<compile_context>
chip_gen: v5e
topology: v5e:2x2
jax: 0.10.0
libtpu: 0.0.40
codegen_flags: <defaults>
</compile_context>

<pallas_src>
import functools

import numpy as np

import jax
import jax.numpy as jnp
from jax.experimental import pallas as pl
from jax.experimental.pallas import tpu as pltpu


# ----------------------------------------------------------------------------
# Fused forward kernel (one grid step == one sample)
# ----------------------------------------------------------------------------
def _fused_forward_kernel(
    x_ref, m1_ref, m2_ref, m3_ref,
    w1_ref, b1_ref, w2_ref, b2_ref, w3_ref, b3_ref,
    wfc_ref, bfc_ref,
    out_ref,
    pbuf1, cbuf1, pbuf2, cbuf2, pbuf3, cbuf3,
    *, H1, W1,
):
    H2, W2 = H1 // 2, W1 // 2          # after pool 1
    H3, W3 = H2 // 2, W2 // 2          # after pool 2
    Hp, Wp = H3 + 2, W3 + 2            # layer-3 pool input, zero padded
    Ho, Wo = Hp // 2, Wp // 2          # pooled layer-3 spatial dims

    def shifted(v, s):
        # out[r] = v[r + s] for every row that is actually consumed.
        # R % 8 == 0  -> circular pltpu.roll (XLU).  Wrapped rows are either
        #   multiplied by a zero border mask (conv taps) or are non-anchor
        #   rows a 2x2 stride-2 pool never reads (H, W even).
        # otherwise   -> exact zero-fill shift (slices + concatenate).
        R, C = v.shape
        amt = (-s) % R
        if amt == 0:
            return v
        if R % 8 == 0:
            return pltpu.roll(v, amt, axis=0)
        if s > 0:
            return jnp.concatenate(
                [v[s:, :], jnp.zeros((s, C), v.dtype)], axis=0)
        return jnp.concatenate(
            [jnp.zeros((-s, C), v.dtype), v[: R + s, :]], axis=0)

    def conv1_relu(v):
        # Cin == 1: 9 VPU broadcast multiply-accumulates (a K<=9 matmul would
        # starve the MXU).
        R = v.shape[0]
        Cout = w1_ref.shape[-1]
        acc = jnp.zeros((R, Cout), jnp.float32)
        k = 0
        for di in (-1, 0, 1):
            for dj in (-1, 0, 1):
                tap = shifted(v, di * W1 + dj) * m1_ref[:, k:k + 1]   # (R, 1)
                acc = acc + tap * w1_ref[k]                           # (1, Cout)
                k += 1
        return jnp.maximum(acc + b1_ref[...], 0.0)

    def conv_relu(v, w_ref, b_ref, mask_ref, W):
        # One MXU matmul per tap, f32 accumulation.
        R = v.shape[0]
        Cout = w_ref.shape[-1]
        acc = jnp.zeros((R, Cout), jnp.float32)
        k = 0
        for di in (-1, 0, 1):
            for dj in (-1, 0, 1):
                tap = shifted(v, di * W + dj) * mask_ref[:, k:k + 1]
                acc = acc + jnp.dot(tap, w_ref[k],
                                    preferred_element_type=jnp.float32)
                k += 1
        return jnp.maximum(acc + b_ref[...], 0.0)

    def maxpool2x2(v, H, W, maxbuf, dstbuf):
        # Two shifted max passes, then stride-2 anchor-row reads stored
        # directly into a compact scratch (no concatenates).
        m = jnp.maximum(v, shifted(v, 1))
        m = jnp.maximum(m, shifted(m, W))
        maxbuf[...] = m
        Hh, Wh = H // 2, W // 2
        for p in range(Hh):
            dstbuf[pl.ds(p * Wh, Wh), :] = \
                maxbuf[pl.ds(2 * p * W, Wh, stride=2), :]
        return dstbuf[...]

    # ---- layer 1: conv(1->32) + ReLU + pool 2x2 --------------------------
    y = conv1_relu(x_ref[...])                        # (H1*W1, 32)
    y = maxpool2x2(y, H1, W1, pbuf1, cbuf1)           # (H2*W2, 32)

    # ---- layer 2: conv(32->64) + ReLU + pool 2x2 -------------------------
    y = conv_relu(y, w2_ref, b2_ref, m2_ref, W2)      # (H2*W2, 64)
    y = maxpool2x2(y, H2, W2, pbuf2, cbuf2)           # (H3*W3, 64)

    # ---- layer 3: conv(64->128) + ReLU + pool 2x2 (padding=1) ------------
    y = conv_relu(y, w3_ref, b3_ref, m3_ref, W3)      # (H3*W3, 128)
    C3 = y.shape[1]
    # Zero only the padding rows of the padded buffer.  Zero padding is
    # equivalent to -inf padding because y >= 0 (post-ReLU) and every pool
    # window contains at least one real pixel.
    zpad = jnp.zeros((Wp + 1, C3), jnp.float32)
    pbuf3[pl.ds(0, Wp + 1), :] = zpad                          # top band + left pad
    for i in range(H3 - 1):
        pbuf3[pl.ds((i + 1) * Wp + W3 + 1, 2), :] = zpad[:2, :]  # right+left pads
    pbuf3[pl.ds(H3 * Wp + W3 + 1, Wp + 1), :] = zpad           # right pad + bottom
    for i in range(H3):                                        # interior rows
        pbuf3[pl.ds((i + 1) * Wp + 1, W3), :] = y[i * W3:(i + 1) * W3, :]
    yp = pbuf3[...]
    m = jnp.maximum(yp, shifted(yp, 1))
    m = jnp.maximum(m, shifted(m, Wp))
    pbuf3[...] = m
    for p in range(Ho):
        cbuf3[pl.ds(p * Wo, Wo), :] = pbuf3[pl.ds(2 * p * Wp, Wo, stride=2), :]
    pooled = cbuf3[...]                                        # (Ho*Wo, 128)

    # ---- fused fc1 @ fc2 (composed host-side; torch view(N,-1) row order
    #      already folded into wfc's (hw, c) layout) ------------------------
    prod = pooled * wfc_ref[...]                               # (HW, 128)
    t = jnp.sum(prod, axis=1, keepdims=True)                   # lane reduce
    t = jnp.sum(t, axis=0, keepdims=True) + bfc_ref[...]       # (1, 1)
    out_ref[...] = jnp.broadcast_to(jnp.reshape(t, (1, 1, 1)), (1, 1, 128))


# ----------------------------------------------------------------------------
# Host-side glue
# ----------------------------------------------------------------------------
def _conv_border_masks(H, W):
    """(H*W, 9) float {0,1}: tap k=(di,dj) valid iff the neighbour is in-bounds."""
    r = np.arange(H * W)
    i, j = r // W, r % W
    cols = []
    for di in (-1, 0, 1):
        for dj in (-1, 0, 1):
            ok = (i + di >= 0) & (i + di < H) & (j + dj >= 0) & (j + dj < W)
            cols.append(ok.astype(np.float32))
    return jnp.asarray(np.stack(cols, axis=1))


def prepare_params(params, H1, W1):
    """One-time host-side prep: conv weights to tap-major layout, border masks,
    and the exact f32 composition of fc1 and fc2 (forward() has no ReLU /
    active dropout between them, so out = a @ (W1 @ W2) + (b1 @ W2 + b2))."""
    H2, W2 = H1 // 2, W1 // 2
    H3, W3 = H2 // 2, W2 // 2
    Ho, Wo = (H3 + 2) // 2, (W3 + 2) // 2
    HW = Ho * Wo
    C3 = params["w3"].shape[-1]                       # 128
    assert HW * C3 == params["fc1_w"].shape[0]        # 2*6*128 = 1536

    f32 = jnp.float32
    # fc1_w rows are in torch view(N,-1) order (c*HW + hw).  Compose with fc2
    # in f32, then permute once to the kernel's pooled (hw, c) layout.
    w_comb = params["fc1_w"].astype(f32) @ params["fc2_w"].astype(f32)   # (HW*C3, 1)
    b_comb = (params["fc1_b"].astype(f32) @ params["fc2_w"].astype(f32)
              + params["fc2_b"].astype(f32))                             # (1,)
    wfc = jnp.transpose(w_comb.reshape(C3, HW))                          # (HW, C3)

    return {
        "m1": _conv_border_masks(H1, W1),
        "m2": _conv_border_masks(H2, W2),
        "m3": _conv_border_masks(H3, W3),
        "w1": params["w1"].reshape(9, 1, 32),   "b1": params["b1"].reshape(1, 32),
        "w2": params["w2"].reshape(9, 32, 64),  "b2": params["b2"].reshape(1, 64),
        "w3": params["w3"].reshape(9, 64, 128), "b3": params["b3"].reshape(1, 128),
        "wfc": wfc, "bfc": b_comb.reshape(1, 1),
    }


def cnn_landmark_forward(x_nchw, prepped):
    N, Cin, H1, W1 = x_nchw.shape
    assert Cin == 1 and H1 % 4 == 0 and W1 % 4 == 0
    H2, W2 = H1 // 2, W1 // 2
    H3, W3 = H2 // 2, W2 // 2
    # The roll-based pooling relies on even dims so anchor rows never read
    # across an image boundary; the fc1 geometry already implies this.
    assert H3 % 2 == 0 and W3 % 2 == 0
    Hp, Wp = H3 + 2, W3 + 2
    Ho, Wo = Hp // 2, Wp // 2
    HW = Ho * Wo

    x_flat = x_nchw.astype(jnp.float32).reshape(N * H1 * W1, 1)  # Cin==1: NCHW==NHWC

    def full_spec(shape):
        nd = len(shape)
        return pl.BlockSpec(shape, lambda n, nd=nd: (0,) * nd)

    kernel = functools.partial(_fused_forward_kernel, H1=H1, W1=W1)

    out = pl.pallas_call(
        kernel,
        grid=(N,),                                    # one sample per grid step
        out_shape=jax.ShapeDtypeStruct((N, 1, 128), jnp.float32),
        in_specs=[
            pl.BlockSpec((H1 * W1, 1), lambda n: (n, 0)),    # x: per-sample block
            full_spec((H1 * W1, 9)),                         # border masks
            full_spec((H2 * W2, 9)),
            full_spec((H3 * W3, 9)),
            full_spec((9, 1, 32)),   full_spec((1, 32)),     # conv1 w/b
            full_spec((9, 32, 64)),  full_spec((1, 64)),     # conv2 w/b
            full_spec((9, 64, 128)), full_spec((1, 128)),    # conv3 w/b
            full_spec((HW, 128)),    full_spec((1, 1)),      # fused fc1@fc2 w/b
        ],
        out_specs=pl.BlockSpec((1, 1, 128), lambda n: (n, 0, 0)),
        scratch_shapes=[
            pltpu.VMEM((H1 * W1, 32), jnp.float32),   # layer-1 pool max buffer
            pltpu.VMEM((H2 * W2, 32), jnp.float32),   # layer-1 pooled (compact)
            pltpu.VMEM((H2 * W2, 64), jnp.float32),   # layer-2 pool max buffer
            pltpu.VMEM((H3 * W3, 64), jnp.float32),   # layer-2 pooled (compact)
            pltpu.VMEM((Hp * Wp, 128), jnp.float32),  # layer-3 padded pool buffer
            pltpu.VMEM((HW, 128), jnp.float32),       # layer-3 pooled (compact)
        ],
        compiler_params=pltpu.CompilerParams(
            dimension_semantics=("parallel",)),       # v7x: split batch over TCs
    )(x_flat, prepped["m1"], prepped["m2"], prepped["m3"],
      prepped["w1"], prepped["b1"], prepped["w2"], prepped["b2"],
      prepped["w3"], prepped["b3"], prepped["wfc"], prepped["bfc"])

    return out[:, 0, :1]                              # (N, 1)


# ----------------------------------------------------------------------------
# Parameter init (matches the torch module's layer shapes / init style)
# ----------------------------------------------------------------------------
def init_params(key):
    ks = jax.random.split(key, 8)

    def conv_w(k, cin, cout):
        bound = (1.0 / (9 * cin)) ** 0.5
        return jax.random.uniform(k, (3, 3, cin, cout), jnp.float32, -bound, bound)

    def conv_b(k, cin, cout):
        bound = (1.0 / (9 * cin)) ** 0.5
        return jax.random.uniform(k, (cout,), jnp.float32, -bound, bound)

    def xavier(k, fin, fout):
        bound = (6.0 / (fin + fout)) ** 0.5
        return jax.random.uniform(k, (fin, fout), jnp.float32, -bound, bound)

    return {
        "w1": conv_w(ks[0], 1, 32),   "b1": conv_b(ks[1], 1, 32),
        "w2": conv_w(ks[2], 32, 64),  "b2": conv_b(ks[3], 32, 64),
        "w3": conv_w(ks[4], 64, 128), "b3": conv_b(ks[5], 64, 128),
        # (in_features, out_features); rows in torch view(N,-1) order (c*12+hw)
        "fc1_w": xavier(ks[6], 2 * 6 * 128, 625),
        "fc1_b": jnp.zeros((625,), jnp.float32),
        "fc2_w": xavier(ks[7], 625, 1),
        "fc2_b": jnp.zeros((1,), jnp.float32),
    }


if __name__ == "__main__":
    key = jax.random.PRNGKey(0)
    pkey, xkey = jax.random.split(key)
    params = init_params(pkey)
    # Spatial size (8, 40): after the three pools the flatten dimension is
    # exactly 2*6*128 = 1536, as fc1 requires.
    x = jax.random.normal(xkey, (2, 1, 8, 40), dtype=jnp.float32)
    prepped = prepare_params(params, H1=8, W1=40)     # one-time weight prep
    fwd = jax.jit(cnn_landmark_forward)
    out = jax.block_until_ready(fwd(x, prepped))
    assert out.shape == (2, 1), out.shape
    assert bool(jnp.all(jnp.isfinite(out)))
    print("KERNEL_OK")
</pallas_src>

<mosaic_0001>
module attributes {stable_mosaic.version = 11 : i64} {
  func.func @_fused_forward_kernel(%arg0: i32, %arg1: memref<320x1xf32, #tpu.memory_space<vmem>>, %arg2: memref<320x9xf32, #tpu.memory_space<vmem>>, %arg3: memref<80x9xf32, #tpu.memory_space<vmem>>, %arg4: memref<20x9xf32, #tpu.memory_space<vmem>>, %arg5: memref<9x1x32xf32, #tpu.memory_space<vmem>>, %arg6: memref<1x32xf32, #tpu.memory_space<vmem>>, %arg7: memref<9x32x64xf32, #tpu.memory_space<vmem>>, %arg8: memref<1x64xf32, #tpu.memory_space<vmem>>, %arg9: memref<9x64x128xf32, #tpu.memory_space<vmem>>, %arg10: memref<1x128xf32, #tpu.memory_space<vmem>>, %arg11: memref<12x128xf32, #tpu.memory_space<vmem>>, %arg12: memref<1x1xf32, #tpu.memory_space<vmem>>, %arg13: memref<1x1x128xf32, #tpu.memory_space<vmem>>, %arg14: memref<320x32xf32, #tpu.memory_space<vmem>>, %arg15: memref<80x32xf32, #tpu.memory_space<vmem>>, %arg16: memref<80x64xf32, #tpu.memory_space<vmem>>, %arg17: memref<20x64xf32, #tpu.memory_space<vmem>>, %arg18: memref<48x128xf32, #tpu.memory_space<vmem>>, %arg19: memref<12x128xf32, #tpu.memory_space<vmem>>) attributes {dimension_semantics = [#tpu.dimension_semantics<parallel>], iteration_bounds = array<i64: 2>, scalar_prefetch = 0 : i64, scratch_operands = 6 : i64, tpu.core_type = #tpu.core_type<tc>, window_params = [{transform_indices = @transform_0, window_bounds = array<i64: 320, 1>}, {pipeline_mode = #tpu.pipeline_mode<synchronous>, transform_indices = @transform_1, window_bounds = array<i64: 320, 9>}, {pipeline_mode = #tpu.pipeline_mode<synchronous>, transform_indices = @transform_2, window_bounds = array<i64: 80, 9>}, {pipeline_mode = #tpu.pipeline_mode<synchronous>, transform_indices = @transform_3, window_bounds = array<i64: 20, 9>}, {pipeline_mode = #tpu.pipeline_mode<synchronous>, transform_indices = @transform_4, window_bounds = array<i64: 9, 1, 32>}, {pipeline_mode = #tpu.pipeline_mode<synchronous>, transform_indices = @transform_5, window_bounds = array<i64: 1, 32>}, {pipeline_mode = #tpu.pipeline_mode<synchronous>, transform_indices = @transform_6, window_bounds = array<i64: 9, 32, 64>}, {pipeline_mode = #tpu.pipeline_mode<synchronous>, transform_indices = @transform_7, window_bounds = array<i64: 1, 64>}, {pipeline_mode = #tpu.pipeline_mode<synchronous>, transform_indices = @transform_8, window_bounds = array<i64: 9, 64, 128>}, {pipeline_mode = #tpu.pipeline_mode<synchronous>, transform_indices = @transform_9, window_bounds = array<i64: 1, 128>}, {pipeline_mode = #tpu.pipeline_mode<synchronous>, transform_indices = @transform_10, window_bounds = array<i64: 12, 128>}, {pipeline_mode = #tpu.pipeline_mode<synchronous>, transform_indices = @transform_11, window_bounds = array<i64: 1, 1>}, {transform_indices = @transform_12, window_bounds = array<i64: 1, 1, 128>}]} {
    %c0 = arith.constant 0 : index
    %c0_0 = arith.constant 0 : index
    %0 = vector.load %arg1[%c0, %c0_0] : memref<320x1xf32, #tpu.memory_space<vmem>>, vector<320x1xf32>
    %cst = arith.constant 0.000000e+00 : f32
    %1 = vector.broadcast %cst : f32 to vector<320x32xf32>
    %c41_i32 = arith.constant 41 : i32
    %2 = tpu.dynamic_rotate %0 by %c41_i32 dim 0 : vector<320x1xf32>, i32 -> vector<320x1xf32>
    %c0_1 = arith.constant 0 : index
    %c0_2 = arith.constant 0 : index
    %3 = vector.load %arg2[%c0_1, %c0_2] : memref<320x9xf32, #tpu.memory_space<vmem>>, vector<320x1xf32>
    %4 = arith.mulf %2, %3 : vector<320x1xf32>
    %c0_3 = arith.constant 0 : index
    %c0_4 = arith.constant 0 : index
    %c0_5 = arith.constant 0 : index
    %5 = vector.load %arg5[%c0_3, %c0_4, %c0_5] : memref<9x1x32xf32, #tpu.memory_space<vmem>>, vector<1x1x32xf32>
    %6 = vector.shape_cast %5 : vector<1x1x32xf32> to vector<1x32xf32>
    %7 = vector.broadcast %4 : vector<320x1xf32> to vector<320x32xf32>
    %8 = vector.broadcast %6 : vector<1x32xf32> to vector<320x32xf32>
    %9 = arith.mulf %7, %8 : vector<320x32xf32>
    %10 = arith.addf %1, %9 : vector<320x32xf32>
    %c40_i32 = arith.constant 40 : i32
    %11 = tpu.dynamic_rotate %0 by %c40_i32 dim 0 : vector<320x1xf32>, i32 -> vector<320x1xf32>
    %c0_6 = arith.constant 0 : index
    %c1 = arith.constant 1 : index
    %12 = vector.load %arg2[%c0_6, %c1] : memref<320x9xf32, #tpu.memory_space<vmem>>, vector<320x1xf32>
    %13 = arith.mulf %11, %12 : vector<320x1xf32>
    %c1_7 = arith.constant 1 : index
    %c0_8 = arith.constant 0 : index
    %c0_9 = arith.constant 0 : index
    %14 = vector.load %arg5[%c1_7, %c0_8, %c0_9] : memref<9x1x32xf32, #tpu.memory_space<vmem>>, vector<1x1x32xf32>
    %15 = vector.shape_cast %14 : vector<1x1x32xf32> to vector<1x32xf32>
    %16 = vector.broadcast %13 : vector<320x1xf32> to vector<320x32xf32>
    %17 = vector.broadcast %15 : vector<1x32xf32> to vector<320x32xf32>
    %18 = arith.mulf %16, %17 : vector<320x32xf32>
    %19 = arith.addf %10, %18 : vector<320x32xf32>
    %c39_i32 = arith.constant 39 : i32
    %20 = tpu.dynamic_rotate %0 by %c39_i32 dim 0 : vector<320x1xf32>, i32 -> vector<320x1xf32>
    %c0_10 = arith.constant 0 : index
    %c2 = arith.constant 2 : index
    %21 = vector.load %arg2[%c0_10, %c2] : memref<320x9xf32, #tpu.memory_space<vmem>>, vector<320x1xf32>
    %22 = arith.mulf %20, %21 : vector<320x1xf32>
    %c2_11 = arith.constant 2 : index
    %c0_12 = arith.constant 0 : index
    %c0_13 = arith.constant 0 : index
    %23 = vector.load %arg5[%c2_11, %c0_12, %c0_13] : memref<9x1x32xf32, #tpu.memory_space<vmem>>, vector<1x1x32xf32>
    %24 = vector.shape_cast %23 : vector<1x1x32xf32> to vector<1x32xf32>
    %25 = vector.broadcast %22 : vector<320x1xf32> to vector<320x32xf32>
    %26 = vector.broadcast %24 : vector<1x32xf32> to vector<320x32xf32>
    %27 = arith.mulf %25, %26 : vector<320x32xf32>
    %28 = arith.addf %19, %27 : vector<320x32xf32>
    %c1_i32 = arith.constant 1 : i32
    %29 = tpu.dynamic_rotate %0 by %c1_i32 dim 0 : vector<320x1xf32>, i32 -> vector<320x1xf32>
    %c0_14 = arith.constant 0 : index
    %c3 = arith.constant 3 : index
    %30 = vector.load %arg2[%c0_14, %c3] : memref<320x9xf32, #tpu.memory_space<vmem>>, vector<320x1xf32>
    %31 = arith.mulf %29, %30 : vector<320x1xf32>
    %c3_15 = arith.constant 3 : index
    %c0_16 = arith.constant 0 : index
    %c0_17 = arith.constant 0 : index
    %32 = vector.load %arg5[%c3_15, %c0_16, %c0_17] : memref<9x1x32xf32, #tpu.memory_space<vmem>>, vector<1x1x32xf32>
    %33 = vector.shape_cast %32 : vector<1x1x32xf32> to vector<1x32xf32>
    %34 = vector.broadcast %31 : vector<320x1xf32> to vector<320x32xf32>
    %35 = vector.broadcast %33 : vector<1x32xf32> to vector<320x32xf32>
    %36 = arith.mulf %34, %35 : vector<320x32xf32>
    %37 = arith.addf %28, %36 : vector<320x32xf32>
    %c0_18 = arith.constant 0 : index
    %c4 = arith.constant 4 : index
    %38 = vector.load %arg2[%c0_18, %c4] : memref<320x9xf32, #tpu.memory_space<vmem>>, vector<320x1xf32>
    %39 = arith.mulf %0, %38 : vector<320x1xf32>
    %c4_19 = arith.constant 4 : index
    %c0_20 = arith.constant 0 : index
    %c0_21 = arith.constant 0 : index
    %40 = vector.load %arg5[%c4_19, %c0_20, %c0_21] : memref<9x1x32xf32, #tpu.memory_space<vmem>>, vector<1x1x32xf32>
    %41 = vector.shape_cast %40 : vector<1x1x32xf32> to vector<1x32xf32>
    %42 = vector.broadcast %39 : vector<320x1xf32> to vector<320x32xf32>
    %43 = vector.broadcast %41 : vector<1x32xf32> to vector<320x32xf32>
    %44 = arith.mulf %42, %43 : vector<320x32xf32>
    %45 = arith.addf %37, %44 : vector<320x32xf32>
    %c319_i32 = arith.constant 319 : i32
    %46 = tpu.dynamic_rotate %0 by %c319_i32 dim 0 : vector<320x1xf32>, i32 -> vector<320x1xf32>
    %c0_22 = arith.constant 0 : index
    %c5 = arith.constant 5 : index
    %47 = vector.load %arg2[%c0_22, %c5] : memref<320x9xf32, #tpu.memory_space<vmem>>, vector<320x1xf32>
    %48 = arith.mulf %46, %47 : vector<320x1xf32>
    %c5_23 = arith.constant 5 : index
    %c0_24 = arith.constant 0 : index
    %c0_25 = arith.constant 0 : index
    %49 = vector.load %arg5[%c5_23, %c0_24, %c0_25] : memref<9x1x32xf32, #tpu.memory_space<vmem>>, vector<1x1x32xf32>
    %50 = vector.shape_cast %49 : vector<1x1x32xf32> to vector<1x32xf32>
    %51 = vector.broadcast %48 : vector<320x1xf32> to vector<320x32xf32>
    %52 = vector.broadcast %50 : vector<1x32xf32> to vector<320x32xf32>
    %53 = arith.mulf %51, %52 : vector<320x32xf32>
    %54 = arith.addf %45, %53 : vector<320x32xf32>
    %c281_i32 = arith.constant 281 : i32
    %55 = tpu.dynamic_rotate %0 by %c281_i32 dim 0 : vector<320x1xf32>, i32 -> vector<320x1xf32>
    %c0_26 = arith.constant 0 : index
    %c6 = arith.constant 6 : index
    %56 = vector.load %arg2[%c0_26, %c6] : memref<320x9xf32, #tpu.memory_space<vmem>>, vector<320x1xf32>
    %57 = arith.mulf %55, %56 : vector<320x1xf32>
    %c6_27 = arith.constant 6 : index
    %c0_28 = arith.constant 0 : index
    %c0_29 = arith.constant 0 : index
    %58 = vector.load %arg5[%c6_27, %c0_28, %c0_29] : memref<9x1x32xf32, #tpu.memory_space<vmem>>, vector<1x1x32xf32>
    %59 = vector.shape_cast %58 : vector<1x1x32xf32> to vector<1x32xf32>
    %60 = vector.broadcast %57 : vector<320x1xf32> to vector<320x32xf32>
    %61 = vector.broadcast %59 : vector<1x32xf32> to vector<320x32xf32>
    %62 = arith.mulf %60, %61 : vector<320x32xf32>
    %63 = arith.addf %54, %62 : vector<320x32xf32>
    %c280_i32 = arith.constant 280 : i32
    %64 = tpu.dynamic_rotate %0 by %c280_i32 dim 0 : vector<320x1xf32>, i32 -> vector<320x1xf32>
    %c0_30 = arith.constant 0 : index
    %c7 = arith.constant 7 : index
    %65 = vector.load %arg2[%c0_30, %c7] : memref<320x9xf32, #tpu.memory_space<vmem>>, vector<320x1xf32>
    %66 = arith.mulf %64, %65 : vector<320x1xf32>
    %c7_31 = arith.constant 7 : index
    %c0_32 = arith.constant 0 : index
    %c0_33 = arith.constant 0 : index
    %67 = vector.load %arg5[%c7_31, %c0_32, %c0_33] : memref<9x1x32xf32, #tpu.memory_space<vmem>>, vector<1x1x32xf32>
    %68 = vector.shape_cast %67 : vector<1x1x32xf32> to vector<1x32xf32>
    %69 = vector.broadcast %66 : vector<320x1xf32> to vector<320x32xf32>
    %70 = vector.broadcast %68 : vector<1x32xf32> to vector<320x32xf32>
    %71 = arith.mulf %69, %70 : vector<320x32xf32>
    %72 = arith.addf %63, %71 : vector<320x32xf32>
    %c279_i32 = arith.constant 279 : i32
    %73 = tpu.dynamic_rotate %0 by %c279_i32 dim 0 : vector<320x1xf32>, i32 -> vector<320x1xf32>
    %c0_34 = arith.constant 0 : index
    %c8 = arith.constant 8 : index
    %74 = vector.load %arg2[%c0_34, %c8] : memref<320x9xf32, #tpu.memory_space<vmem>>, vector<320x1xf32>
    %75 = arith.mulf %73, %74 : vector<320x1xf32>
    %c8_35 = arith.constant 8 : index
    %c0_36 = arith.constant 0 : index
    %c0_37 = arith.constant 0 : index
    %76 = vector.load %arg5[%c8_35, %c0_36, %c0_37] : memref<9x1x32xf32, #tpu.memory_space<vmem>>, vector<1x1x32xf32>
    %77 = vector.shape_cast %76 : vector<1x1x32xf32> to vector<1x32xf32>
    %78 = vector.broadcast %75 : vector<320x1xf32> to vector<320x32xf32>
    %79 = vector.broadcast %77 : vector<1x32xf32> to vector<320x32xf32>
    %80 = arith.mulf %78, %79 : vector<320x32xf32>
    %81 = arith.addf %72, %80 : vector<320x32xf32>
    %c0_38 = arith.constant 0 : index
    %c0_39 = arith.constant 0 : index
    %82 = vector.load %arg6[%c0_38, %c0_39] : memref<1x32xf32, #tpu.memory_space<vmem>>, vector<1x32xf32>
    %83 = vector.broadcast %82 : vector<1x32xf32> to vector<320x32xf32>
    %84 = arith.addf %81, %83 : vector<320x32xf32>
    %cst_40 = arith.constant 0.000000e+00 : f32
    %85 = vector.broadcast %cst_40 : f32 to vector<320x32xf32>
    %86 = arith.maximumf %84, %85 : vector<320x32xf32>
    %c319_i32_41 = arith.constant 319 : i32
    %87 = tpu.dynamic_rotate %86 by %c319_i32_41 dim 0 : vector<320x32xf32>, i32 -> vector<320x32xf32>
    %88 = arith.maximumf %86, %87 : vector<320x32xf32>
    %c280_i32_42 = arith.constant 280 : i32
    %89 = tpu.dynamic_rotate %88 by %c280_i32_42 dim 0 : vector<320x32xf32>, i32 -> vector<320x32xf32>
    %90 = arith.maximumf %88, %89 : vector<320x32xf32>
    %c0_43 = arith.constant 0 : index
    %c0_44 = arith.constant 0 : index
    %91 = vector.load %arg14[%c0_43, %c0_44] : memref<320x32xf32, #tpu.memory_space<vmem>>, vector<320x32xf32>
    tpu.vector_store %arg14[%c0_43, %c0_44], %90 {strides = array<i32>} : memref<320x32xf32, #tpu.memory_space<vmem>>, vector<320x32xf32>,
    %c0_45 = arith.constant 0 : index
    %c0_46 = arith.constant 0 : index
    %92 = tpu.strided_load %arg14[%c0_45, %c0_46] {strides = array<i32: 2, 1>} : memref<320x32xf32, #tpu.memory_space<vmem>>, vector<20x32xf32>
    %c0_47 = arith.constant 0 : index
    %c0_48 = arith.constant 0 : index
    %93 = vector.load %arg15[%c0_47, %c0_48] : memref<80x32xf32, #tpu.memory_space<vmem>>, vector<20x32xf32>
    tpu.vector_store %arg15[%c0_47, %c0_48], %92 {strides = array<i32>} : memref<80x32xf32, #tpu.memory_space<vmem>>, vector<20x32xf32>,
    %c80 = arith.constant 80 : index
    %c0_49 = arith.constant 0 : index
    %94 = tpu.strided_load %arg14[%c80, %c0_49] {strides = array<i32: 2, 1>} : memref<320x32xf32, #tpu.memory_space<vmem>>, vector<20x32xf32>
    %c20 = arith.constant 20 : index
    %c0_50 = arith.constant 0 : index
    %95 = vector.load %arg15[%c20, %c0_50] : memref<80x32xf32, #tpu.memory_space<vmem>>, vector<20x32xf32>
    tpu.vector_store %arg15[%c20, %c0_50], %94 {strides = array<i32>} : memref<80x32xf32, #tpu.memory_space<vmem>>, vector<20x32xf32>,
    %c160 = arith.constant 160 : index
    %c0_51 = arith.constant 0 : index
    %96 = tpu.strided_load %arg14[%c160, %c0_51] {strides = array<i32: 2, 1>} : memref<320x32xf32, #tpu.memory_space<vmem>>, vector<20x32xf32>
    %c40 = arith.constant 40 : index
    %c0_52 = arith.constant 0 : index
    %97 = vector.load %arg15[%c40, %c0_52] : memref<80x32xf32, #tpu.memory_space<vmem>>, vector<20x32xf32>
    tpu.vector_store %arg15[%c40, %c0_52], %96 {strides = array<i32>} : memref<80x32xf32, #tpu.memory_space<vmem>>, vector<20x32xf32>,
    %c240 = arith.constant 240 : index
    %c0_53 = arith.constant 0 : index
    %98 = tpu.strided_load %arg14[%c240, %c0_53] {strides = array<i32: 2, 1>} : memref<320x32xf32, #tpu.memory_space<vmem>>, vector<20x32xf32>
    %c60 = arith.constant 60 : index
    %c0_54 = arith.constant 0 : index
    %99 = vector.load %arg15[%c60, %c0_54] : memref<80x32xf32, #tpu.memory_space<vmem>>, vector<20x32xf32>
    tpu.vector_store %arg15[%c60, %c0_54], %98 {strides = array<i32>} : memref<80x32xf32, #tpu.memory_space<vmem>>, vector<20x32xf32>,
    %c0_55 = arith.constant 0 : index
    %c0_56 = arith.constant 0 : index
    %100 = vector.load %arg15[%c0_55, %c0_56] : memref<80x32xf32, #tpu.memory_space<vmem>>, vector<80x32xf32>
    %cst_57 = arith.constant 0.000000e+00 : f32
    %101 = vector.broadcast %cst_57 : f32 to vector<80x64xf32>
    %c21_i32 = arith.constant 21 : i32
    %102 = tpu.dynamic_rotate %100 by %c21_i32 dim 0 : vector<80x32xf32>, i32 -> vector<80x32xf32>
    %c0_58 = arith.constant 0 : index
    %c0_59 = arith.constant 0 : index
    %103 = vector.load %arg3[%c0_58, %c0_59] : memref<80x9xf32, #tpu.memory_space<vmem>>, vector<80x1xf32>
    %104 = vector.broadcast %103 : vector<80x1xf32> to vector<80x32xf32>
    %105 = arith.mulf %102, %104 : vector<80x32xf32>
    %c0_60 = arith.constant 0 : index
    %c0_61 = arith.constant 0 : index
    %c0_62 = arith.constant 0 : index
    %106 = vector.load %arg7[%c0_60, %c0_61, %c0_62] : memref<9x32x64xf32, #tpu.memory_space<vmem>>, vector<1x32x64xf32>
    %107 = vector.shape_cast %106 : vector<1x32x64xf32> to vector<32x64xf32>
    %cst_63 = arith.constant dense<0.000000e+00> : vector<80x64xf32>
    %108 = tpu.matmul %105, %107, %cst_63 {dimension_numbers = #tpu.dot_dimension_numbers<[1], [0], [0], [1], [0, 0, 1, 1], [], []>} : vector<80x32xf32>, vector<32x64xf32>, vector<80x64xf32> -> vector<80x64xf32>
    %109 = arith.addf %101, %108 : vector<80x64xf32>
    %c20_i32 = arith.constant 20 : i32
    %110 = tpu.dynamic_rotate %100 by %c20_i32 dim 0 : vector<80x32xf32>, i32 -> vector<80x32xf32>
    %c0_64 = arith.constant 0 : index
    %c1_65 = arith.constant 1 : index
    %111 = vector.load %arg3[%c0_64, %c1_65] : memref<80x9xf32, #tpu.memory_space<vmem>>, vector<80x1xf32>
    %112 = vector.broadcast %111 : vector<80x1xf32> to vector<80x32xf32>
    %113 = arith.mulf %110, %112 : vector<80x32xf32>
    %c1_66 = arith.constant 1 : index
    %c0_67 = arith.constant 0 : index
    %c0_68 = arith.constant 0 : index
    %114 = vector.load %arg7[%c1_66, %c0_67, %c0_68] : memref<9x32x64xf32, #tpu.memory_space<vmem>>, vector<1x32x64xf32>
    %115 = vector.shape_cast %114 : vector<1x32x64xf32> to vector<32x64xf32>
    %cst_69 = arith.constant dense<0.000000e+00> : vector<80x64xf32>
    %116 = tpu.matmul %113, %115, %cst_69 {dimension_numbers = #tpu.dot_dimension_numbers<[1], [0], [0], [1], [0, 0, 1, 1], [], []>} : vector<80x32xf32>, vector<32x64xf32>, vector<80x64xf32> -> vector<80x64xf32>
    %117 = arith.addf %109, %116 : vector<80x64xf32>
    %c19_i32 = arith.constant 19 : i32
    %118 = tpu.dynamic_rotate %100 by %c19_i32 dim 0 : vector<80x32xf32>, i32 -> vector<80x32xf32>
    %c0_70 = arith.constant 0 : index
    %c2_71 = arith.constant 2 : index
    %119 = vector.load %arg3[%c0_70, %c2_71] : memref<80x9xf32, #tpu.memory_space<vmem>>, vector<80x1xf32>
    %120 = vector.broadcast %119 : vector<80x1xf32> to vector<80x32xf32>
    %121 = arith.mulf %118, %120 : vector<80x32xf32>
    %c2_72 = arith.constant 2 : index
    %c0_73 = arith.constant 0 : index
    %c0_74 = arith.constant 0 : index
    %122 = vector.load %arg7[%c2_72, %c0_73, %c0_74] : memref<9x32x64xf32, #tpu.memory_space<vmem>>, vector<1x32x64xf32>
    %123 = vector.shape_cast %122 : vector<1x32x64xf32> to vector<32x64xf32>
    %cst_75 = arith.constant dense<0.000000e+00> : vector<80x64xf32>
    %124 = tpu.matmul %121, %123, %cst_75 {dimension_numbers = #tpu.dot_dimension_numbers<[1], [0], [0], [1], [0, 0, 1, 1], [], []>} : vector<80x32xf32>, vector<32x64xf32>, vector<80x64xf32> -> vector<80x64xf32>
    %125 = arith.addf %117, %124 : vector<80x64xf32>
    %c1_i32_76 = arith.constant 1 : i32
    %126 = tpu.dynamic_rotate %100 by %c1_i32_76 dim 0 : vector<80x32xf32>, i32 -> vector<80x32xf32>
    %c0_77 = arith.constant 0 : index
    %c3_78 = arith.constant 3 : index
    %127 = vector.load %arg3[%c0_77, %c3_78] : memref<80x9xf32, #tpu.memory_space<vmem>>, vector<80x1xf32>
    %128 = vector.broadcast %127 : vector<80x1xf32> to vector<80x32xf32>
    %129 = arith.mulf %126, %128 : vector<80x32xf32>
    %c3_79 = arith.constant 3 : index
    %c0_80 = arith.constant 0 : index
    %c0_81 = arith.constant 0 : index
    %130 = vector.load %arg7[%c3_79, %c0_80, %c0_81] : memref<9x32x64xf32, #tpu.memory_space<vmem>>, vector<1x32x64xf32>
    %131 = vector.shape_cast %130 : vector<1x32x64xf32> to vector<32x64xf32>
    %cst_82 = arith.constant dense<0.000000e+00> : vector<80x64xf32>
    %132 = tpu.matmul %129, %131, %cst_82 {dimension_numbers = #tpu.dot_dimension_numbers<[1], [0], [0], [1], [0, 0, 1, 1], [], []>} : vector<80x32xf32>, vector<32x64xf32>, vector<80x64xf32> -> vector<80x64xf32>
    %133 = arith.addf %125, %132 : vector<80x64xf32>
    %c0_83 = arith.constant 0 : index
    %c4_84 = arith.constant 4 : index
    %134 = vector.load %arg3[%c0_83, %c4_84] : memref<80x9xf32, #tpu.memory_space<vmem>>, vector<80x1xf32>
    %135 = vector.broadcast %134 : vector<80x1xf32> to vector<80x32xf32>
    %136 = arith.mulf %100, %135 : vector<80x32xf32>
    %c4_85 = arith.constant 4 : index
    %c0_86 = arith.constant 0 : index
    %c0_87 = arith.constant 0 : index
    %137 = vector.load %arg7[%c4_85, %c0_86, %c0_87] : memref<9x32x64xf32, #tpu.memory_space<vmem>>, vector<1x32x64xf32>
    %138 = vector.shape_cast %137 : vector<1x32x64xf32> to vector<32x64xf32>
    %cst_88 = arith.constant dense<0.000000e+00> : vector<80x64xf32>
    %139 = tpu.matmul %136, %138, %cst_88 {dimension_numbers = #tpu.dot_dimension_numbers<[1], [0], [0], [1], [0, 0, 1, 1], [], []>} : vector<80x32xf32>, vector<32x64xf32>, vector<80x64xf32> -> vector<80x64xf32>
    %140 = arith.addf %133, %139 : vector<80x64xf32>
    %c79_i32 = arith.constant 79 : i32
    %141 = tpu.dynamic_rotate %100 by %c79_i32 dim 0 : vector<80x32xf32>, i32 -> vector<80x32xf32>
    %c0_89 = arith.constant 0 : index
    %c5_90 = arith.constant 5 : index
    %142 = vector.load %arg3[%c0_89, %c5_90] : memref<80x9xf32, #tpu.memory_space<vmem>>, vector<80x1xf32>
    %143 = vector.broadcast %142 : vector<80x1xf32> to vector<80x32xf32>
    %144 = arith.mulf %141, %143 : vector<80x32xf32>
    %c5_91 = arith.constant 5 : index
    %c0_92 = arith.constant 0 : index
    %c0_93 = arith.constant 0 : index
    %145 = vector.load %arg7[%c5_91, %c0_92, %c0_93] : memref<9x32x64xf32, #tpu.memory_space<vmem>>, vector<1x32x64xf32>
    %146 = vector.shape_cast %145 : vector<1x32x64xf32> to vector<32x64xf32>
    %cst_94 = arith.constant dense<0.000000e+00> : vector<80x64xf32>
    %147 = tpu.matmul %144, %146, %cst_94 {dimension_numbers = #tpu.dot_dimension_numbers<[1], [0], [0], [1], [0, 0, 1, 1], [], []>} : vector<80x32xf32>, vector<32x64xf32>, vector<80x64xf32> -> vector<80x64xf32>
    %148 = arith.addf %140, %147 : vector<80x64xf32>
    %c61_i32 = arith.constant 61 : i32
    %149 = tpu.dynamic_rotate %100 by %c61_i32 dim 0 : vector<80x32xf32>, i32 -> vector<80x32xf32>
    %c0_95 = arith.constant 0 : index
    %c6_96 = arith.constant 6 : index
    %150 = vector.load %arg3[%c0_95, %c6_96] : memref<80x9xf32, #tpu.memory_space<vmem>>, vector<80x1xf32>
    %151 = vector.broadcast %150 : vector<80x1xf32> to vector<80x32xf32>
    %152 = arith.mulf %149, %151 : vector<80x32xf32>
    %c6_97 = arith.constant 6 : index
    %c0_98 = arith.constant 0 : index
    %c0_99 = arith.constant 0 : index
    %153 = vector.load %arg7[%c6_97, %c0_98, %c0_99] : memref<9x32x64xf32, #tpu.memory_space<vmem>>, vector<1x32x64xf32>
    %154 = vector.shape_cast %153 : vector<1x32x64xf32> to vector<32x64xf32>
    %cst_100 = arith.constant dense<0.000000e+00> : vector<80x64xf32>
    %155 = tpu.matmul %152, %154, %cst_100 {dimension_numbers = #tpu.dot_dimension_numbers<[1], [0], [0], [1], [0, 0, 1, 1], [], []>} : vector<80x32xf32>, vector<32x64xf32>, vector<80x64xf32> -> vector<80x64xf32>
    %156 = arith.addf %148, %155 : vector<80x64xf32>
    %c60_i32 = arith.constant 60 : i32
    %157 = tpu.dynamic_rotate %100 by %c60_i32 dim 0 : vector<80x32xf32>, i32 -> vector<80x32xf32>
    %c0_101 = arith.constant 0 : index
    %c7_102 = arith.constant 7 : index
    %158 = vector.load %arg3[%c0_101, %c7_102] : memref<80x9xf32, #tpu.memory_space<vmem>>, vector<80x1xf32>
    %159 = vector.broadcast %158 : vector<80x1xf32> to vector<80x32xf32>
    %160 = arith.mulf %157, %159 : vector<80x32xf32>
    %c7_103 = arith.constant 7 : index
    %c0_104 = arith.constant 0 : index
    %c0_105 = arith.constant 0 : index
    %161 = vector.load %arg7[%c7_103, %c0_104, %c0_105] : memref<9x32x64xf32, #tpu.memory_space<vmem>>, vector<1x32x64xf32>
    %162 = vector.shape_cast %161 : vector<1x32x64xf32> to vector<32x64xf32>
    %cst_106 = arith.constant dense<0.000000e+00> : vector<80x64xf32>
    %163 = tpu.matmul %160, %162, %cst_106 {dimension_numbers = #tpu.dot_dimension_numbers<[1], [0], [0], [1], [0, 0, 1, 1], [], []>} : vector<80x32xf32>, vector<32x64xf32>, vector<80x64xf32> -> vector<80x64xf32>
    %164 = arith.addf %156, %163 : vector<80x64xf32>
    %c59_i32 = arith.constant 59 : i32
    %165 = tpu.dynamic_rotate %100 by %c59_i32 dim 0 : vector<80x32xf32>, i32 -> vector<80x32xf32>
    %c0_107 = arith.constant 0 : index
    %c8_108 = arith.constant 8 : index
    %166 = vector.load %arg3[%c0_107, %c8_108] : memref<80x9xf32, #tpu.memory_space<vmem>>, vector<80x1xf32>
    %167 = vector.broadcast %166 : vector<80x1xf32> to vector<80x32xf32>
    %168 = arith.mulf %165, %167 : vector<80x32xf32>
    %c8_109 = arith.constant 8 : index
    %c0_110 = arith.constant 0 : index
    %c0_111 = arith.constant 0 : index
    %169 = vector.load %arg7[%c8_109, %c0_110, %c0_111] : memref<9x32x64xf32, #tpu.memory_space<vmem>>, vector<1x32x64xf32>
    %170 = vector.shape_cast %169 : vector<1x32x64xf32> to vector<32x64xf32>
    %cst_112 = arith.constant dense<0.000000e+00> : vector<80x64xf32>
    %171 = tpu.matmul %168, %170, %cst_112 {dimension_numbers = #tpu.dot_dimension_numbers<[1], [0], [0], [1], [0, 0, 1, 1], [], []>} : vector<80x32xf32>, vector<32x64xf32>, vector<80x64xf32> -> vector<80x64xf32>
    %172 = arith.addf %164, %171 : vector<80x64xf32>
    %c0_113 = arith.constant 0 : index
    %c0_114 = arith.constant 0 : index
    %173 = vector.load %arg8[%c0_113, %c0_114] : memref<1x64xf32, #tpu.memory_space<vmem>>, vector<1x64xf32>
    %174 = vector.broadcast %173 : vector<1x64xf32> to vector<80x64xf32>
    %175 = arith.addf %172, %174 : vector<80x64xf32>
    %cst_115 = arith.constant 0.000000e+00 : f32
    %176 = vector.broadcast %cst_115 : f32 to vector<80x64xf32>
    %177 = arith.maximumf %175, %176 : vector<80x64xf32>
    %c79_i32_116 = arith.constant 79 : i32
    %178 = tpu.dynamic_rotate %177 by %c79_i32_116 dim 0 : vector<80x64xf32>, i32 -> vector<80x64xf32>
    %179 = arith.maximumf %177, %178 : vector<80x64xf32>
    %c60_i32_117 = arith.constant 60 : i32
    %180 = tpu.dynamic_rotate %179 by %c60_i32_117 dim 0 : vector<80x64xf32>, i32 -> vector<80x64xf32>
    %181 = arith.maximumf %179, %180 : vector<80x64xf32>
    %c0_118 = arith.constant 0 : index
    %c0_119 = arith.constant 0 : index
    %182 = vector.load %arg16[%c0_118, %c0_119] : memref<80x64xf32, #tpu.memory_space<vmem>>, vector<80x64xf32>
    tpu.vector_store %arg16[%c0_118, %c0_119], %181 {strides = array<i32>} : memref<80x64xf32, #tpu.memory_space<vmem>>, vector<80x64xf32>,
    %c0_120 = arith.constant 0 : index
    %c0_121 = arith.constant 0 : index
    %183 = tpu.strided_load %arg16[%c0_120, %c0_121] {strides = array<i32: 2, 1>} : memref<80x64xf32, #tpu.memory_space<vmem>>, vector<10x64xf32>
    %c0_122 = arith.constant 0 : index
    %c0_123 = arith.constant 0 : index
    %184 = vector.load %arg17[%c0_122, %c0_123] : memref<20x64xf32, #tpu.memory_space<vmem>>, vector<10x64xf32>
    tpu.vector_store %arg17[%c0_122, %c0_123], %183 {strides = array<i32>} : memref<20x64xf32, #tpu.memory_space<vmem>>, vector<10x64xf32>,
    %c40_124 = arith.constant 40 : index
    %c0_125 = arith.constant 0 : index
    %185 = tpu.strided_load %arg16[%c40_124, %c0_125] {strides = array<i32: 2, 1>} : memref<80x64xf32, #tpu.memory_space<vmem>>, vector<10x64xf32>
    %c10 = arith.constant 10 : index
    %c0_126 = arith.constant 0 : index
    %186 = vector.load %arg17[%c10, %c0_126] : memref<20x64xf32, #tpu.memory_space<vmem>>, vector<10x64xf32>
    tpu.vector_store %arg17[%c10, %c0_126], %185 {strides = array<i32>} : memref<20x64xf32, #tpu.memory_space<vmem>>, vector<10x64xf32>,
    %c0_127 = arith.constant 0 : index
    %c0_128 = arith.constant 0 : index
    %187 = vector.load %arg17[%c0_127, %c0_128] : memref<20x64xf32, #tpu.memory_space<vmem>>, vector<20x64xf32>
    %cst_129 = arith.constant 0.000000e+00 : f32
    %188 = vector.broadcast %cst_129 : f32 to vector<20x128xf32>
    %cst_130 = arith.constant 0.000000e+00 : f32
    %189 = vector.broadcast %cst_130 : f32 to vector<11x64xf32>
    %190 = vector.extract_strided_slice %187 {offsets = [0, 0], sizes = [9, 64], strides = [1, 1]} : vector<20x64xf32> to vector<9x64xf32>
    %191 = tpu.concatenate %189, %190 in 0 : vector<11x64xf32>, vector<9x64xf32> -> vector<20x64xf32>
    %c0_131 = arith.constant 0 : index
    %c0_132 = arith.constant 0 : index
    %192 = vector.load %arg4[%c0_131, %c0_132] : memref<20x9xf32, #tpu.memory_space<vmem>>, vector<20x1xf32>
    %193 = vector.broadcast %192 : vector<20x1xf32> to vector<20x64xf32>
    %194 = arith.mulf %191, %193 : vector<20x64xf32>
    %c0_133 = arith.constant 0 : index
    %c0_134 = arith.constant 0 : index
    %c0_135 = arith.constant 0 : index
    %195 = vector.load %arg9[%c0_133, %c0_134, %c0_135] : memref<9x64x128xf32, #tpu.memory_space<vmem>>, vector<1x64x128xf32>
    %196 = vector.shape_cast %195 : vector<1x64x128xf32> to vector<64x128xf32>
    %cst_136 = arith.constant dense<0.000000e+00> : vector<20x128xf32>
    %197 = tpu.matmul %194, %196, %cst_136 {dimension_numbers = #tpu.dot_dimension_numbers<[1], [0], [0], [1], [0, 0, 1, 1], [], []>} : vector<20x64xf32>, vector<64x128xf32>, vector<20x128xf32> -> vector<20x128xf32>
    %198 = arith.addf %188, %197 : vector<20x128xf32>
    %cst_137 = arith.constant 0.000000e+00 : f32
    %199 = vector.broadcast %cst_137 : f32 to vector<10x64xf32>
    %200 = vector.extract_strided_slice %187 {offsets = [0, 0], sizes = [10, 64], strides = [1, 1]} : vector<20x64xf32> to vector<10x64xf32>
    %201 = tpu.concatenate %199, %200 in 0 : vector<10x64xf32>, vector<10x64xf32> -> vector<20x64xf32>
    %c0_138 = arith.constant 0 : index
    %c1_139 = arith.constant 1 : index
    %202 = vector.load %arg4[%c0_138, %c1_139] : memref<20x9xf32, #tpu.memory_space<vmem>>, vector<20x1xf32>
    %203 = vector.broadcast %202 : vector<20x1xf32> to vector<20x64xf32>
    %204 = arith.mulf %201, %203 : vector<20x64xf32>
    %c1_140 = arith.constant 1 : index
    %c0_141 = arith.constant 0 : index
    %c0_142 = arith.constant 0 : index
    %205 = vector.load %arg9[%c1_140, %c0_141, %c0_142] : memref<9x64x128xf32, #tpu.memory_space<vmem>>, vector<1x64x128xf32>
    %206 = vector.shape_cast %205 : vector<1x64x128xf32> to vector<64x128xf32>
    %cst_143 = arith.constant dense<0.000000e+00> : vector<20x128xf32>
    %207 = tpu.matmul %204, %206, %cst_143 {dimension_numbers = #tpu.dot_dimension_numbers<[1], [0], [0], [1], [0, 0, 1, 1], [], []>} : vector<20x64xf32>, vector<64x128xf32>, vector<20x128xf32> -> vector<20x128xf32>
    %208 = arith.addf %198, %207 : vector<20x128xf32>
    %cst_144 = arith.constant 0.000000e+00 : f32
    %209 = vector.broadcast %cst_144 : f32 to vector<9x64xf32>
    %210 = vector.extract_strided_slice %187 {offsets = [0, 0], sizes = [11, 64], strides = [1, 1]} : vector<20x64xf32> to vector<11x64xf32>
    %211 = tpu.concatenate %209, %210 in 0 : vector<9x64xf32>, vector<11x64xf32> -> vector<20x64xf32>
    %c0_145 = arith.constant 0 : index
    %c2_146 = arith.constant 2 : index
    %212 = vector.load %arg4[%c0_145, %c2_146] : memref<20x9xf32, #tpu.memory_space<vmem>>, vector<20x1xf32>
    %213 = vector.broadcast %212 : vector<20x1xf32> to vector<20x64xf32>
    %214 = arith.mulf %211, %213 : vector<20x64xf32>
    %c2_147 = arith.constant 2 : index
    %c0_148 = arith.constant 0 : index
    %c0_149 = arith.constant 0 : index
    %215 = vector.load %arg9[%c2_147, %c0_148, %c0_149] : memref<9x64x128xf32, #tpu.memory_space<vmem>>, vector<1x64x128xf32>
    %216 = vector.shape_cast %215 : vector<1x64x128xf32> to vector<64x128xf32>
    %cst_150 = arith.constant dense<0.000000e+00> : vector<20x128xf32>
    %217 = tpu.matmul %214, %216, %cst_150 {dimension_numbers = #tpu.dot_dimension_numbers<[1], [0], [0], [1], [0, 0, 1, 1], [], []>} : vector<20x64xf32>, vector<64x128xf32>, vector<20x128xf32> -> vector<20x128xf32>
    %218 = arith.addf %208, %217 : vector<20x128xf32>
    %cst_151 = arith.constant 0.000000e+00 : f32
    %219 = vector.broadcast %cst_151 : f32 to vector<1x64xf32>
    %220 = vector.extract_strided_slice %187 {offsets = [0, 0], sizes = [19, 64], strides = [1, 1]} : vector<20x64xf32> to vector<19x64xf32>
    %221 = tpu.concatenate %219, %220 in 0 : vector<1x64xf32>, vector<19x64xf32> -> vector<20x64xf32>
    %c0_152 = arith.constant 0 : index
    %c3_153 = arith.constant 3 : index
    %222 = vector.load %arg4[%c0_152, %c3_153] : memref<20x9xf32, #tpu.memory_space<vmem>>, vector<20x1xf32>
    %223 = vector.broadcast %222 : vector<20x1xf32> to vector<20x64xf32>
    %224 = arith.mulf %221, %223 : vector<20x64xf32>
    %c3_154 = arith.constant 3 : index
    %c0_155 = arith.constant 0 : index
    %c0_156 = arith.constant 0 : index
    %225 = vector.load %arg9[%c3_154, %c0_155, %c0_156] : memref<9x64x128xf32, #tpu.memory_space<vmem>>, vector<1x64x128xf32>
    %226 = vector.shape_cast %225 : vector<1x64x128xf32> to vector<64x128xf32>
    %cst_157 = arith.constant dense<0.000000e+00> : vector<20x128xf32>
    %227 = tpu.matmul %224, %226, %cst_157 {dimension_numbers = #tpu.dot_dimension_numbers<[1], [0], [0], [1], [0, 0, 1, 1], [], []>} : vector<20x64xf32>, vector<64x128xf32>, vector<20x128xf32> -> vector<20x128xf32>
    %228 = arith.addf %218, %227 : vector<20x128xf32>
    %c0_158 = arith.constant 0 : index
    %c4_159 = arith.constant 4 : index
    %229 = vector.load %arg4[%c0_158, %c4_159] : memref<20x9xf32, #tpu.memory_space<vmem>>, vector<20x1xf32>
    %230 = vector.broadcast %229 : vector<20x1xf32> to vector<20x64xf32>
    %231 = arith.mulf %187, %230 : vector<20x64xf32>
    %c4_160 = arith.constant 4 : index
    %c0_161 = arith.constant 0 : index
    %c0_162 = arith.constant 0 : index
    %232 = vector.load %arg9[%c4_160, %c0_161, %c0_162] : memref<9x64x128xf32, #tpu.memory_space<vmem>>, vector<1x64x128xf32>
    %233 = vector.shape_cast %232 : vector<1x64x128xf32> to vector<64x128xf32>
    %cst_163 = arith.constant dense<0.000000e+00> : vector<20x128xf32>
    %234 = tpu.matmul %231, %233, %cst_163 {dimension_numbers = #tpu.dot_dimension_numbers<[1], [0], [0], [1], [0, 0, 1, 1], [], []>} : vector<20x64xf32>, vector<64x128xf32>, vector<20x128xf32> -> vector<20x128xf32>
    %235 = arith.addf %228, %234 : vector<20x128xf32>
    %236 = vector.extract_strided_slice %187 {offsets = [1, 0], sizes = [19, 64], strides = [1, 1]} : vector<20x64xf32> to vector<19x64xf32>
    %cst_164 = arith.constant 0.000000e+00 : f32
    %237 = vector.broadcast %cst_164 : f32 to vector<1x64xf32>
    %238 = tpu.concatenate %236, %237 in 0 : vector<19x64xf32>, vector<1x64xf32> -> vector<20x64xf32>
    %c0_165 = arith.constant 0 : index
    %c5_166 = arith.constant 5 : index
    %239 = vector.load %arg4[%c0_165, %c5_166] : memref<20x9xf32, #tpu.memory_space<vmem>>, vector<20x1xf32>
    %240 = vector.broadcast %239 : vector<20x1xf32> to vector<20x64xf32>
    %241 = arith.mulf %238, %240 : vector<20x64xf32>
    %c5_167 = arith.constant 5 : index
    %c0_168 = arith.constant 0 : index
    %c0_169 = arith.constant 0 : index
    %242 = vector.load %arg9[%c5_167, %c0_168, %c0_169] : memref<9x64x128xf32, #tpu.memory_space<vmem>>, vector<1x64x128xf32>
    %243 = vector.shape_cast %242 : vector<1x64x128xf32> to vector<64x128xf32>
    %cst_170 = arith.constant dense<0.000000e+00> : vector<20x128xf32>
    %244 = tpu.matmul %241, %243, %cst_170 {dimension_numbers = #tpu.dot_dimension_numbers<[1], [0], [0], [1], [0, 0, 1, 1], [], []>} : vector<20x64xf32>, vector<64x128xf32>, vector<20x128xf32> -> vector<20x128xf32>
    %245 = arith.addf %235, %244 : vector<20x128xf32>
    %246 = vector.extract_strided_slice %187 {offsets = [9, 0], sizes = [11, 64], strides = [1, 1]} : vector<20x64xf32> to vector<11x64xf32>
    %cst_171 = arith.constant 0.000000e+00 : f32
    %247 = vector.broadcast %cst_171 : f32 to vector<9x64xf32>
    %248 = tpu.concatenate %246, %247 in 0 : vector<11x64xf32>, vector<9x64xf32> -> vector<20x64xf32>
    %c0_172 = arith.constant 0 : index
    %c6_173 = arith.constant 6 : index
    %249 = vector.load %arg4[%c0_172, %c6_173] : memref<20x9xf32, #tpu.memory_space<vmem>>, vector<20x1xf32>
    %250 = vector.broadcast %249 : vector<20x1xf32> to vector<20x64xf32>
    %251 = arith.mulf %248, %250 : vector<20x64xf32>
    %c6_174 = arith.constant 6 : index
    %c0_175 = arith.constant 0 : index
    %c0_176 = arith.constant 0 : index
    %252 = vector.load %arg9[%c6_174, %c0_175, %c0_176] : memref<9x64x128xf32, #tpu.memory_space<vmem>>, vector<1x64x128xf32>
    %253 = vector.shape_cast %252 : vector<1x64x128xf32> to vector<64x128xf32>
    %cst_177 = arith.constant dense<0.000000e+00> : vector<20x128xf32>
    %254 = tpu.matmul %251, %253, %cst_177 {dimension_numbers = #tpu.dot_dimension_numbers<[1], [0], [0], [1], [0, 0, 1, 1], [], []>} : vector<20x64xf32>, vector<64x128xf32>, vector<20x128xf32> -> vector<20x128xf32>
    %255 = arith.addf %245, %254 : vector<20x128xf32>
    %256 = vector.extract_strided_slice %187 {offsets = [10, 0], sizes = [10, 64], strides = [1, 1]} : vector<20x64xf32> to vector<10x64xf32>
    %cst_178 = arith.constant 0.000000e+00 : f32
    %257 = vector.broadcast %cst_178 : f32 to vector<10x64xf32>
    %258 = tpu.concatenate %256, %257 in 0 : vector<10x64xf32>, vector<10x64xf32> -> vector<20x64xf32>
    %c0_179 = arith.constant 0 : index
    %c7_180 = arith.constant 7 : index
    %259 = vector.load %arg4[%c0_179, %c7_180] : memref<20x9xf32, #tpu.memory_space<vmem>>, vector<20x1xf32>
    %260 = vector.broadcast %259 : vector<20x1xf32> to vector<20x64xf32>
    %261 = arith.mulf %258, %260 : vector<20x64xf32>
    %c7_181 = arith.constant 7 : index
    %c0_182 = arith.constant 0 : index
    %c0_183 = arith.constant 0 : index
    %262 = vector.load %arg9[%c7_181, %c0_182, %c0_183] : memref<9x64x128xf32, #tpu.memory_space<vmem>>, vector<1x64x128xf32>
    %263 = vector.shape_cast %262 : vector<1x64x128xf32> to vector<64x128xf32>
    %cst_184 = arith.constant dense<0.000000e+00> : vector<20x128xf32>
    %264 = tpu.matmul %261, %263, %cst_184 {dimension_numbers = #tpu.dot_dimension_numbers<[1], [0], [0], [1], [0, 0, 1, 1], [], []>} : vector<20x64xf32>, vector<64x128xf32>, vector<20x128xf32> -> vector<20x128xf32>
    %265 = arith.addf %255, %264 : vector<20x128xf32>
    %266 = vector.extract_strided_slice %187 {offsets = [11, 0], sizes = [9, 64], strides = [1, 1]} : vector<20x64xf32> to vector<9x64xf32>
    %cst_185 = arith.constant 0.000000e+00 : f32
    %267 = vector.broadcast %cst_185 : f32 to vector<11x64xf32>
    %268 = tpu.concatenate %266, %267 in 0 : vector<9x64xf32>, vector<11x64xf32> -> vector<20x64xf32>
    %c0_186 = arith.constant 0 : index
    %c8_187 = arith.constant 8 : index
    %269 = vector.load %arg4[%c0_186, %c8_187] : memref<20x9xf32, #tpu.memory_space<vmem>>, vector<20x1xf32>
    %270 = vector.broadcast %269 : vector<20x1xf32> to vector<20x64xf32>
    %271 = arith.mulf %268, %270 : vector<20x64xf32>
    %c8_188 = arith.constant 8 : index
    %c0_189 = arith.constant 0 : index
    %c0_190 = arith.constant 0 : index
    %272 = vector.load %arg9[%c8_188, %c0_189, %c0_190] : memref<9x64x128xf32, #tpu.memory_space<vmem>>, vector<1x64x128xf32>
    %273 = vector.shape_cast %272 : vector<1x64x128xf32> to vector<64x128xf32>
    %cst_191 = arith.constant dense<0.000000e+00> : vector<20x128xf32>
    %274 = tpu.matmul %271, %273, %cst_191 {dimension_numbers = #tpu.dot_dimension_numbers<[1], [0], [0], [1], [0, 0, 1, 1], [], []>} : vector<20x64xf32>, vector<64x128xf32>, vector<20x128xf32> -> vector<20x128xf32>
    %275 = arith.addf %265, %274 : vector<20x128xf32>
    %c0_192 = arith.constant 0 : index
    %c0_193 = arith.constant 0 : index
    %276 = vector.load %arg10[%c0_192, %c0_193] : memref<1x128xf32, #tpu.memory_space<vmem>>, vector<1x128xf32>
    %277 = vector.broadcast %276 : vector<1x128xf32> to vector<20x128xf32>
    %278 = arith.addf %275, %277 : vector<20x128xf32>
    %cst_194 = arith.constant 0.000000e+00 : f32
    %279 = vector.broadcast %cst_194 : f32 to vector<20x128xf32>
    %280 = arith.maximumf %278, %279 : vector<20x128xf32>
    %cst_195 = arith.constant 0.000000e+00 : f32
    %281 = vector.broadcast %cst_195 : f32 to vector<13x128xf32>
    %c0_196 = arith.constant 0 : index
    %c0_197 = arith.constant 0 : index
    %282 = vector.load %arg18[%c0_196, %c0_197] : memref<48x128xf32, #tpu.memory_space<vmem>>, vector<13x128xf32>
    tpu.vector_store %arg18[%c0_196, %c0_197], %281 {strides = array<i32>} : memref<48x128xf32, #tpu.memory_space<vmem>>, vector<13x128xf32>,
    %283 = vector.extract_strided_slice %281 {offsets = [0, 0], sizes = [2, 128], strides = [1, 1]} : vector<13x128xf32> to vector<2x128xf32>
    %c23 = arith.constant 23 : index
    %c0_198 = arith.constant 0 : index
    %284 = vector.load %arg18[%c23, %c0_198] : memref<48x128xf32, #tpu.memory_space<vmem>>, vector<2x128xf32>
    tpu.vector_store %arg18[%c23, %c0_198], %283 {strides = array<i32>} : memref<48x128xf32, #tpu.memory_space<vmem>>, vector<2x128xf32>,
    %c35 = arith.constant 35 : index
    %c0_199 = arith.constant 0 : index
    %285 = vector.load %arg18[%c35, %c0_199] : memref<48x128xf32, #tpu.memory_space<vmem>>, vector<13x128xf32>
    tpu.vector_store %arg18[%c35, %c0_199], %281 {strides = array<i32>} : memref<48x128xf32, #tpu.memory_space<vmem>>, vector<13x128xf32>,
    %286 = vector.extract_strided_slice %280 {offsets = [0, 0], sizes = [10, 128], strides = [1, 1]} : vector<20x128xf32> to vector<10x128xf32>
    %c13 = arith.constant 13 : index
    %c0_200 = arith.constant 0 : index
    %287 = vector.load %arg18[%c13, %c0_200] : memref<48x128xf32, #tpu.memory_space<vmem>>, vector<10x128xf32>
    tpu.vector_store %arg18[%c13, %c0_200], %286 {strides = array<i32>} : memref<48x128xf32, #tpu.memory_space<vmem>>, vector<10x128xf32>,
    %288 = vector.extract_strided_slice %280 {offsets = [10, 0], sizes = [10, 128], strides = [1, 1]} : vector<20x128xf32> to vector<10x128xf32>
    %c25 = arith.constant 25 : index
    %c0_201 = arith.constant 0 : index
    %289 = vector.load %arg18[%c25, %c0_201] : memref<48x128xf32, #tpu.memory_space<vmem>>, vector<10x128xf32>
    tpu.vector_store %arg18[%c25, %c0_201], %288 {strides = array<i32>} : memref<48x128xf32, #tpu.memory_space<vmem>>, vector<10x128xf32>,
    %c0_202 = arith.constant 0 : index
    %c0_203 = arith.constant 0 : index
    %290 = vector.load %arg18[%c0_202, %c0_203] : memref<48x128xf32, #tpu.memory_space<vmem>>, vector<48x128xf32>
    %c47_i32 = arith.constant 47 : i32
    %291 = tpu.dynamic_rotate %290 by %c47_i32 dim 0 : vector<48x128xf32>, i32 -> vector<48x128xf32>
    %292 = arith.maximumf %290, %291 : vector<48x128xf32>
    %c36_i32 = arith.constant 36 : i32
    %293 = tpu.dynamic_rotate %292 by %c36_i32 dim 0 : vector<48x128xf32>, i32 -> vector<48x128xf32>
    %294 = arith.maximumf %292, %293 : vector<48x128xf32>
    %c0_204 = arith.constant 0 : index
    %c0_205 = arith.constant 0 : index
    %295 = vector.load %arg18[%c0_204, %c0_205] : memref<48x128xf32, #tpu.memory_space<vmem>>, vector<48x128xf32>
    tpu.vector_store %arg18[%c0_204, %c0_205], %294 {strides = array<i32>} : memref<48x128xf32, #tpu.memory_space<vmem>>, vector<48x128xf32>,
    %c0_206 = arith.constant 0 : index
    %c0_207 = arith.constant 0 : index
    %296 = tpu.strided_load %arg18[%c0_206, %c0_207] {strides = array<i32: 2, 1>} : memref<48x128xf32, #tpu.memory_space<vmem>>, vector<6x128xf32>
    %c0_208 = arith.constant 0 : index
    %c0_209 = arith.constant 0 : index
    %297 = vector.load %arg19[%c0_208, %c0_209] : memref<12x128xf32, #tpu.memory_space<vmem>>, vector<6x128xf32>
    tpu.vector_store %arg19[%c0_208, %c0_209], %296 {strides = array<i32>} : memref<12x128xf32, #tpu.memory_space<vmem>>, vector<6x128xf32>,
    %c24 = arith.constant 24 : index
    %c0_210 = arith.constant 0 : index
    %298 = tpu.strided_load %arg18[%c24, %c0_210] {strides = array<i32: 2, 1>} : memref<48x128xf32, #tpu.memory_space<vmem>>, vector<6x128xf32>
    %c6_211 = arith.constant 6 : index
    %c0_212 = arith.constant 0 : index
    %299 = vector.load %arg19[%c6_211, %c0_212] : memref<12x128xf32, #tpu.memory_space<vmem>>, vector<6x128xf32>
    tpu.vector_store %arg19[%c6_211, %c0_212], %298 {strides = array<i32>} : memref<12x128xf32, #tpu.memory_space<vmem>>, vector<6x128xf32>,
    %c0_213 = arith.constant 0 : index
    %c0_214 = arith.constant 0 : index
    %300 = vector.load %arg19[%c0_213, %c0_214] : memref<12x128xf32, #tpu.memory_space<vmem>>, vector<12x128xf32>
    %c0_215 = arith.constant 0 : index
    %c0_216 = arith.constant 0 : index
    %301 = vector.load %arg11[%c0_215, %c0_216] : memref<12x128xf32, #tpu.memory_space<vmem>>, vector<12x128xf32>
    %302 = arith.mulf %300, %301 : vector<12x128xf32>
    %cst_217 = arith.constant dense<0.000000e+00> : vector<12xf32>
    %303 = vector.multi_reduction <add>, %302, %cst_217 [1] : vector<12x128xf32> to vector<12xf32>
    %304 = vector.shape_cast %303 : vector<12xf32> to vector<12x1xf32>
    %cst_218 = arith.constant dense<0.000000e+00> : vector<1xf32>
    %305 = vector.multi_reduction <add>, %304, %cst_218 [0] : vector<12x1xf32> to vector<1xf32>
    %306 = vector.shape_cast %305 : vector<1xf32> to vector<1x1xf32>
    %c0_219 = arith.constant 0 : index
    %c0_220 = arith.constant 0 : index
    %307 = vector.load %arg12[%c0_219, %c0_220] : memref<1x1xf32, #tpu.memory_space<vmem>>, vector<1x1xf32>
    %308 = arith.addf %306, %307 : vector<1x1xf32>
    %309 = vector.shape_cast %308 : vector<1x1xf32> to vector<1x1x1xf32>
    %310 = vector.shape_cast %309 : vector<1x1x1xf32> to vector<1x1x1xf32>
    %311 = vector.broadcast %310 : vector<1x1x1xf32> to vector<1x1x128xf32>
    %c0_221 = arith.constant 0 : index
    %c0_222 = arith.constant 0 : index
    %c0_223 = arith.constant 0 : index
    %312 = vector.load %arg13[%c0_221, %c0_222, %c0_223] : memref<1x1x128xf32, #tpu.memory_space<vmem>>, vector<1x1x128xf32>
    tpu.vector_store %arg13[%c0_221, %c0_222, %c0_223], %311 {strides = array<i32>} : memref<1x1x128xf32, #tpu.memory_space<vmem>>, vector<1x1x128xf32>,
    return
  }
  func.func @transform_0(%arg0: i32) -> (i32, i32) {
    %c0_i32 = arith.constant 0 : i32
    %c0_i32_0 = arith.constant 0 : i32
    return %arg0, %c0_i32 : i32, i32
  }
  func.func @transform_1(%arg0: i32) -> (i32, i32) {
    %c0_i32 = arith.constant 0 : i32
    %c0_i32_0 = arith.constant 0 : i32
    %c0_i32_1 = arith.constant 0 : i32
    return %c0_i32, %c0_i32_0 : i32, i32
  }
  func.func @transform_2(%arg0: i32) -> (i32, i32) {
    %c0_i32 = arith.constant 0 : i32
    %c0_i32_0 = arith.constant 0 : i32
    %c0_i32_1 = arith.constant 0 : i32
    return %c0_i32, %c0_i32_0 : i32, i32
  }
  func.func @transform_3(%arg0: i32) -> (i32, i32) {
    %c0_i32 = arith.constant 0 : i32
    %c0_i32_0 = arith.constant 0 : i32
    %c0_i32_1 = arith.constant 0 : i32
    return %c0_i32, %c0_i32_0 : i32, i32
  }
  func.func @transform_4(%arg0: i32) -> (i32, i32, i32) {
    %c0_i32 = arith.constant 0 : i32
    %c0_i32_0 = arith.constant 0 : i32
    %c0_i32_1 = arith.constant 0 : i32
    %c0_i32_2 = arith.constant 0 : i32
    return %c0_i32, %c0_i32_0, %c0_i32_1 : i32, i32, i32
  }
  func.func @transform_5(%arg0: i32) -> (i32, i32) {
    %c0_i32 = arith.constant 0 : i32
    %c0_i32_0 = arith.constant 0 : i32
    %c0_i32_1 = arith.constant 0 : i32
    return %c0_i32, %c0_i32_0 : i32, i32
  }
  func.func @transform_6(%arg0: i32) -> (i32, i32, i32) {
    %c0_i32 = arith.constant 0 : i32
    %c0_i32_0 = arith.constant 0 : i32
    %c0_i32_1 = arith.constant 0 : i32
    %c0_i32_2 = arith.constant 0 : i32
    return %c0_i32, %c0_i32_0, %c0_i32_1 : i32, i32, i32
  }
  func.func @transform_7(%arg0: i32) -> (i32, i32) {
    %c0_i32 = arith.constant 0 : i32
    %c0_i32_0 = arith.constant 0 : i32
    %c0_i32_1 = arith.constant 0 : i32
    return %c0_i32, %c0_i32_0 : i32, i32
  }
  func.func @transform_8(%arg0: i32) -> (i32, i32, i32) {
    %c0_i32 = arith.constant 0 : i32
    %c0_i32_0 = arith.constant 0 : i32
    %c0_i32_1 = arith.constant 0 : i32
    %c0_i32_2 = arith.constant 0 : i32
    return %c0_i32, %c0_i32_0, %c0_i32_1 : i32, i32, i32
  }
  func.func @transform_9(%arg0: i32) -> (i32, i32) {
    %c0_i32 = arith.constant 0 : i32
    %c0_i32_0 = arith.constant 0 : i32
    %c0_i32_1 = arith.constant 0 : i32
    return %c0_i32, %c0_i32_0 : i32, i32
  }
  func.func @transform_10(%arg0: i32) -> (i32, i32) {
    %c0_i32 = arith.constant 0 : i32
    %c0_i32_0 = arith.constant 0 : i32
    %c0_i32_1 = arith.constant 0 : i32
    return %c0_i32, %c0_i32_0 : i32, i32
  }
  func.func @transform_11(%arg0: i32) -> (i32, i32) {
    %c0_i32 = arith.constant 0 : i32
    %c0_i32_0 = arith.constant 0 : i32
    %c0_i32_1 = arith.constant 0 : i32
    return %c0_i32, %c0_i32_0 : i32, i32
  }
  func.func @transform_12(%arg0: i32) -> (i32, i32, i32) {
    %c0_i32 = arith.constant 0 : i32
    %c0_i32_0 = arith.constant 0 : i32
    %c0_i32_1 = arith.constant 0 : i32
    return %arg0, %c0_i32, %c0_i32_0 : i32, i32, i32
  }
}

</mosaic_0001>

<llo_original>
// kernel: cnn_landmark_forward.1
$region0: #{cnn_landmark_forward.1}
  #allocation0 [shape = 'u32[]', space=smem, size = 0x4, offset = 0x4, fixed_abs, tag = 'smem constant byte address 0x4 - core index']
  #allocation1 [shape = 'u32[72,128]{1,0:T(1,128)}', space=vmem, size = 0x9000, scoped, tag = 'internal scratch']
  #allocation2 [shape = 'f32[320,32]{1,0:T(8,128)}', space=vmem, size = 0x28000, scoped, tag = 'scratch operand']
  #allocation3 [shape = 'f32[80,32]{1,0:T(8,128)}', space=vmem, size = 0xa000, scoped, tag = 'scratch operand']
  #allocation4 [shape = 'f32[80,64]{1,0:T(8,128)}', space=vmem, size = 0xa000, scoped, tag = 'scratch operand']
  #allocation5 [shape = 'f32[20,64]{1,0:T(8,128)}', space=vmem, size = 0x3000, scoped, tag = 'scratch operand']
  #allocation6 [shape = 'f32[48,128]{1,0:T(8,128)}', space=vmem, size = 0x6000, scoped, tag = 'scratch operand']
  #allocation7 [shape = 'f32[12,128]{1,0:T(8,128)}', space=vmem, size = 0x2000, scoped, tag = 'scratch operand']
  #allocation8 [shape = 'f32[1,1]{1,0:T(1,128)S(1)}', space=vmem, size = 0x200, scoped, tag = 'scoped memory for cnn_landmark_forward.1']
  %s0 = inlined_call_operand.vmem [shape: f32[640,1], index: 0, kind: input, shape index: {}]
  %s1 = inlined_call_operand.vmem [shape: f32[320,9], index: 1, kind: input, shape index: {}]
  %s2 = inlined_call_operand.vmem [shape: f32[80,9], index: 2, kind: input, shape index: {}]
  %s3 = inlined_call_operand.vmem [shape: f32[20,9], index: 3, kind: input, shape index: {}]
  %s4 = inlined_call_operand.vmem [shape: f32[9,1,32], index: 4, kind: input, shape index: {}]
  %s5 = inlined_call_operand.vmem [shape: f32[1,32], index: 5, kind: input, shape index: {}]
  %s6 = inlined_call_operand.vmem [shape: f32[9,32,64], index: 6, kind: input, shape index: {}]
  %s7 = inlined_call_operand.vmem [shape: f32[1,64], index: 7, kind: input, shape index: {}]
  %s8 = inlined_call_operand.vmem [shape: f32[9,64,128], index: 8, kind: input, shape index: {}]
  %s9 = inlined_call_operand.vmem [shape: f32[1,128], index: 9, kind: input, shape index: {}]
  %s10 = inlined_call_operand.vmem [shape: f32[12,128], index: 10, kind: input, shape index: {}]
  %s11 = inlined_call_operand.<no memory space> [shape: f32[1,1], index: 11, kind: input, shape index: {}]
  %s12 = inlined_call_operand.vmem [shape: f32[2,1,128], index: 12, kind: output, shape index: {}]
  %s13 = sld [smem:[#allocation0]]
  $region81: #{cnn_landmark_forward.1} parent=0
    _
  %s15 = ssub.s32 1, %s13
  %s16 = scalar_select 0, %s15, %s13
  %v17 = vstv %s11
  %18 = vst [vmem:[#allocation8] sm:$0x1] %v17
  loop: start=0, step=1, limit=4
  $region2: #{cnn_landmark_forward.1} parent=0 // loop_pre_header
    _
  $region3: #{cnn_landmark_forward.1} parent=0 // loop_header
    %s20 = sphi 0, %s24
    %p21 = scmp.ge.s32.totalorder %s20, 4
    %s30 = sphi 0, %s32
    %s33 = sphi 0, %s30
    %s34 = sphi 0, %s33
    %s50 = sphi 0, %s34
    %s54 = sphi 0, %s54
    %s56 = sphi 0, %s54
    %s57 = sphi 0, %s56
    %s71 = sphi 0, %s57
    %s75 = sphi 0, %s75
    %s77 = sphi 0, %s75
    %s78 = sphi 0, %s77
    %s92 = sphi 0, %s78
    %s96 = sphi 0, %s96
    %s98 = sphi 0, %s96
    %s99 = sphi 0, %s98
    %s113 = sphi 0, %s99
    %s117 = sphi 0, %s117
    %s119 = sphi 0, %s117
    %s120 = sphi 0, %s119
    %s134 = sphi 0, %s120
    %s138 = sphi 0, %s138
    %s140 = sphi 0, %s138
    %s141 = sphi 0, %s140
    %s155 = sphi 0, %s141
    %s159 = sphi 0, %s159
    %s161 = sphi 0, %s159
    %s162 = sphi 0, %s161
    %s176 = sphi 0, %s162
    %s180 = sphi 0, %s180
    %s182 = sphi 0, %s180
    %s183 = sphi 0, %s182
    %s197 = sphi 0, %s183
    %s201 = sphi 0, %s201
    %s203 = sphi 0, %s201
    %s204 = sphi 0, %s203
    %s218 = sphi 0, %s204
    %s222 = sphi 0, %s222
    %s224 = sphi 0, %s222
    %s225 = sphi 0, %s224
    %s239 = sphi 0, %s225
    %s243 = sphi 0, %s243
    %s245 = sphi 0, %s243
    %s246 = sphi 0, %s245
    %s260 = sphi 0, %s246
    %s264 = sphi 0, %s264
    %s266 = sphi 0, %s264
    %s267 = sphi 0, %s266
    %s281 = sphi 0, %s267
    %s287 = sphi 0, %s289
    %s290 = sphi 0, %s287
    %s291 = sphi 0, %s290
    %s307 = sphi 0, %s291
  $region4: #{cnn_landmark_forward.1} parent=0 // loop_header_branch
    %23 = sbr.rel (%p21) target = $region8
  $region5: #{cnn_landmark_forward.1} parent=0 // loop_body
    %s25 = ssub.s32 %s20, 1
    %s26 = ssub.s32 %s20, 2
    %s27 = sadd.s32 %s20, 1
    %s28 = ssub.s32 %s20, %s27
    %p29 = scmp.eq.s32.totalorder %s28, 0
    %s31 = sadd.s32 %s30, 1
    %s32 = scalar_select %p29, %s30, %s31
    %p35 = pneg %p29
    %p36 = scmp.eq.s32.totalorder %s20, 1
    %p37 = por %p35, %p36
    %p38 = scmp.ne.s32.totalorder %s30, %s33
    %p39 = scmp.eq.s32.totalorder %s20, 0
    %p40 = por %p38, %p39
    %p41 = scmp.ne.s32.totalorder %s30, %s33
    %p42 = scmp.eq.s32.totalorder %s25, 1
    %p43 = por %p41, %p42
    %p44 = scmp.ne.s32.totalorder %s33, %s34
    %p45 = scmp.eq.s32.totalorder %s25, 0
    %p46 = por %p44, %p45
    %p47 = scmp.ne.s32.totalorder %s33, %s34
    %p48 = scmp.eq.s32.totalorder %s26, 1
    %p49 = por %p47, %p48
    %p51 = scmp.ne.s32.totalorder %s34, %s50
    %p52 = scmp.eq.s32.totalorder %s26, 0
    %p53 = por %p51, %p52
    %s55 = sadd.s32 %s54, 1
    %p58 = scmp.eq.s32.totalorder %s20, 1
    %p59 = scmp.ne.s32.totalorder %s54, %s56
    %p60 = scmp.eq.s32.totalorder %s20, 0
    %p61 = por %p59, %p60
    %p62 = scmp.ne.s32.totalorder %s54, %s56
    %p63 = scmp.eq.s32.totalorder %s25, 1
    %p64 = por %p62, %p63
    %p65 = scmp.ne.s32.totalorder %s56, %s57
    %p66 = scmp.eq.s32.totalorder %s25, 0
    %p67 = por %p65, %p66
    %p68 = scmp.ne.s32.totalorder %s56, %s57
    %p69 = scmp.eq.s32.totalorder %s26, 1
    %p70 = por %p68, %p69
    %p72 = scmp.ne.s32.totalorder %s57, %s71
    %p73 = scmp.eq.s32.totalorder %s26, 0
    %p74 = por %p72, %p73
    %s76 = sadd.s32 %s75, 1
    %p79 = scmp.eq.s32.totalorder %s20, 1
    %p80 = scmp.ne.s32.totalorder %s75, %s77
    %p81 = scmp.eq.s32.totalorder %s20, 0
    %p82 = por %p80, %p81
    %p83 = scmp.ne.s32.totalorder %s75, %s77
    %p84 = scmp.eq.s32.totalorder %s25, 1
    %p85 = por %p83, %p84
    %p86 = scmp.ne.s32.totalorder %s77, %s78
    %p87 = scmp.eq.s32.totalorder %s25, 0
    %p88 = por %p86, %p87
    %p89 = scmp.ne.s32.totalorder %s77, %s78
    %p90 = scmp.eq.s32.totalorder %s26, 1
    %p91 = por %p89, %p90
    %p93 = scmp.ne.s32.totalorder %s78, %s92
    %p94 = scmp.eq.s32.totalorder %s26, 0
    %p95 = por %p93, %p94
    %s97 = sadd.s32 %s96, 1
    %p100 = scmp.eq.s32.totalorder %s20, 1
    %p101 = scmp.ne.s32.totalorder %s96, %s98
    %p102 = scmp.eq.s32.totalorder %s20, 0
    %p103 = por %p101, %p102
    %p104 = scmp.ne.s32.totalorder %s96, %s98
    %p105 = scmp.eq.s32.totalorder %s25, 1
    %p106 = por %p104, %p105
    %p107 = scmp.ne.s32.totalorder %s98, %s99
    %p108 = scmp.eq.s32.totalorder %s25, 0
    %p109 = por %p107, %p108
    %p110 = scmp.ne.s32.totalorder %s98, %s99
    %p111 = scmp.eq.s32.totalorder %s26, 1
    %p112 = por %p110, %p111
    %p114 = scmp.ne.s32.totalorder %s99, %s113
    %p115 = scmp.eq.s32.totalorder %s26, 0
    %p116 = por %p114, %p115
    %s118 = sadd.s32 %s117, 1
    %p121 = scmp.eq.s32.totalorder %s20, 1
    %p122 = scmp.ne.s32.totalorder %s117, %s119
    %p123 = scmp.eq.s32.totalorder %s20, 0
    %p124 = por %p122, %p123
    %p125 = scmp.ne.s32.totalorder %s117, %s119
    %p126 = scmp.eq.s32.totalorder %s25, 1
    %p127 = por %p125, %p126
    %p128 = scmp.ne.s32.totalorder %s119, %s120
    %p129 = scmp.eq.s32.totalorder %s25, 0
    %p130 = por %p128, %p129
    %p131 = scmp.ne.s32.totalorder %s119, %s120
    %p132 = scmp.eq.s32.totalorder %s26, 1
    %p133 = por %p131, %p132
    %p135 = scmp.ne.s32.totalorder %s120, %s134
    %p136 = scmp.eq.s32.totalorder %s26, 0
    %p137 = por %p135, %p136
    %s139 = sadd.s32 %s138, 1
    %p142 = scmp.eq.s32.totalorder %s20, 1
    %p143 = scmp.ne.s32.totalorder %s138, %s140
    %p144 = scmp.eq.s32.totalorder %s20, 0
    %p145 = por %p143, %p144
    %p146 = scmp.ne.s32.totalorder %s138, %s140
    %p147 = scmp.eq.s32.totalorder %s25, 1
    %p148 = por %p146, %p147
    %p149 = scmp.ne.s32.totalorder %s140, %s141
    %p150 = scmp.eq.s32.totalorder %s25, 0
    %p151 = por %p149, %p150
    %p152 = scmp.ne.s32.totalorder %s140, %s141
    %p153 = scmp.eq.s32.totalorder %s26, 1
    %p154 = por %p152, %p153
    %p156 = scmp.ne.s32.totalorder %s141, %s155
    %p157 = scmp.eq.s32.totalorder %s26, 0
    %p158 = por %p156, %p157
    %s160 = sadd.s32 %s159, 1
    %p163 = scmp.eq.s32.totalorder %s20, 1
    %p164 = scmp.ne.s32.totalorder %s159, %s161
    %p165 = scmp.eq.s32.totalorder %s20, 0
    %p166 = por %p164, %p165
    %p167 = scmp.ne.s32.totalorder %s159, %s161
    %p168 = scmp.eq.s32.totalorder %s25, 1
    %p169 = por %p167, %p168
    %p170 = scmp.ne.s32.totalorder %s161, %s162
    %p171 = scmp.eq.s32.totalorder %s25, 0
    %p172 = por %p170, %p171
    %p173 = scmp.ne.s32.totalorder %s161, %s162
    %p174 = scmp.eq.s32.totalorder %s26, 1
    %p175 = por %p173, %p174
    %p177 = scmp.ne.s32.totalorder %s162, %s176
    %p178 = scmp.eq.s32.totalorder %s26, 0
    %p179 = por %p177, %p178
    %s181 = sadd.s32 %s180, 1
    %p184 = scmp.eq.s32.totalorder %s20, 1
    %p185 = scmp.ne.s32.totalorder %s180, %s182
    %p186 = scmp.eq.s32.totalorder %s20, 0
    %p187 = por %p185, %p186
    %p188 = scmp.ne.s32.totalorder %s180, %s182
    %p189 = scmp.eq.s32.totalorder %s25, 1
    %p190 = por %p188, %p189
    %p191 = scmp.ne.s32.totalorder %s182, %s183
    %p192 = scmp.eq.s32.totalorder %s25, 0
    %p193 = por %p191, %p192
    %p194 = scmp.ne.s32.totalorder %s182, %s183
    %p195 = scmp.eq.s32.totalorder %s26, 1
    %p196 = por %p194, %p195
    %p198 = scmp.ne.s32.totalorder %s183, %s197
    %p199 = scmp.eq.s32.totalorder %s26, 0
    %p200 = por %p198, %p199
    %s202 = sadd.s32 %s201, 1
    %p205 = scmp.eq.s32.totalorder %s20, 1
    %p206 = scmp.ne.s32.totalorder %s201, %s203
    %p207 = scmp.eq.s32.totalorder %s20, 0
    %p208 = por %p206, %p207
    %p209 = scmp.ne.s32.totalorder %s201, %s203
    %p210 = scmp.eq.s32.totalorder %s25, 1
    %p211 = por %p209, %p210
    %p212 = scmp.ne.s32.totalorder %s203, %s204
    %p213 = scmp.eq.s32.totalorder %s25, 0
    %p214 = por %p212, %p213
    %p215 = scmp.ne.s32.totalorder %s203, %s204
    %p216 = scmp.eq.s32.totalorder %s26, 1
    %p217 = por %p215, %p216
    %p219 = scmp.ne.s32.totalorder %s204, %s218
    %p220 = scmp.eq.s32.totalorder %s26, 0
    %p221 = por %p219, %p220
    %s223 = sadd.s32 %s222, 1
    %p226 = scmp.eq.s32.totalorder %s20, 1
    %p227 = scmp.ne.s32.totalorder %s222, %s224
    %p228 = scmp.eq.s32.totalorder %s20, 0
    %p229 = por %p227, %p228
    %p230 = scmp.ne.s32.totalorder %s222, %s224
    %p231 = scmp.eq.s32.totalorder %s25, 1
    %p232 = por %p230, %p231
    %p233 = scmp.ne.s32.totalorder %s224, %s225
    %p234 = scmp.eq.s32.totalorder %s25, 0
    %p235 = por %p233, %p234
    %p236 = scmp.ne.s32.totalorder %s224, %s225
    %p237 = scmp.eq.s32.totalorder %s26, 1
    %p238 = por %p236, %p237
    %p240 = scmp.ne.s32.totalorder %s225, %s239
    %p241 = scmp.eq.s32.totalorder %s26, 0
    %p242 = por %p240, %p241
    %s244 = sadd.s32 %s243, 1
    %p247 = scmp.eq.s32.totalorder %s20, 1
    %p248 = scmp.ne.s32.totalorder %s243, %s245
    %p249 = scmp.eq.s32.totalorder %s20, 0
    %p250 = por %p248, %p249
    %p251 = scmp.ne.s32.totalorder %s243, %s245
    %p252 = scmp.eq.s32.totalorder %s25, 1
    %p253 = por %p251, %p252
    %p254 = scmp.ne.s32.totalorder %s245, %s246
    %p255 = scmp.eq.s32.totalorder %s25, 0
    %p256 = por %p254, %p255
    %p257 = scmp.ne.s32.totalorder %s245, %s246
    %p258 = scmp.eq.s32.totalorder %s26, 1
    %p259 = por %p257, %p258
    %p261 = scmp.ne.s32.totalorder %s246, %s260
    %p262 = scmp.eq.s32.totalorder %s26, 0
    %p263 = por %p261, %p262
    %s265 = sadd.s32 %s264, 1
    %p268 = scmp.eq.s32.totalorder %s20, 1
    %p269 = scmp.ne.s32.totalorder %s264, %s266
    %p270 = scmp.eq.s32.totalorder %s20, 0
    %p271 = por %p269, %p270
    %p272 = scmp.ne.s32.totalorder %s264, %s266
    %p273 = scmp.eq.s32.totalorder %s25, 1
    %p274 = por %p272, %p273
    %p275 = scmp.ne.s32.totalorder %s266, %s267
    %p276 = scmp.eq.s32.totalorder %s25, 0
    %p277 = por %p275, %p276
    %p278 = scmp.ne.s32.totalorder %s266, %s267
    %p279 = scmp.eq.s32.totalorder %s26, 1
    %p280 = por %p278, %p279
    %p282 = scmp.ne.s32.totalorder %s267, %s281
    %p283 = scmp.eq.s32.totalorder %s26, 0
    %p284 = por %p282, %p283
    %s285 = ssub.s32 %s20, %s27
    %p286 = scmp.eq.s32.totalorder %s285, 0
    %s288 = sadd.s32 %s287, 1
    %s289 = scalar_select %p286, %s287, %s288
    %p292 = pneg %p286
    %p293 = scmp.eq.s32.totalorder %s20, 1
    %p294 = por %p292, %p293
    %p295 = scmp.ne.s32.totalorder %s287, %s290
    %p296 = scmp.eq.s32.totalorder %s20, 0
    %p297 = por %p295, %p296
    %p298 = scmp.ne.s32.totalorder %s287, %s290
    %p299 = scmp.eq.s32.totalorder %s25, 1
    %p300 = por %p298, %p299
    %p301 = scmp.ne.s32.totalorder %s290, %s291
    %p302 = scmp.eq.s32.totalorder %s25, 0
    %p303 = por %p301, %p302
    %p304 = scmp.ne.s32.totalorder %s290, %s291
    %p305 = scmp.eq.s32.totalorder %s26, 1
    %p306 = por %p304, %p305
    %p308 = scmp.ne.s32.totalorder %s291, %s307
    %p309 = scmp.eq.s32.totalorder %s26, 0
    %p310 = por %p308, %p309
    %p311 = scmp.le.s32.totalorder 1, %s20
    %p312 = scmp.lt.s32.totalorder %s20, 3
    %p313 = pnand %p311, %p312
    %p314 = pneg %p313
    // Predicated region
    $region9: #{cnn_landmark_forward.1} parent=5 // pred_check
      _
    $region10: #{cnn_landmark_forward.1} parent=5 // pred_check_branch
      %316 = sbr.rel (%p313) target = $region12
    $region11: #{cnn_landmark_forward.1} parent=5 // pred_region
      %s317 = ssub.s32 %s20, 1
      // Predicated region
      $region13: #{cnn_landmark_forward.1} parent=11 // pred_check
        %p318 = pneg %p67
      $region14: #{cnn_landmark_forward.1} parent=11 // pred_check_branch
        %320 = sbr.rel (%p318) target = $region16
      $region15: #{cnn_landmark_forward.1} parent=11 // pred_region
        _
      $region16: #{cnn_landmark_forward.1} parent=11 // pred_fallthru
        _
      // Predicated region
      $region17: #{cnn_landmark_forward.1} parent=11 // pred_check
        %p321 = pneg %p88
      $region18: #{cnn_landmark_forward.1} parent=11 // pred_check_branch
        %323 = sbr.rel (%p321) target = $region20
      $region19: #{cnn_landmark_forward.1} parent=11 // pred_region
        _
      $region20: #{cnn_landmark_forward.1} parent=11 // pred_fallthru
        _
      // Predicated region
      $region21: #{cnn_landmark_forward.1} parent=11 // pred_check
        %p324 = pneg %p109
      $region22: #{cnn_landmark_forward.1} parent=11 // pred_check_branch
        %326 = sbr.rel (%p324) target = $region24
      $region23: #{cnn_landmark_forward.1} parent=11 // pred_region
        _
      $region24: #{cnn_landmark_forward.1} parent=11 // pred_fallthru
        _
      // Predicated region
      $region25: #{cnn_landmark_forward.1} parent=11 // pred_check
        %p327 = pneg %p130
      $region26: #{cnn_landmark_forward.1} parent=11 // pred_check_branch
        %329 = sbr.rel (%p327) target = $region28
      $region27: #{cnn_landmark_forward.1} parent=11 // pred_region
        _
      $region28: #{cnn_landmark_forward.1} parent=11 // pred_fallthru
        _
      // Predicated region
      $region29: #{cnn_landmark_forward.1} parent=11 // pred_check
        %p330 = pneg %p151
      $region30: #{cnn_landmark_forward.1} parent=11 // pred_check_branch
        %332 = sbr.rel (%p330) target = $region32
      $region31: #{cnn_landmark_forward.1} parent=11 // pred_region
        _
      $region32: #{cnn_landmark_forward.1} parent=11 // pred_fallthru
        _
      // Predicated region
      $region33: #{cnn_landmark_forward.1} parent=11 // pred_check
        %p333 = pneg %p172
      $region34: #{cnn_landmark_forward.1} parent=11 // pred_check_branch
        %335 = sbr.rel (%p333) target = $region36
      $region35: #{cnn_landmark_forward.1} parent=11 // pred_region
        _
      $region36: #{cnn_landmark_forward.1} parent=11 // pred_fallthru
        _
      // Predicated region
      $region37: #{cnn_landmark_forward.1} parent=11 // pred_check
        %p336 = pneg %p193
      $region38: #{cnn_landmark_forward.1} parent=11 // pred_check_branch
        %338 = sbr.rel (%p336) target = $region40
      $region39: #{cnn_landmark_forward.1} parent=11 // pred_region
        _
      $region40: #{cnn_landmark_forward.1} parent=11 // pred_fallthru
        _
      // Predicated region
      $region41: #{cnn_landmark_forward.1} parent=11 // pred_check
        %p339 = pneg %p214
      $region42: #{cnn_landmark_forward.1} parent=11 // pred_check_branch
        %341 = sbr.rel (%p339) target = $region44
      $region43: #{cnn_landmark_forward.1} parent=11 // pred_region
        _
      $region44: #{cnn_landmark_forward.1} parent=11 // pred_fallthru
        _
      // Predicated region
      $region45: #{cnn_landmark_forward.1} parent=11 // pred_check
        %p342 = pneg %p235
      $region46: #{cnn_landmark_forward.1} parent=11 // pred_check_branch
        %344 = sbr.rel (%p342) target = $region48
      $region47: #{cnn_landmark_forward.1} parent=11 // pred_region
        _
      $region48: #{cnn_landmark_forward.1} parent=11 // pred_fallthru
        _
      // Predicated region
      $region49: #{cnn_landmark_forward.1} parent=11 // pred_check
        %p345 = pneg %p256
      $region50: #{cnn_landmark_forward.1} parent=11 // pred_check_branch
        %347 = sbr.rel (%p345) target = $region52
      $region51: #{cnn_landmark_forward.1} parent=11 // pred_region
        _
      $region52: #{cnn_landmark_forward.1} parent=11 // pred_fallthru
        _
      // Predicated region
      $region53: #{cnn_landmark_forward.1} parent=11 // pred_check
        %p348 = pneg %p277
      $region54: #{cnn_landmark_forward.1} parent=11 // pred_check_branch
        %350 = sbr.rel (%p348) target = $region56
      $region55: #{cnn_landmark_forward.1} parent=11 // pred_region
        _
      $region56: #{cnn_landmark_forward.1} parent=11 // pred_fallthru
        _
    $region12: #{cnn_landmark_forward.1} parent=5 // pred_fallthru
      _
    %p351 = scmp.lt.s32.totalorder %s20, 2
    // Predicated region
    $region57: #{cnn_landmark_forward.1} parent=5 // pred_check
      %p352 = pneg %p351
    $region58: #{cnn_landmark_forward.1} parent=5 // pred_check_branch
      %354 = sbr.rel (%p352) target = $region60
    $region59: #{cnn_landmark_forward.1} parent=5 // pred_region
      // Predicated region
      $region61: #{cnn_landmark_forward.1} parent=59 // pred_check
        %p355 = pneg %p40
      $region62: #{cnn_landmark_forward.1} parent=59 // pred_check_branch
        %357 = sbr.rel (%p355) target = $region64
      $region63: #{cnn_landmark_forward.1} parent=59 // pred_region
        %s358 = smul.u32 40, %s20
        %p359 = scmp.lt.s32.totalorder %s358, 79
        %s360 = scalar_select %p359, %s358, 79
        %s361 = smul.addr %s360, 8
        %s362 = scalar_lea.vmem %s0, %s361
        %s363 = smul.u32 40, %s20
      $region64: #{cnn_landmark_forward.1} parent=59 // pred_fallthru
        _
    $region60: #{cnn_landmark_forward.1} parent=5 // pred_fallthru
      _
    %p364 = scmp.le.s32.totalorder 1, %s20
    %p365 = scmp.lt.s32.totalorder %s20, 3
    %p366 = pnand %p364, %p365
    %p367 = pneg %p366
    // Predicated region
    $region65: #{cnn_landmark_forward.1} parent=5 // pred_check
      _
    $region66: #{cnn_landmark_forward.1} parent=5 // pred_check_branch
      %369 = sbr.rel (%p366) target = $region68
    $region67: #{cnn_landmark_forward.1} parent=5 // pred_region
      %s370 = ssub.s32 %s20, 1
      %s371 = smul.u32 40, %s25
      %p372 = scmp.lt.s32.totalorder %s371, 79
      %s373 = scalar_select %p372, %s371, 79
      %s374 = smul.addr %s373, 8
      %s375 = scalar_lea.vmem %s0, %s374
      %p376 = pneg %p46
      %p377 = pneg %p43
      %p378 = pneg %p67
      %p379 = pneg %p64
      %p380 = pneg %p88
      %p381 = pneg %p85
      %p382 = pneg %p109
      %p383 = pneg %p106
      %p384 = pneg %p130
      %p385 = pneg %p127
      %p386 = pneg %p151
      %p387 = pneg %p148
      %p388 = pneg %p172
      %p389 = pneg %p169
      %p390 = pneg %p193
      %p391 = pneg %p190
      %p392 = pneg %p214
      %p393 = pneg %p211
      %p394 = pneg %p235
      %p395 = pneg %p232
      %p396 = pneg %p256
      %p397 = pneg %p253
      %p398 = pneg %p277
      %p399 = pneg %p274
      %p400 = pneg %p303
      %p401 = pneg %p300
      %p402 = scmp.lt.s32.totalorder %s25, 1
      %s403 = scalar_select %p402, %s25, 1
      %s404 = scalar_lea.vmem %s12, %s403
      %s405 = smul.u32 40, %s25
      %p406 = scmp.lt.s32.totalorder %s405, 79
      %s407 = scalar_select %p406, %s405, 79
      %s408 = smul.addr %s407, 8
      %s409 = scalar_lea.vmem %s0, %s408
      %s410 = smul.u32 40, %s25
      %p411 = scmp.lt.s32.totalorder %s25, 1
      %s412 = scalar_select %p411, %s25, 1
      %s413 = scalar_lea.vmem %s12, %s412
      %v414 = vld [vmem:[%s409] sm:$0xff]
      %v415 = vld [vmem:[%s409 + $0x8] sm:$0xff]
      %v416 = vld [vmem:[%s409 + $0x10] sm:$0xff]
      %v417 = vld [vmem:[%s409 + $0x18] sm:$0xff]
      %v418 = vld [vmem:[%s409 + $0x20] sm:$0xff]
      %v419 = vld [vmem:[%s409 + $0x28] sm:$0xff]
      %v420 = vld [vmem:[%s409 + $0x30] sm:$0xff]
      %v421 = vld [vmem:[%s409 + $0x38] sm:$0xff]
      %v422 = vld [vmem:[%s409 + $0x40] sm:$0xff]
      %v423 = vld [vmem:[%s409 + $0x48] sm:$0xff]
      %v424 = vld [vmem:[%s409 + $0x50] sm:$0xff]
      %v425 = vld [vmem:[%s409 + $0x58] sm:$0xff]
      %v426 = vld [vmem:[%s409 + $0x60] sm:$0xff]
      %v427 = vld [vmem:[%s409 + $0x68] sm:$0xff]
      %v428 = vld [vmem:[%s409 + $0x70] sm:$0xff]
      %v429 = vld [vmem:[%s409 + $0x78] sm:$0xff]
      %v430 = vld [vmem:[%s409 + $0x80] sm:$0xff]
      %v431 = vld [vmem:[%s409 + $0x88] sm:$0xff]
      %v432 = vld [vmem:[%s409 + $0x90] sm:$0xff]
      %v433 = vld [vmem:[%s409 + $0x98] sm:$0xff]
      %v434 = vld [vmem:[%s409 + $0xa0] sm:$0xff]
      %v435 = vld [vmem:[%s409 + $0xa8] sm:$0xff]
      %v436 = vld [vmem:[%s409 + $0xb0] sm:$0xff]
      %v437 = vld [vmem:[%s409 + $0xb8] sm:$0xff]
      %v438 = vld [vmem:[%s409 + $0xc0] sm:$0xff]
      %v439 = vld [vmem:[%s409 + $0xc8] sm:$0xff]
      %v440 = vld [vmem:[%s409 + $0xd0] sm:$0xff]
      %v441 = vld [vmem:[%s409 + $0xd8] sm:$0xff]
      %v442 = vld [vmem:[%s409 + $0xe0] sm:$0xff]
      %v443 = vld [vmem:[%s409 + $0xe8] sm:$0xff]
      %v444 = vld [vmem:[%s409 + $0xf0] sm:$0xff]
      %v445 = vld [vmem:[%s409 + $0xf8] sm:$0xff]
      %v446 = vld [vmem:[%s409 + $0x100] sm:$0xff]
      %v447 = vld [vmem:[%s409 + $0x108] sm:$0xff]
      %v448 = vld [vmem:[%s409 + $0x110] sm:$0xff]
      %v449 = vld [vmem:[%s409 + $0x118] sm:$0xff]
      %v450 = vld [vmem:[%s409 + $0x120] sm:$0xff]
      %v451 = vld [vmem:[%s409 + $0x128] sm:$0xff]
      %v452 = vld [vmem:[%s409 + $0x130] sm:$0xff]
      %v453 = vld [vmem:[%s409 + $0x138] sm:$0xff]
      %v454 = vrot.slane %v414, 7
      %v455 = vrot.slane %v415, 7
      %v456 = vrot.slane %v416, 7
      %v457 = vrot.slane %v417, 7
      %v458 = vrot.slane %v418, 7
      %v459 = vrot.slane %v419, 7
      %v460 = vrot.slane %v420, 7
      %v461 = vrot.slane %v421, 7
      %v462 = vrot.slane %v422, 7
      %v463 = vrot.slane %v423, 7
      %v464 = vrot.slane %v424, 7
      %v465 = vrot.slane %v425, 7
      %v466 = vrot.slane %v426, 7
      %v467 = vrot.slane %v427, 7
      %v468 = vrot.slane %v428, 7
      %v469 = vrot.slane %v429, 7
      %v470 = vrot.slane %v430, 7
      %v471 = vrot.slane %v431, 7
      %v472 = vrot.slane %v432, 7
      %v473 = vrot.slane %v433, 7
      %v474 = vrot.slane %v434, 7
      %v475 = vrot.slane %v435, 7
      %v476 = vrot.slane %v436, 7
      %v477 = vrot.slane %v437, 7
      %v478 = vrot.slane %v438, 7
      %v479 = vrot.slane %v439, 7
      %v480 = vrot.slane %v440, 7
      %v481 = vrot.slane %v441, 7
      %v482 = vrot.slane %v442, 7
      %v483 = vrot.slane %v443, 7
      %v484 = vrot.slane %v444, 7
      %v485 = vrot.slane %v445, 7
      %v486 = vrot.slane %v446, 7
      %v487 = vrot.slane %v447, 7
      %v488 = vrot.slane %v448, 7
      %v489 = vrot.slane %v449, 7
      %v490 = vrot.slane %v450, 7
      %v491 = vrot.slane %v451, 7
      %v492 = vrot.slane %v452, 7
      %v493 = vrot.slane %v453, 7
      %v494 = vlaneseq
      %v495 = vshrl.u32 %v494, 7
      %vm496 = vcmp.lt.s32.totalorder %v495, 1
      %v497 = vsel %vm496, %v492, %v493
      %v498 = vsel %vm496, %v491, %v492
      %v499 = vsel %vm496, %v490, %v491
      %v500 = vsel %vm496, %v489, %v490
      %v501 = vsel %vm496, %v488, %v489
      %v502 = vsel %vm496, %v487, %v488
      %v503 = vsel %vm496, %v486, %v487
      %v504 = vsel %vm496, %v485, %v486
      %v505 = vsel %vm496, %v484, %v485
      %v506 = vsel %vm496, %v483, %v484
      %v507 = vsel %vm496, %v482, %v483
      %v508 = vsel %vm496, %v481, %v482
      %v509 = vsel %vm496, %v480, %v481
      %v510 = vsel %vm496, %v479, %v480
      %v511 = vsel %vm496, %v478, %v479
      %v512 = vsel %vm496, %v477, %v478
      %v513 = vsel %vm496, %v476, %v477
      %v514 = vsel %vm496, %v475, %v476
      %v515 = vsel %vm496, %v474, %v475
      %v516 = vsel %vm496, %v473, %v474
      %v517 = vsel %vm496, %v472, %v473
      %v518 = vsel %vm496, %v471, %v472
      %v519 = vsel %vm496, %v470, %v471
      %v520 = vsel %vm496, %v469, %v470
      %v521 = vsel %vm496, %v468, %v469
      %v522 = vsel %vm496, %v467, %v468
      %v523 = vsel %vm496, %v466, %v467
      %v524 = vsel %vm496, %v465, %v466
      %v525 = vsel %vm496, %v464, %v465
      %v526 = vsel %vm496, %v463, %v464
      %v527 = vsel %vm496, %v462, %v463
      %v528 = vsel %vm496, %v461, %v462
      %v529 = vsel %vm496, %v460, %v461
      %v530 = vsel %vm496, %v459, %v460
      %v531 = vsel %vm496, %v458, %v459
      %v532 = vsel %vm496, %v457, %v458
      %v533 = vsel %vm496, %v456, %v457
      %v534 = vsel %vm496, %v455, %v456
      %v535 = vsel %vm496, %v454, %v455
      %v536 = vsel %vm496, %v493, %v454
      %v537 = vld [vmem:[%s1] sm:$0xff]
      %v538 = vld [vmem:[%s1 + $0x8] sm:$0xff]
      %v539 = vld [vmem:[%s1 + $0x10] sm:$0xff]
      %v540 = vld [vmem:[%s1 + $0x18] sm:$0xff]
      %v541 = vld [vmem:[%s1 + $0x20] sm:$0xff]
      %v542 = vld [vmem:[%s1 + $0x28] sm:$0xff]
      %v543 = vld [vmem:[%s1 + $0x30] sm:$0xff]
      %v544 = vld [vmem:[%s1 + $0x38] sm:$0xff]
      %v545 = vld [vmem:[%s1 + $0x40] sm:$0xff]
      %v546 = vld [vmem:[%s1 + $0x48] sm:$0xff]
      %v547 = vld [vmem:[%s1 + $0x50] sm:$0xff]
      %v548 = vld [vmem:[%s1 + $0x58] sm:$0xff]
      %v549 = vld [vmem:[%s1 + $0x60] sm:$0xff]
      %v550 = vld [vmem:[%s1 + $0x68] sm:$0xff]
      %v551 = vld [vmem:[%s1 + $0x70] sm:$0xff]
      %v552 = vld [vmem:[%s1 + $0x78] sm:$0xff]
      %v553 = vld [vmem:[%s1 + $0x80] sm:$0xff]
      %v554 = vld [vmem:[%s1 + $0x88] sm:$0xff]
      %v555 = vld [vmem:[%s1 + $0x90] sm:$0xff]
      %v556 = vld [vmem:[%s1 + $0x98] sm:$0xff]
      %v557 = vld [vmem:[%s1 + $0xa0] sm:$0xff]
      %v558 = vld [vmem:[%s1 + $0xa8] sm:$0xff]
      %v559 = vld [vmem:[%s1 + $0xb0] sm:$0xff]
      %v560 = vld [vmem:[%s1 + $0xb8] sm:$0xff]
      %v561 = vld [vmem:[%s1 + $0xc0] sm:$0xff]
      %v562 = vld [vmem:[%s1 + $0xc8] sm:$0xff]
      %v563 = vld [vmem:[%s1 + $0xd0] sm:$0xff]
      %v564 = vld [vmem:[%s1 + $0xd8] sm:$0xff]
      %v565 = vld [vmem:[%s1 + $0xe0] sm:$0xff]
      %v566 = vld [vmem:[%s1 + $0xe8] sm:$0xff]
      %v567 = vld [vmem:[%s1 + $0xf0] sm:$0xff]
      %v568 = vld [vmem:[%s1 + $0xf8] sm:$0xff]
      %v569 = vld [vmem:[%s1 + $0x100] sm:$0xff]
      %v570 = vld [vmem:[%s1 + $0x108] sm:$0xff]
      %v571 = vld [vmem:[%s1 + $0x110] sm:$0xff]
      %v572 = vld [vmem:[%s1 + $0x118] sm:$0xff]
      %v573 = vld [vmem:[%s1 + $0x120] sm:$0xff]
      %v574 = vld [vmem:[%s1 + $0x128] sm:$0xff]
      %v575 = vld [vmem:[%s1 + $0x130] sm:$0xff]
      %v576 = vld [vmem:[%s1 + $0x138] sm:$0xff]
      %v577 = vmul.f32 %v501, %v537
      %v578 = vmul.f32 %v500, %v538
      %v579 = vmul.f32 %v499, %v539
      %v580 = vmul.f32 %v498, %v540
      %v581 = vmul.f32 %v497, %v541
      %v582 = vmul.f32 %v536, %v542
      %v583 = vmul.f32 %v535, %v543
      %v584 = vmul.f32 %v534, %v544
      %v585 = vmul.f32 %v533, %v545
      %v586 = vmul.f32 %v532, %v546
      %v587 = vmul.f32 %v531, %v547
      %v588 = vmul.f32 %v530, %v548
      %v589 = vmul.f32 %v529, %v549
      %v590 = vmul.f32 %v528, %v550
      %v591 = vmul.f32 %v527, %v551
      %v592 = vmul.f32 %v526, %v552
      %v593 = vmul.f32 %v525, %v553
      %v594 = vmul.f32 %v524, %v554
      %v595 = vmul.f32 %v523, %v555
      %v596 = vmul.f32 %v522, %v556
      %v597 = vmul.f32 %v521, %v557
      %v598 = vmul.f32 %v520, %v558
      %v599 = vmul.f32 %v519, %v559
      %v600 = vmul.f32 %v518, %v560
      %v601 = vmul.f32 %v517, %v561
      %v602 = vmul.f32 %v516, %v562
      %v603 = vmul.f32 %v515, %v563
      %v604 = vmul.f32 %v514, %v564
      %v605 = vmul.f32 %v513, %v565
      %v606 = vmul.f32 %v512, %v566
      %v607 = vmul.f32 %v511, %v567
      %v608 = vmul.f32 %v510, %v568
      %v609 = vmul.f32 %v509, %v569
      %v610 = vmul.f32 %v508, %v570
      %v611 = vmul.f32 %v507, %v571
      %v612 = vmul.f32 %v506, %v572
      %v613 = vmul.f32 %v505, %v573
      %v614 = vmul.f32 %v504, %v574
      %v615 = vmul.f32 %v503, %v575
      %v616 = vmul.f32 %v502, %v576
      %v617 = vld [vmem:[%s4] sm:$0x1]
      %619 = vset.pattern.permute.xlu0 0
      %620 = vperm.xlu0 %619, %v577
      %v621 = vpop.permute.xlu0 %620
      %624 = vset.pattern.permute.xlu0 0
      %625 = vperm.xlu0 %624, %v578
      %v626 = vpop.permute.xlu0 %625
      %629 = vset.pattern.permute.xlu0 0
      %630 = vperm.xlu0 %629, %v579
      %v631 = vpop.permute.xlu0 %630
      %634 = vset.pattern.permute.xlu0 0
      %635 = vperm.xlu0 %634, %v580
      %v636 = vpop.permute.xlu0 %635
      %639 = vset.pattern.permute.xlu0 0
      %640 = vperm.xlu0 %639, %v581
      %v641 = vpop.permute.xlu0 %640
      %644 = vset.pattern.permute.xlu0 0
      %645 = vperm.xlu0 %644, %v582
      %v646 = vpop.permute.xlu0 %645
      %649 = vset.pattern.permute.xlu0 0
      %650 = vperm.xlu0 %649, %v583
      %v651 = vpop.permute.xlu0 %650
      %654 = vset.pattern.permute.xlu0 0
      %655 = vperm.xlu0 %654, %v584
      %v656 = vpop.permute.xlu0 %655
      %659 = vset.pattern.permute.xlu0 0
      %660 = vperm.xlu0 %659, %v585
      %v661 = vpop.permute.xlu0 %660
      %664 = vset.pattern.permute.xlu0 0
      %665 = vperm.xlu0 %664, %v586
      %v666 = vpop.permute.xlu0 %665
      %669 = vset.pattern.permute.xlu0 0
      %670 = vperm.xlu0 %669, %v587
      %v671 = vpop.permute.xlu0 %670
      %674 = vset.pattern.permute.xlu0 0
      %675 = vperm.xlu0 %674, %v588
      %v676 = vpop.permute.xlu0 %675
      %679 = vset.pattern.permute.xlu0 0
      %680 = vperm.xlu0 %679, %v589
      %v681 = vpop.permute.xlu0 %680
      %684 = vset.pattern.permute.xlu0 0
      %685 = vperm.xlu0 %684, %v590
      %v686 = vpop.permute.xlu0 %685
      %689 = vset.pattern.permute.xlu0 0
      %690 = vperm.xlu0 %689, %v591
      %v691 = vpop.permute.xlu0 %690
      %694 = vset.pattern.permute.xlu0 0
      %695 = vperm.xlu0 %694, %v592
      %v696 = vpop.permute.xlu0 %695
      %699 = vset.pattern.permute.xlu0 0
      %700 = vperm.xlu0 %699, %v593
      %v701 = vpop.permute.xlu0 %700
      %704 = vset.pattern.permute.xlu0 0
      %705 = vperm.xlu0 %704, %v594
      %v706 = vpop.permute.xlu0 %705
      %709 = vset.pattern.permute.xlu0 0
      %710 = vperm.xlu0 %709, %v595
      %v711 = vpop.permute.xlu0 %710
      %714 = vset.pattern.permute.xlu0 0
      %715 = vperm.xlu0 %714, %v596
      %v716 = vpop.permute.xlu0 %715
      %719 = vset.pattern.permute.xlu0 0
      %720 = vperm.xlu0 %719, %v597
      %v721 = vpop.permute.xlu0 %720
      %724 = vset.pattern.permute.xlu0 0
      %725 = vperm.xlu0 %724, %v598
      %v726 = vpop.permute.xlu0 %725
      %729 = vset.pattern.permute.xlu0 0
      %730 = vperm.xlu0 %729, %v599
      %v731 = vpop.permute.xlu0 %730
      %734 = vset.pattern.permute.xlu0 0
      %735 = vperm.xlu0 %734, %v600
      %v736 = vpop.permute.xlu0 %735
      %739 = vset.pattern.permute.xlu0 0
      %740 = vperm.xlu0 %739, %v601
      %v741 = vpop.permute.xlu0 %740
      %744 = vset.pattern.permute.xlu0 0
      %745 = vperm.xlu0 %744, %v602
      %v746 = vpop.permute.xlu0 %745
      %749 = vset.pattern.permute.xlu0 0
      %750 = vperm.xlu0 %749, %v603
      %v751 = vpop.permute.xlu0 %750
      %754 = vset.pattern.permute.xlu0 0
      %755 = vperm.xlu0 %754, %v604
      %v756 = vpop.permute.xlu0 %755
      %759 = vset.pattern.permute.xlu0 0
      %760 = vperm.xlu0 %759, %v605
      %v761 = vpop.permute.xlu0 %760
      %764 = vset.pattern.permute.xlu0 0
      %765 = vperm.xlu0 %764, %v606
      %v766 = vpop.permute.xlu0 %765
      %769 = vset.pattern.permute.xlu0 0
      %770 = vperm.xlu0 %769, %v607
      %v771 = vpop.permute.xlu0 %770
      %774 = vset.pattern.permute.xlu0 0
      %775 = vperm.xlu0 %774, %v608
      %v776 = vpop.permute.xlu0 %775
      %779 = vset.pattern.permute.xlu0 0
      %780 = vperm.xlu0 %779, %v609
      %v781 = vpop.permute.xlu0 %780
      %784 = vset.pattern.permute.xlu0 0
      %785 = vperm.xlu0 %784, %v610
      %v786 = vpop.permute.xlu0 %785
      %789 = vset.pattern.permute.xlu0 0
      %790 = vperm.xlu0 %789, %v611
      %v791 = vpop.permute.xlu0 %790
      %794 = vset.pattern.permute.xlu0 0
      %795 = vperm.xlu0 %794, %v612
      %v796 = vpop.permute.xlu0 %795
      %799 = vset.pattern.permute.xlu0 0
      %800 = vperm.xlu0 %799, %v613
      %v801 = vpop.permute.xlu0 %800
      %804 = vset.pattern.permute.xlu0 0
      %805 = vperm.xlu0 %804, %v614
      %v806 = vpop.permute.xlu0 %805
      %809 = vset.pattern.permute.xlu0 0
      %810 = vperm.xlu0 %809, %v615
      %v811 = vpop.permute.xlu0 %810
      %814 = vset.pattern.permute.xlu0 0
      %815 = vperm.xlu0 %814, %v616
      %v816 = vpop.permute.xlu0 %815
      %v819 = vperm.slane %v617, 0
      %v821 = vmul.f32 %v621, %v819
      %v822 = vmul.f32 %v626, %v819
      %v823 = vmul.f32 %v631, %v819
      %v824 = vmul.f32 %v636, %v819
      %v825 = vmul.f32 %v641, %v819
      %v826 = vmul.f32 %v646, %v819
      %v827 = vmul.f32 %v651, %v819
      %v828 = vmul.f32 %v656, %v819
      %v829 = vmul.f32 %v661, %v819
      %v830 = vmul.f32 %v666, %v819
      %v831 = vmul.f32 %v671, %v819
      %v832 = vmul.f32 %v676, %v819
      %v833 = vmul.f32 %v681, %v819
      %v834 = vmul.f32 %v686, %v819
      %v835 = vmul.f32 %v691, %v819
      %v836 = vmul.f32 %v696, %v819
      %v837 = vmul.f32 %v701, %v819
      %v838 = vmul.f32 %v706, %v819
      %v839 = vmul.f32 %v711, %v819
      %v840 = vmul.f32 %v716, %v819
      %v841 = vmul.f32 %v721, %v819
      %v842 = vmul.f32 %v726, %v819
      %v843 = vmul.f32 %v731, %v819
      %v844 = vmul.f32 %v736, %v819
      %v845 = vmul.f32 %v741, %v819
      %v846 = vmul.f32 %v746, %v819
      %v847 = vmul.f32 %v751, %v819
      %v848 = vmul.f32 %v756, %v819
      %v849 = vmul.f32 %v761, %v819
      %v850 = vmul.f32 %v766, %v819
      %v851 = vmul.f32 %v771, %v819
      %v852 = vmul.f32 %v776, %v819
      %v853 = vmul.f32 %v781, %v819
      %v854 = vmul.f32 %v786, %v819
      %v855 = vmul.f32 %v791, %v819
      %v856 = vmul.f32 %v796, %v819
      %v857 = vmul.f32 %v801, %v819
      %v858 = vmul.f32 %v806, %v819
      %v859 = vmul.f32 %v811, %v819
      %v860 = vmul.f32 %v816, %v819
      %v861 = vadd.f32 %v821, 0.0
      %v862 = vadd.f32 %v822, 0.0
      %v863 = vadd.f32 %v823, 0.0
      %v864 = vadd.f32 %v824, 0.0
      %v865 = vadd.f32 %v825, 0.0
      %v866 = vadd.f32 %v826, 0.0
      %v867 = vadd.f32 %v827, 0.0
      %v868 = vadd.f32 %v828, 0.0
      %v869 = vadd.f32 %v829, 0.0
      %v870 = vadd.f32 %v830, 0.0
      %v871 = vadd.f32 %v831, 0.0
      %v872 = vadd.f32 %v832, 0.0
      %v873 = vadd.f32 %v833, 0.0
      %v874 = vadd.f32 %v834, 0.0
      %v875 = vadd.f32 %v835, 0.0
      %v876 = vadd.f32 %v836, 0.0
      %v877 = vadd.f32 %v837, 0.0
      %v878 = vadd.f32 %v838, 0.0
      %v879 = vadd.f32 %v839, 0.0
      %v880 = vadd.f32 %v840, 0.0
      %v881 = vadd.f32 %v841, 0.0
      %v882 = vadd.f32 %v842, 0.0
      %v883 = vadd.f32 %v843, 0.0
      %v884 = vadd.f32 %v844, 0.0
      %v885 = vadd.f32 %v845, 0.0
      %v886 = vadd.f32 %v846, 0.0
      %v887 = vadd.f32 %v847, 0.0
      %v888 = vadd.f32 %v848, 0.0
      %v889 = vadd.f32 %v849, 0.0
      %v890 = vadd.f32 %v850, 0.0
      %v891 = vadd.f32 %v851, 0.0
      %v892 = vadd.f32 %v852, 0.0
      %v893 = vadd.f32 %v853, 0.0
      %v894 = vadd.f32 %v854, 0.0
      %v895 = vadd.f32 %v855, 0.0
      %v896 = vadd.f32 %v856, 0.0
      %v897 = vadd.f32 %v857, 0.0
      %v898 = vadd.f32 %v858, 0.0
      %v899 = vadd.f32 %v859, 0.0
      %v900 = vadd.f32 %v860, 0.0
      %941 = vrot.lane.b32.xlu0 %v537, 127
      %v942 = vpop.permute.xlu0 %941
      %943 = vrot.lane.b32.xlu0 %v538, 127
      %v944 = vpop.permute.xlu0 %943
      %945 = vrot.lane.b32.xlu0 %v539, 127
      %v946 = vpop.permute.xlu0 %945
      %947 = vrot.lane.b32.xlu0 %v540, 127
      %v948 = vpop.permute.xlu0 %947
      %949 = vrot.lane.b32.xlu0 %v541, 127
      %v950 = vpop.permute.xlu0 %949
      %951 = vrot.lane.b32.xlu0 %v542, 127
      %v952 = vpop.permute.xlu0 %951
      %953 = vrot.lane.b32.xlu0 %v543, 127
      %v954 = vpop.permute.xlu0 %953
      %955 = vrot.lane.b32.xlu0 %v544, 127
      %v956 = vpop.permute.xlu0 %955
      %957 = vrot.lane.b32.xlu0 %v545, 127
      %v958 = vpop.permute.xlu0 %957
      %959 = vrot.lane.b32.xlu0 %v546, 127
      %v960 = vpop.permute.xlu0 %959
      %961 = vrot.lane.b32.xlu0 %v547, 127
      %v962 = vpop.permute.xlu0 %961
      %963 = vrot.lane.b32.xlu0 %v548, 127
      %v964 = vpop.permute.xlu0 %963
      %965 = vrot.lane.b32.xlu0 %v549, 127
      %v966 = vpop.permute.xlu0 %965
      %967 = vrot.lane.b32.xlu0 %v550, 127
      %v968 = vpop.permute.xlu0 %967
      %969 = vrot.lane.b32.xlu0 %v551, 127
      %v970 = vpop.permute.xlu0 %969
      %971 = vrot.lane.b32.xlu0 %v552, 127
      %v972 = vpop.permute.xlu0 %971
      %973 = vrot.lane.b32.xlu0 %v553, 127
      %v974 = vpop.permute.xlu0 %973
      %975 = vrot.lane.b32.xlu0 %v554, 127
      %v976 = vpop.permute.xlu0 %975
      %977 = vrot.lane.b32.xlu0 %v555, 127
      %v978 = vpop.permute.xlu0 %977
      %979 = vrot.lane.b32.xlu0 %v556, 127
      %v980 = vpop.permute.xlu0 %979
      %981 = vrot.lane.b32.xlu0 %v557, 127
      %v982 = vpop.permute.xlu0 %981
      %983 = vrot.lane.b32.xlu0 %v558, 127
      %v984 = vpop.permute.xlu0 %983
      %985 = vrot.lane.b32.xlu0 %v559, 127
      %v986 = vpop.permute.xlu0 %985
      %987 = vrot.lane.b32.xlu0 %v560, 127
      %v988 = vpop.permute.xlu0 %987
      %989 = vrot.lane.b32.xlu0 %v561, 127
      %v990 = vpop.permute.xlu0 %989
      %991 = vrot.lane.b32.xlu0 %v562, 127
      %v992 = vpop.permute.xlu0 %991
      %993 = vrot.lane.b32.xlu0 %v563, 127
      %v994 = vpop.permute.xlu0 %993
      %995 = vrot.lane.b32.xlu0 %v564, 127
      %v996 = vpop.permute.xlu0 %995
      %997 = vrot.lane.b32.xlu0 %v565, 127
      %v998 = vpop.permute.xlu0 %997
      %999 = vrot.lane.b32.xlu0 %v566, 127
      %v1000 = vpop.permute.xlu0 %999
      %1001 = vrot.lane.b32.xlu0 %v567, 127
      %v1002 = vpop.permute.xlu0 %1001
      %1003 = vrot.lane.b32.xlu0 %v568, 127
      %v1004 = vpop.permute.xlu0 %1003
      %1005 = vrot.lane.b32.xlu0 %v569, 127
      %v1006 = vpop.permute.xlu0 %1005
      %1007 = vrot.lane.b32.xlu0 %v570, 127
      %v1008 = vpop.permute.xlu0 %1007
      %1009 = vrot.lane.b32.xlu0 %v571, 127
      %v1010 = vpop.permute.xlu0 %1009
      %1011 = vrot.lane.b32.xlu0 %v572, 127
      %v1012 = vpop.permute.xlu0 %1011
      %1013 = vrot.lane.b32.xlu0 %v573, 127
      %v1014 = vpop.permute.xlu0 %1013
      %1015 = vrot.lane.b32.xlu0 %v574, 127
      %v1016 = vpop.permute.xlu0 %1015
      %1017 = vrot.lane.b32.xlu0 %v575, 127
      %v1018 = vpop.permute.xlu0 %1017
      %1019 = vrot.lane.b32.xlu0 %v576, 127
      %v1020 = vpop.permute.xlu0 %1019
      %v1061 = vmul.f32 %v449, %v942
      %v1062 = vmul.f32 %v450, %v944
      %v1063 = vmul.f32 %v451, %v946
      %v1064 = vmul.f32 %v452, %v948
      %v1065 = vmul.f32 %v453, %v950
      %v1066 = vmul.f32 %v414, %v952
      %v1067 = vmul.f32 %v415, %v954
      %v1068 = vmul.f32 %v416, %v956
      %v1069 = vmul.f32 %v417, %v958
      %v1070 = vmul.f32 %v418, %v960
      %v1071 = vmul.f32 %v419, %v962
      %v1072 = vmul.f32 %v420, %v964
      %v1073 = vmul.f32 %v421, %v966
      %v1074 = vmul.f32 %v422, %v968
      %v1075 = vmul.f32 %v423, %v970
      %v1076 = vmul.f32 %v424, %v972
      %v1077 = vmul.f32 %v425, %v974
      %v1078 = vmul.f32 %v426, %v976
      %v1079 = vmul.f32 %v427, %v978
      %v1080 = vmul.f32 %v428, %v980
      %v1081 = vmul.f32 %v429, %v982
      %v1082 = vmul.f32 %v430, %v984
      %v1083 = vmul.f32 %v431, %v986
      %v1084 = vmul.f32 %v432, %v988
      %v1085 = vmul.f32 %v433, %v990
      %v1086 = vmul.f32 %v434, %v992
      %v1087 = vmul.f32 %v435, %v994
      %v1088 = vmul.f32 %v436, %v996
      %v1089 = vmul.f32 %v437, %v998
      %v1090 = vmul.f32 %v438, %v1000
      %v1091 = vmul.f32 %v439, %v1002
      %v1092 = vmul.f32 %v440, %v1004
      %v1093 = vmul.f32 %v441, %v1006
      %v1094 = vmul.f32 %v442, %v1008
      %v1095 = vmul.f32 %v443, %v1010
      %v1096 = vmul.f32 %v444, %v1012
      %v1097 = vmul.f32 %v445, %v1014
      %v1098 = vmul.f32 %v446, %v1016
      %v1099 = vmul.f32 %v447, %v1018
      %v1100 = vmul.f32 %v448, %v1020
      %s1101 = scalar_lea.vmem %s4, 1
      %v1102 = vld [vmem:[%s1101] sm:$0x1]
      %1104 = vset.pattern.permute.xlu0 0
      %1105 = vperm.xlu0 %1104, %v1061
      %v1106 = vpop.permute.xlu0 %1105
      %1109 = vset.pattern.permute.xlu0 0
      %1110 = vperm.xlu0 %1109, %v1062
      %v1111 = vpop.permute.xlu0 %1110
      %1114 = vset.pattern.permute.xlu0 0
      %1115 = vperm.xlu0 %1114, %v1063
      %v1116 = vpop.permute.xlu0 %1115
      %1119 = vset.pattern.permute.xlu0 0
      %1120 = vperm.xlu0 %1119, %v1064
      %v1121 = vpop.permute.xlu0 %1120
      %1124 = vset.pattern.permute.xlu0 0
      %1125 = vperm.xlu0 %1124, %v1065
      %v1126 = vpop.permute.xlu0 %1125
      %1129 = vset.pattern.permute.xlu0 0
      %1130 = vperm.xlu0 %1129, %v1066
      %v1131 = vpop.permute.xlu0 %1130
      %1134 = vset.pattern.permute.xlu0 0
      %1135 = vperm.xlu0 %1134, %v1067
      %v1136 = vpop.permute.xlu0 %1135
      %1139 = vset.pattern.permute.xlu0 0
      %1140 = vperm.xlu0 %1139, %v1068
      %v1141 = vpop.permute.xlu0 %1140
      %1144 = vset.pattern.permute.xlu0 0
      %1145 = vperm.xlu0 %1144, %v1069
      %v1146 = vpop.permute.xlu0 %1145
      %1149 = vset.pattern.permute.xlu0 0
      %1150 = vperm.xlu0 %1149, %v1070
      %v1151 = vpop.permute.xlu0 %1150
      %1154 = vset.pattern.permute.xlu0 0
      %1155 = vperm.xlu0 %1154, %v1071
      %v1156 = vpop.permute.xlu0 %1155
      %1159 = vset.pattern.permute.xlu0 0
      %1160 = vperm.xlu0 %1159, %v1072
      %v1161 = vpop.permute.xlu0 %1160
      %1164 = vset.pattern.permute.xlu0 0
      %1165 = vperm.xlu0 %1164, %v1073
      %v1166 = vpop.permute.xlu0 %1165
      %1169 = vset.pattern.permute.xlu0 0
      %1170 = vperm.xlu0 %1169, %v1074
      %v1171 = vpop.permute.xlu0 %1170
      %1174 = vset.pattern.permute.xlu0 0
      %1175 = vperm.xlu0 %1174, %v1075
      %v1176 = vpop.permute.xlu0 %1175
      %1179 = vset.pattern.permute.xlu0 0
      %1180 = vperm.xlu0 %1179, %v1076
      %v1181 = vpop.permute.xlu0 %1180
      %1184 = vset.pattern.permute.xlu0 0
      %1185 = vperm.xlu0 %1184, %v1077
      %v1186 = vpop.permute.xlu0 %1185
      %1189 = vset.pattern.permute.xlu0 0
      %1190 = vperm.xlu0 %1189, %v1078
      %v1191 = vpop.permute.xlu0 %1190
      %1194 = vset.pattern.permute.xlu0 0
      %1195 = vperm.xlu0 %1194, %v1079
      %v1196 = vpop.permute.xlu0 %1195
      %1199 = vset.pattern.permute.xlu0 0
      %1200 = vperm.xlu0 %1199, %v1080
      %v1201 = vpop.permute.xlu0 %1200
      %1204 = vset.pattern.permute.xlu0 0
      %1205 = vperm.xlu0 %1204, %v1081
      %v1206 = vpop.permute.xlu0 %1205
      %1209 = vset.pattern.permute.xlu0 0
      %1210 = vperm.xlu0 %1209, %v1082
      %v1211 = vpop.permute.xlu0 %1210
      %1214 = vset.pattern.permute.xlu0 0
      %1215 = vperm.xlu0 %1214, %v1083
      %v1216 = vpop.permute.xlu0 %1215
      %1219 = vset.pattern.permute.xlu0 0
      %1220 = vperm.xlu0 %1219, %v1084
      %v1221 = vpop.permute.xlu0 %1220
      %1224 = vset.pattern.permute.xlu0 0
      %1225 = vperm.xlu0 %1224, %v1085
      %v1226 = vpop.permute.xlu0 %1225
      %1229 = vset.pattern.permute.xlu0 0
      %1230 = vperm.xlu0 %1229, %v1086
      %v1231 = vpop.permute.xlu0 %1230
      %1234 = vset.pattern.permute.xlu0 0
      %1235 = vperm.xlu0 %1234, %v1087
      %v1236 = vpop.permute.xlu0 %1235
      %1239 = vset.pattern.permute.xlu0 0
      %1240 = vperm.xlu0 %1239, %v1088
      %v1241 = vpop.permute.xlu0 %1240
      %1244 = vset.pattern.permute.xlu0 0
      %1245 = vperm.xlu0 %1244, %v1089
      %v1246 = vpop.permute.xlu0 %1245
      %1249 = vset.pattern.permute.xlu0 0
      %1250 = vperm.xlu0 %1249, %v1090
      %v1251 = vpop.permute.xlu0 %1250
      %1254 = vset.pattern.permute.xlu0 0
      %1255 = vperm.xlu0 %1254, %v1091
      %v1256 = vpop.permute.xlu0 %1255
      %1259 = vset.pattern.permute.xlu0 0
      %1260 = vperm.xlu0 %1259, %v1092
      %v1261 = vpop.permute.xlu0 %1260
      %1264 = vset.pattern.permute.xlu0 0
      %1265 = vperm.xlu0 %1264, %v1093
      %v1266 = vpop.permute.xlu0 %1265
      %1269 = vset.pattern.permute.xlu0 0
      %1270 = vperm.xlu0 %1269, %v1094
      %v1271 = vpop.permute.xlu0 %1270
      %1274 = vset.pattern.permute.xlu0 0
      %1275 = vperm.xlu0 %1274, %v1095
      %v1276 = vpop.permute.xlu0 %1275
      %1279 = vset.pattern.permute.xlu0 0
      %1280 = vperm.xlu0 %1279, %v1096
      %v1281 = vpop.permute.xlu0 %1280
      %1284 = vset.pattern.permute.xlu0 0
      %1285 = vperm.xlu0 %1284, %v1097
      %v1286 = vpop.permute.xlu0 %1285
      %1289 = vset.pattern.permute.xlu0 0
      %1290 = vperm.xlu0 %1289, %v1098
      %v1291 = vpop.permute.xlu0 %1290
      %1294 = vset.pattern.permute.xlu0 0
      %1295 = vperm.xlu0 %1294, %v1099
      %v1296 = vpop.permute.xlu0 %1295
      %1299 = vset.pattern.permute.xlu0 0
      %1300 = vperm.xlu0 %1299, %v1100
      %v1301 = vpop.permute.xlu0 %1300
      %v1304 = vperm.slane %v1102, 0
      %v1306 = vmul.f32 %v1106, %v1304
      %v1307 = vmul.f32 %v1111, %v1304
      %v1308 = vmul.f32 %v1116, %v1304
      %v1309 = vmul.f32 %v1121, %v1304
      %v1310 = vmul.f32 %v1126, %v1304
      %v1311 = vmul.f32 %v1131, %v1304
      %v1312 = vmul.f32 %v1136, %v1304
      %v1313 = vmul.f32 %v1141, %v1304
      %v1314 = vmul.f32 %v1146, %v1304
      %v1315 = vmul.f32 %v1151, %v1304
      %v1316 = vmul.f32 %v1156, %v1304
      %v1317 = vmul.f32 %v1161, %v1304
      %v1318 = vmul.f32 %v1166, %v1304
      %v1319 = vmul.f32 %v1171, %v1304
      %v1320 = vmul.f32 %v1176, %v1304
      %v1321 = vmul.f32 %v1181, %v1304
      %v1322 = vmul.f32 %v1186, %v1304
      %v1323 = vmul.f32 %v1191, %v1304
      %v1324 = vmul.f32 %v1196, %v1304
      %v1325 = vmul.f32 %v1201, %v1304
      %v1326 = vmul.f32 %v1206, %v1304
      %v1327 = vmul.f32 %v1211, %v1304
      %v1328 = vmul.f32 %v1216, %v1304
      %v1329 = vmul.f32 %v1221, %v1304
      %v1330 = vmul.f32 %v1226, %v1304
      %v1331 = vmul.f32 %v1231, %v1304
      %v1332 = vmul.f32 %v1236, %v1304
      %v1333 = vmul.f32 %v1241, %v1304
      %v1334 = vmul.f32 %v1246, %v1304
      %v1335 = vmul.f32 %v1251, %v1304
      %v1336 = vmul.f32 %v1256, %v1304
      %v1337 = vmul.f32 %v1261, %v1304
      %v1338 = vmul.f32 %v1266, %v1304
      %v1339 = vmul.f32 %v1271, %v1304
      %v1340 = vmul.f32 %v1276, %v1304
      %v1341 = vmul.f32 %v1281, %v1304
      %v1342 = vmul.f32 %v1286, %v1304
      %v1343 = vmul.f32 %v1291, %v1304
      %v1344 = vmul.f32 %v1296, %v1304
      %v1345 = vmul.f32 %v1301, %v1304
      %v1346 = vadd.f32 %v861, %v1306
      %v1347 = vadd.f32 %v862, %v1307
      %v1348 = vadd.f32 %v863, %v1308
      %v1349 = vadd.f32 %v864, %v1309
      %v1350 = vadd.f32 %v865, %v1310
      %v1351 = vadd.f32 %v866, %v1311
      %v1352 = vadd.f32 %v867, %v1312
      %v1353 = vadd.f32 %v868, %v1313
      %v1354 = vadd.f32 %v869, %v1314
      %v1355 = vadd.f32 %v870, %v1315
      %v1356 = vadd.f32 %v871, %v1316
      %v1357 = vadd.f32 %v872, %v1317
      %v1358 = vadd.f32 %v873, %v1318
      %v1359 = vadd.f32 %v874, %v1319
      %v1360 = vadd.f32 %v875, %v1320
      %v1361 = vadd.f32 %v876, %v1321
      %v1362 = vadd.f32 %v877, %v1322
      %v1363 = vadd.f32 %v878, %v1323
      %v1364 = vadd.f32 %v879, %v1324
      %v1365 = vadd.f32 %v880, %v1325
      %v1366 = vadd.f32 %v881, %v1326
      %v1367 = vadd.f32 %v882, %v1327
      %v1368 = vadd.f32 %v883, %v1328
      %v1369 = vadd.f32 %v884, %v1329
      %v1370 = vadd.f32 %v885, %v1330
      %v1371 = vadd.f32 %v886, %v1331
      %v1372 = vadd.f32 %v887, %v1332
      %v1373 = vadd.f32 %v888, %v1333
      %v1374 = vadd.f32 %v889, %v1334
      %v1375 = vadd.f32 %v890, %v1335
      %v1376 = vadd.f32 %v891, %v1336
      %v1377 = vadd.f32 %v892, %v1337
      %v1378 = vadd.f32 %v893, %v1338
      %v1379 = vadd.f32 %v894, %v1339
      %v1380 = vadd.f32 %v895, %v1340
      %v1381 = vadd.f32 %v896, %v1341
      %v1382 = vadd.f32 %v897, %v1342
      %v1383 = vadd.f32 %v898, %v1343
      %v1384 = vadd.f32 %v899, %v1344
      %v1385 = vadd.f32 %v900, %v1345
      %v1386 = vrot.slane %v414, 1
      %v1387 = vrot.slane %v415, 1
      %v1388 = vrot.slane %v416, 1
      %v1389 = vrot.slane %v417, 1
      %v1390 = vrot.slane %v418, 1
      %v1391 = vrot.slane %v419, 1
      %v1392 = vrot.slane %v420, 1
      %v1393 = vrot.slane %v421, 1
      %v1394 = vrot.slane %v422, 1
      %v1395 = vrot.slane %v423, 1
      %v1396 = vrot.slane %v424, 1
      %v1397 = vrot.slane %v425, 1
      %v1398 = vrot.slane %v426, 1
      %v1399 = vrot.slane %v427, 1
      %v1400 = vrot.slane %v428, 1
      %v1401 = vrot.slane %v429, 1
      %v1402 = vrot.slane %v430, 1
      %v1403 = vrot.slane %v431, 1
      %v1404 = vrot.slane %v432, 1
      %v1405 = vrot.slane %v433, 1
      %v1406 = vrot.slane %v434, 1
      %v1407 = vrot.slane %v435, 1
      %v1408 = vrot.slane %v436, 1
      %v1409 = vrot.slane %v437, 1
      %v1410 = vrot.slane %v438, 1
      %v1411 = vrot.slane %v439, 1
      %v1412 = vrot.slane %v440, 1
      %v1413 = vrot.slane %v441, 1
      %v1414 = vrot.slane %v442, 1
      %v1415 = vrot.slane %v443, 1
      %v1416 = vrot.slane %v444, 1
      %v1417 = vrot.slane %v445, 1
      %v1418 = vrot.slane %v446, 1
      %v1419 = vrot.slane %v447, 1
      %v1420 = vrot.slane %v448, 1
      %v1421 = vrot.slane %v449, 1
      %v1422 = vrot.slane %v450, 1
      %v1423 = vrot.slane %v451, 1
      %v1424 = vrot.slane %v452, 1
      %v1425 = vrot.slane %v453, 1
      %vm1426 = vcmp.lt.s32.totalorder %v495, 7
      %v1427 = vsel %vm1426, %v1424, %v1425
      %v1428 = vsel %vm1426, %v1423, %v1424
      %v1429 = vsel %vm1426, %v1422, %v1423
      %v1430 = vsel %vm1426, %v1421, %v1422
      %v1431 = vsel %vm1426, %v1420, %v1421
      %v1432 = vsel %vm1426, %v1419, %v1420
      %v1433 = vsel %vm1426, %v1418, %v1419
      %v1434 = vsel %vm1426, %v1417, %v1418
      %v1435 = vsel %vm1426, %v1416, %v1417
      %v1436 = vsel %vm1426, %v1415, %v1416
      %v1437 = vsel %vm1426, %v1414, %v1415
      %v1438 = vsel %vm1426, %v1413, %v1414
      %v1439 = vsel %vm1426, %v1412, %v1413
      %v1440 = vsel %vm1426, %v1411, %v1412
      %v1441 = vsel %vm1426, %v1410, %v1411
      %v1442 = vsel %vm1426, %v1409, %v1410
      %v1443 = vsel %vm1426, %v1408, %v1409
      %v1444 = vsel %vm1426, %v1407, %v1408
      %v1445 = vsel %vm1426, %v1406, %v1407
      %v1446 = vsel %vm1426, %v1405, %v1406
      %v1447 = vsel %vm1426, %v1404, %v1405
      %v1448 = vsel %vm1426, %v1403, %v1404
      %v1449 = vsel %vm1426, %v1402, %v1403
      %v1450 = vsel %vm1426, %v1401, %v1402
      %v1451 = vsel %vm1426, %v1400, %v1401
      %v1452 = vsel %vm1426, %v1399, %v1400
      %v1453 = vsel %vm1426, %v1398, %v1399
      %v1454 = vsel %vm1426, %v1397, %v1398
      %v1455 = vsel %vm1426, %v1396, %v1397
      %v1456 = vsel %vm1426, %v1395, %v1396
      %v1457 = vsel %vm1426, %v1394, %v1395
      %v1458 = vsel %vm1426, %v1393, %v1394
      %v1459 = vsel %vm1426, %v1392, %v1393
      %v1460 = vsel %vm1426, %v1391, %v1392
      %v1461 = vsel %vm1426, %v1390, %v1391
      %v1462 = vsel %vm1426, %v1389, %v1390
      %v1463 = vsel %vm1426, %v1388, %v1389
      %v1464 = vsel %vm1426, %v1387, %v1388
      %v1465 = vsel %vm1426, %v1386, %v1387
      %v1466 = vsel %vm1426, %v1425, %v1386
      %1467 = vrot.lane.b32.xlu0 %v537, 126
      %v1468 = vpop.permute.xlu0 %1467
      %1469 = vrot.lane.b32.xlu0 %v538, 126
      %v1470 = vpop.permute.xlu0 %1469
      %1471 = vrot.lane.b32.xlu0 %v539, 126
      %v1472 = vpop.permute.xlu0 %1471
      %1473 = vrot.lane.b32.xlu0 %v540, 126
      %v1474 = vpop.permute.xlu0 %1473
      %1475 = vrot.lane.b32.xlu0 %v541, 126
      %v1476 = vpop.permute.xlu0 %1475
      %1477 = vrot.lane.b32.xlu0 %v542, 126
      %v1478 = vpop.permute.xlu0 %1477
      %1479 = vrot.lane.b32.xlu0 %v543, 126
      %v1480 = vpop.permute.xlu0 %1479
      %1481 = vrot.lane.b32.xlu0 %v544, 126
      %v1482 = vpop.permute.xlu0 %1481
      %1483 = vrot.lane.b32.xlu0 %v545, 126
      %v1484 = vpop.permute.xlu0 %1483
      %1485 = vrot.lane.b32.xlu0 %v546, 126
      %v1486 = vpop.permute.xlu0 %1485
      %1487 = vrot.lane.b32.xlu0 %v547, 126
      %v1488 = vpop.permute.xlu0 %1487
      %1489 = vrot.lane.b32.xlu0 %v548, 126
      %v1490 = vpop.permute.xlu0 %1489
      %1491 = vrot.lane.b32.xlu0 %v549, 126
      %v1492 = vpop.permute.xlu0 %1491
      %1493 = vrot.lane.b32.xlu0 %v550, 126
      %v1494 = vpop.permute.xlu0 %1493
      %1495 = vrot.lane.b32.xlu0 %v551, 126
      %v1496 = vpop.permute.xlu0 %1495
      %1497 = vrot.lane.b32.xlu0 %v552, 126
      %v1498 = vpop.permute.xlu0 %1497
      %1499 = vrot.lane.b32.xlu0 %v553, 126
      %v1500 = vpop.permute.xlu0 %1499
      %1501 = vrot.lane.b32.xlu0 %v554, 126
      %v1502 = vpop.permute.xlu0 %1501
      %1503 = vrot.lane.b32.xlu0 %v555, 126
      %v1504 = vpop.permute.xlu0 %1503
      %1505 = vrot.lane.b32.xlu0 %v556, 126
      %v1506 = vpop.permute.xlu0 %1505
      %1507 = vrot.lane.b32.xlu0 %v557, 126
      %v1508 = vpop.permute.xlu0 %1507
      %1509 = vrot.lane.b32.xlu0 %v558, 126
      %v1510 = vpop.permute.xlu0 %1509
      %1511 = vrot.lane.b32.xlu0 %v559, 126
      %v1512 = vpop.permute.xlu0 %1511
      %1513 = vrot.lane.b32.xlu0 %v560, 126
      %v1514 = vpop.permute.xlu0 %1513
      %1515 = vrot.lane.b32.xlu0 %v561, 126
      %v1516 = vpop.permute.xlu0 %1515
      %1517 = vrot.lane.b32.xlu0 %v562, 126
      %v1518 = vpop.permute.xlu0 %1517
      %1519 = vrot.lane.b32.xlu0 %v563, 126
      %v1520 = vpop.permute.xlu0 %1519
      %1521 = vrot.lane.b32.xlu0 %v564, 126
      %v1522 = vpop.permute.xlu0 %1521
      %1523 = vrot.lane.b32.xlu0 %v565, 126
      %v1524 = vpop.permute.xlu0 %1523
      %1525 = vrot.lane.b32.xlu0 %v566, 126
      %v1526 = vpop.permute.xlu0 %1525
      %1527 = vrot.lane.b32.xlu0 %v567, 126
      %v1528 = vpop.permute.xlu0 %1527
      %1529 = vrot.lane.b32.xlu0 %v568, 126
      %v1530 = vpop.permute.xlu0 %1529
      %1531 = vrot.lane.b32.xlu0 %v569, 126
      %v1532 = vpop.permute.xlu0 %1531
      %1533 = vrot.lane.b32.xlu0 %v570, 126
      %v1534 = vpop.permute.xlu0 %1533
      %1535 = vrot.lane.b32.xlu0 %v571, 126
      %v1536 = vpop.permute.xlu0 %1535
      %1537 = vrot.lane.b32.xlu0 %v572, 126
      %v1538 = vpop.permute.xlu0 %1537
      %1539 = vrot.lane.b32.xlu0 %v573, 126
      %v1540 = vpop.permute.xlu0 %1539
      %1541 = vrot.lane.b32.xlu0 %v574, 126
      %v1542 = vpop.permute.xlu0 %1541
      %1543 = vrot.lane.b32.xlu0 %v575, 126
      %v1544 = vpop.permute.xlu0 %1543
      %1545 = vrot.lane.b32.xlu0 %v576, 126
      %v1546 = vpop.permute.xlu0 %1545
      %v1587 = vmul.f32 %v1430, %v1468
      %v1588 = vmul.f32 %v1429, %v1470
      %v1589 = vmul.f32 %v1428, %v1472
      %v1590 = vmul.f32 %v1427, %v1474
      %v1591 = vmul.f32 %v1466, %v1476
      %v1592 = vmul.f32 %v1465, %v1478
      %v1593 = vmul.f32 %v1464, %v1480
      %v1594 = vmul.f32 %v1463, %v1482
      %v1595 = vmul.f32 %v1462, %v1484
      %v1596 = vmul.f32 %v1461, %v1486
      %v1597 = vmul.f32 %v1460, %v1488
      %v1598 = vmul.f32 %v1459, %v1490
      %v1599 = vmul.f32 %v1458, %v1492
      %v1600 = vmul.f32 %v1457, %v1494
      %v1601 = vmul.f32 %v1456, %v1496
      %v1602 = vmul.f32 %v1455, %v1498
      %v1603 = vmul.f32 %v1454, %v1500
      %v1604 = vmul.f32 %v1453, %v1502
      %v1605 = vmul.f32 %v1452, %v1504
      %v1606 = vmul.f32 %v1451, %v1506
      %v1607 = vmul.f32 %v1450, %v1508
      %v1608 = vmul.f32 %v1449, %v1510
      %v1609 = vmul.f32 %v1448, %v1512
      %v1610 = vmul.f32 %v1447, %v1514
      %v1611 = vmul.f32 %v1446, %v1516
      %v1612 = vmul.f32 %v1445, %v1518
      %v1613 = vmul.f32 %v1444, %v1520
      %v1614 = vmul.f32 %v1443, %v1522
      %v1615 = vmul.f32 %v1442, %v1524
      %v1616 = vmul.f32 %v1441, %v1526
      %v1617 = vmul.f32 %v1440, %v1528
      %v1618 = vmul.f32 %v1439, %v1530
      %v1619 = vmul.f32 %v1438, %v1532
      %v1620 = vmul.f32 %v1437, %v1534
      %v1621 = vmul.f32 %v1436, %v1536
      %v1622 = vmul.f32 %v1435, %v1538
      %v1623 = vmul.f32 %v1434, %v1540
      %v1624 = vmul.f32 %v1433, %v1542
      %v1625 = vmul.f32 %v1432, %v1544
      %v1626 = vmul.f32 %v1431, %v1546
      %s1627 = scalar_lea.vmem %s4, 2
      %v1628 = vld [vmem:[%s1627] sm:$0x1]
      %1630 = vset.pattern.permute.xlu0 0
      %1631 = vperm.xlu0 %1630, %v1587
      %v1632 = vpop.permute.xlu0 %1631
      %1635 = vset.pattern.permute.xlu0 0
      %1636 = vperm.xlu0 %1635, %v1588
      %v1637 = vpop.permute.xlu0 %1636
      %1640 = vset.pattern.permute.xlu0 0
      %1641 = vperm.xlu0 %1640, %v1589
      %v1642 = vpop.permute.xlu0 %1641
      %1645 = vset.pattern.permute.xlu0 0
      %1646 = vperm.xlu0 %1645, %v1590
      %v1647 = vpop.permute.xlu0 %1646
      %1650 = vset.pattern.permute.xlu0 0
      %1651 = vperm.xlu0 %1650, %v1591
      %v1652 = vpop.permute.xlu0 %1651
      %1655 = vset.pattern.permute.xlu0 0
      %1656 = vperm.xlu0 %1655, %v1592
      %v1657 = vpop.permute.xlu0 %1656
      %1660 = vset.pattern.permute.xlu0 0
      %1661 = vperm.xlu0 %1660, %v1593
      %v1662 = vpop.permute.xlu0 %1661
      %1665 = vset.pattern.permute.xlu0 0
      %1666 = vperm.xlu0 %1665, %v1594
      %v1667 = vpop.permute.xlu0 %1666
      %1670 = vset.pattern.permute.xlu0 0
      %1671 = vperm.xlu0 %1670, %v1595
      %v1672 = vpop.permute.xlu0 %1671
      %1675 = vset.pattern.permute.xlu0 0
      %1676 = vperm.xlu0 %1675, %v1596
      %v1677 = vpop.permute.xlu0 %1676
      %1680 = vset.pattern.permute.xlu0 0
      %1681 = vperm.xlu0 %1680, %v1597
      %v1682 = vpop.permute.xlu0 %1681
      %1685 = vset.pattern.permute.xlu0 0
      %1686 = vperm.xlu0 %1685, %v1598
      %v1687 = vpop.permute.xlu0 %1686
      %1690 = vset.pattern.permute.xlu0 0
      %1691 = vperm.xlu0 %1690, %v1599
      %v1692 = vpop.permute.xlu0 %1691
      %1695 = vset.pattern.permute.xlu0 0
      %1696 = vperm.xlu0 %1695, %v1600
      %v1697 = vpop.permute.xlu0 %1696
      %1700 = vset.pattern.permute.xlu0 0
      %1701 = vperm.xlu0 %1700, %v1601
      %v1702 = vpop.permute.xlu0 %1701
      %1705 = vset.pattern.permute.xlu0 0
      %1706 = vperm.xlu0 %1705, %v1602
      %v1707 = vpop.permute.xlu0 %1706
      %1710 = vset.pattern.permute.xlu0 0
      %1711 = vperm.xlu0 %1710, %v1603
      %v1712 = vpop.permute.xlu0 %1711
      %1715 = vset.pattern.permute.xlu0 0
      %1716 = vperm.xlu0 %1715, %v1604
      %v1717 = vpop.permute.xlu0 %1716
      %1720 = vset.pattern.permute.xlu0 0
      %1721 = vperm.xlu0 %1720, %v1605
      %v1722 = vpop.permute.xlu0 %1721
      %1725 = vset.pattern.permute.xlu0 0
      %1726 = vperm.xlu0 %1725, %v1606
      %v1727 = vpop.permute.xlu0 %1726
      %1730 = vset.pattern.permute.xlu0 0
      %1731 = vperm.xlu0 %1730, %v1607
      %v1732 = vpop.permute.xlu0 %1731
      %1735 = vset.pattern.permute.xlu0 0
      %1736 = vperm.xlu0 %1735, %v1608
      %v1737 = vpop.permute.xlu0 %1736
      %1740 = vset.pattern.permute.xlu0 0
      %1741 = vperm.xlu0 %1740, %v1609
      %v1742 = vpop.permute.xlu0 %1741
      %1745 = vset.pattern.permute.xlu0 0
      %1746 = vperm.xlu0 %1745, %v1610
      %v1747 = vpop.permute.xlu0 %1746
      %1750 = vset.pattern.permute.xlu0 0
      %1751 = vperm.xlu0 %1750, %v1611
      %v1752 = vpop.permute.xlu0 %1751
      %1755 = vset.pattern.permute.xlu0 0
      %1756 = vperm.xlu0 %1755, %v1612
      %v1757 = vpop.permute.xlu0 %1756
      %1760 = vset.pattern.permute.xlu0 0
      %1761 = vperm.xlu0 %1760, %v1613
      %v1762 = vpop.permute.xlu0 %1761
      %1765 = vset.pattern.permute.xlu0 0
      %1766 = vperm.xlu0 %1765, %v1614
      %v1767 = vpop.permute.xlu0 %1766
      %1770 = vset.pattern.permute.xlu0 0
      %1771 = vperm.xlu0 %1770, %v1615
      %v1772 = vpop.permute.xlu0 %1771
      %1775 = vset.pattern.permute.xlu0 0
      %1776 = vperm.xlu0 %1775, %v1616
      %v1777 = vpop.permute.xlu0 %1776
      %1780 = vset.pattern.permute.xlu0 0
      %1781 = vperm.xlu0 %1780, %v1617
      %v1782 = vpop.permute.xlu0 %1781
      %1785 = vset.pattern.permute.xlu0 0
      %1786 = vperm.xlu0 %1785, %v1618
      %v1787 = vpop.permute.xlu0 %1786
      %1790 = vset.pattern.permute.xlu0 0
      %1791 = vperm.xlu0 %1790, %v1619
      %v1792 = vpop.permute.xlu0 %1791
      %1795 = vset.pattern.permute.xlu0 0
      %1796 = vperm.xlu0 %1795, %v1620
      %v1797 = vpop.permute.xlu0 %1796
      %1800 = vset.pattern.permute.xlu0 0
      %1801 = vperm.xlu0 %1800, %v1621
      %v1802 = vpop.permute.xlu0 %1801
      %1805 = vset.pattern.permute.xlu0 0
      %1806 = vperm.xlu0 %1805, %v1622
      %v1807 = vpop.permute.xlu0 %1806
      %1810 = vset.pattern.permute.xlu0 0
      %1811 = vperm.xlu0 %1810, %v1623
      %v1812 = vpop.permute.xlu0 %1811
      %1815 = vset.pattern.permute.xlu0 0
      %1816 = vperm.xlu0 %1815, %v1624
      %v1817 = vpop.permute.xlu0 %1816
      %1820 = vset.pattern.permute.xlu0 0
      %1821 = vperm.xlu0 %1820, %v1625
      %v1822 = vpop.permute.xlu0 %1821
      %1825 = vset.pattern.permute.xlu0 0
      %1826 = vperm.xlu0 %1825, %v1626
      %v1827 = vpop.permute.xlu0 %1826
      %v1830 = vperm.slane %v1628, 0
      %v1832 = vmul.f32 %v1632, %v1830
      %v1833 = vmul.f32 %v1637, %v1830
      %v1834 = vmul.f32 %v1642, %v1830
      %v1835 = vmul.f32 %v1647, %v1830
      %v1836 = vmul.f32 %v1652, %v1830
      %v1837 = vmul.f32 %v1657, %v1830
      %v1838 = vmul.f32 %v1662, %v1830
      %v1839 = vmul.f32 %v1667, %v1830
      %v1840 = vmul.f32 %v1672, %v1830
      %v1841 = vmul.f32 %v1677, %v1830
      %v1842 = vmul.f32 %v1682, %v1830
      %v1843 = vmul.f32 %v1687, %v1830
      %v1844 = vmul.f32 %v1692, %v1830
      %v1845 = vmul.f32 %v1697, %v1830
      %v1846 = vmul.f32 %v1702, %v1830
      %v1847 = vmul.f32 %v1707, %v1830
      %v1848 = vmul.f32 %v1712, %v1830
      %v1849 = vmul.f32 %v1717, %v1830
      %v1850 = vmul.f32 %v1722, %v1830
      %v1851 = vmul.f32 %v1727, %v1830
      %v1852 = vmul.f32 %v1732, %v1830
      %v1853 = vmul.f32 %v1737, %v1830
      %v1854 = vmul.f32 %v1742, %v1830
      %v1855 = vmul.f32 %v1747, %v1830
      %v1856 = vmul.f32 %v1752, %v1830
      %v1857 = vmul.f32 %v1757, %v1830
      %v1858 = vmul.f32 %v1762, %v1830
      %v1859 = vmul.f32 %v1767, %v1830
      %v1860 = vmul.f32 %v1772, %v1830
      %v1861 = vmul.f32 %v1777, %v1830
      %v1862 = vmul.f32 %v1782, %v1830
      %v1863 = vmul.f32 %v1787, %v1830
      %v1864 = vmul.f32 %v1792, %v1830
      %v1865 = vmul.f32 %v1797, %v1830
      %v1866 = vmul.f32 %v1802, %v1830
      %v1867 = vmul.f32 %v1807, %v1830
      %v1868 = vmul.f32 %v1812, %v1830
      %v1869 = vmul.f32 %v1817, %v1830
      %v1870 = vmul.f32 %v1822, %v1830
      %v1871 = vmul.f32 %v1827, %v1830
      %v1872 = vadd.f32 %v1346, %v1832
      %v1873 = vadd.f32 %v1347, %v1833
      %v1874 = vadd.f32 %v1348, %v1834
      %v1875 = vadd.f32 %v1349, %v1835
      %v1876 = vadd.f32 %v1350, %v1836
      %v1877 = vadd.f32 %v1351, %v1837
      %v1878 = vadd.f32 %v1352, %v1838
      %v1879 = vadd.f32 %v1353, %v1839
      %v1880 = vadd.f32 %v1354, %v1840
      %v1881 = vadd.f32 %v1355, %v1841
      %v1882 = vadd.f32 %v1356, %v1842
      %v1883 = vadd.f32 %v1357, %v1843
      %v1884 = vadd.f32 %v1358, %v1844
      %v1885 = vadd.f32 %v1359, %v1845
      %v1886 = vadd.f32 %v1360, %v1846
      %v1887 = vadd.f32 %v1361, %v1847
      %v1888 = vadd.f32 %v1362, %v1848
      %v1889 = vadd.f32 %v1363, %v1849
      %v1890 = vadd.f32 %v1364, %v1850
      %v1891 = vadd.f32 %v1365, %v1851
      %v1892 = vadd.f32 %v1366, %v1852
      %v1893 = vadd.f32 %v1367, %v1853
      %v1894 = vadd.f32 %v1368, %v1854
      %v1895 = vadd.f32 %v1369, %v1855
      %v1896 = vadd.f32 %v1370, %v1856
      %v1897 = vadd.f32 %v1371, %v1857
      %v1898 = vadd.f32 %v1372, %v1858
      %v1899 = vadd.f32 %v1373, %v1859
      %v1900 = vadd.f32 %v1374, %v1860
      %v1901 = vadd.f32 %v1375, %v1861
      %v1902 = vadd.f32 %v1376, %v1862
      %v1903 = vadd.f32 %v1377, %v1863
      %v1904 = vadd.f32 %v1378, %v1864
      %v1905 = vadd.f32 %v1379, %v1865
      %v1906 = vadd.f32 %v1380, %v1866
      %v1907 = vadd.f32 %v1381, %v1867
      %v1908 = vadd.f32 %v1382, %v1868
      %v1909 = vadd.f32 %v1383, %v1869
      %v1910 = vadd.f32 %v1384, %v1870
      %v1911 = vadd.f32 %v1385, %v1871
      %1912 = vrot.lane.b32.xlu0 %v537, 125
      %v1913 = vpop.permute.xlu0 %1912
      %1914 = vrot.lane.b32.xlu0 %v538, 125
      %v1915 = vpop.permute.xlu0 %1914
      %1916 = vrot.lane.b32.xlu0 %v539, 125
      %v1917 = vpop.permute.xlu0 %1916
      %1918 = vrot.lane.b32.xlu0 %v540, 125
      %v1919 = vpop.permute.xlu0 %1918
      %1920 = vrot.lane.b32.xlu0 %v541, 125
      %v1921 = vpop.permute.xlu0 %1920
      %1922 = vrot.lane.b32.xlu0 %v542, 125
      %v1923 = vpop.permute.xlu0 %1922
      %1924 = vrot.lane.b32.xlu0 %v543, 125
      %v1925 = vpop.permute.xlu0 %1924
      %1926 = vrot.lane.b32.xlu0 %v544, 125
      %v1927 = vpop.permute.xlu0 %1926
      %1928 = vrot.lane.b32.xlu0 %v545, 125
      %v1929 = vpop.permute.xlu0 %1928
      %1930 = vrot.lane.b32.xlu0 %v546, 125
      %v1931 = vpop.permute.xlu0 %1930
      %1932 = vrot.lane.b32.xlu0 %v547, 125
      %v1933 = vpop.permute.xlu0 %1932
      %1934 = vrot.lane.b32.xlu0 %v548, 125
      %v1935 = vpop.permute.xlu0 %1934
      %1936 = vrot.lane.b32.xlu0 %v549, 125
      %v1937 = vpop.permute.xlu0 %1936
      %1938 = vrot.lane.b32.xlu0 %v550, 125
      %v1939 = vpop.permute.xlu0 %1938
      %1940 = vrot.lane.b32.xlu0 %v551, 125
      %v1941 = vpop.permute.xlu0 %1940
      %1942 = vrot.lane.b32.xlu0 %v552, 125
      %v1943 = vpop.permute.xlu0 %1942
      %1944 = vrot.lane.b32.xlu0 %v553, 125
      %v1945 = vpop.permute.xlu0 %1944
      %1946 = vrot.lane.b32.xlu0 %v554, 125
      %v1947 = vpop.permute.xlu0 %1946
      %1948 = vrot.lane.b32.xlu0 %v555, 125
      %v1949 = vpop.permute.xlu0 %1948
      %1950 = vrot.lane.b32.xlu0 %v556, 125
      %v1951 = vpop.permute.xlu0 %1950
      %1952 = vrot.lane.b32.xlu0 %v557, 125
      %v1953 = vpop.permute.xlu0 %1952
      %1954 = vrot.lane.b32.xlu0 %v558, 125
      %v1955 = vpop.permute.xlu0 %1954
      %1956 = vrot.lane.b32.xlu0 %v559, 125
      %v1957 = vpop.permute.xlu0 %1956
      %1958 = vrot.lane.b32.xlu0 %v560, 125
      %v1959 = vpop.permute.xlu0 %1958
      %1960 = vrot.lane.b32.xlu0 %v561, 125
      %v1961 = vpop.permute.xlu0 %1960
      %1962 = vrot.lane.b32.xlu0 %v562, 125
      %v1963 = vpop.permute.xlu0 %1962
      %1964 = vrot.lane.b32.xlu0 %v563, 125
      %v1965 = vpop.permute.xlu0 %1964
      %1966 = vrot.lane.b32.xlu0 %v564, 125
      %v1967 = vpop.permute.xlu0 %1966
      %1968 = vrot.lane.b32.xlu0 %v565, 125
      %v1969 = vpop.permute.xlu0 %1968
      %1970 = vrot.lane.b32.xlu0 %v566, 125
      %v1971 = vpop.permute.xlu0 %1970
      %1972 = vrot.lane.b32.xlu0 %v567, 125
      %v1973 = vpop.permute.xlu0 %1972
      %1974 = vrot.lane.b32.xlu0 %v568, 125
      %v1975 = vpop.permute.xlu0 %1974
      %1976 = vrot.lane.b32.xlu0 %v569, 125
      %v1977 = vpop.permute.xlu0 %1976
      %1978 = vrot.lane.b32.xlu0 %v570, 125
      %v1979 = vpop.permute.xlu0 %1978
      %1980 = vrot.lane.b32.xlu0 %v571, 125
      %v1981 = vpop.permute.xlu0 %1980
      %1982 = vrot.lane.b32.xlu0 %v572, 125
      %v1983 = vpop.permute.xlu0 %1982
      %1984 = vrot.lane.b32.xlu0 %v573, 125
      %v1985 = vpop.permute.xlu0 %1984
      %1986 = vrot.lane.b32.xlu0 %v574, 125
      %v1987 = vpop.permute.xlu0 %1986
      %1988 = vrot.lane.b32.xlu0 %v575, 125
      %v1989 = vpop.permute.xlu0 %1988
      %1990 = vrot.lane.b32.xlu0 %v576, 125
      %v1991 = vpop.permute.xlu0 %1990
      %v2032 = vmul.f32 %v536, %v1913
      %v2033 = vmul.f32 %v535, %v1915
      %v2034 = vmul.f32 %v534, %v1917
      %v2035 = vmul.f32 %v533, %v1919
      %v2036 = vmul.f32 %v532, %v1921
      %v2037 = vmul.f32 %v531, %v1923
      %v2038 = vmul.f32 %v530, %v1925
      %v2039 = vmul.f32 %v529, %v1927
      %v2040 = vmul.f32 %v528, %v1929
      %v2041 = vmul.f32 %v527, %v1931
      %v2042 = vmul.f32 %v526, %v1933
      %v2043 = vmul.f32 %v525, %v1935
      %v2044 = vmul.f32 %v524, %v1937
      %v2045 = vmul.f32 %v523, %v1939
      %v2046 = vmul.f32 %v522, %v1941
      %v2047 = vmul.f32 %v521, %v1943
      %v2048 = vmul.f32 %v520, %v1945
      %v2049 = vmul.f32 %v519, %v1947
      %v2050 = vmul.f32 %v518, %v1949
      %v2051 = vmul.f32 %v517, %v1951
      %v2052 = vmul.f32 %v516, %v1953
      %v2053 = vmul.f32 %v515, %v1955
      %v2054 = vmul.f32 %v514, %v1957
      %v2055 = vmul.f32 %v513, %v1959
      %v2056 = vmul.f32 %v512, %v1961
      %v2057 = vmul.f32 %v511, %v1963
      %v2058 = vmul.f32 %v510, %v1965
      %v2059 = vmul.f32 %v509, %v1967
      %v2060 = vmul.f32 %v508, %v1969
      %v2061 = vmul.f32 %v507, %v1971
      %v2062 = vmul.f32 %v506, %v1973
      %v2063 = vmul.f32 %v505, %v1975
      %v2064 = vmul.f32 %v504, %v1977
      %v2065 = vmul.f32 %v503, %v1979
      %v2066 = vmul.f32 %v502, %v1981
      %v2067 = vmul.f32 %v501, %v1983
      %v2068 = vmul.f32 %v500, %v1985
      %v2069 = vmul.f32 %v499, %v1987
      %v2070 = vmul.f32 %v498, %v1989
      %v2071 = vmul.f32 %v497, %v1991
      %s2072 = scalar_lea.vmem %s4, 3
      %v2073 = vld [vmem:[%s2072] sm:$0x1]
      %2075 = vset.pattern.permute.xlu0 0
      %2076 = vperm.xlu0 %2075, %v2032
      %v2077 = vpop.permute.xlu0 %2076
      %2080 = vset.pattern.permute.xlu0 0
      %2081 = vperm.xlu0 %2080, %v2033
      %v2082 = vpop.permute.xlu0 %2081
      %2085 = vset.pattern.permute.xlu0 0
      %2086 = vperm.xlu0 %2085, %v2034
      %v2087 = vpop.permute.xlu0 %2086
      %2090 = vset.pattern.permute.xlu0 0
      %2091 = vperm.xlu0 %2090, %v2035
      %v2092 = vpop.permute.xlu0 %2091
      %2095 = vset.pattern.permute.xlu0 0
      %2096 = vperm.xlu0 %2095, %v2036
      %v2097 = vpop.permute.xlu0 %2096
      %2100 = vset.pattern.permute.xlu0 0
      %2101 = vperm.xlu0 %2100, %v2037
      %v2102 = vpop.permute.xlu0 %2101
      %2105 = vset.pattern.permute.xlu0 0
      %2106 = vperm.xlu0 %2105, %v2038
      %v2107 = vpop.permute.xlu0 %2106
      %2110 = vset.pattern.permute.xlu0 0
      %2111 = vperm.xlu0 %2110, %v2039
      %v2112 = vpop.permute.xlu0 %2111
      %2115 = vset.pattern.permute.xlu0 0
      %2116 = vperm.xlu0 %2115, %v2040
      %v2117 = vpop.permute.xlu0 %2116
      %2120 = vset.pattern.permute.xlu0 0
      %2121 = vperm.xlu0 %2120, %v2041
      %v2122 = vpop.permute.xlu0 %2121
      %2125 = vset.pattern.permute.xlu0 0
      %2126 = vperm.xlu0 %2125, %v2042
      %v2127 = vpop.permute.xlu0 %2126
      %2130 = vset.pattern.permute.xlu0 0
      %2131 = vperm.xlu0 %2130, %v2043
      %v2132 = vpop.permute.xlu0 %2131
      %2135 = vset.pattern.permute.xlu0 0
      %2136 = vperm.xlu0 %2135, %v2044
      %v2137 = vpop.permute.xlu0 %2136
      %2140 = vset.pattern.permute.xlu0 0
      %2141 = vperm.xlu0 %2140, %v2045
      %v2142 = vpop.permute.xlu0 %2141
      %2145 = vset.pattern.permute.xlu0 0
      %2146 = vperm.xlu0 %2145, %v2046
      %v2147 = vpop.permute.xlu0 %2146
      %2150 = vset.pattern.permute.xlu0 0
      %2151 = vperm.xlu0 %2150, %v2047
      %v2152 = vpop.permute.xlu0 %2151
      %2155 = vset.pattern.permute.xlu0 0
      %2156 = vperm.xlu0 %2155, %v2048
      %v2157 = vpop.permute.xlu0 %2156
      %2160 = vset.pattern.permute.xlu0 0
      %2161 = vperm.xlu0 %2160, %v2049
      %v2162 = vpop.permute.xlu0 %2161
      %2165 = vset.pattern.permute.xlu0 0
      %2166 = vperm.xlu0 %2165, %v2050
      %v2167 = vpop.permute.xlu0 %2166
      %2170 = vset.pattern.permute.xlu0 0
      %2171 = vperm.xlu0 %2170, %v2051
      %v2172 = vpop.permute.xlu0 %2171
      %2175 = vset.pattern.permute.xlu0 0
      %2176 = vperm.xlu0 %2175, %v2052
      %v2177 = vpop.permute.xlu0 %2176
      %2180 = vset.pattern.permute.xlu0 0
      %2181 = vperm.xlu0 %2180, %v2053
      %v2182 = vpop.permute.xlu0 %2181
      %2185 = vset.pattern.permute.xlu0 0
      %2186 = vperm.xlu0 %2185, %v2054
      %v2187 = vpop.permute.xlu0 %2186
      %2190 = vset.pattern.permute.xlu0 0
      %2191 = vperm.xlu0 %2190, %v2055
      %v2192 = vpop.permute.xlu0 %2191
      %2195 = vset.pattern.permute.xlu0 0
      %2196 = vperm.xlu0 %2195, %v2056
      %v2197 = vpop.permute.xlu0 %2196
      %2200 = vset.pattern.permute.xlu0 0
      %2201 = vperm.xlu0 %2200, %v2057
      %v2202 = vpop.permute.xlu0 %2201
      %2205 = vset.pattern.permute.xlu0 0
      %2206 = vperm.xlu0 %2205, %v2058
      %v2207 = vpop.permute.xlu0 %2206
      %2210 = vset.pattern.permute.xlu0 0
      %2211 = vperm.xlu0 %2210, %v2059
      %v2212 = vpop.permute.xlu0 %2211
      %2215 = vset.pattern.permute.xlu0 0
      %2216 = vperm.xlu0 %2215, %v2060
      %v2217 = vpop.permute.xlu0 %2216
      %2220 = vset.pattern.permute.xlu0 0
      %2221 = vperm.xlu0 %2220, %v2061
      %v2222 = vpop.permute.xlu0 %2221
      %2225 = vset.pattern.permute.xlu0 0
      %2226 = vperm.xlu0 %2225, %v2062
      %v2227 = vpop.permute.xlu0 %2226
      %2230 = vset.pattern.permute.xlu0 0
      %2231 = vperm.xlu0 %2230, %v2063
      %v2232 = vpop.permute.xlu0 %2231
      %2235 = vset.pattern.permute.xlu0 0
      %2236 = vperm.xlu0 %2235, %v2064
      %v2237 = vpop.permute.xlu0 %2236
      %2240 = vset.pattern.permute.xlu0 0
      %2241 = vperm.xlu0 %2240, %v2065
      %v2242 = vpop.permute.xlu0 %2241
      %2245 = vset.pattern.permute.xlu0 0
      %2246 = vperm.xlu0 %2245, %v2066
      %v2247 = vpop.permute.xlu0 %2246
      %2250 = vset.pattern.permute.xlu0 0
      %2251 = vperm.xlu0 %2250, %v2067
      %v2252 = vpop.permute.xlu0 %2251
      %2255 = vset.pattern.permute.xlu0 0
      %2256 = vperm.xlu0 %2255, %v2068
      %v2257 = vpop.permute.xlu0 %2256
      %2260 = vset.pattern.permute.xlu0 0
      %2261 = vperm.xlu0 %2260, %v2069
      %v2262 = vpop.permute.xlu0 %2261
      %2265 = vset.pattern.permute.xlu0 0
      %2266 = vperm.xlu0 %2265, %v2070
      %v2267 = vpop.permute.xlu0 %2266
      %2270 = vset.pattern.permute.xlu0 0
      %2271 = vperm.xlu0 %2270, %v2071
      %v2272 = vpop.permute.xlu0 %2271
      %v2275 = vperm.slane %v2073, 0
      %v2277 = vmul.f32 %v2077, %v2275
      %v2278 = vmul.f32 %v2082, %v2275
      %v2279 = vmul.f32 %v2087, %v2275
      %v2280 = vmul.f32 %v2092, %v2275
      %v2281 = vmul.f32 %v2097, %v2275
      %v2282 = vmul.f32 %v2102, %v2275
      %v2283 = vmul.f32 %v2107, %v2275
      %v2284 = vmul.f32 %v2112, %v2275
      %v2285 = vmul.f32 %v2117, %v2275
      %v2286 = vmul.f32 %v2122, %v2275
      %v2287 = vmul.f32 %v2127, %v2275
      %v2288 = vmul.f32 %v2132, %v2275
      %v2289 = vmul.f32 %v2137, %v2275
      %v2290 = vmul.f32 %v2142, %v2275
      %v2291 = vmul.f32 %v2147, %v2275
      %v2292 = vmul.f32 %v2152, %v2275
      %v2293 = vmul.f32 %v2157, %v2275
      %v2294 = vmul.f32 %v2162, %v2275
      %v2295 = vmul.f32 %v2167, %v2275
      %v2296 = vmul.f32 %v2172, %v2275
      %v2297 = vmul.f32 %v2177, %v2275
      %v2298 = vmul.f32 %v2182, %v2275
      %v2299 = vmul.f32 %v2187, %v2275
      %v2300 = vmul.f32 %v2192, %v2275
      %v2301 = vmul.f32 %v2197, %v2275
      %v2302 = vmul.f32 %v2202, %v2275
      %v2303 = vmul.f32 %v2207, %v2275
      %v2304 = vmul.f32 %v2212, %v2275
      %v2305 = vmul.f32 %v2217, %v2275
      %v2306 = vmul.f32 %v2222, %v2275
      %v2307 = vmul.f32 %v2227, %v2275
      %v2308 = vmul.f32 %v2232, %v2275
      %v2309 = vmul.f32 %v2237, %v2275
      %v2310 = vmul.f32 %v2242, %v2275
      %v2311 = vmul.f32 %v2247, %v2275
      %v2312 = vmul.f32 %v2252, %v2275
      %v2313 = vmul.f32 %v2257, %v2275
      %v2314 = vmul.f32 %v2262, %v2275
      %v2315 = vmul.f32 %v2267, %v2275
      %v2316 = vmul.f32 %v2272, %v2275
      %v2317 = vadd.f32 %v1872, %v2277
      %v2318 = vadd.f32 %v1873, %v2278
      %v2319 = vadd.f32 %v1874, %v2279
      %v2320 = vadd.f32 %v1875, %v2280
      %v2321 = vadd.f32 %v1876, %v2281
      %v2322 = vadd.f32 %v1877, %v2282
      %v2323 = vadd.f32 %v1878, %v2283
      %v2324 = vadd.f32 %v1879, %v2284
      %v2325 = vadd.f32 %v1880, %v2285
      %v2326 = vadd.f32 %v1881, %v2286
      %v2327 = vadd.f32 %v1882, %v2287
      %v2328 = vadd.f32 %v1883, %v2288
      %v2329 = vadd.f32 %v1884, %v2289
      %v2330 = vadd.f32 %v1885, %v2290
      %v2331 = vadd.f32 %v1886, %v2291
      %v2332 = vadd.f32 %v1887, %v2292
      %v2333 = vadd.f32 %v1888, %v2293
      %v2334 = vadd.f32 %v1889, %v2294
      %v2335 = vadd.f32 %v1890, %v2295
      %v2336 = vadd.f32 %v1891, %v2296
      %v2337 = vadd.f32 %v1892, %v2297
      %v2338 = vadd.f32 %v1893, %v2298
      %v2339 = vadd.f32 %v1894, %v2299
      %v2340 = vadd.f32 %v1895, %v2300
      %v2341 = vadd.f32 %v1896, %v2301
      %v2342 = vadd.f32 %v1897, %v2302
      %v2343 = vadd.f32 %v1898, %v2303
      %v2344 = vadd.f32 %v1899, %v2304
      %v2345 = vadd.f32 %v1900, %v2305
      %v2346 = vadd.f32 %v1901, %v2306
      %v2347 = vadd.f32 %v1902, %v2307
      %v2348 = vadd.f32 %v1903, %v2308
      %v2349 = vadd.f32 %v1904, %v2309
      %v2350 = vadd.f32 %v1905, %v2310
      %v2351 = vadd.f32 %v1906, %v2311
      %v2352 = vadd.f32 %v1907, %v2312
      %v2353 = vadd.f32 %v1908, %v2313
      %v2354 = vadd.f32 %v1909, %v2314
      %v2355 = vadd.f32 %v1910, %v2315
      %v2356 = vadd.f32 %v1911, %v2316
      %2357 = vrot.lane.b32.xlu0 %v537, 124
      %v2358 = vpop.permute.xlu0 %2357
      %2359 = vrot.lane.b32.xlu0 %v538, 124
      %v2360 = vpop.permute.xlu0 %2359
      %2361 = vrot.lane.b32.xlu0 %v539, 124
      %v2362 = vpop.permute.xlu0 %2361
      %2363 = vrot.lane.b32.xlu0 %v540, 124
      %v2364 = vpop.permute.xlu0 %2363
      %2365 = vrot.lane.b32.xlu0 %v541, 124
      %v2366 = vpop.permute.xlu0 %2365
      %2367 = vrot.lane.b32.xlu0 %v542, 124
      %v2368 = vpop.permute.xlu0 %2367
      %2369 = vrot.lane.b32.xlu0 %v543, 124
      %v2370 = vpop.permute.xlu0 %2369
      %2371 = vrot.lane.b32.xlu0 %v544, 124
      %v2372 = vpop.permute.xlu0 %2371
      %2373 = vrot.lane.b32.xlu0 %v545, 124
      %v2374 = vpop.permute.xlu0 %2373
      %2375 = vrot.lane.b32.xlu0 %v546, 124
      %v2376 = vpop.permute.xlu0 %2375
      %2377 = vrot.lane.b32.xlu0 %v547, 124
      %v2378 = vpop.permute.xlu0 %2377
      %2379 = vrot.lane.b32.xlu0 %v548, 124
      %v2380 = vpop.permute.xlu0 %2379
      %2381 = vrot.lane.b32.xlu0 %v549, 124
      %v2382 = vpop.permute.xlu0 %2381
      %2383 = vrot.lane.b32.xlu0 %v550, 124
      %v2384 = vpop.permute.xlu0 %2383
      %2385 = vrot.lane.b32.xlu0 %v551, 124
      %v2386 = vpop.permute.xlu0 %2385
      %2387 = vrot.lane.b32.xlu0 %v552, 124
      %v2388 = vpop.permute.xlu0 %2387
      %2389 = vrot.lane.b32.xlu0 %v553, 124
      %v2390 = vpop.permute.xlu0 %2389
      %2391 = vrot.lane.b32.xlu0 %v554, 124
      %v2392 = vpop.permute.xlu0 %2391
      %2393 = vrot.lane.b32.xlu0 %v555, 124
      %v2394 = vpop.permute.xlu0 %2393
      %2395 = vrot.lane.b32.xlu0 %v556, 124
      %v2396 = vpop.permute.xlu0 %2395
      %2397 = vrot.lane.b32.xlu0 %v557, 124
      %v2398 = vpop.permute.xlu0 %2397
      %2399 = vrot.lane.b32.xlu0 %v558, 124
      %v2400 = vpop.permute.xlu0 %2399
      %2401 = vrot.lane.b32.xlu0 %v559, 124
      %v2402 = vpop.permute.xlu0 %2401
      %2403 = vrot.lane.b32.xlu0 %v560, 124
      %v2404 = vpop.permute.xlu0 %2403
      %2405 = vrot.lane.b32.xlu0 %v561, 124
      %v2406 = vpop.permute.xlu0 %2405
      %2407 = vrot.lane.b32.xlu0 %v562, 124
      %v2408 = vpop.permute.xlu0 %2407
      %2409 = vrot.lane.b32.xlu0 %v563, 124
      %v2410 = vpop.permute.xlu0 %2409
      %2411 = vrot.lane.b32.xlu0 %v564, 124
      %v2412 = vpop.permute.xlu0 %2411
      %2413 = vrot.lane.b32.xlu0 %v565, 124
      %v2414 = vpop.permute.xlu0 %2413
      %2415 = vrot.lane.b32.xlu0 %v566, 124
      %v2416 = vpop.permute.xlu0 %2415
      %2417 = vrot.lane.b32.xlu0 %v567, 124
      %v2418 = vpop.permute.xlu0 %2417
      %2419 = vrot.lane.b32.xlu0 %v568, 124
      %v2420 = vpop.permute.xlu0 %2419
      %2421 = vrot.lane.b32.xlu0 %v569, 124
      %v2422 = vpop.permute.xlu0 %2421
      %2423 = vrot.lane.b32.xlu0 %v570, 124
      %v2424 = vpop.permute.xlu0 %2423
      %2425 = vrot.lane.b32.xlu0 %v571, 124
      %v2426 = vpop.permute.xlu0 %2425
      %2427 = vrot.lane.b32.xlu0 %v572, 124
      %v2428 = vpop.permute.xlu0 %2427
      %2429 = vrot.lane.b32.xlu0 %v573, 124
      %v2430 = vpop.permute.xlu0 %2429
      %2431 = vrot.lane.b32.xlu0 %v574, 124
      %v2432 = vpop.permute.xlu0 %2431
      %2433 = vrot.lane.b32.xlu0 %v575, 124
      %v2434 = vpop.permute.xlu0 %2433
      %2435 = vrot.lane.b32.xlu0 %v576, 124
      %v2436 = vpop.permute.xlu0 %2435
      %v2477 = vmul.f32 %v414, %v2358
      %v2478 = vmul.f32 %v415, %v2360
      %v2479 = vmul.f32 %v416, %v2362
      %v2480 = vmul.f32 %v417, %v2364
      %v2481 = vmul.f32 %v418, %v2366
      %v2482 = vmul.f32 %v419, %v2368
      %v2483 = vmul.f32 %v420, %v2370
      %v2484 = vmul.f32 %v421, %v2372
      %v2485 = vmul.f32 %v422, %v2374
      %v2486 = vmul.f32 %v423, %v2376
      %v2487 = vmul.f32 %v424, %v2378
      %v2488 = vmul.f32 %v425, %v2380
      %v2489 = vmul.f32 %v426, %v2382
      %v2490 = vmul.f32 %v427, %v2384
      %v2491 = vmul.f32 %v428, %v2386
      %v2492 = vmul.f32 %v429, %v2388
      %v2493 = vmul.f32 %v430, %v2390
      %v2494 = vmul.f32 %v431, %v2392
      %v2495 = vmul.f32 %v432, %v2394
      %v2496 = vmul.f32 %v433, %v2396
      %v2497 = vmul.f32 %v434, %v2398
      %v2498 = vmul.f32 %v435, %v2400
      %v2499 = vmul.f32 %v436, %v2402
      %v2500 = vmul.f32 %v437, %v2404
      %v2501 = vmul.f32 %v438, %v2406
      %v2502 = vmul.f32 %v439, %v2408
      %v2503 = vmul.f32 %v440, %v2410
      %v2504 = vmul.f32 %v441, %v2412
      %v2505 = vmul.f32 %v442, %v2414
      %v2506 = vmul.f32 %v443, %v2416
      %v2507 = vmul.f32 %v444, %v2418
      %v2508 = vmul.f32 %v445, %v2420
      %v2509 = vmul.f32 %v446, %v2422
      %v2510 = vmul.f32 %v447, %v2424
      %v2511 = vmul.f32 %v448, %v2426
      %v2512 = vmul.f32 %v449, %v2428
      %v2513 = vmul.f32 %v450, %v2430
      %v2514 = vmul.f32 %v451, %v2432
      %v2515 = vmul.f32 %v452, %v2434
      %v2516 = vmul.f32 %v453, %v2436
      %s2517 = scalar_lea.vmem %s4, 4
      %v2518 = vld [vmem:[%s2517] sm:$0x1]
      %2520 = vset.pattern.permute.xlu0 0
      %2521 = vperm.xlu0 %2520, %v2477
      %v2522 = vpop.permute.xlu0 %2521
      %2525 = vset.pattern.permute.xlu0 0
      %2526 = vperm.xlu0 %2525, %v2478
      %v2527 = vpop.permute.xlu0 %2526
      %2530 = vset.pattern.permute.xlu0 0
      %2531 = vperm.xlu0 %2530, %v2479
      %v2532 = vpop.permute.xlu0 %2531
      %2535 = vset.pattern.permute.xlu0 0
      %2536 = vperm.xlu0 %2535, %v2480
      %v2537 = vpop.permute.xlu0 %2536
      %2540 = vset.pattern.permute.xlu0 0
      %2541 = vperm.xlu0 %2540, %v2481
      %v2542 = vpop.permute.xlu0 %2541
      %2545 = vset.pattern.permute.xlu0 0
      %2546 = vperm.xlu0 %2545, %v2482
      %v2547 = vpop.permute.xlu0 %2546
      %2550 = vset.pattern.permute.xlu0 0
      %2551 = vperm.xlu0 %2550, %v2483
      %v2552 = vpop.permute.xlu0 %2551
      %2555 = vset.pattern.permute.xlu0 0
      %2556 = vperm.xlu0 %2555, %v2484
      %v2557 = vpop.permute.xlu0 %2556
      %2560 = vset.pattern.permute.xlu0 0
      %2561 = vperm.xlu0 %2560, %v2485
      %v2562 = vpop.permute.xlu0 %2561
      %2565 = vset.pattern.permute.xlu0 0
      %2566 = vperm.xlu0 %2565, %v2486
      %v2567 = vpop.permute.xlu0 %2566
      %2570 = vset.pattern.permute.xlu0 0
      %2571 = vperm.xlu0 %2570, %v2487
      %v2572 = vpop.permute.xlu0 %2571
      %2575 = vset.pattern.permute.xlu0 0
      %2576 = vperm.xlu0 %2575, %v2488
      %v2577 = vpop.permute.xlu0 %2576
      %2580 = vset.pattern.permute.xlu0 0
      %2581 = vperm.xlu0 %2580, %v2489
      %v2582 = vpop.permute.xlu0 %2581
      %2585 = vset.pattern.permute.xlu0 0
      %2586 = vperm.xlu0 %2585, %v2490
      %v2587 = vpop.permute.xlu0 %2586
      %2590 = vset.pattern.permute.xlu0 0
      %2591 = vperm.xlu0 %2590, %v2491
      %v2592 = vpop.permute.xlu0 %2591
      %2595 = vset.pattern.permute.xlu0 0
      %2596 = vperm.xlu0 %2595, %v2492
      %v2597 = vpop.permute.xlu0 %2596
      %2600 = vset.pattern.permute.xlu0 0
      %2601 = vperm.xlu0 %2600, %v2493
      %v2602 = vpop.permute.xlu0 %2601
      %2605 = vset.pattern.permute.xlu0 0
      %2606 = vperm.xlu0 %2605, %v2494
      %v2607 = vpop.permute.xlu0 %2606
      %2610 = vset.pattern.permute.xlu0 0
      %2611 = vperm.xlu0 %2610, %v2495
      %v2612 = vpop.permute.xlu0 %2611
      %2615 = vset.pattern.permute.xlu0 0
      %2616 = vperm.xlu0 %2615, %v2496
      %v2617 = vpop.permute.xlu0 %2616
      %2620 = vset.pattern.permute.xlu0 0
      %2621 = vperm.xlu0 %2620, %v2497
      %v2622 = vpop.permute.xlu0 %2621
      %2625 = vset.pattern.permute.xlu0 0
      %2626 = vperm.xlu0 %2625, %v2498
      %v2627 = vpop.permute.xlu0 %2626
      %2630 = vset.pattern.permute.xlu0 0
      %2631 = vperm.xlu0 %2630, %v2499
      %v2632 = vpop.permute.xlu0 %2631
      %2635 = vset.pattern.permute.xlu0 0
      %2636 = vperm.xlu0 %2635, %v2500
      %v2637 = vpop.permute.xlu0 %2636
      %2640 = vset.pattern.permute.xlu0 0
      %2641 = vperm.xlu0 %2640, %v2501
      %v2642 = vpop.permute.xlu0 %2641
      %2645 = vset.pattern.permute.xlu0 0
      %2646 = vperm.xlu0 %2645, %v2502
      %v2647 = vpop.permute.xlu0 %2646
      %2650 = vset.pattern.permute.xlu0 0
      %2651 = vperm.xlu0 %2650, %v2503
      %v2652 = vpop.permute.xlu0 %2651
      %2655 = vset.pattern.permute.xlu0 0
      %2656 = vperm.xlu0 %2655, %v2504
      %v2657 = vpop.permute.xlu0 %2656
      %2660 = vset.pattern.permute.xlu0 0
      %2661 = vperm.xlu0 %2660, %v2505
      %v2662 = vpop.permute.xlu0 %2661
      %2665 = vset.pattern.permute.xlu0 0
      %2666 = vperm.xlu0 %2665, %v2506
      %v2667 = vpop.permute.xlu0 %2666
      %2670 = vset.pattern.permute.xlu0 0
      %2671 = vperm.xlu0 %2670, %v2507
      %v2672 = vpop.permute.xlu0 %2671
      %2675 = vset.pattern.permute.xlu0 0
      %2676 = vperm.xlu0 %2675, %v2508
      %v2677 = vpop.permute.xlu0 %2676
      %2680 = vset.pattern.permute.xlu0 0
      %2681 = vperm.xlu0 %2680, %v2509
      %v2682 = vpop.permute.xlu0 %2681
      %2685 = vset.pattern.permute.xlu0 0
      %2686 = vperm.xlu0 %2685, %v2510
      %v2687 = vpop.permute.xlu0 %2686
      %2690 = vset.pattern.permute.xlu0 0
      %2691 = vperm.xlu0 %2690, %v2511
      %v2692 = vpop.permute.xlu0 %2691
      %2695 = vset.pattern.permute.xlu0 0
      %2696 = vperm.xlu0 %2695, %v2512
      %v2697 = vpop.permute.xlu0 %2696
      %2700 = vset.pattern.permute.xlu0 0
      %2701 = vperm.xlu0 %2700, %v2513
      %v2702 = vpop.permute.xlu0 %2701
      %2705 = vset.pattern.permute.xlu0 0
      %2706 = vperm.xlu0 %2705, %v2514
      %v2707 = vpop.permute.xlu0 %2706
      %2710 = vset.pattern.permute.xlu0 0
      %2711 = vperm.xlu0 %2710, %v2515
      %v2712 = vpop.permute.xlu0 %2711
      %2715 = vset.pattern.permute.xlu0 0
      %2716 = vperm.xlu0 %2715, %v2516
      %v2717 = vpop.permute.xlu0 %2716
      %v2720 = vperm.slane %v2518, 0
      %v2722 = vmul.f32 %v2522, %v2720
      %v2723 = vmul.f32 %v2527, %v2720
      %v2724 = vmul.f32 %v2532, %v2720
      %v2725 = vmul.f32 %v2537, %v2720
      %v2726 = vmul.f32 %v2542, %v2720
      %v2727 = vmul.f32 %v2547, %v2720
      %v2728 = vmul.f32 %v2552, %v2720
      %v2729 = vmul.f32 %v2557, %v2720
      %v2730 = vmul.f32 %v2562, %v2720
      %v2731 = vmul.f32 %v2567, %v2720
      %v2732 = vmul.f32 %v2572, %v2720
      %v2733 = vmul.f32 %v2577, %v2720
      %v2734 = vmul.f32 %v2582, %v2720
      %v2735 = vmul.f32 %v2587, %v2720
      %v2736 = vmul.f32 %v2592, %v2720
      %v2737 = vmul.f32 %v2597, %v2720
      %v2738 = vmul.f32 %v2602, %v2720
      %v2739 = vmul.f32 %v2607, %v2720
      %v2740 = vmul.f32 %v2612, %v2720
      %v2741 = vmul.f32 %v2617, %v2720
      %v2742 = vmul.f32 %v2622, %v2720
      %v2743 = vmul.f32 %v2627, %v2720
      %v2744 = vmul.f32 %v2632, %v2720
      %v2745 = vmul.f32 %v2637, %v2720
      %v2746 = vmul.f32 %v2642, %v2720
      %v2747 = vmul.f32 %v2647, %v2720
      %v2748 = vmul.f32 %v2652, %v2720
      %v2749 = vmul.f32 %v2657, %v2720
      %v2750 = vmul.f32 %v2662, %v2720
      %v2751 = vmul.f32 %v2667, %v2720
      %v2752 = vmul.f32 %v2672, %v2720
      %v2753 = vmul.f32 %v2677, %v2720
      %v2754 = vmul.f32 %v2682, %v2720
      %v2755 = vmul.f32 %v2687, %v2720
      %v2756 = vmul.f32 %v2692, %v2720
      %v2757 = vmul.f32 %v2697, %v2720
      %v2758 = vmul.f32 %v2702, %v2720
      %v2759 = vmul.f32 %v2707, %v2720
      %v2760 = vmul.f32 %v2712, %v2720
      %v2761 = vmul.f32 %v2717, %v2720
      %v2762 = vadd.f32 %v2317, %v2722
      %v2763 = vadd.f32 %v2318, %v2723
      %v2764 = vadd.f32 %v2319, %v2724
      %v2765 = vadd.f32 %v2320, %v2725
      %v2766 = vadd.f32 %v2321, %v2726
      %v2767 = vadd.f32 %v2322, %v2727
      %v2768 = vadd.f32 %v2323, %v2728
      %v2769 = vadd.f32 %v2324, %v2729
      %v2770 = vadd.f32 %v2325, %v2730
      %v2771 = vadd.f32 %v2326, %v2731
      %v2772 = vadd.f32 %v2327, %v2732
      %v2773 = vadd.f32 %v2328, %v2733
      %v2774 = vadd.f32 %v2329, %v2734
      %v2775 = vadd.f32 %v2330, %v2735
      %v2776 = vadd.f32 %v2331, %v2736
      %v2777 = vadd.f32 %v2332, %v2737
      %v2778 = vadd.f32 %v2333, %v2738
      %v2779 = vadd.f32 %v2334, %v2739
      %v2780 = vadd.f32 %v2335, %v2740
      %v2781 = vadd.f32 %v2336, %v2741
      %v2782 = vadd.f32 %v2337, %v2742
      %v2783 = vadd.f32 %v2338, %v2743
      %v2784 = vadd.f32 %v2339, %v2744
      %v2785 = vadd.f32 %v2340, %v2745
      %v2786 = vadd.f32 %v2341, %v2746
      %v2787 = vadd.f32 %v2342, %v2747
      %v2788 = vadd.f32 %v2343, %v2748
      %v2789 = vadd.f32 %v2344, %v2749
      %v2790 = vadd.f32 %v2345, %v2750
      %v2791 = vadd.f32 %v2346, %v2751
      %v2792 = vadd.f32 %v2347, %v2752
      %v2793 = vadd.f32 %v2348, %v2753
      %v2794 = vadd.f32 %v2349, %v2754
      %v2795 = vadd.f32 %v2350, %v2755
      %v2796 = vadd.f32 %v2351, %v2756
      %v2797 = vadd.f32 %v2352, %v2757
      %v2798 = vadd.f32 %v2353, %v2758
      %v2799 = vadd.f32 %v2354, %v2759
      %v2800 = vadd.f32 %v2355, %v2760
      %v2801 = vadd.f32 %v2356, %v2761
      %2802 = vrot.lane.b32.xlu0 %v537, 123
      %v2803 = vpop.permute.xlu0 %2802
      %2804 = vrot.lane.b32.xlu0 %v538, 123
      %v2805 = vpop.permute.xlu0 %2804
      %2806 = vrot.lane.b32.xlu0 %v539, 123
      %v2807 = vpop.permute.xlu0 %2806
      %2808 = vrot.lane.b32.xlu0 %v540, 123
      %v2809 = vpop.permute.xlu0 %2808
      %2810 = vrot.lane.b32.xlu0 %v541, 123
      %v2811 = vpop.permute.xlu0 %2810
      %2812 = vrot.lane.b32.xlu0 %v542, 123
      %v2813 = vpop.permute.xlu0 %2812
      %2814 = vrot.lane.b32.xlu0 %v543, 123
      %v2815 = vpop.permute.xlu0 %2814
      %2816 = vrot.lane.b32.xlu0 %v544, 123
      %v2817 = vpop.permute.xlu0 %2816
      %2818 = vrot.lane.b32.xlu0 %v545, 123
      %v2819 = vpop.permute.xlu0 %2818
      %2820 = vrot.lane.b32.xlu0 %v546, 123
      %v2821 = vpop.permute.xlu0 %2820
      %2822 = vrot.lane.b32.xlu0 %v547, 123
      %v2823 = vpop.permute.xlu0 %2822
      %2824 = vrot.lane.b32.xlu0 %v548, 123
      %v2825 = vpop.permute.xlu0 %2824
      %2826 = vrot.lane.b32.xlu0 %v549, 123
      %v2827 = vpop.permute.xlu0 %2826
      %2828 = vrot.lane.b32.xlu0 %v550, 123
      %v2829 = vpop.permute.xlu0 %2828
      %2830 = vrot.lane.b32.xlu0 %v551, 123
      %v2831 = vpop.permute.xlu0 %2830
      %2832 = vrot.lane.b32.xlu0 %v552, 123
      %v2833 = vpop.permute.xlu0 %2832
      %2834 = vrot.lane.b32.xlu0 %v553, 123
      %v2835 = vpop.permute.xlu0 %2834
      %2836 = vrot.lane.b32.xlu0 %v554, 123
      %v2837 = vpop.permute.xlu0 %2836
      %2838 = vrot.lane.b32.xlu0 %v555, 123
      %v2839 = vpop.permute.xlu0 %2838
      %2840 = vrot.lane.b32.xlu0 %v556, 123
      %v2841 = vpop.permute.xlu0 %2840
      %2842 = vrot.lane.b32.xlu0 %v557, 123
      %v2843 = vpop.permute.xlu0 %2842
      %2844 = vrot.lane.b32.xlu0 %v558, 123
      %v2845 = vpop.permute.xlu0 %2844
      %2846 = vrot.lane.b32.xlu0 %v559, 123
      %v2847 = vpop.permute.xlu0 %2846
      %2848 = vrot.lane.b32.xlu0 %v560, 123
      %v2849 = vpop.permute.xlu0 %2848
      %2850 = vrot.lane.b32.xlu0 %v561, 123
      %v2851 = vpop.permute.xlu0 %2850
      %2852 = vrot.lane.b32.xlu0 %v562, 123
      %v2853 = vpop.permute.xlu0 %2852
      %2854 = vrot.lane.b32.xlu0 %v563, 123
      %v2855 = vpop.permute.xlu0 %2854
      %2856 = vrot.lane.b32.xlu0 %v564, 123
      %v2857 = vpop.permute.xlu0 %2856
      %2858 = vrot.lane.b32.xlu0 %v565, 123
      %v2859 = vpop.permute.xlu0 %2858
      %2860 = vrot.lane.b32.xlu0 %v566, 123
      %v2861 = vpop.permute.xlu0 %2860
      %2862 = vrot.lane.b32.xlu0 %v567, 123
      %v2863 = vpop.permute.xlu0 %2862
      %2864 = vrot.lane.b32.xlu0 %v568, 123
      %v2865 = vpop.permute.xlu0 %2864
      %2866 = vrot.lane.b32.xlu0 %v569, 123
      %v2867 = vpop.permute.xlu0 %2866
      %2868 = vrot.lane.b32.xlu0 %v570, 123
      %v2869 = vpop.permute.xlu0 %2868
      %2870 = vrot.lane.b32.xlu0 %v571, 123
      %v2871 = vpop.permute.xlu0 %2870
      %2872 = vrot.lane.b32.xlu0 %v572, 123
      %v2873 = vpop.permute.xlu0 %2872
      %2874 = vrot.lane.b32.xlu0 %v573, 123
      %v2875 = vpop.permute.xlu0 %2874
      %2876 = vrot.lane.b32.xlu0 %v574, 123
      %v2877 = vpop.permute.xlu0 %2876
      %2878 = vrot.lane.b32.xlu0 %v575, 123
      %v2879 = vpop.permute.xlu0 %2878
      %2880 = vrot.lane.b32.xlu0 %v576, 123
      %v2881 = vpop.permute.xlu0 %2880
      %v2922 = vmul.f32 %v1465, %v2803
      %v2923 = vmul.f32 %v1464, %v2805
      %v2924 = vmul.f32 %v1463, %v2807
      %v2925 = vmul.f32 %v1462, %v2809
      %v2926 = vmul.f32 %v1461, %v2811
      %v2927 = vmul.f32 %v1460, %v2813
      %v2928 = vmul.f32 %v1459, %v2815
      %v2929 = vmul.f32 %v1458, %v2817
      %v2930 = vmul.f32 %v1457, %v2819
      %v2931 = vmul.f32 %v1456, %v2821
      %v2932 = vmul.f32 %v1455, %v2823
      %v2933 = vmul.f32 %v1454, %v2825
      %v2934 = vmul.f32 %v1453, %v2827
      %v2935 = vmul.f32 %v1452, %v2829
      %v2936 = vmul.f32 %v1451, %v2831
      %v2937 = vmul.f32 %v1450, %v2833
      %v2938 = vmul.f32 %v1449, %v2835
      %v2939 = vmul.f32 %v1448, %v2837
      %v2940 = vmul.f32 %v1447, %v2839
      %v2941 = vmul.f32 %v1446, %v2841
      %v2942 = vmul.f32 %v1445, %v2843
      %v2943 = vmul.f32 %v1444, %v2845
      %v2944 = vmul.f32 %v1443, %v2847
      %v2945 = vmul.f32 %v1442, %v2849
      %v2946 = vmul.f32 %v1441, %v2851
      %v2947 = vmul.f32 %v1440, %v2853
      %v2948 = vmul.f32 %v1439, %v2855
      %v2949 = vmul.f32 %v1438, %v2857
      %v2950 = vmul.f32 %v1437, %v2859
      %v2951 = vmul.f32 %v1436, %v2861
      %v2952 = vmul.f32 %v1435, %v2863
      %v2953 = vmul.f32 %v1434, %v2865
      %v2954 = vmul.f32 %v1433, %v2867
      %v2955 = vmul.f32 %v1432, %v2869
      %v2956 = vmul.f32 %v1431, %v2871
      %v2957 = vmul.f32 %v1430, %v2873
      %v2958 = vmul.f32 %v1429, %v2875
      %v2959 = vmul.f32 %v1428, %v2877
      %v2960 = vmul.f32 %v1427, %v2879
      %v2961 = vmul.f32 %v1466, %v2881
      %s2962 = scalar_lea.vmem %s4, 5
      %v2963 = vld [vmem:[%s2962] sm:$0x1]
      %2965 = vset.pattern.permute.xlu0 0
      %2966 = vperm.xlu0 %2965, %v2922
      %v2967 = vpop.permute.xlu0 %2966
      %2970 = vset.pattern.permute.xlu0 0
      %2971 = vperm.xlu0 %2970, %v2923
      %v2972 = vpop.permute.xlu0 %2971
      %2975 = vset.pattern.permute.xlu0 0
      %2976 = vperm.xlu0 %2975, %v2924
      %v2977 = vpop.permute.xlu0 %2976
      %2980 = vset.pattern.permute.xlu0 0
      %2981 = vperm.xlu0 %2980, %v2925
      %v2982 = vpop.permute.xlu0 %2981
      %2985 = vset.pattern.permute.xlu0 0
      %2986 = vperm.xlu0 %2985, %v2926
      %v2987 = vpop.permute.xlu0 %2986
      %2990 = vset.pattern.permute.xlu0 0
      %2991 = vperm.xlu0 %2990, %v2927
      %v2992 = vpop.permute.xlu0 %2991
      %2995 = vset.pattern.permute.xlu0 0
      %2996 = vperm.xlu0 %2995, %v2928
      %v2997 = vpop.permute.xlu0 %2996
      %3000 = vset.pattern.permute.xlu0 0
      %3001 = vperm.xlu0 %3000, %v2929
      %v3002 = vpop.permute.xlu0 %3001
      %3005 = vset.pattern.permute.xlu0 0
      %3006 = vperm.xlu0 %3005, %v2930
      %v3007 = vpop.permute.xlu0 %3006
      %3010 = vset.pattern.permute.xlu0 0
      %3011 = vperm.xlu0 %3010, %v2931
      %v3012 = vpop.permute.xlu0 %3011
      %3015 = vset.pattern.permute.xlu0 0
      %3016 = vperm.xlu0 %3015, %v2932
      %v3017 = vpop.permute.xlu0 %3016
      %3020 = vset.pattern.permute.xlu0 0
      %3021 = vperm.xlu0 %3020, %v2933
      %v3022 = vpop.permute.xlu0 %3021
      %3025 = vset.pattern.permute.xlu0 0
      %3026 = vperm.xlu0 %3025, %v2934
      %v3027 = vpop.permute.xlu0 %3026
      %3030 = vset.pattern.permute.xlu0 0
      %3031 = vperm.xlu0 %3030, %v2935
      %v3032 = vpop.permute.xlu0 %3031
      %3035 = vset.pattern.permute.xlu0 0
      %3036 = vperm.xlu0 %3035, %v2936
      %v3037 = vpop.permute.xlu0 %3036
      %3040 = vset.pattern.permute.xlu0 0
      %3041 = vperm.xlu0 %3040, %v2937
      %v3042 = vpop.permute.xlu0 %3041
      %3045 = vset.pattern.permute.xlu0 0
      %3046 = vperm.xlu0 %3045, %v2938
      %v3047 = vpop.permute.xlu0 %3046
      %3050 = vset.pattern.permute.xlu0 0
      %3051 = vperm.xlu0 %3050, %v2939
      %v3052 = vpop.permute.xlu0 %3051
      %3055 = vset.pattern.permute.xlu0 0
      %3056 = vperm.xlu0 %3055, %v2940
      %v3057 = vpop.permute.xlu0 %3056
      %3060 = vset.pattern.permute.xlu0 0
      %3061 = vperm.xlu0 %3060, %v2941
      %v3062 = vpop.permute.xlu0 %3061
      %3065 = vset.pattern.permute.xlu0 0
      %3066 = vperm.xlu0 %3065, %v2942
      %v3067 = vpop.permute.xlu0 %3066
      %3070 = vset.pattern.permute.xlu0 0
      %3071 = vperm.xlu0 %3070, %v2943
      %v3072 = vpop.permute.xlu0 %3071
      %3075 = vset.pattern.permute.xlu0 0
      %3076 = vperm.xlu0 %3075, %v2944
      %v3077 = vpop.permute.xlu0 %3076
      %3080 = vset.pattern.permute.xlu0 0
      %3081 = vperm.xlu0 %3080, %v2945
      %v3082 = vpop.permute.xlu0 %3081
      %3085 = vset.pattern.permute.xlu0 0
      %3086 = vperm.xlu0 %3085, %v2946
      %v3087 = vpop.permute.xlu0 %3086
      %3090 = vset.pattern.permute.xlu0 0
      %3091 = vperm.xlu0 %3090, %v2947
      %v3092 = vpop.permute.xlu0 %3091
      %3095 = vset.pattern.permute.xlu0 0
      %3096 = vperm.xlu0 %3095, %v2948
      %v3097 = vpop.permute.xlu0 %3096
      %3100 = vset.pattern.permute.xlu0 0
      %3101 = vperm.xlu0 %3100, %v2949
      %v3102 = vpop.permute.xlu0 %3101
      %3105 = vset.pattern.permute.xlu0 0
      %3106 = vperm.xlu0 %3105, %v2950
      %v3107 = vpop.permute.xlu0 %3106
      %3110 = vset.pattern.permute.xlu0 0
      %3111 = vperm.xlu0 %3110, %v2951
      %v3112 = vpop.permute.xlu0 %3111
      %3115 = vset.pattern.permute.xlu0 0
      %3116 = vperm.xlu0 %3115, %v2952
      %v3117 = vpop.permute.xlu0 %3116
      %3120 = vset.pattern.permute.xlu0 0
      %3121 = vperm.xlu0 %3120, %v2953
      %v3122 = vpop.permute.xlu0 %3121
      %3125 = vset.pattern.permute.xlu0 0
      %3126 = vperm.xlu0 %3125, %v2954
      %v3127 = vpop.permute.xlu0 %3126
      %3130 = vset.pattern.permute.xlu0 0
      %3131 = vperm.xlu0 %3130, %v2955
      %v3132 = vpop.permute.xlu0 %3131
      %3135 = vset.pattern.permute.xlu0 0
      %3136 = vperm.xlu0 %3135, %v2956
      %v3137 = vpop.permute.xlu0 %3136
      %3140 = vset.pattern.permute.xlu0 0
      %3141 = vperm.xlu0 %3140, %v2957
      %v3142 = vpop.permute.xlu0 %3141
      %3145 = vset.pattern.permute.xlu0 0
      %3146 = vperm.xlu0 %3145, %v2958
      %v3147 = vpop.permute.xlu0 %3146
      %3150 = vset.pattern.permute.xlu0 0
      %3151 = vperm.xlu0 %3150, %v2959
      %v3152 = vpop.permute.xlu0 %3151
      %3155 = vset.pattern.permute.xlu0 0
      %3156 = vperm.xlu0 %3155, %v2960
      %v3157 = vpop.permute.xlu0 %3156
      %3160 = vset.pattern.permute.xlu0 0
      %3161 = vperm.xlu0 %3160, %v2961
      %v3162 = vpop.permute.xlu0 %3161
      %v3165 = vperm.slane %v2963, 0
      %v3167 = vmul.f32 %v2967, %v3165
      %v3168 = vmul.f32 %v2972, %v3165
      %v3169 = vmul.f32 %v2977, %v3165
      %v3170 = vmul.f32 %v2982, %v3165
      %v3171 = vmul.f32 %v2987, %v3165
      %v3172 = vmul.f32 %v2992, %v3165
      %v3173 = vmul.f32 %v2997, %v3165
      %v3174 = vmul.f32 %v3002, %v3165
      %v3175 = vmul.f32 %v3007, %v3165
      %v3176 = vmul.f32 %v3012, %v3165
      %v3177 = vmul.f32 %v3017, %v3165
      %v3178 = vmul.f32 %v3022, %v3165
      %v3179 = vmul.f32 %v3027, %v3165
      %v3180 = vmul.f32 %v3032, %v3165
      %v3181 = vmul.f32 %v3037, %v3165
      %v3182 = vmul.f32 %v3042, %v3165
      %v3183 = vmul.f32 %v3047, %v3165
      %v3184 = vmul.f32 %v3052, %v3165
      %v3185 = vmul.f32 %v3057, %v3165
      %v3186 = vmul.f32 %v3062, %v3165
      %v3187 = vmul.f32 %v3067, %v3165
      %v3188 = vmul.f32 %v3072, %v3165
      %v3189 = vmul.f32 %v3077, %v3165
      %v3190 = vmul.f32 %v3082, %v3165
      %v3191 = vmul.f32 %v3087, %v3165
      %v3192 = vmul.f32 %v3092, %v3165
      %v3193 = vmul.f32 %v3097, %v3165
      %v3194 = vmul.f32 %v3102, %v3165
      %v3195 = vmul.f32 %v3107, %v3165
      %v3196 = vmul.f32 %v3112, %v3165
      %v3197 = vmul.f32 %v3117, %v3165
      %v3198 = vmul.f32 %v3122, %v3165
      %v3199 = vmul.f32 %v3127, %v3165
      %v3200 = vmul.f32 %v3132, %v3165
      %v3201 = vmul.f32 %v3137, %v3165
      %v3202 = vmul.f32 %v3142, %v3165
      %v3203 = vmul.f32 %v3147, %v3165
      %v3204 = vmul.f32 %v3152, %v3165
      %v3205 = vmul.f32 %v3157, %v3165
      %v3206 = vmul.f32 %v3162, %v3165
      %v3207 = vadd.f32 %v2762, %v3167
      %v3208 = vadd.f32 %v2763, %v3168
      %v3209 = vadd.f32 %v2764, %v3169
      %v3210 = vadd.f32 %v2765, %v3170
      %v3211 = vadd.f32 %v2766, %v3171
      %v3212 = vadd.f32 %v2767, %v3172
      %v3213 = vadd.f32 %v2768, %v3173
      %v3214 = vadd.f32 %v2769, %v3174
      %v3215 = vadd.f32 %v2770, %v3175
      %v3216 = vadd.f32 %v2771, %v3176
      %v3217 = vadd.f32 %v2772, %v3177
      %v3218 = vadd.f32 %v2773, %v3178
      %v3219 = vadd.f32 %v2774, %v3179
      %v3220 = vadd.f32 %v2775, %v3180
      %v3221 = vadd.f32 %v2776, %v3181
      %v3222 = vadd.f32 %v2777, %v3182
      %v3223 = vadd.f32 %v2778, %v3183
      %v3224 = vadd.f32 %v2779, %v3184
      %v3225 = vadd.f32 %v2780, %v3185
      %v3226 = vadd.f32 %v2781, %v3186
      %v3227 = vadd.f32 %v2782, %v3187
      %v3228 = vadd.f32 %v2783, %v3188
      %v3229 = vadd.f32 %v2784, %v3189
      %v3230 = vadd.f32 %v2785, %v3190
      %v3231 = vadd.f32 %v2786, %v3191
      %v3232 = vadd.f32 %v2787, %v3192
      %v3233 = vadd.f32 %v2788, %v3193
      %v3234 = vadd.f32 %v2789, %v3194
      %v3235 = vadd.f32 %v2790, %v3195
      %v3236 = vadd.f32 %v2791, %v3196
      %v3237 = vadd.f32 %v2792, %v3197
      %v3238 = vadd.f32 %v2793, %v3198
      %v3239 = vadd.f32 %v2794, %v3199
      %v3240 = vadd.f32 %v2795, %v3200
      %v3241 = vadd.f32 %v2796, %v3201
      %v3242 = vadd.f32 %v2797, %v3202
      %v3243 = vadd.f32 %v2798, %v3203
      %v3244 = vadd.f32 %v2799, %v3204
      %v3245 = vadd.f32 %v2800, %v3205
      %v3246 = vadd.f32 %v2801, %v3206
      %3247 = vrot.lane.b32.xlu0 %v537, 122
      %v3248 = vpop.permute.xlu0 %3247
      %3249 = vrot.lane.b32.xlu0 %v538, 122
      %v3250 = vpop.permute.xlu0 %3249
      %3251 = vrot.lane.b32.xlu0 %v539, 122
      %v3252 = vpop.permute.xlu0 %3251
      %3253 = vrot.lane.b32.xlu0 %v540, 122
      %v3254 = vpop.permute.xlu0 %3253
      %3255 = vrot.lane.b32.xlu0 %v541, 122
      %v3256 = vpop.permute.xlu0 %3255
      %3257 = vrot.lane.b32.xlu0 %v542, 122
      %v3258 = vpop.permute.xlu0 %3257
      %3259 = vrot.lane.b32.xlu0 %v543, 122
      %v3260 = vpop.permute.xlu0 %3259
      %3261 = vrot.lane.b32.xlu0 %v544, 122
      %v3262 = vpop.permute.xlu0 %3261
      %3263 = vrot.lane.b32.xlu0 %v545, 122
      %v3264 = vpop.permute.xlu0 %3263
      %3265 = vrot.lane.b32.xlu0 %v546, 122
      %v3266 = vpop.permute.xlu0 %3265
      %3267 = vrot.lane.b32.xlu0 %v547, 122
      %v3268 = vpop.permute.xlu0 %3267
      %3269 = vrot.lane.b32.xlu0 %v548, 122
      %v3270 = vpop.permute.xlu0 %3269
      %3271 = vrot.lane.b32.xlu0 %v549, 122
      %v3272 = vpop.permute.xlu0 %3271
      %3273 = vrot.lane.b32.xlu0 %v550, 122
      %v3274 = vpop.permute.xlu0 %3273
      %3275 = vrot.lane.b32.xlu0 %v551, 122
      %v3276 = vpop.permute.xlu0 %3275
      %3277 = vrot.lane.b32.xlu0 %v552, 122
      %v3278 = vpop.permute.xlu0 %3277
      %3279 = vrot.lane.b32.xlu0 %v553, 122
      %v3280 = vpop.permute.xlu0 %3279
      %3281 = vrot.lane.b32.xlu0 %v554, 122
      %v3282 = vpop.permute.xlu0 %3281
      %3283 = vrot.lane.b32.xlu0 %v555, 122
      %v3284 = vpop.permute.xlu0 %3283
      %3285 = vrot.lane.b32.xlu0 %v556, 122
      %v3286 = vpop.permute.xlu0 %3285
      %3287 = vrot.lane.b32.xlu0 %v557, 122
      %v3288 = vpop.permute.xlu0 %3287
      %3289 = vrot.lane.b32.xlu0 %v558, 122
      %v3290 = vpop.permute.xlu0 %3289
      %3291 = vrot.lane.b32.xlu0 %v559, 122
      %v3292 = vpop.permute.xlu0 %3291
      %3293 = vrot.lane.b32.xlu0 %v560, 122
      %v3294 = vpop.permute.xlu0 %3293
      %3295 = vrot.lane.b32.xlu0 %v561, 122
      %v3296 = vpop.permute.xlu0 %3295
      %3297 = vrot.lane.b32.xlu0 %v562, 122
      %v3298 = vpop.permute.xlu0 %3297
      %3299 = vrot.lane.b32.xlu0 %v563, 122
      %v3300 = vpop.permute.xlu0 %3299
      %3301 = vrot.lane.b32.xlu0 %v564, 122
      %v3302 = vpop.permute.xlu0 %3301
      %3303 = vrot.lane.b32.xlu0 %v565, 122
      %v3304 = vpop.permute.xlu0 %3303
      %3305 = vrot.lane.b32.xlu0 %v566, 122
      %v3306 = vpop.permute.xlu0 %3305
      %3307 = vrot.lane.b32.xlu0 %v567, 122
      %v3308 = vpop.permute.xlu0 %3307
      %3309 = vrot.lane.b32.xlu0 %v568, 122
      %v3310 = vpop.permute.xlu0 %3309
      %3311 = vrot.lane.b32.xlu0 %v569, 122
      %v3312 = vpop.permute.xlu0 %3311
      %3313 = vrot.lane.b32.xlu0 %v570, 122
      %v3314 = vpop.permute.xlu0 %3313
      %3315 = vrot.lane.b32.xlu0 %v571, 122
      %v3316 = vpop.permute.xlu0 %3315
      %3317 = vrot.lane.b32.xlu0 %v572, 122
      %v3318 = vpop.permute.xlu0 %3317
      %3319 = vrot.lane.b32.xlu0 %v573, 122
      %v3320 = vpop.permute.xlu0 %3319
      %3321 = vrot.lane.b32.xlu0 %v574, 122
      %v3322 = vpop.permute.xlu0 %3321
      %3323 = vrot.lane.b32.xlu0 %v575, 122
      %v3324 = vpop.permute.xlu0 %3323
      %3325 = vrot.lane.b32.xlu0 %v576, 122
      %v3326 = vpop.permute.xlu0 %3325
      %v3367 = vmul.f32 %v531, %v3248
      %v3368 = vmul.f32 %v530, %v3250
      %v3369 = vmul.f32 %v529, %v3252
      %v3370 = vmul.f32 %v528, %v3254
      %v3371 = vmul.f32 %v527, %v3256
      %v3372 = vmul.f32 %v526, %v3258
      %v3373 = vmul.f32 %v525, %v3260
      %v3374 = vmul.f32 %v524, %v3262
      %v3375 = vmul.f32 %v523, %v3264
      %v3376 = vmul.f32 %v522, %v3266
      %v3377 = vmul.f32 %v521, %v3268
      %v3378 = vmul.f32 %v520, %v3270
      %v3379 = vmul.f32 %v519, %v3272
      %v3380 = vmul.f32 %v518, %v3274
      %v3381 = vmul.f32 %v517, %v3276
      %v3382 = vmul.f32 %v516, %v3278
      %v3383 = vmul.f32 %v515, %v3280
      %v3384 = vmul.f32 %v514, %v3282
      %v3385 = vmul.f32 %v513, %v3284
      %v3386 = vmul.f32 %v512, %v3286
      %v3387 = vmul.f32 %v511, %v3288
      %v3388 = vmul.f32 %v510, %v3290
      %v3389 = vmul.f32 %v509, %v3292
      %v3390 = vmul.f32 %v508, %v3294
      %v3391 = vmul.f32 %v507, %v3296
      %v3392 = vmul.f32 %v506, %v3298
      %v3393 = vmul.f32 %v505, %v3300
      %v3394 = vmul.f32 %v504, %v3302
      %v3395 = vmul.f32 %v503, %v3304
      %v3396 = vmul.f32 %v502, %v3306
      %v3397 = vmul.f32 %v501, %v3308
      %v3398 = vmul.f32 %v500, %v3310
      %v3399 = vmul.f32 %v499, %v3312
      %v3400 = vmul.f32 %v498, %v3314
      %v3401 = vmul.f32 %v497, %v3316
      %v3402 = vmul.f32 %v536, %v3318
      %v3403 = vmul.f32 %v535, %v3320
      %v3404 = vmul.f32 %v534, %v3322
      %v3405 = vmul.f32 %v533, %v3324
      %v3406 = vmul.f32 %v532, %v3326
      %s3407 = scalar_lea.vmem %s4, 6
      %v3408 = vld [vmem:[%s3407] sm:$0x1]
      %3410 = vset.pattern.permute.xlu0 0
      %3411 = vperm.xlu0 %3410, %v3367
      %v3412 = vpop.permute.xlu0 %3411
      %3415 = vset.pattern.permute.xlu0 0
      %3416 = vperm.xlu0 %3415, %v3368
      %v3417 = vpop.permute.xlu0 %3416
      %3420 = vset.pattern.permute.xlu0 0
      %3421 = vperm.xlu0 %3420, %v3369
      %v3422 = vpop.permute.xlu0 %3421
      %3425 = vset.pattern.permute.xlu0 0
      %3426 = vperm.xlu0 %3425, %v3370
      %v3427 = vpop.permute.xlu0 %3426
      %3430 = vset.pattern.permute.xlu0 0
      %3431 = vperm.xlu0 %3430, %v3371
      %v3432 = vpop.permute.xlu0 %3431
      %3435 = vset.pattern.permute.xlu0 0
      %3436 = vperm.xlu0 %3435, %v3372
      %v3437 = vpop.permute.xlu0 %3436
      %3440 = vset.pattern.permute.xlu0 0
      %3441 = vperm.xlu0 %3440, %v3373
      %v3442 = vpop.permute.xlu0 %3441
      %3445 = vset.pattern.permute.xlu0 0
      %3446 = vperm.xlu0 %3445, %v3374
      %v3447 = vpop.permute.xlu0 %3446
      %3450 = vset.pattern.permute.xlu0 0
      %3451 = vperm.xlu0 %3450, %v3375
      %v3452 = vpop.permute.xlu0 %3451
      %3455 = vset.pattern.permute.xlu0 0
      %3456 = vperm.xlu0 %3455, %v3376
      %v3457 = vpop.permute.xlu0 %3456
      %3460 = vset.pattern.permute.xlu0 0
      %3461 = vperm.xlu0 %3460, %v3377
      %v3462 = vpop.permute.xlu0 %3461
      %3465 = vset.pattern.permute.xlu0 0
      %3466 = vperm.xlu0 %3465, %v3378
      %v3467 = vpop.permute.xlu0 %3466
      %3470 = vset.pattern.permute.xlu0 0
      %3471 = vperm.xlu0 %3470, %v3379
      %v3472 = vpop.permute.xlu0 %3471
      %3475 = vset.pattern.permute.xlu0 0
      %3476 = vperm.xlu0 %3475, %v3380
      %v3477 = vpop.permute.xlu0 %3476
      %3480 = vset.pattern.permute.xlu0 0
      %3481 = vperm.xlu0 %3480, %v3381
      %v3482 = vpop.permute.xlu0 %3481
      %3485 = vset.pattern.permute.xlu0 0
      %3486 = vperm.xlu0 %3485, %v3382
      %v3487 = vpop.permute.xlu0 %3486
      %3490 = vset.pattern.permute.xlu0 0
      %3491 = vperm.xlu0 %3490, %v3383
      %v3492 = vpop.permute.xlu0 %3491
      %3495 = vset.pattern.permute.xlu0 0
      %3496 = vperm.xlu0 %3495, %v3384
      %v3497 = vpop.permute.xlu0 %3496
      %3500 = vset.pattern.permute.xlu0 0
      %3501 = vperm.xlu0 %3500, %v3385
      %v3502 = vpop.permute.xlu0 %3501
      %3505 = vset.pattern.permute.xlu0 0
      %3506 = vperm.xlu0 %3505, %v3386
      %v3507 = vpop.permute.xlu0 %3506
      %3510 = vset.pattern.permute.xlu0 0
      %3511 = vperm.xlu0 %3510, %v3387
      %v3512 = vpop.permute.xlu0 %3511
      %3515 = vset.pattern.permute.xlu0 0
      %3516 = vperm.xlu0 %3515, %v3388
      %v3517 = vpop.permute.xlu0 %3516
      %3520 = vset.pattern.permute.xlu0 0
      %3521 = vperm.xlu0 %3520, %v3389
      %v3522 = vpop.permute.xlu0 %3521
      %3525 = vset.pattern.permute.xlu0 0
      %3526 = vperm.xlu0 %3525, %v3390
      %v3527 = vpop.permute.xlu0 %3526
      %3530 = vset.pattern.permute.xlu0 0
      %3531 = vperm.xlu0 %3530, %v3391
      %v3532 = vpop.permute.xlu0 %3531
      %3535 = vset.pattern.permute.xlu0 0
      %3536 = vperm.xlu0 %3535, %v3392
      %v3537 = vpop.permute.xlu0 %3536
      %3540 = vset.pattern.permute.xlu0 0
      %3541 = vperm.xlu0 %3540, %v3393
      %v3542 = vpop.permute.xlu0 %3541
      %3545 = vset.pattern.permute.xlu0 0
      %3546 = vperm.xlu0 %3545, %v3394
      %v3547 = vpop.permute.xlu0 %3546
      %3550 = vset.pattern.permute.xlu0 0
      %3551 = vperm.xlu0 %3550, %v3395
      %v3552 = vpop.permute.xlu0 %3551
      %3555 = vset.pattern.permute.xlu0 0
      %3556 = vperm.xlu0 %3555, %v3396
      %v3557 = vpop.permute.xlu0 %3556
      %3560 = vset.pattern.permute.xlu0 0
      %3561 = vperm.xlu0 %3560, %v3397
      %v3562 = vpop.permute.xlu0 %3561
      %3565 = vset.pattern.permute.xlu0 0
      %3566 = vperm.xlu0 %3565, %v3398
      %v3567 = vpop.permute.xlu0 %3566
      %3570 = vset.pattern.permute.xlu0 0
      %3571 = vperm.xlu0 %3570, %v3399
      %v3572 = vpop.permute.xlu0 %3571
      %3575 = vset.pattern.permute.xlu0 0
      %3576 = vperm.xlu0 %3575, %v3400
      %v3577 = vpop.permute.xlu0 %3576
      %3580 = vset.pattern.permute.xlu0 0
      %3581 = vperm.xlu0 %3580, %v3401
      %v3582 = vpop.permute.xlu0 %3581
      %3585 = vset.pattern.permute.xlu0 0
      %3586 = vperm.xlu0 %3585, %v3402
      %v3587 = vpop.permute.xlu0 %3586
      %3590 = vset.pattern.permute.xlu0 0
      %3591 = vperm.xlu0 %3590, %v3403
      %v3592 = vpop.permute.xlu0 %3591
      %3595 = vset.pattern.permute.xlu0 0
      %3596 = vperm.xlu0 %3595, %v3404
      %v3597 = vpop.permute.xlu0 %3596
      %3600 = vset.pattern.permute.xlu0 0
      %3601 = vperm.xlu0 %3600, %v3405
      %v3602 = vpop.permute.xlu0 %3601
      %3605 = vset.pattern.permute.xlu0 0
      %3606 = vperm.xlu0 %3605, %v3406
      %v3607 = vpop.permute.xlu0 %3606
      %v3610 = vperm.slane %v3408, 0
      %v3612 = vmul.f32 %v3412, %v3610
      %v3613 = vmul.f32 %v3417, %v3610
      %v3614 = vmul.f32 %v3422, %v3610
      %v3615 = vmul.f32 %v3427, %v3610
      %v3616 = vmul.f32 %v3432, %v3610
      %v3617 = vmul.f32 %v3437, %v3610
      %v3618 = vmul.f32 %v3442, %v3610
      %v3619 = vmul.f32 %v3447, %v3610
      %v3620 = vmul.f32 %v3452, %v3610
      %v3621 = vmul.f32 %v3457, %v3610
      %v3622 = vmul.f32 %v3462, %v3610
      %v3623 = vmul.f32 %v3467, %v3610
      %v3624 = vmul.f32 %v3472, %v3610
      %v3625 = vmul.f32 %v3477, %v3610
      %v3626 = vmul.f32 %v3482, %v3610
      %v3627 = vmul.f32 %v3487, %v3610
      %v3628 = vmul.f32 %v3492, %v3610
      %v3629 = vmul.f32 %v3497, %v3610
      %v3630 = vmul.f32 %v3502, %v3610
      %v3631 = vmul.f32 %v3507, %v3610
      %v3632 = vmul.f32 %v3512, %v3610
      %v3633 = vmul.f32 %v3517, %v3610
      %v3634 = vmul.f32 %v3522, %v3610
      %v3635 = vmul.f32 %v3527, %v3610
      %v3636 = vmul.f32 %v3532, %v3610
      %v3637 = vmul.f32 %v3537, %v3610
      %v3638 = vmul.f32 %v3542, %v3610
      %v3639 = vmul.f32 %v3547, %v3610
      %v3640 = vmul.f32 %v3552, %v3610
      %v3641 = vmul.f32 %v3557, %v3610
      %v3642 = vmul.f32 %v3562, %v3610
      %v3643 = vmul.f32 %v3567, %v3610
      %v3644 = vmul.f32 %v3572, %v3610
      %v3645 = vmul.f32 %v3577, %v3610
      %v3646 = vmul.f32 %v3582, %v3610
      %v3647 = vmul.f32 %v3587, %v3610
      %v3648 = vmul.f32 %v3592, %v3610
      %v3649 = vmul.f32 %v3597, %v3610
      %v3650 = vmul.f32 %v3602, %v3610
      %v3651 = vmul.f32 %v3607, %v3610
      %v3652 = vadd.f32 %v3207, %v3612
      %v3653 = vadd.f32 %v3208, %v3613
      %v3654 = vadd.f32 %v3209, %v3614
      %v3655 = vadd.f32 %v3210, %v3615
      %v3656 = vadd.f32 %v3211, %v3616
      %v3657 = vadd.f32 %v3212, %v3617
      %v3658 = vadd.f32 %v3213, %v3618
      %v3659 = vadd.f32 %v3214, %v3619
      %v3660 = vadd.f32 %v3215, %v3620
      %v3661 = vadd.f32 %v3216, %v3621
      %v3662 = vadd.f32 %v3217, %v3622
      %v3663 = vadd.f32 %v3218, %v3623
      %v3664 = vadd.f32 %v3219, %v3624
      %v3665 = vadd.f32 %v3220, %v3625
      %v3666 = vadd.f32 %v3221, %v3626
      %v3667 = vadd.f32 %v3222, %v3627
      %v3668 = vadd.f32 %v3223, %v3628
      %v3669 = vadd.f32 %v3224, %v3629
      %v3670 = vadd.f32 %v3225, %v3630
      %v3671 = vadd.f32 %v3226, %v3631
      %v3672 = vadd.f32 %v3227, %v3632
      %v3673 = vadd.f32 %v3228, %v3633
      %v3674 = vadd.f32 %v3229, %v3634
      %v3675 = vadd.f32 %v3230, %v3635
      %v3676 = vadd.f32 %v3231, %v3636
      %v3677 = vadd.f32 %v3232, %v3637
      %v3678 = vadd.f32 %v3233, %v3638
      %v3679 = vadd.f32 %v3234, %v3639
      %v3680 = vadd.f32 %v3235, %v3640
      %v3681 = vadd.f32 %v3236, %v3641
      %v3682 = vadd.f32 %v3237, %v3642
      %v3683 = vadd.f32 %v3238, %v3643
      %v3684 = vadd.f32 %v3239, %v3644
      %v3685 = vadd.f32 %v3240, %v3645
      %v3686 = vadd.f32 %v3241, %v3646
      %v3687 = vadd.f32 %v3242, %v3647
      %v3688 = vadd.f32 %v3243, %v3648
      %v3689 = vadd.f32 %v3244, %v3649
      %v3690 = vadd.f32 %v3245, %v3650
      %v3691 = vadd.f32 %v3246, %v3651
      %3692 = vrot.lane.b32.xlu0 %v537, 121
      %v3693 = vpop.permute.xlu0 %3692
      %3694 = vrot.lane.b32.xlu0 %v538, 121
      %v3695 = vpop.permute.xlu0 %3694
      %3696 = vrot.lane.b32.xlu0 %v539, 121
      %v3697 = vpop.permute.xlu0 %3696
      %3698 = vrot.lane.b32.xlu0 %v540, 121
      %v3699 = vpop.permute.xlu0 %3698
      %3700 = vrot.lane.b32.xlu0 %v541, 121
      %v3701 = vpop.permute.xlu0 %3700
      %3702 = vrot.lane.b32.xlu0 %v542, 121
      %v3703 = vpop.permute.xlu0 %3702
      %3704 = vrot.lane.b32.xlu0 %v543, 121
      %v3705 = vpop.permute.xlu0 %3704
      %3706 = vrot.lane.b32.xlu0 %v544, 121
      %v3707 = vpop.permute.xlu0 %3706
      %3708 = vrot.lane.b32.xlu0 %v545, 121
      %v3709 = vpop.permute.xlu0 %3708
      %3710 = vrot.lane.b32.xlu0 %v546, 121
      %v3711 = vpop.permute.xlu0 %3710
      %3712 = vrot.lane.b32.xlu0 %v547, 121
      %v3713 = vpop.permute.xlu0 %3712
      %3714 = vrot.lane.b32.xlu0 %v548, 121
      %v3715 = vpop.permute.xlu0 %3714
      %3716 = vrot.lane.b32.xlu0 %v549, 121
      %v3717 = vpop.permute.xlu0 %3716
      %3718 = vrot.lane.b32.xlu0 %v550, 121
      %v3719 = vpop.permute.xlu0 %3718
      %3720 = vrot.lane.b32.xlu0 %v551, 121
      %v3721 = vpop.permute.xlu0 %3720
      %3722 = vrot.lane.b32.xlu0 %v552, 121
      %v3723 = vpop.permute.xlu0 %3722
      %3724 = vrot.lane.b32.xlu0 %v553, 121
      %v3725 = vpop.permute.xlu0 %3724
      %3726 = vrot.lane.b32.xlu0 %v554, 121
      %v3727 = vpop.permute.xlu0 %3726
      %3728 = vrot.lane.b32.xlu0 %v555, 121
      %v3729 = vpop.permute.xlu0 %3728
      %3730 = vrot.lane.b32.xlu0 %v556, 121
      %v3731 = vpop.permute.xlu0 %3730
      %3732 = vrot.lane.b32.xlu0 %v557, 121
      %v3733 = vpop.permute.xlu0 %3732
      %3734 = vrot.lane.b32.xlu0 %v558, 121
      %v3735 = vpop.permute.xlu0 %3734
      %3736 = vrot.lane.b32.xlu0 %v559, 121
      %v3737 = vpop.permute.xlu0 %3736
      %3738 = vrot.lane.b32.xlu0 %v560, 121
      %v3739 = vpop.permute.xlu0 %3738
      %3740 = vrot.lane.b32.xlu0 %v561, 121
      %v3741 = vpop.permute.xlu0 %3740
      %3742 = vrot.lane.b32.xlu0 %v562, 121
      %v3743 = vpop.permute.xlu0 %3742
      %3744 = vrot.lane.b32.xlu0 %v563, 121
      %v3745 = vpop.permute.xlu0 %3744
      %3746 = vrot.lane.b32.xlu0 %v564, 121
      %v3747 = vpop.permute.xlu0 %3746
      %3748 = vrot.lane.b32.xlu0 %v565, 121
      %v3749 = vpop.permute.xlu0 %3748
      %3750 = vrot.lane.b32.xlu0 %v566, 121
      %v3751 = vpop.permute.xlu0 %3750
      %3752 = vrot.lane.b32.xlu0 %v567, 121
      %v3753 = vpop.permute.xlu0 %3752
      %3754 = vrot.lane.b32.xlu0 %v568, 121
      %v3755 = vpop.permute.xlu0 %3754
      %3756 = vrot.lane.b32.xlu0 %v569, 121
      %v3757 = vpop.permute.xlu0 %3756
      %3758 = vrot.lane.b32.xlu0 %v570, 121
      %v3759 = vpop.permute.xlu0 %3758
      %3760 = vrot.lane.b32.xlu0 %v571, 121
      %v3761 = vpop.permute.xlu0 %3760
      %3762 = vrot.lane.b32.xlu0 %v572, 121
      %v3763 = vpop.permute.xlu0 %3762
      %3764 = vrot.lane.b32.xlu0 %v573, 121
      %v3765 = vpop.permute.xlu0 %3764
      %3766 = vrot.lane.b32.xlu0 %v574, 121
      %v3767 = vpop.permute.xlu0 %3766
      %3768 = vrot.lane.b32.xlu0 %v575, 121
      %v3769 = vpop.permute.xlu0 %3768
      %3770 = vrot.lane.b32.xlu0 %v576, 121
      %v3771 = vpop.permute.xlu0 %3770
      %v3812 = vmul.f32 %v419, %v3693
      %v3813 = vmul.f32 %v420, %v3695
      %v3814 = vmul.f32 %v421, %v3697
      %v3815 = vmul.f32 %v422, %v3699
      %v3816 = vmul.f32 %v423, %v3701
      %v3817 = vmul.f32 %v424, %v3703
      %v3818 = vmul.f32 %v425, %v3705
      %v3819 = vmul.f32 %v426, %v3707
      %v3820 = vmul.f32 %v427, %v3709
      %v3821 = vmul.f32 %v428, %v3711
      %v3822 = vmul.f32 %v429, %v3713
      %v3823 = vmul.f32 %v430, %v3715
      %v3824 = vmul.f32 %v431, %v3717
      %v3825 = vmul.f32 %v432, %v3719
      %v3826 = vmul.f32 %v433, %v3721
      %v3827 = vmul.f32 %v434, %v3723
      %v3828 = vmul.f32 %v435, %v3725
      %v3829 = vmul.f32 %v436, %v3727
      %v3830 = vmul.f32 %v437, %v3729
      %v3831 = vmul.f32 %v438, %v3731
      %v3832 = vmul.f32 %v439, %v3733
      %v3833 = vmul.f32 %v440, %v3735
      %v3834 = vmul.f32 %v441, %v3737
      %v3835 = vmul.f32 %v442, %v3739
      %v3836 = vmul.f32 %v443, %v3741
      %v3837 = vmul.f32 %v444, %v3743
      %v3838 = vmul.f32 %v445, %v3745
      %v3839 = vmul.f32 %v446, %v3747
      %v3840 = vmul.f32 %v447, %v3749
      %v3841 = vmul.f32 %v448, %v3751
      %v3842 = vmul.f32 %v449, %v3753
      %v3843 = vmul.f32 %v450, %v3755
      %v3844 = vmul.f32 %v451, %v3757
      %v3845 = vmul.f32 %v452, %v3759
      %v3846 = vmul.f32 %v453, %v3761
      %v3847 = vmul.f32 %v414, %v3763
      %v3848 = vmul.f32 %v415, %v3765
      %v3849 = vmul.f32 %v416, %v3767
      %v3850 = vmul.f32 %v417, %v3769
      %v3851 = vmul.f32 %v418, %v3771
      %s3852 = scalar_lea.vmem %s4, 7
      %v3853 = vld [vmem:[%s3852] sm:$0x1]
      %3855 = vset.pattern.permute.xlu0 0
      %3856 = vperm.xlu0 %3855, %v3812
      %v3857 = vpop.permute.xlu0 %3856
      %3860 = vset.pattern.permute.xlu0 0
      %3861 = vperm.xlu0 %3860, %v3813
      %v3862 = vpop.permute.xlu0 %3861
      %3865 = vset.pattern.permute.xlu0 0
      %3866 = vperm.xlu0 %3865, %v3814
      %v3867 = vpop.permute.xlu0 %3866
      %3870 = vset.pattern.permute.xlu0 0
      %3871 = vperm.xlu0 %3870, %v3815
      %v3872 = vpop.permute.xlu0 %3871
      %3875 = vset.pattern.permute.xlu0 0
      %3876 = vperm.xlu0 %3875, %v3816
      %v3877 = vpop.permute.xlu0 %3876
      %3880 = vset.pattern.permute.xlu0 0
      %3881 = vperm.xlu0 %3880, %v3817
      %v3882 = vpop.permute.xlu0 %3881
      %3885 = vset.pattern.permute.xlu0 0
      %3886 = vperm.xlu0 %3885, %v3818
      %v3887 = vpop.permute.xlu0 %3886
      %3890 = vset.pattern.permute.xlu0 0
      %3891 = vperm.xlu0 %3890, %v3819
      %v3892 = vpop.permute.xlu0 %3891
      %3895 = vset.pattern.permute.xlu0 0
      %3896 = vperm.xlu0 %3895, %v3820
      %v3897 = vpop.permute.xlu0 %3896
      %3900 = vset.pattern.permute.xlu0 0
      %3901 = vperm.xlu0 %3900, %v3821
      %v3902 = vpop.permute.xlu0 %3901
      %3905 = vset.pattern.permute.xlu0 0
      %3906 = vperm.xlu0 %3905, %v3822
      %v3907 = vpop.permute.xlu0 %3906
      %3910 = vset.pattern.permute.xlu0 0
      %3911 = vperm.xlu0 %3910, %v3823
      %v3912 = vpop.permute.xlu0 %3911
      %3915 = vset.pattern.permute.xlu0 0
      %3916 = vperm.xlu0 %3915, %v3824
      %v3917 = vpop.permute.xlu0 %3916
      %3920 = vset.pattern.permute.xlu0 0
      %3921 = vperm.xlu0 %3920, %v3825
      %v3922 = vpop.permute.xlu0 %3921
      %3925 = vset.pattern.permute.xlu0 0
      %3926 = vperm.xlu0 %3925, %v3826
      %v3927 = vpop.permute.xlu0 %3926
      %3930 = vset.pattern.permute.xlu0 0
      %3931 = vperm.xlu0 %3930, %v3827
      %v3932 = vpop.permute.xlu0 %3931
      %3935 = vset.pattern.permute.xlu0 0
      %3936 = vperm.xlu0 %3935, %v3828
      %v3937 = vpop.permute.xlu0 %3936
      %3940 = vset.pattern.permute.xlu0 0
      %3941 = vperm.xlu0 %3940, %v3829
      %v3942 = vpop.permute.xlu0 %3941
      %3945 = vset.pattern.permute.xlu0 0
      %3946 = vperm.xlu0 %3945, %v3830
      %v3947 = vpop.permute.xlu0 %3946
      %3950 = vset.pattern.permute.xlu0 0
      %3951 = vperm.xlu0 %3950, %v3831
      %v3952 = vpop.permute.xlu0 %3951
      %3955 = vset.pattern.permute.xlu0 0
      %3956 = vperm.xlu0 %3955, %v3832
      %v3957 = vpop.permute.xlu0 %3956
      %3960 = vset.pattern.permute.xlu0 0
      %3961 = vperm.xlu0 %3960, %v3833
      %v3962 = vpop.permute.xlu0 %3961
      %3965 = vset.pattern.permute.xlu0 0
      %3966 = vperm.xlu0 %3965, %v3834
      %v3967 = vpop.permute.xlu0 %3966
      %3970 = vset.pattern.permute.xlu0 0
      %3971 = vperm.xlu0 %3970, %v3835
      %v3972 = vpop.permute.xlu0 %3971
      %3975 = vset.pattern.permute.xlu0 0
      %3976 = vperm.xlu0 %3975, %v3836
      %v3977 = vpop.permute.xlu0 %3976
      %3980 = vset.pattern.permute.xlu0 0
      %3981 = vperm.xlu0 %3980, %v3837
      %v3982 = vpop.permute.xlu0 %3981
      %3985 = vset.pattern.permute.xlu0 0
      %3986 = vperm.xlu0 %3985, %v3838
      %v3987 = vpop.permute.xlu0 %3986
      %3990 = vset.pattern.permute.xlu0 0
      %3991 = vperm.xlu0 %3990, %v3839
      %v3992 = vpop.permute.xlu0 %3991
      %3995 = vset.pattern.permute.xlu0 0
      %3996 = vperm.xlu0 %3995, %v3840
      %v3997 = vpop.permute.xlu0 %3996
      %4000 = vset.pattern.permute.xlu0 0
      %4001 = vperm.xlu0 %4000, %v3841
      %v4002 = vpop.permute.xlu0 %4001
      %4005 = vset.pattern.permute.xlu0 0
      %4006 = vperm.xlu0 %4005, %v3842
      %v4007 = vpop.permute.xlu0 %4006
      %4010 = vset.pattern.permute.xlu0 0
      %4011 = vperm.xlu0 %4010, %v3843
      %v4012 = vpop.permute.xlu0 %4011
      %4015 = vset.pattern.permute.xlu0 0
      %4016 = vperm.xlu0 %4015, %v3844
      %v4017 = vpop.permute.xlu0 %4016
      %4020 = vset.pattern.permute.xlu0 0
      %4021 = vperm.xlu0 %4020, %v3845
      %v4022 = vpop.permute.xlu0 %4021
      %4025 = vset.pattern.permute.xlu0 0
      %4026 = vperm.xlu0 %4025, %v3846
      %v4027 = vpop.permute.xlu0 %4026
      %4030 = vset.pattern.permute.xlu0 0
      %4031 = vperm.xlu0 %4030, %v3847
      %v4032 = vpop.permute.xlu0 %4031
      %4035 = vset.pattern.permute.xlu0 0
      %4036 = vperm.xlu0 %4035, %v3848
      %v4037 = vpop.permute.xlu0 %4036
      %4040 = vset.pattern.permute.xlu0 0
      %4041 = vperm.xlu0 %4040, %v3849
      %v4042 = vpop.permute.xlu0 %4041
      %4045 = vset.pattern.permute.xlu0 0
      %4046 = vperm.xlu0 %4045, %v3850
      %v4047 = vpop.permute.xlu0 %4046
      %4050 = vset.pattern.permute.xlu0 0
      %4051 = vperm.xlu0 %4050, %v3851
      %v4052 = vpop.permute.xlu0 %4051
      %v4055 = vperm.slane %v3853, 0
      %v4057 = vmul.f32 %v3857, %v4055
      %v4058 = vmul.f32 %v3862, %v4055
      %v4059 = vmul.f32 %v3867, %v4055
      %v4060 = vmul.f32 %v3872, %v4055
      %v4061 = vmul.f32 %v3877, %v4055
      %v4062 = vmul.f32 %v3882, %v4055
      %v4063 = vmul.f32 %v3887, %v4055
      %v4064 = vmul.f32 %v3892, %v4055
      %v4065 = vmul.f32 %v3897, %v4055
      %v4066 = vmul.f32 %v3902, %v4055
      %v4067 = vmul.f32 %v3907, %v4055
      %v4068 = vmul.f32 %v3912, %v4055
      %v4069 = vmul.f32 %v3917, %v4055
      %v4070 = vmul.f32 %v3922, %v4055
      %v4071 = vmul.f32 %v3927, %v4055
      %v4072 = vmul.f32 %v3932, %v4055
      %v4073 = vmul.f32 %v3937, %v4055
      %v4074 = vmul.f32 %v3942, %v4055
      %v4075 = vmul.f32 %v3947, %v4055
      %v4076 = vmul.f32 %v3952, %v4055
      %v4077 = vmul.f32 %v3957, %v4055
      %v4078 = vmul.f32 %v3962, %v4055
      %v4079 = vmul.f32 %v3967, %v4055
      %v4080 = vmul.f32 %v3972, %v4055
      %v4081 = vmul.f32 %v3977, %v4055
      %v4082 = vmul.f32 %v3982, %v4055
      %v4083 = vmul.f32 %v3987, %v4055
      %v4084 = vmul.f32 %v3992, %v4055
      %v4085 = vmul.f32 %v3997, %v4055
      %v4086 = vmul.f32 %v4002, %v4055
      %v4087 = vmul.f32 %v4007, %v4055
      %v4088 = vmul.f32 %v4012, %v4055
      %v4089 = vmul.f32 %v4017, %v4055
      %v4090 = vmul.f32 %v4022, %v4055
      %v4091 = vmul.f32 %v4027, %v4055
      %v4092 = vmul.f32 %v4032, %v4055
      %v4093 = vmul.f32 %v4037, %v4055
      %v4094 = vmul.f32 %v4042, %v4055
      %v4095 = vmul.f32 %v4047, %v4055
      %v4096 = vmul.f32 %v4052, %v4055
      %v4097 = vadd.f32 %v3652, %v4057
      %v4098 = vadd.f32 %v3653, %v4058
      %v4099 = vadd.f32 %v3654, %v4059
      %v4100 = vadd.f32 %v3655, %v4060
      %v4101 = vadd.f32 %v3656, %v4061
      %v4102 = vadd.f32 %v3657, %v4062
      %v4103 = vadd.f32 %v3658, %v4063
      %v4104 = vadd.f32 %v3659, %v4064
      %v4105 = vadd.f32 %v3660, %v4065
      %v4106 = vadd.f32 %v3661, %v4066
      %v4107 = vadd.f32 %v3662, %v4067
      %v4108 = vadd.f32 %v3663, %v4068
      %v4109 = vadd.f32 %v3664, %v4069
      %v4110 = vadd.f32 %v3665, %v4070
      %v4111 = vadd.f32 %v3666, %v4071
      %v4112 = vadd.f32 %v3667, %v4072
      %v4113 = vadd.f32 %v3668, %v4073
      %v4114 = vadd.f32 %v3669, %v4074
      %v4115 = vadd.f32 %v3670, %v4075
      %v4116 = vadd.f32 %v3671, %v4076
      %v4117 = vadd.f32 %v3672, %v4077
      %v4118 = vadd.f32 %v3673, %v4078
      %v4119 = vadd.f32 %v3674, %v4079
      %v4120 = vadd.f32 %v3675, %v4080
      %v4121 = vadd.f32 %v3676, %v4081
      %v4122 = vadd.f32 %v3677, %v4082
      %v4123 = vadd.f32 %v3678, %v4083
      %v4124 = vadd.f32 %v3679, %v4084
      %v4125 = vadd.f32 %v3680, %v4085
      %v4126 = vadd.f32 %v3681, %v4086
      %v4127 = vadd.f32 %v3682, %v4087
      %v4128 = vadd.f32 %v3683, %v4088
      %v4129 = vadd.f32 %v3684, %v4089
      %v4130 = vadd.f32 %v3685, %v4090
      %v4131 = vadd.f32 %v3686, %v4091
      %v4132 = vadd.f32 %v3687, %v4092
      %v4133 = vadd.f32 %v3688, %v4093
      %v4134 = vadd.f32 %v3689, %v4094
      %v4135 = vadd.f32 %v3690, %v4095
      %v4136 = vadd.f32 %v3691, %v4096
      %4137 = vrot.lane.b32.xlu0 %v537, 120
      %v4138 = vpop.permute.xlu0 %4137
      %4139 = vrot.lane.b32.xlu0 %v538, 120
      %v4140 = vpop.permute.xlu0 %4139
      %4141 = vrot.lane.b32.xlu0 %v539, 120
      %v4142 = vpop.permute.xlu0 %4141
      %4143 = vrot.lane.b32.xlu0 %v540, 120
      %v4144 = vpop.permute.xlu0 %4143
      %4145 = vrot.lane.b32.xlu0 %v541, 120
      %v4146 = vpop.permute.xlu0 %4145
      %4147 = vrot.lane.b32.xlu0 %v542, 120
      %v4148 = vpop.permute.xlu0 %4147
      %4149 = vrot.lane.b32.xlu0 %v543, 120
      %v4150 = vpop.permute.xlu0 %4149
      %4151 = vrot.lane.b32.xlu0 %v544, 120
      %v4152 = vpop.permute.xlu0 %4151
      %4153 = vrot.lane.b32.xlu0 %v545, 120
      %v4154 = vpop.permute.xlu0 %4153
      %4155 = vrot.lane.b32.xlu0 %v546, 120
      %v4156 = vpop.permute.xlu0 %4155
      %4157 = vrot.lane.b32.xlu0 %v547, 120
      %v4158 = vpop.permute.xlu0 %4157
      %4159 = vrot.lane.b32.xlu0 %v548, 120
      %v4160 = vpop.permute.xlu0 %4159
      %4161 = vrot.lane.b32.xlu0 %v549, 120
      %v4162 = vpop.permute.xlu0 %4161
      %4163 = vrot.lane.b32.xlu0 %v550, 120
      %v4164 = vpop.permute.xlu0 %4163
      %4165 = vrot.lane.b32.xlu0 %v551, 120
      %v4166 = vpop.permute.xlu0 %4165
      %4167 = vrot.lane.b32.xlu0 %v552, 120
      %v4168 = vpop.permute.xlu0 %4167
      %4169 = vrot.lane.b32.xlu0 %v553, 120
      %v4170 = vpop.permute.xlu0 %4169
      %4171 = vrot.lane.b32.xlu0 %v554, 120
      %v4172 = vpop.permute.xlu0 %4171
      %4173 = vrot.lane.b32.xlu0 %v555, 120
      %v4174 = vpop.permute.xlu0 %4173
      %4175 = vrot.lane.b32.xlu0 %v556, 120
      %v4176 = vpop.permute.xlu0 %4175
      %4177 = vrot.lane.b32.xlu0 %v557, 120
      %v4178 = vpop.permute.xlu0 %4177
      %4179 = vrot.lane.b32.xlu0 %v558, 120
      %v4180 = vpop.permute.xlu0 %4179
      %4181 = vrot.lane.b32.xlu0 %v559, 120
      %v4182 = vpop.permute.xlu0 %4181
      %4183 = vrot.lane.b32.xlu0 %v560, 120
      %v4184 = vpop.permute.xlu0 %4183
      %4185 = vrot.lane.b32.xlu0 %v561, 120
      %v4186 = vpop.permute.xlu0 %4185
      %4187 = vrot.lane.b32.xlu0 %v562, 120
      %v4188 = vpop.permute.xlu0 %4187
      %4189 = vrot.lane.b32.xlu0 %v563, 120
      %v4190 = vpop.permute.xlu0 %4189
      %4191 = vrot.lane.b32.xlu0 %v564, 120
      %v4192 = vpop.permute.xlu0 %4191
      %4193 = vrot.lane.b32.xlu0 %v565, 120
      %v4194 = vpop.permute.xlu0 %4193
      %4195 = vrot.lane.b32.xlu0 %v566, 120
      %v4196 = vpop.permute.xlu0 %4195
      %4197 = vrot.lane.b32.xlu0 %v567, 120
      %v4198 = vpop.permute.xlu0 %4197
      %4199 = vrot.lane.b32.xlu0 %v568, 120
      %v4200 = vpop.permute.xlu0 %4199
      %4201 = vrot.lane.b32.xlu0 %v569, 120
      %v4202 = vpop.permute.xlu0 %4201
      %4203 = vrot.lane.b32.xlu0 %v570, 120
      %v4204 = vpop.permute.xlu0 %4203
      %4205 = vrot.lane.b32.xlu0 %v571, 120
      %v4206 = vpop.permute.xlu0 %4205
      %4207 = vrot.lane.b32.xlu0 %v572, 120
      %v4208 = vpop.permute.xlu0 %4207
      %4209 = vrot.lane.b32.xlu0 %v573, 120
      %v4210 = vpop.permute.xlu0 %4209
      %4211 = vrot.lane.b32.xlu0 %v574, 120
      %v4212 = vpop.permute.xlu0 %4211
      %4213 = vrot.lane.b32.xlu0 %v575, 120
      %v4214 = vpop.permute.xlu0 %4213
      %4215 = vrot.lane.b32.xlu0 %v576, 120
      %v4216 = vpop.permute.xlu0 %4215
      %v4257 = vmul.f32 %v1460, %v4138
      %v4258 = vmul.f32 %v1459, %v4140
      %v4259 = vmul.f32 %v1458, %v4142
      %v4260 = vmul.f32 %v1457, %v4144
      %v4261 = vmul.f32 %v1456, %v4146
      %v4262 = vmul.f32 %v1455, %v4148
      %v4263 = vmul.f32 %v1454, %v4150
      %v4264 = vmul.f32 %v1453, %v4152
      %v4265 = vmul.f32 %v1452, %v4154
      %v4266 = vmul.f32 %v1451, %v4156
      %v4267 = vmul.f32 %v1450, %v4158
      %v4268 = vmul.f32 %v1449, %v4160
      %v4269 = vmul.f32 %v1448, %v4162
      %v4270 = vmul.f32 %v1447, %v4164
      %v4271 = vmul.f32 %v1446, %v4166
      %v4272 = vmul.f32 %v1445, %v4168
      %v4273 = vmul.f32 %v1444, %v4170
      %v4274 = vmul.f32 %v1443, %v4172
      %v4275 = vmul.f32 %v1442, %v4174
      %v4276 = vmul.f32 %v1441, %v4176
      %v4277 = vmul.f32 %v1440, %v4178
      %v4278 = vmul.f32 %v1439, %v4180
      %v4279 = vmul.f32 %v1438, %v4182
      %v4280 = vmul.f32 %v1437, %v4184
      %v4281 = vmul.f32 %v1436, %v4186
      %v4282 = vmul.f32 %v1435, %v4188
      %v4283 = vmul.f32 %v1434, %v4190
      %v4284 = vmul.f32 %v1433, %v4192
      %v4285 = vmul.f32 %v1432, %v4194
      %v4286 = vmul.f32 %v1431, %v4196
      %v4287 = vmul.f32 %v1430, %v4198
      %v4288 = vmul.f32 %v1429, %v4200
      %v4289 = vmul.f32 %v1428, %v4202
      %v4290 = vmul.f32 %v1427, %v4204
      %v4291 = vmul.f32 %v1466, %v4206
      %v4292 = vmul.f32 %v1465, %v4208
      %v4293 = vmul.f32 %v1464, %v4210
      %v4294 = vmul.f32 %v1463, %v4212
      %v4295 = vmul.f32 %v1462, %v4214
      %v4296 = vmul.f32 %v1461, %v4216
      %s4297 = scalar_lea.vmem %s4, 8
      %v4298 = vld [vmem:[%s4297] sm:$0x1]
      %4300 = vset.pattern.permute.xlu0 0
      %4301 = vperm.xlu0 %4300, %v4257
      %v4302 = vpop.permute.xlu0 %4301
      %4305 = vset.pattern.permute.xlu0 0
      %4306 = vperm.xlu0 %4305, %v4258
      %v4307 = vpop.permute.xlu0 %4306
      %4310 = vset.pattern.permute.xlu0 0
      %4311 = vperm.xlu0 %4310, %v4259
      %v4312 = vpop.permute.xlu0 %4311
      %4315 = vset.pattern.permute.xlu0 0
      %4316 = vperm.xlu0 %4315, %v4260
      %v4317 = vpop.permute.xlu0 %4316
      %4320 = vset.pattern.permute.xlu0 0
      %4321 = vperm.xlu0 %4320, %v4261
      %v4322 = vpop.permute.xlu0 %4321
      %4325 = vset.pattern.permute.xlu0 0
      %4326 = vperm.xlu0 %4325, %v4262
      %v4327 = vpop.permute.xlu0 %4326
      %4330 = vset.pattern.permute.xlu0 0
      %4331 = vperm.xlu0 %4330, %v4263
      %v4332 = vpop.permute.xlu0 %4331
      %4335 = vset.pattern.permute.xlu0 0
      %4336 = vperm.xlu0 %4335, %v4264
      %v4337 = vpop.permute.xlu0 %4336
      %4340 = vset.pattern.permute.xlu0 0
      %4341 = vperm.xlu0 %4340, %v4265
      %v4342 = vpop.permute.xlu0 %4341
      %4345 = vset.pattern.permute.xlu0 0
      %4346 = vperm.xlu0 %4345, %v4266
      %v4347 = vpop.permute.xlu0 %4346
      %4350 = vset.pattern.permute.xlu0 0
      %4351 = vperm.xlu0 %4350, %v4267
      %v4352 = vpop.permute.xlu0 %4351
      %4355 = vset.pattern.permute.xlu0 0
      %4356 = vperm.xlu0 %4355, %v4268
      %v4357 = vpop.permute.xlu0 %4356
      %4360 = vset.pattern.permute.xlu0 0
      %4361 = vperm.xlu0 %4360, %v4269
      %v4362 = vpop.permute.xlu0 %4361
      %4365 = vset.pattern.permute.xlu0 0
      %4366 = vperm.xlu0 %4365, %v4270
      %v4367 = vpop.permute.xlu0 %4366
      %4370 = vset.pattern.permute.xlu0 0
      %4371 = vperm.xlu0 %4370, %v4271
      %v4372 = vpop.permute.xlu0 %4371
      %4375 = vset.pattern.permute.xlu0 0
      %4376 = vperm.xlu0 %4375, %v4272
      %v4377 = vpop.permute.xlu0 %4376
      %4380 = vset.pattern.permute.xlu0 0
      %4381 = vperm.xlu0 %4380, %v4273
      %v4382 = vpop.permute.xlu0 %4381
      %4385 = vset.pattern.permute.xlu0 0
      %4386 = vperm.xlu0 %4385, %v4274
      %v4387 = vpop.permute.xlu0 %4386
      %4390 = vset.pattern.permute.xlu0 0
      %4391 = vperm.xlu0 %4390, %v4275
      %v4392 = vpop.permute.xlu0 %4391
      %4395 = vset.pattern.permute.xlu0 0
      %4396 = vperm.xlu0 %4395, %v4276
      %v4397 = vpop.permute.xlu0 %4396
      %4400 = vset.pattern.permute.xlu0 0
      %4401 = vperm.xlu0 %4400, %v4277
      %v4402 = vpop.permute.xlu0 %4401
      %4405 = vset.pattern.permute.xlu0 0
      %4406 = vperm.xlu0 %4405, %v4278
      %v4407 = vpop.permute.xlu0 %4406
      %4410 = vset.pattern.permute.xlu0 0
      %4411 = vperm.xlu0 %4410, %v4279
      %v4412 = vpop.permute.xlu0 %4411
      %4415 = vset.pattern.permute.xlu0 0
      %4416 = vperm.xlu0 %4415, %v4280
      %v4417 = vpop.permute.xlu0 %4416
      %4420 = vset.pattern.permute.xlu0 0
      %4421 = vperm.xlu0 %4420, %v4281
      %v4422 = vpop.permute.xlu0 %4421
      %4425 = vset.pattern.permute.xlu0 0
      %4426 = vperm.xlu0 %4425, %v4282
      %v4427 = vpop.permute.xlu0 %4426
      %4430 = vset.pattern.permute.xlu0 0
      %4431 = vperm.xlu0 %4430, %v4283
      %v4432 = vpop.permute.xlu0 %4431
      %4435 = vset.pattern.permute.xlu0 0
      %4436 = vperm.xlu0 %4435, %v4284
      %v4437 = vpop.permute.xlu0 %4436
      %4440 = vset.pattern.permute.xlu0 0
      %4441 = vperm.xlu0 %4440, %v4285
      %v4442 = vpop.permute.xlu0 %4441
      %4445 = vset.pattern.permute.xlu0 0
      %4446 = vperm.xlu0 %4445, %v4286
      %v4447 = vpop.permute.xlu0 %4446
      %4450 = vset.pattern.permute.xlu0 0
      %4451 = vperm.xlu0 %4450, %v4287
      %v4452 = vpop.permute.xlu0 %4451
      %4455 = vset.pattern.permute.xlu0 0
      %4456 = vperm.xlu0 %4455, %v4288
      %v4457 = vpop.permute.xlu0 %4456
      %4460 = vset.pattern.permute.xlu0 0
      %4461 = vperm.xlu0 %4460, %v4289
      %v4462 = vpop.permute.xlu0 %4461
      %4465 = vset.pattern.permute.xlu0 0
      %4466 = vperm.xlu0 %4465, %v4290
      %v4467 = vpop.permute.xlu0 %4466
      %4470 = vset.pattern.permute.xlu0 0
      %4471 = vperm.xlu0 %4470, %v4291
      %v4472 = vpop.permute.xlu0 %4471
      %4475 = vset.pattern.permute.xlu0 0
      %4476 = vperm.xlu0 %4475, %v4292
      %v4477 = vpop.permute.xlu0 %4476
      %4480 = vset.pattern.permute.xlu0 0
      %4481 = vperm.xlu0 %4480, %v4293
      %v4482 = vpop.permute.xlu0 %4481
      %4485 = vset.pattern.permute.xlu0 0
      %4486 = vperm.xlu0 %4485, %v4294
      %v4487 = vpop.permute.xlu0 %4486
      %4490 = vset.pattern.permute.xlu0 0
      %4491 = vperm.xlu0 %4490, %v4295
      %v4492 = vpop.permute.xlu0 %4491
      %4495 = vset.pattern.permute.xlu0 0
      %4496 = vperm.xlu0 %4495, %v4296
      %v4497 = vpop.permute.xlu0 %4496
      %v4500 = vperm.slane %v4298, 0
      %v4502 = vmul.f32 %v4302, %v4500
      %v4503 = vmul.f32 %v4307, %v4500
      %v4504 = vmul.f32 %v4312, %v4500
      %v4505 = vmul.f32 %v4317, %v4500
      %v4506 = vmul.f32 %v4322, %v4500
      %v4507 = vmul.f32 %v4327, %v4500
      %v4508 = vmul.f32 %v4332, %v4500
      %v4509 = vmul.f32 %v4337, %v4500
      %v4510 = vmul.f32 %v4342, %v4500
      %v4511 = vmul.f32 %v4347, %v4500
      %v4512 = vmul.f32 %v4352, %v4500
      %v4513 = vmul.f32 %v4357, %v4500
      %v4514 = vmul.f32 %v4362, %v4500
      %v4515 = vmul.f32 %v4367, %v4500
      %v4516 = vmul.f32 %v4372, %v4500
      %v4517 = vmul.f32 %v4377, %v4500
      %v4518 = vmul.f32 %v4382, %v4500
      %v4519 = vmul.f32 %v4387, %v4500
      %v4520 = vmul.f32 %v4392, %v4500
      %v4521 = vmul.f32 %v4397, %v4500
      %v4522 = vmul.f32 %v4402, %v4500
      %v4523 = vmul.f32 %v4407, %v4500
      %v4524 = vmul.f32 %v4412, %v4500
      %v4525 = vmul.f32 %v4417, %v4500
      %v4526 = vmul.f32 %v4422, %v4500
      %v4527 = vmul.f32 %v4427, %v4500
      %v4528 = vmul.f32 %v4432, %v4500
      %v4529 = vmul.f32 %v4437, %v4500
      %v4530 = vmul.f32 %v4442, %v4500
      %v4531 = vmul.f32 %v4447, %v4500
      %v4532 = vmul.f32 %v4452, %v4500
      %v4533 = vmul.f32 %v4457, %v4500
      %v4534 = vmul.f32 %v4462, %v4500
      %v4535 = vmul.f32 %v4467, %v4500
      %v4536 = vmul.f32 %v4472, %v4500
      %v4537 = vmul.f32 %v4477, %v4500
      %v4538 = vmul.f32 %v4482, %v4500
      %v4539 = vmul.f32 %v4487, %v4500
      %v4540 = vmul.f32 %v4492, %v4500
      %v4541 = vmul.f32 %v4497, %v4500
      %v4542 = vadd.f32 %v4097, %v4502
      %v4543 = vadd.f32 %v4098, %v4503
      %v4544 = vadd.f32 %v4099, %v4504
      %v4545 = vadd.f32 %v4100, %v4505
      %v4546 = vadd.f32 %v4101, %v4506
      %v4547 = vadd.f32 %v4102, %v4507
      %v4548 = vadd.f32 %v4103, %v4508
      %v4549 = vadd.f32 %v4104, %v4509
      %v4550 = vadd.f32 %v4105, %v4510
      %v4551 = vadd.f32 %v4106, %v4511
      %v4552 = vadd.f32 %v4107, %v4512
      %v4553 = vadd.f32 %v4108, %v4513
      %v4554 = vadd.f32 %v4109, %v4514
      %v4555 = vadd.f32 %v4110, %v4515
      %v4556 = vadd.f32 %v4111, %v4516
      %v4557 = vadd.f32 %v4112, %v4517
      %v4558 = vadd.f32 %v4113, %v4518
      %v4559 = vadd.f32 %v4114, %v4519
      %v4560 = vadd.f32 %v4115, %v4520
      %v4561 = vadd.f32 %v4116, %v4521
      %v4562 = vadd.f32 %v4117, %v4522
      %v4563 = vadd.f32 %v4118, %v4523
      %v4564 = vadd.f32 %v4119, %v4524
      %v4565 = vadd.f32 %v4120, %v4525
      %v4566 = vadd.f32 %v4121, %v4526
      %v4567 = vadd.f32 %v4122, %v4527
      %v4568 = vadd.f32 %v4123, %v4528
      %v4569 = vadd.f32 %v4124, %v4529
      %v4570 = vadd.f32 %v4125, %v4530
      %v4571 = vadd.f32 %v4126, %v4531
      %v4572 = vadd.f32 %v4127, %v4532
      %v4573 = vadd.f32 %v4128, %v4533
      %v4574 = vadd.f32 %v4129, %v4534
      %v4575 = vadd.f32 %v4130, %v4535
      %v4576 = vadd.f32 %v4131, %v4536
      %v4577 = vadd.f32 %v4132, %v4537
      %v4578 = vadd.f32 %v4133, %v4538
      %v4579 = vadd.f32 %v4134, %v4539
      %v4580 = vadd.f32 %v4135, %v4540
      %v4581 = vadd.f32 %v4136, %v4541
      %v4582 = vld [vmem:[%s5] sm:$0x1]
      %v4584 = vperm.slane %v4582, 0
      %v4586 = vadd.f32 %v4542, %v4584
      %v4587 = vadd.f32 %v4543, %v4584
      %v4588 = vadd.f32 %v4544, %v4584
      %v4589 = vadd.f32 %v4545, %v4584
      %v4590 = vadd.f32 %v4546, %v4584
      %v4591 = vadd.f32 %v4547, %v4584
      %v4592 = vadd.f32 %v4548, %v4584
      %v4593 = vadd.f32 %v4549, %v4584
      %v4594 = vadd.f32 %v4550, %v4584
      %v4595 = vadd.f32 %v4551, %v4584
      %v4596 = vadd.f32 %v4552, %v4584
      %v4597 = vadd.f32 %v4553, %v4584
      %v4598 = vadd.f32 %v4554, %v4584
      %v4599 = vadd.f32 %v4555, %v4584
      %v4600 = vadd.f32 %v4556, %v4584
      %v4601 = vadd.f32 %v4557, %v4584
      %v4602 = vadd.f32 %v4558, %v4584
      %v4603 = vadd.f32 %v4559, %v4584
      %v4604 = vadd.f32 %v4560, %v4584
      %v4605 = vadd.f32 %v4561, %v4584
      %v4606 = vadd.f32 %v4562, %v4584
      %v4607 = vadd.f32 %v4563, %v4584
      %v4608 = vadd.f32 %v4564, %v4584
      %v4609 = vadd.f32 %v4565, %v4584
      %v4610 = vadd.f32 %v4566, %v4584
      %v4611 = vadd.f32 %v4567, %v4584
      %v4612 = vadd.f32 %v4568, %v4584
      %v4613 = vadd.f32 %v4569, %v4584
      %v4614 = vadd.f32 %v4570, %v4584
      %v4615 = vadd.f32 %v4571, %v4584
      %v4616 = vadd.f32 %v4572, %v4584
      %v4617 = vadd.f32 %v4573, %v4584
      %v4618 = vadd.f32 %v4574, %v4584
      %v4619 = vadd.f32 %v4575, %v4584
      %v4620 = vadd.f32 %v4576, %v4584
      %v4621 = vadd.f32 %v4577, %v4584
      %v4622 = vadd.f32 %v4578, %v4584
      %v4623 = vadd.f32 %v4579, %v4584
      %v4624 = vadd.f32 %v4580, %v4584
      %v4625 = vadd.f32 %v4581, %v4584
      %v4626 = vmax.f32 %v4586, 0.0
      %v4627 = vmax.f32 %v4587, 0.0
      %v4628 = vmax.f32 %v4588, 0.0
      %v4629 = vmax.f32 %v4589, 0.0
      %v4630 = vmax.f32 %v4590, 0.0
      %v4631 = vmax.f32 %v4591, 0.0
      %v4632 = vmax.f32 %v4592, 0.0
      %v4633 = vmax.f32 %v4593, 0.0
      %v4634 = vmax.f32 %v4594, 0.0
      %v4635 = vmax.f32 %v4595, 0.0
      %v4636 = vmax.f32 %v4596, 0.0
      %v4637 = vmax.f32 %v4597, 0.0
      %v4638 = vmax.f32 %v4598, 0.0
      %v4639 = vmax.f32 %v4599, 0.0
      %v4640 = vmax.f32 %v4600, 0.0
      %v4641 = vmax.f32 %v4601, 0.0
      %v4642 = vmax.f32 %v4602, 0.0
      %v4643 = vmax.f32 %v4603, 0.0
      %v4644 = vmax.f32 %v4604, 0.0
      %v4645 = vmax.f32 %v4605, 0.0
      %v4646 = vmax.f32 %v4606, 0.0
      %v4647 = vmax.f32 %v4607, 0.0
      %v4648 = vmax.f32 %v4608, 0.0
      %v4649 = vmax.f32 %v4609, 0.0
      %v4650 = vmax.f32 %v4610, 0.0
      %v4651 = vmax.f32 %v4611, 0.0
      %v4652 = vmax.f32 %v4612, 0.0
      %v4653 = vmax.f32 %v4613, 0.0
      %v4654 = vmax.f32 %v4614, 0.0
      %v4655 = vmax.f32 %v4615, 0.0
      %v4656 = vmax.f32 %v4616, 0.0
      %v4657 = vmax.f32 %v4617, 0.0
      %v4658 = vmax.f32 %v4618, 0.0
      %v4659 = vmax.f32 %v4619, 0.0
      %v4660 = vmax.f32 %v4620, 0.0
      %v4661 = vmax.f32 %v4621, 0.0
      %v4662 = vmax.f32 %v4622, 0.0
      %v4663 = vmax.f32 %v4623, 0.0
      %v4664 = vmax.f32 %v4624, 0.0
      %v4665 = vmax.f32 %v4625, 0.0
      %v4666 = vrot.slane %v4626, 1
      %v4667 = vrot.slane %v4627, 1
      %v4668 = vrot.slane %v4628, 1
      %v4669 = vrot.slane %v4629, 1
      %v4670 = vrot.slane %v4630, 1
      %v4671 = vrot.slane %v4631, 1
      %v4672 = vrot.slane %v4632, 1
      %v4673 = vrot.slane %v4633, 1
      %v4674 = vrot.slane %v4634, 1
      %v4675 = vrot.slane %v4635, 1
      %v4676 = vrot.slane %v4636, 1
      %v4677 = vrot.slane %v4637, 1
      %v4678 = vrot.slane %v4638, 1
      %v4679 = vrot.slane %v4639, 1
      %v4680 = vrot.slane %v4640, 1
      %v4681 = vrot.slane %v4641, 1
      %v4682 = vrot.slane %v4642, 1
      %v4683 = vrot.slane %v4643, 1
      %v4684 = vrot.slane %v4644, 1
      %v4685 = vrot.slane %v4645, 1
      %v4686 = vrot.slane %v4646, 1
      %v4687 = vrot.slane %v4647, 1
      %v4688 = vrot.slane %v4648, 1
      %v4689 = vrot.slane %v4649, 1
      %v4690 = vrot.slane %v4650, 1
      %v4691 = vrot.slane %v4651, 1
      %v4692 = vrot.slane %v4652, 1
      %v4693 = vrot.slane %v4653, 1
      %v4694 = vrot.slane %v4654, 1
      %v4695 = vrot.slane %v4655, 1
      %v4696 = vrot.slane %v4656, 1
      %v4697 = vrot.slane %v4657, 1
      %v4698 = vrot.slane %v4658, 1
      %v4699 = vrot.slane %v4659, 1
      %v4700 = vrot.slane %v4660, 1
      %v4701 = vrot.slane %v4661, 1
      %v4702 = vrot.slane %v4662, 1
      %v4703 = vrot.slane %v4663, 1
      %v4704 = vrot.slane %v4664, 1
      %v4705 = vrot.slane %v4665, 1
      %v4706 = vsel %vm1426, %v4704, %v4705
      %v4707 = vsel %vm1426, %v4703, %v4704
      %v4708 = vsel %vm1426, %v4702, %v4703
      %v4709 = vsel %vm1426, %v4701, %v4702
      %v4710 = vsel %vm1426, %v4700, %v4701
      %v4711 = vsel %vm1426, %v4699, %v4700
      %v4712 = vsel %vm1426, %v4698, %v4699
      %v4713 = vsel %vm1426, %v4697, %v4698
      %v4714 = vsel %vm1426, %v4696, %v4697
      %v4715 = vsel %vm1426, %v4695, %v4696
      %v4716 = vsel %vm1426, %v4694, %v4695
      %v4717 = vsel %vm1426, %v4693, %v4694
      %v4718 = vsel %vm1426, %v4692, %v4693
      %v4719 = vsel %vm1426, %v4691, %v4692
      %v4720 = vsel %vm1426, %v4690, %v4691
      %v4721 = vsel %vm1426, %v4689, %v4690
      %v4722 = vsel %vm1426, %v4688, %v4689
      %v4723 = vsel %vm1426, %v4687, %v4688
      %v4724 = vsel %vm1426, %v4686, %v4687
      %v4725 = vsel %vm1426, %v4685, %v4686
      %v4726 = vsel %vm1426, %v4684, %v4685
      %v4727 = vsel %vm1426, %v4683, %v4684
      %v4728 = vsel %vm1426, %v4682, %v4683
      %v4729 = vsel %vm1426, %v4681, %v4682
      %v4730 = vsel %vm1426, %v4680, %v4681
      %v4731 = vsel %vm1426, %v4679, %v4680
      %v4732 = vsel %vm1426, %v4678, %v4679
      %v4733 = vsel %vm1426, %v4677, %v4678
      %v4734 = vsel %vm1426, %v4676, %v4677
      %v4735 = vsel %vm1426, %v4675, %v4676
      %v4736 = vsel %vm1426, %v4674, %v4675
      %v4737 = vsel %vm1426, %v4673, %v4674
      %v4738 = vsel %vm1426, %v4672, %v4673
      %v4739 = vsel %vm1426, %v4671, %v4672
      %v4740 = vsel %vm1426, %v4670, %v4671
      %v4741 = vsel %vm1426, %v4669, %v4670
      %v4742 = vsel %vm1426, %v4668, %v4669
      %v4743 = vsel %vm1426, %v4667, %v4668
      %v4744 = vsel %vm1426, %v4666, %v4667
      %v4745 = vsel %vm1426, %v4705, %v4666
      %v4746 = vmax.f32 %v4626, %v4744
      %v4747 = vmax.f32 %v4627, %v4743
      %v4748 = vmax.f32 %v4628, %v4742
      %v4749 = vmax.f32 %v4629, %v4741
      %v4750 = vmax.f32 %v4630, %v4740
      %v4751 = vmax.f32 %v4631, %v4739
      %v4752 = vmax.f32 %v4632, %v4738
      %v4753 = vmax.f32 %v4633, %v4737
      %v4754 = vmax.f32 %v4634, %v4736
      %v4755 = vmax.f32 %v4635, %v4735
      %v4756 = vmax.f32 %v4636, %v4734
      %v4757 = vmax.f32 %v4637, %v4733
      %v4758 = vmax.f32 %v4638, %v4732
      %v4759 = vmax.f32 %v4639, %v4731
      %v4760 = vmax.f32 %v4640, %v4730
      %v4761 = vmax.f32 %v4641, %v4729
      %v4762 = vmax.f32 %v4642, %v4728
      %v4763 = vmax.f32 %v4643, %v4727
      %v4764 = vmax.f32 %v4644, %v4726
      %v4765 = vmax.f32 %v4645, %v4725
      %v4766 = vmax.f32 %v4646, %v4724
      %v4767 = vmax.f32 %v4647, %v4723
      %v4768 = vmax.f32 %v4648, %v4722
      %v4769 = vmax.f32 %v4649, %v4721
      %v4770 = vmax.f32 %v4650, %v4720
      %v4771 = vmax.f32 %v4651, %v4719
      %v4772 = vmax.f32 %v4652, %v4718
      %v4773 = vmax.f32 %v4653, %v4717
      %v4774 = vmax.f32 %v4654, %v4716
      %v4775 = vmax.f32 %v4655, %v4715
      %v4776 = vmax.f32 %v4656, %v4714
      %v4777 = vmax.f32 %v4657, %v4713
      %v4778 = vmax.f32 %v4658, %v4712
      %v4779 = vmax.f32 %v4659, %v4711
      %v4780 = vmax.f32 %v4660, %v4710
      %v4781 = vmax.f32 %v4661, %v4709
      %v4782 = vmax.f32 %v4662, %v4708
      %v4783 = vmax.f32 %v4663, %v4707
      %v4784 = vmax.f32 %v4664, %v4706
      %v4785 = vmax.f32 %v4665, %v4745
      %v4786 = vmax.f32 %v4746, %v4751
      %v4787 = vmax.f32 %v4747, %v4752
      %v4788 = vmax.f32 %v4748, %v4753
      %v4789 = vmax.f32 %v4749, %v4754
      %v4790 = vmax.f32 %v4750, %v4755
      %v4791 = vmax.f32 %v4751, %v4756
      %v4792 = vmax.f32 %v4752, %v4757
      %v4793 = vmax.f32 %v4753, %v4758
      %v4794 = vmax.f32 %v4754, %v4759
      %v4795 = vmax.f32 %v4755, %v4760
      %v4796 = vmax.f32 %v4756, %v4761
      %v4797 = vmax.f32 %v4757, %v4762
      %v4798 = vmax.f32 %v4758, %v4763
      %v4799 = vmax.f32 %v4759, %v4764
      %v4800 = vmax.f32 %v4760, %v4765
      %v4801 = vmax.f32 %v4761, %v4766
      %v4802 = vmax.f32 %v4762, %v4767
      %v4803 = vmax.f32 %v4763, %v4768
      %v4804 = vmax.f32 %v4764, %v4769
      %v4805 = vmax.f32 %v4765, %v4770
      %v4806 = vmax.f32 %v4766, %v4771
      %v4807 = vmax.f32 %v4767, %v4772
      %v4808 = vmax.f32 %v4768, %v4773
      %v4809 = vmax.f32 %v4769, %v4774
      %v4810 = vmax.f32 %v4770, %v4775
      %v4811 = vmax.f32 %v4771, %v4776
      %v4812 = vmax.f32 %v4772, %v4777
      %v4813 = vmax.f32 %v4773, %v4778
      %v4814 = vmax.f32 %v4774, %v4779
      %v4815 = vmax.f32 %v4775, %v4780
      %v4816 = vmax.f32 %v4776, %v4781
      %v4817 = vmax.f32 %v4777, %v4782
      %v4818 = vmax.f32 %v4778, %v4783
      %v4819 = vmax.f32 %v4779, %v4784
      %v4820 = vmax.f32 %v4780, %v4785
      %v4821 = vmax.f32 %v4781, %v4746
      %v4822 = vmax.f32 %v4782, %v4747
      %v4823 = vmax.f32 %v4783, %v4748
      %v4824 = vmax.f32 %v4784, %v4749
      %v4825 = vmax.f32 %v4785, %v4750
      %vm4826 = vcmask 261120
      %4827 = vst.msk [vmem:[#allocation2] sm:$0xff] %vm4826, %v4786
      %4828 = vst.msk [vmem:[#allocation2 + $0x8] sm:$0xff] %vm4826, %v4787
      %4829 = vst.msk [vmem:[#allocation2 + $0x10] sm:$0xff] %vm4826, %v4788
      %4830 = vst.msk [vmem:[#allocation2 + $0x18] sm:$0xff] %vm4826, %v4789
      %4831 = vst.msk [vmem:[#allocation2 + $0x20] sm:$0xff] %vm4826, %v4790
      %4832 = vst.msk [vmem:[#allocation2 + $0x28] sm:$0xff] %vm4826, %v4791
      %4833 = vst.msk [vmem:[#allocation2 + $0x30] sm:$0xff] %vm4826, %v4792
      %4834 = vst.msk [vmem:[#allocation2 + $0x38] sm:$0xff] %vm4826, %v4793
      %4835 = vst.msk [vmem:[#allocation2 + $0x40] sm:$0xff] %vm4826, %v4794
      %4836 = vst.msk [vmem:[#allocation2 + $0x48] sm:$0xff] %vm4826, %v4795
      %4837 = vst.msk [vmem:[#allocation2 + $0x50] sm:$0xff] %vm4826, %v4796
      %4838 = vst.msk [vmem:[#allocation2 + $0x58] sm:$0xff] %vm4826, %v4797
      %4839 = vst.msk [vmem:[#allocation2 + $0x60] sm:$0xff] %vm4826, %v4798
      %4840 = vst.msk [vmem:[#allocation2 + $0x68] sm:$0xff] %vm4826, %v4799
      %4841 = vst.msk [vmem:[#allocation2 + $0x70] sm:$0xff] %vm4826, %v4800
      %4842 = vst.msk [vmem:[#allocation2 + $0x78] sm:$0xff] %vm4826, %v4801
      %4843 = vst.msk [vmem:[#allocation2 + $0x80] sm:$0xff] %vm4826, %v4802
      %4844 = vst.msk [vmem:[#allocation2 + $0x88] sm:$0xff] %vm4826, %v4803
      %4845 = vst.msk [vmem:[#allocation2 + $0x90] sm:$0xff] %vm4826, %v4804
      %4846 = vst.msk [vmem:[#allocation2 + $0x98] sm:$0xff] %vm4826, %v4805
      %4847 = vst.msk [vmem:[#allocation2 + $0xa0] sm:$0xff] %vm4826, %v4806
      %4848 = vst.msk [vmem:[#allocation2 + $0xa8] sm:$0xff] %vm4826, %v4807
      %4849 = vst.msk [vmem:[#allocation2 + $0xb0] sm:$0xff] %vm4826, %v4808
      %4850 = vst.msk [vmem:[#allocation2 + $0xb8] sm:$0xff] %vm4826, %v4809
      %4851 = vst.msk [vmem:[#allocation2 + $0xc0] sm:$0xff] %vm4826, %v4810
      %4852 = vst.msk [vmem:[#allocation2 + $0xc8] sm:$0xff] %vm4826, %v4811
      %4853 = vst.msk [vmem:[#allocation2 + $0xd0] sm:$0xff] %vm4826, %v4812
      %4854 = vst.msk [vmem:[#allocation2 + $0xd8] sm:$0xff] %vm4826, %v4813
      %4855 = vst.msk [vmem:[#allocation2 + $0xe0] sm:$0xff] %vm4826, %v4814
      %4856 = vst.msk [vmem:[#allocation2 + $0xe8] sm:$0xff] %vm4826, %v4815
      %4857 = vst.msk [vmem:[#allocation2 + $0xf0] sm:$0xff] %vm4826, %v4816
      %4858 = vst.msk [vmem:[#allocation2 + $0xf8] sm:$0xff] %vm4826, %v4817
      %4859 = vst.msk [vmem:[#allocation2 + $0x100] sm:$0xff] %vm4826, %v4818
      %4860 = vst.msk [vmem:[#allocation2 + $0x108] sm:$0xff] %vm4826, %v4819
      %4861 = vst.msk [vmem:[#allocation2 + $0x110] sm:$0xff] %vm4826, %v4820
      %4862 = vst.msk [vmem:[#allocation2 + $0x118] sm:$0xff] %vm4826, %v4821
      %4863 = vst.msk [vmem:[#allocation2 + $0x120] sm:$0xff] %vm4826, %v4822
      %4864 = vst.msk [vmem:[#allocation2 + $0x128] sm:$0xff] %vm4826, %v4823
      %4865 = vst.msk [vmem:[#allocation2 + $0x130] sm:$0xff] %vm4826, %v4824
      %4866 = vst.msk [vmem:[#allocation2 + $0x138] sm:$0xff] %vm4826, %v4825
      %v4867 = vld [vmem:[#allocation2] ss:$2 sm:$0xff]
      %s4868 = scalar_lea.vmem [#allocation2], 16
      %v4869 = vld [vmem:[%s4868] ss:$2 sm:$0xff]
      %s4870 = scalar_lea.vmem [#allocation2], 32
      %v4871 = vld [vmem:[%s4870] ss:$2 sm:$0xf]
      %4872 = vst.msk [vmem:[#allocation3] sm:$0xff] %vm4826, %v4867
      %4873 = vst.msk [vmem:[#allocation3 + $0x8] sm:$0xff] %vm4826, %v4869
      %vm4874 = vcmask 257024
      %4875 = vst.msk [vmem:[#allocation3 + $0x10] sm:$0xf] %vm4874, %v4871
      %s4876 = scalar_lea.vmem [#allocation2], 80
      %v4877 = vld [vmem:[%s4876] ss:$2 sm:$0xff]
      %s4878 = scalar_lea.vmem [#allocation2], 96
      %v4879 = vld [vmem:[%s4878] ss:$2 sm:$0xff]
      %s4880 = scalar_lea.vmem [#allocation2], 112
      %v4881 = vld [vmem:[%s4880] ss:$2 sm:$0xf]
      %4882 = vst.msk [vmem:[#allocation3 + $0x14] sm:$0xff] %vm4826, %v4877
      %4883 = vst.msk [vmem:[#allocation3 + $0x1c] sm:$0xff] %vm4826, %v4879
      %4884 = vst.msk [vmem:[#allocation3 + $0x24] sm:$0xf] %vm4874, %v4881
      %s4885 = scalar_lea.vmem [#allocation2], 160
      %v4886 = vld [vmem:[%s4885] ss:$2 sm:$0xff]
      %s4887 = scalar_lea.vmem [#allocation2], 176
      %v4888 = vld [vmem:[%s4887] ss:$2 sm:$0xff]
      %s4889 = scalar_lea.vmem [#allocation2], 192
      %v4890 = vld [vmem:[%s4889] ss:$2 sm:$0xf]
      %4891 = vst.msk [vmem:[#allocation3 + $0x28] sm:$0xff] %vm4826, %v4886
      %4892 = vst.msk [vmem:[#allocation3 + $0x30] sm:$0xff] %vm4826, %v4888
      %4893 = vst.msk [vmem:[#allocation3 + $0x38] sm:$0xf] %vm4874, %v4890
      %s4894 = scalar_lea.vmem [#allocation2], 240
      %v4895 = vld [vmem:[%s4894] ss:$2 sm:$0xff]
      %s4896 = scalar_lea.vmem [#allocation2], 256
      %v4897 = vld [vmem:[%s4896] ss:$2 sm:$0xff]
      %s4898 = scalar_lea.vmem [#allocation2], 272
      %v4899 = vld [vmem:[%s4898] ss:$2 sm:$0xf]
      %4900 = vst.msk [vmem:[#allocation3 + $0x3c] sm:$0xff] %vm4826, %v4895
      %4901 = vst.msk [vmem:[#allocation3 + $0x44] sm:$0xff] %vm4826, %v4897
      %4902 = vst.msk [vmem:[#allocation3 + $0x4c] sm:$0xf] %vm4874, %v4899
      %v4903 = vld [vmem:[#allocation3] sm:$0xff]
      %v4904 = vld [vmem:[#allocation3 + $0x8] sm:$0xff]
      %v4905 = vld [vmem:[#allocation3 + $0x10] sm:$0xff]
      %v4906 = vld [vmem:[#allocation3 + $0x18] sm:$0xff]
      %v4907 = vld [vmem:[#allocation3 + $0x20] sm:$0xff]
      %v4908 = vld [vmem:[#allocation3 + $0x28] sm:$0xff]
      %v4909 = vld [vmem:[#allocation3 + $0x30] sm:$0xff]
      %v4910 = vld [vmem:[#allocation3 + $0x38] sm:$0xff]
      %v4911 = vld [vmem:[#allocation3 + $0x40] sm:$0xff]
      %v4912 = vld [vmem:[#allocation3 + $0x48] sm:$0xff]
      %v4913 = vrot.slane %v4903, 3
      %v4914 = vrot.slane %v4904, 3
      %v4915 = vrot.slane %v4905, 3
      %v4916 = vrot.slane %v4906, 3
      %v4917 = vrot.slane %v4907, 3
      %v4918 = vrot.slane %v4908, 3
      %v4919 = vrot.slane %v4909, 3
      %v4920 = vrot.slane %v4910, 3
      %v4921 = vrot.slane %v4911, 3
      %v4922 = vrot.slane %v4912, 3
      %vm4923 = vcmp.lt.s32.totalorder %v495, 5
      %v4924 = vsel %vm4923, %v4921, %v4922
      %v4925 = vsel %vm4923, %v4920, %v4921
      %v4926 = vsel %vm4923, %v4919, %v4920
      %v4927 = vsel %vm4923, %v4918, %v4919
      %v4928 = vsel %vm4923, %v4917, %v4918
      %v4929 = vsel %vm4923, %v4916, %v4917
      %v4930 = vsel %vm4923, %v4915, %v4916
      %v4931 = vsel %vm4923, %v4914, %v4915
      %v4932 = vsel %vm4923, %v4913, %v4914
      %v4933 = vsel %vm4923, %v4922, %v4913
      %v4934 = vld [vmem:[%s2] sm:$0xff]
      %v4935 = vld [vmem:[%s2 + $0x8] sm:$0xff]
      %v4936 = vld [vmem:[%s2 + $0x10] sm:$0xff]
      %v4937 = vld [vmem:[%s2 + $0x18] sm:$0xff]
      %v4938 = vld [vmem:[%s2 + $0x20] sm:$0xff]
      %v4939 = vld [vmem:[%s2 + $0x28] sm:$0xff]
      %v4940 = vld [vmem:[%s2 + $0x30] sm:$0xff]
      %v4941 = vld [vmem:[%s2 + $0x38] sm:$0xff]
      %v4942 = vld [vmem:[%s2 + $0x40] sm:$0xff]
      %v4943 = vld [vmem:[%s2 + $0x48] sm:$0xff]
      %4945 = vset.pattern.permute.xlu0 0
      %4946 = vperm.xlu0 %4945, %v4934
      %v4947 = vpop.permute.xlu0 %4946
      %4950 = vset.pattern.permute.xlu0 0
      %4951 = vperm.xlu0 %4950, %v4935
      %v4952 = vpop.permute.xlu0 %4951
      %4955 = vset.pattern.permute.xlu0 0
      %4956 = vperm.xlu0 %4955, %v4936
      %v4957 = vpop.permute.xlu0 %4956
      %4960 = vset.pattern.permute.xlu0 0
      %4961 = vperm.xlu0 %4960, %v4937
      %v4962 = vpop.permute.xlu0 %4961
      %4965 = vset.pattern.permute.xlu0 0
      %4966 = vperm.xlu0 %4965, %v4938
      %v4967 = vpop.permute.xlu0 %4966
      %4970 = vset.pattern.permute.xlu0 0
      %4971 = vperm.xlu0 %4970, %v4939
      %v4972 = vpop.permute.xlu0 %4971
      %4975 = vset.pattern.permute.xlu0 0
      %4976 = vperm.xlu0 %4975, %v4940
      %v4977 = vpop.permute.xlu0 %4976
      %4980 = vset.pattern.permute.xlu0 0
      %4981 = vperm.xlu0 %4980, %v4941
      %v4982 = vpop.permute.xlu0 %4981
      %4985 = vset.pattern.permute.xlu0 0
      %4986 = vperm.xlu0 %4985, %v4942
      %v4987 = vpop.permute.xlu0 %4986
      %4990 = vset.pattern.permute.xlu0 0
      %4991 = vperm.xlu0 %4990, %v4943
      %v4992 = vpop.permute.xlu0 %4991
      %v4994 = vmul.f32 %v4925, %v4947
      %v4995 = vmul.f32 %v4924, %v4952
      %v4996 = vmul.f32 %v4933, %v4957
      %v4997 = vmul.f32 %v4932, %v4962
      %v4998 = vmul.f32 %v4931, %v4967
      %v4999 = vmul.f32 %v4930, %v4972
      %v5000 = vmul.f32 %v4929, %v4977
      %v5001 = vmul.f32 %v4928, %v4982
      %v5002 = vmul.f32 %v4927, %v4987
      %v5003 = vmul.f32 %v4926, %v4992
      %v5004 = vld [vmem:[%s6] sm:$0xff]
      %v5005 = vld [vmem:[%s6 + $0x8] sm:$0xff]
      %v5006 = vld [vmem:[%s6 + $0x10] sm:$0xff]
      %v5007 = vld [vmem:[%s6 + $0x18] sm:$0xff]
      %v5008 = vrot.slane %v4903, 4
      %v5009 = vrot.slane %v4904, 4
      %v5010 = vrot.slane %v4905, 4
      %v5011 = vrot.slane %v4906, 4
      %v5012 = vrot.slane %v4907, 4
      %v5013 = vrot.slane %v4908, 4
      %v5014 = vrot.slane %v4909, 4
      %v5015 = vrot.slane %v4910, 4
      %v5016 = vrot.slane %v4911, 4
      %v5017 = vrot.slane %v4912, 4
      %vm5018 = vcmp.lt.s32.totalorder %v495, 4
      %v5019 = vsel %vm5018, %v5016, %v5017
      %v5020 = vsel %vm5018, %v5015, %v5016
      %v5021 = vsel %vm5018, %v5014, %v5015
      %v5022 = vsel %vm5018, %v5013, %v5014
      %v5023 = vsel %vm5018, %v5012, %v5013
      %v5024 = vsel %vm5018, %v5011, %v5012
      %v5025 = vsel %vm5018, %v5010, %v5011
      %v5026 = vsel %vm5018, %v5009, %v5010
      %v5027 = vsel %vm5018, %v5008, %v5009
      %v5028 = vsel %vm5018, %v5017, %v5008
      %5029 = vset.pattern.permute.xlu0 1
      %5030 = vperm.xlu0 %5029, %v4934
      %v5031 = vpop.permute.xlu0 %5030
      %5033 = vset.pattern.permute.xlu0 1
      %5034 = vperm.xlu0 %5033, %v4935
      %v5035 = vpop.permute.xlu0 %5034
      %5037 = vset.pattern.permute.xlu0 1
      %5038 = vperm.xlu0 %5037, %v4936
      %v5039 = vpop.permute.xlu0 %5038
      %5041 = vset.pattern.permute.xlu0 1
      %5042 = vperm.xlu0 %5041, %v4937
      %v5043 = vpop.permute.xlu0 %5042
      %5045 = vset.pattern.permute.xlu0 1
      %5046 = vperm.xlu0 %5045, %v4938
      %v5047 = vpop.permute.xlu0 %5046
      %5049 = vset.pattern.permute.xlu0 1
      %5050 = vperm.xlu0 %5049, %v4939
      %v5051 = vpop.permute.xlu0 %5050
      %5053 = vset.pattern.permute.xlu0 1
      %5054 = vperm.xlu0 %5053, %v4940
      %v5055 = vpop.permute.xlu0 %5054
      %5057 = vset.pattern.permute.xlu0 1
      %5058 = vperm.xlu0 %5057, %v4941
      %v5059 = vpop.permute.xlu0 %5058
      %5061 = vset.pattern.permute.xlu0 1
      %5062 = vperm.xlu0 %5061, %v4942
      %v5063 = vpop.permute.xlu0 %5062
      %5065 = vset.pattern.permute.xlu0 1
      %5066 = vperm.xlu0 %5065, %v4943
      %v5067 = vpop.permute.xlu0 %5066
      %v5069 = vmul.f32 %v5020, %v5031
      %v5070 = vmul.f32 %v5019, %v5035
      %v5071 = vmul.f32 %v5028, %v5039
      %v5072 = vmul.f32 %v5027, %v5043
      %v5073 = vmul.f32 %v5026, %v5047
      %v5074 = vmul.f32 %v5025, %v5051
      %v5075 = vmul.f32 %v5024, %v5055
      %v5076 = vmul.f32 %v5023, %v5059
      %v5077 = vmul.f32 %v5022, %v5063
      %v5078 = vmul.f32 %v5021, %v5067
      %s5079 = scalar_lea.vmem %s6, 32
      %v5080 = vld [vmem:[%s5079] sm:$0xff]
      %v5081 = vld [vmem:[%s5079 + $0x8] sm:$0xff]
      %v5082 = vld [vmem:[%s5079 + $0x10] sm:$0xff]
      %v5083 = vld [vmem:[%s5079 + $0x18] sm:$0xff]
      %v5085 = vsel %vm4826, %v5069, 0
      %v5088 = vsel %vm4826, %v5070, 0
      %v5091 = vsel %vm4826, %v5071, 0
      %v5094 = vsel %vm4826, %v5072, 0
      %v5097 = vsel %vm4826, %v5073, 0
      %v5100 = vsel %vm4826, %v5074, 0
      %v5103 = vsel %vm4826, %v5075, 0
      %v5106 = vsel %vm4826, %v5076, 0
      %v5109 = vsel %vm4826, %v5077, 0
      %v5112 = vsel %vm4826, %v5078, 0
      %5114 = vmatpush.msra.mxu0 0.0
      %5115 = vmatpush.msra.mxu0 0.0
      %5116 = vmatpush.msra.mxu0 0.0
      %5117 = vmatpush.msra.mxu0 0.0
      %5118 = vmatpush.msra.mxu0 0.0
      %5119 = vmatpush.msra.mxu0 0.0
      %5120 = vmatpush.msra.mxu0 0.0
      %5121 = vmatpush.msra.mxu0 0.0
      %5122 = vmatpush.msra.mxu0 0.0
      %5123 = vmatpush.msra.mxu0 0.0
      %5124 = vmatpush.msra.mxu0 0.0
      %5125 = vmatpush.msra.mxu0 0.0
      %5126 = vmatpush.msra.mxu0 %v5083
      %5127 = vmatpush.msra.mxu0 %v5082
      %5128 = vmatpush.msra.mxu0 %v5081
      %5129 = vmatpush.msra.mxu0 %v5080
      %5130 = vmatmul.f32.gmra.mxu0 %v5085
      %v5131 = vpop.f32.mrf.mxu0
      %v5132 = vadd.f32 0.0, %v5131
      %5133 = vmatmul.f32.gmra.mxu0 %v5088
      %v5134 = vpop.f32.mrf.mxu0
      %v5135 = vadd.f32 0.0, %v5134
      %5136 = vmatmul.f32.gmra.mxu0 %v5091
      %v5137 = vpop.f32.mrf.mxu0
      %v5138 = vadd.f32 0.0, %v5137
      %5139 = vmatmul.f32.gmra.mxu0 %v5094
      %v5140 = vpop.f32.mrf.mxu0
      %v5141 = vadd.f32 0.0, %v5140
      %5142 = vmatmul.f32.gmra.mxu0 %v5097
      %v5143 = vpop.f32.mrf.mxu0
      %v5144 = vadd.f32 0.0, %v5143
      %5145 = vmatmul.f32.gmra.mxu0 %v5100
      %v5146 = vpop.f32.mrf.mxu0
      %v5147 = vadd.f32 0.0, %v5146
      %5148 = vmatmul.f32.gmra.mxu0 %v5103
      %v5149 = vpop.f32.mrf.mxu0
      %v5150 = vadd.f32 0.0, %v5149
      %5151 = vmatmul.f32.gmra.mxu0 %v5106
      %v5152 = vpop.f32.mrf.mxu0
      %v5153 = vadd.f32 0.0, %v5152
      %5154 = vmatmul.f32.gmra.mxu0 %v5109
      %v5155 = vpop.f32.mrf.mxu0
      %v5156 = vadd.f32 0.0, %v5155
      %5157 = vmatmul.f32.gmra.mxu0 %v5112
      %v5158 = vpop.f32.mrf.mxu0
      %v5159 = vadd.f32 0.0, %v5158
      %5160 = vdwg.mxu0
      %v5162 = vsel %vm4826, %v4994, 0
      %v5165 = vsel %vm4826, %v4995, 0
      %v5168 = vsel %vm4826, %v4996, 0
      %v5171 = vsel %vm4826, %v4997, 0
      %v5174 = vsel %vm4826, %v4998, 0
      %v5177 = vsel %vm4826, %v4999, 0
      %v5180 = vsel %vm4826, %v5000, 0
      %v5183 = vsel %vm4826, %v5001, 0
      %v5186 = vsel %vm4826, %v5002, 0
      %v5189 = vsel %vm4826, %v5003, 0
      %5191 = vmatpush.msra.mxu0 0.0
      %5192 = vmatpush.msra.mxu0 0.0
      %5193 = vmatpush.msra.mxu0 0.0
      %5194 = vmatpush.msra.mxu0 0.0
      %5195 = vmatpush.msra.mxu0 0.0
      %5196 = vmatpush.msra.mxu0 0.0
      %5197 = vmatpush.msra.mxu0 0.0
      %5198 = vmatpush.msra.mxu0 0.0
      %5199 = vmatpush.msra.mxu0 0.0
      %5200 = vmatpush.msra.mxu0 0.0
      %5201 = vmatpush.msra.mxu0 0.0
      %5202 = vmatpush.msra.mxu0 0.0
      %5203 = vmatpush.msra.mxu0 %v5007
      %5204 = vmatpush.msra.mxu0 %v5006
      %5205 = vmatpush.msra.mxu0 %v5005
      %5206 = vmatpush.msra.mxu0 %v5004
      %5207 = vmatmul.f32.gmra.mxu0 %v5162
      %v5208 = vpop.f32.mrf.mxu0
      %v5209 = vadd.f32 %v5132, %v5208
      %5210 = vmatmul.f32.gmra.mxu0 %v5165
      %v5211 = vpop.f32.mrf.mxu0
      %v5212 = vadd.f32 %v5135, %v5211
      %5213 = vmatmul.f32.gmra.mxu0 %v5168
      %v5214 = vpop.f32.mrf.mxu0
      %v5215 = vadd.f32 %v5138, %v5214
      %5216 = vmatmul.f32.gmra.mxu0 %v5171
      %v5217 = vpop.f32.mrf.mxu0
      %v5218 = vadd.f32 %v5141, %v5217
      %5219 = vmatmul.f32.gmra.mxu0 %v5174
      %v5220 = vpop.f32.mrf.mxu0
      %v5221 = vadd.f32 %v5144, %v5220
      %5222 = vmatmul.f32.gmra.mxu0 %v5177
      %v5223 = vpop.f32.mrf.mxu0
      %v5224 = vadd.f32 %v5147, %v5223
      %5225 = vmatmul.f32.gmra.mxu0 %v5180
      %v5226 = vpop.f32.mrf.mxu0
      %v5227 = vadd.f32 %v5150, %v5226
      %5228 = vmatmul.f32.gmra.mxu0 %v5183
      %v5229 = vpop.f32.mrf.mxu0
      %v5230 = vadd.f32 %v5153, %v5229
      %5231 = vmatmul.f32.gmra.mxu0 %v5186
      %v5232 = vpop.f32.mrf.mxu0
      %v5233 = vadd.f32 %v5156, %v5232
      %5234 = vmatmul.f32.gmra.mxu0 %v5189
      %v5235 = vpop.f32.mrf.mxu0
      %v5236 = vadd.f32 %v5159, %v5235
      %5237 = vdwg.mxu0
      %v5238 = vrot.slane %v4903, 5
      %v5239 = vrot.slane %v4904, 5
      %v5240 = vrot.slane %v4905, 5
      %v5241 = vrot.slane %v4906, 5
      %v5242 = vrot.slane %v4907, 5
      %v5243 = vrot.slane %v4908, 5
      %v5244 = vrot.slane %v4909, 5
      %v5245 = vrot.slane %v4910, 5
      %v5246 = vrot.slane %v4911, 5
      %v5247 = vrot.slane %v4912, 5
      %vm5248 = vcmp.lt.s32.totalorder %v495, 3
      %v5249 = vsel %vm5248, %v5246, %v5247
      %v5250 = vsel %vm5248, %v5245, %v5246
      %v5251 = vsel %vm5248, %v5244, %v5245
      %v5252 = vsel %vm5248, %v5243, %v5244
      %v5253 = vsel %vm5248, %v5242, %v5243
      %v5254 = vsel %vm5248, %v5241, %v5242
      %v5255 = vsel %vm5248, %v5240, %v5241
      %v5256 = vsel %vm5248, %v5239, %v5240
      %v5257 = vsel %vm5248, %v5238, %v5239
      %v5258 = vsel %vm5248, %v5247, %v5238
      %5259 = vset.pattern.permute.xlu0 2
      %5260 = vperm.xlu0 %5259, %v4934
      %v5261 = vpop.permute.xlu0 %5260
      %5263 = vset.pattern.permute.xlu0 2
      %5264 = vperm.xlu0 %5263, %v4935
      %v5265 = vpop.permute.xlu0 %5264
      %5267 = vset.pattern.permute.xlu0 2
      %5268 = vperm.xlu0 %5267, %v4936
      %v5269 = vpop.permute.xlu0 %5268
      %5271 = vset.pattern.permute.xlu0 2
      %5272 = vperm.xlu0 %5271, %v4937
      %v5273 = vpop.permute.xlu0 %5272
      %5275 = vset.pattern.permute.xlu0 2
      %5276 = vperm.xlu0 %5275, %v4938
      %v5277 = vpop.permute.xlu0 %5276
      %5279 = vset.pattern.permute.xlu0 2
      %5280 = vperm.xlu0 %5279, %v4939
      %v5281 = vpop.permute.xlu0 %5280
      %5283 = vset.pattern.permute.xlu0 2
      %5284 = vperm.xlu0 %5283, %v4940
      %v5285 = vpop.permute.xlu0 %5284
      %5287 = vset.pattern.permute.xlu0 2
      %5288 = vperm.xlu0 %5287, %v4941
      %v5289 = vpop.permute.xlu0 %5288
      %5291 = vset.pattern.permute.xlu0 2
      %5292 = vperm.xlu0 %5291, %v4942
      %v5293 = vpop.permute.xlu0 %5292
      %5295 = vset.pattern.permute.xlu0 2
      %5296 = vperm.xlu0 %5295, %v4943
      %v5297 = vpop.permute.xlu0 %5296
      %v5299 = vmul.f32 %v5250, %v5261
      %v5300 = vmul.f32 %v5249, %v5265
      %v5301 = vmul.f32 %v5258, %v5269
      %v5302 = vmul.f32 %v5257, %v5273
      %v5303 = vmul.f32 %v5256, %v5277
      %v5304 = vmul.f32 %v5255, %v5281
      %v5305 = vmul.f32 %v5254, %v5285
      %v5306 = vmul.f32 %v5253, %v5289
      %v5307 = vmul.f32 %v5252, %v5293
      %v5308 = vmul.f32 %v5251, %v5297
      %s5309 = scalar_lea.vmem %s6, 64
      %v5310 = vld [vmem:[%s5309] sm:$0xff]
      %v5311 = vld [vmem:[%s5309 + $0x8] sm:$0xff]
      %v5312 = vld [vmem:[%s5309 + $0x10] sm:$0xff]
      %v5313 = vld [vmem:[%s5309 + $0x18] sm:$0xff]
      %v5315 = vsel %vm4826, %v5299, 0
      %v5318 = vsel %vm4826, %v5300, 0
      %v5321 = vsel %vm4826, %v5301, 0
      %v5324 = vsel %vm4826, %v5302, 0
      %v5327 = vsel %vm4826, %v5303, 0
      %v5330 = vsel %vm4826, %v5304, 0
      %v5333 = vsel %vm4826, %v5305, 0
      %v5336 = vsel %vm4826, %v5306, 0
      %v5339 = vsel %vm4826, %v5307, 0
      %v5342 = vsel %vm4826, %v5308, 0
      %5344 = vmatpush.msra.mxu0 0.0
      %5345 = vmatpush.msra.mxu0 0.0
      %5346 = vmatpush.msra.mxu0 0.0
      %5347 = vmatpush.msra.mxu0 0.0
      %5348 = vmatpush.msra.mxu0 0.0
      %5349 = vmatpush.msra.mxu0 0.0
      %5350 = vmatpush.msra.mxu0 0.0
      %5351 = vmatpush.msra.mxu0 0.0
      %5352 = vmatpush.msra.mxu0 0.0
      %5353 = vmatpush.msra.mxu0 0.0
      %5354 = vmatpush.msra.mxu0 0.0
      %5355 = vmatpush.msra.mxu0 0.0
      %5356 = vmatpush.msra.mxu0 %v5313
      %5357 = vmatpush.msra.mxu0 %v5312
      %5358 = vmatpush.msra.mxu0 %v5311
      %5359 = vmatpush.msra.mxu0 %v5310
      %5360 = vmatmul.f32.gmra.mxu0 %v5315
      %v5361 = vpop.f32.mrf.mxu0
      %v5362 = vadd.f32 0.0, %v5361
      %5363 = vmatmul.f32.gmra.mxu0 %v5318
      %v5364 = vpop.f32.mrf.mxu0
      %v5365 = vadd.f32 0.0, %v5364
      %5366 = vmatmul.f32.gmra.mxu0 %v5321
      %v5367 = vpop.f32.mrf.mxu0
      %v5368 = vadd.f32 0.0, %v5367
      %5369 = vmatmul.f32.gmra.mxu0 %v5324
      %v5370 = vpop.f32.mrf.mxu0
      %v5371 = vadd.f32 0.0, %v5370
      %5372 = vmatmul.f32.gmra.mxu0 %v5327
      %v5373 = vpop.f32.mrf.mxu0
      %v5374 = vadd.f32 0.0, %v5373
      %5375 = vmatmul.f32.gmra.mxu0 %v5330
      %v5376 = vpop.f32.mrf.mxu0
      %v5377 = vadd.f32 0.0, %v5376
      %5378 = vmatmul.f32.gmra.mxu0 %v5333
      %v5379 = vpop.f32.mrf.mxu0
      %v5380 = vadd.f32 0.0, %v5379
      %5381 = vmatmul.f32.gmra.mxu0 %v5336
      %v5382 = vpop.f32.mrf.mxu0
      %v5383 = vadd.f32 0.0, %v5382
      %5384 = vmatmul.f32.gmra.mxu0 %v5339
      %v5385 = vpop.f32.mrf.mxu0
      %v5386 = vadd.f32 0.0, %v5385
      %5387 = vmatmul.f32.gmra.mxu0 %v5342
      %v5388 = vpop.f32.mrf.mxu0
      %v5389 = vadd.f32 0.0, %v5388
      %5390 = vdwg.mxu0
      %v5391 = vadd.f32 %v5209, %v5362
      %v5392 = vadd.f32 %v5212, %v5365
      %v5393 = vadd.f32 %v5215, %v5368
      %v5394 = vadd.f32 %v5218, %v5371
      %v5395 = vadd.f32 %v5221, %v5374
      %v5396 = vadd.f32 %v5224, %v5377
      %v5397 = vadd.f32 %v5227, %v5380
      %v5398 = vadd.f32 %v5230, %v5383
      %v5399 = vadd.f32 %v5233, %v5386
      %v5400 = vadd.f32 %v5236, %v5389
      %v5401 = vrot.slane %v4903, 7
      %v5402 = vrot.slane %v4904, 7
      %v5403 = vrot.slane %v4905, 7
      %v5404 = vrot.slane %v4906, 7
      %v5405 = vrot.slane %v4907, 7
      %v5406 = vrot.slane %v4908, 7
      %v5407 = vrot.slane %v4909, 7
      %v5408 = vrot.slane %v4910, 7
      %v5409 = vrot.slane %v4911, 7
      %v5410 = vrot.slane %v4912, 7
      %v5411 = vsel %vm496, %v5409, %v5410
      %v5412 = vsel %vm496, %v5408, %v5409
      %v5413 = vsel %vm496, %v5407, %v5408
      %v5414 = vsel %vm496, %v5406, %v5407
      %v5415 = vsel %vm496, %v5405, %v5406
      %v5416 = vsel %vm496, %v5404, %v5405
      %v5417 = vsel %vm496, %v5403, %v5404
      %v5418 = vsel %vm496, %v5402, %v5403
      %v5419 = vsel %vm496, %v5401, %v5402
      %v5420 = vsel %vm496, %v5410, %v5401
      %5421 = vset.pattern.permute.xlu0 3
      %5422 = vperm.xlu0 %5421, %v4934
      %v5423 = vpop.permute.xlu0 %5422
      %5425 = vset.pattern.permute.xlu0 3
      %5426 = vperm.xlu0 %5425, %v4935
      %v5427 = vpop.permute.xlu0 %5426
      %5429 = vset.pattern.permute.xlu0 3
      %5430 = vperm.xlu0 %5429, %v4936
      %v5431 = vpop.permute.xlu0 %5430
      %5433 = vset.pattern.permute.xlu0 3
      %5434 = vperm.xlu0 %5433, %v4937
      %v5435 = vpop.permute.xlu0 %5434
      %5437 = vset.pattern.permute.xlu0 3
      %5438 = vperm.xlu0 %5437, %v4938
      %v5439 = vpop.permute.xlu0 %5438
      %5441 = vset.pattern.permute.xlu0 3
      %5442 = vperm.xlu0 %5441, %v4939
      %v5443 = vpop.permute.xlu0 %5442
      %5445 = vset.pattern.permute.xlu0 3
      %5446 = vperm.xlu0 %5445, %v4940
      %v5447 = vpop.permute.xlu0 %5446
      %5449 = vset.pattern.permute.xlu0 3
      %5450 = vperm.xlu0 %5449, %v4941
      %v5451 = vpop.permute.xlu0 %5450
      %5453 = vset.pattern.permute.xlu0 3
      %5454 = vperm.xlu0 %5453, %v4942
      %v5455 = vpop.permute.xlu0 %5454
      %5457 = vset.pattern.permute.xlu0 3
      %5458 = vperm.xlu0 %5457, %v4943
      %v5459 = vpop.permute.xlu0 %5458
      %v5461 = vmul.f32 %v5420, %v5423
      %v5462 = vmul.f32 %v5419, %v5427
      %v5463 = vmul.f32 %v5418, %v5431
      %v5464 = vmul.f32 %v5417, %v5435
      %v5465 = vmul.f32 %v5416, %v5439
      %v5466 = vmul.f32 %v5415, %v5443
      %v5467 = vmul.f32 %v5414, %v5447
      %v5468 = vmul.f32 %v5413, %v5451
      %v5469 = vmul.f32 %v5412, %v5455
      %v5470 = vmul.f32 %v5411, %v5459
      %s5471 = scalar_lea.vmem %s6, 96
      %v5472 = vld [vmem:[%s5471] sm:$0xff]
      %v5473 = vld [vmem:[%s5471 + $0x8] sm:$0xff]
      %v5474 = vld [vmem:[%s5471 + $0x10] sm:$0xff]
      %v5475 = vld [vmem:[%s5471 + $0x18] sm:$0xff]
      %v5477 = vsel %vm4826, %v5461, 0
      %v5480 = vsel %vm4826, %v5462, 0
      %v5483 = vsel %vm4826, %v5463, 0
      %v5486 = vsel %vm4826, %v5464, 0
      %v5489 = vsel %vm4826, %v5465, 0
      %v5492 = vsel %vm4826, %v5466, 0
      %v5495 = vsel %vm4826, %v5467, 0
      %v5498 = vsel %vm4826, %v5468, 0
      %v5501 = vsel %vm4826, %v5469, 0
      %v5504 = vsel %vm4826, %v5470, 0
      %5506 = vmatpush.msra.mxu0 0.0
      %5507 = vmatpush.msra.mxu0 0.0
      %5508 = vmatpush.msra.mxu0 0.0
      %5509 = vmatpush.msra.mxu0 0.0
      %5510 = vmatpush.msra.mxu0 0.0
      %5511 = vmatpush.msra.mxu0 0.0
      %5512 = vmatpush.msra.mxu0 0.0
      %5513 = vmatpush.msra.mxu0 0.0
      %5514 = vmatpush.msra.mxu0 0.0
      %5515 = vmatpush.msra.mxu0 0.0
      %5516 = vmatpush.msra.mxu0 0.0
      %5517 = vmatpush.msra.mxu0 0.0
      %5518 = vmatpush.msra.mxu0 %v5475
      %5519 = vmatpush.msra.mxu0 %v5474
      %5520 = vmatpush.msra.mxu0 %v5473
      %5521 = vmatpush.msra.mxu0 %v5472
      %5522 = vmatmul.f32.gmra.mxu0 %v5477
      %v5523 = vpop.f32.mrf.mxu0
      %v5524 = vadd.f32 0.0, %v5523
      %5525 = vmatmul.f32.gmra.mxu0 %v5480
      %v5526 = vpop.f32.mrf.mxu0
      %v5527 = vadd.f32 0.0, %v5526
      %5528 = vmatmul.f32.gmra.mxu0 %v5483
      %v5529 = vpop.f32.mrf.mxu0
      %v5530 = vadd.f32 0.0, %v5529
      %5531 = vmatmul.f32.gmra.mxu0 %v5486
      %v5532 = vpop.f32.mrf.mxu0
      %v5533 = vadd.f32 0.0, %v5532
      %5534 = vmatmul.f32.gmra.mxu0 %v5489
      %v5535 = vpop.f32.mrf.mxu0
      %v5536 = vadd.f32 0.0, %v5535
      %5537 = vmatmul.f32.gmra.mxu0 %v5492
      %v5538 = vpop.f32.mrf.mxu0
      %v5539 = vadd.f32 0.0, %v5538
      %5540 = vmatmul.f32.gmra.mxu0 %v5495
      %v5541 = vpop.f32.mrf.mxu0
      %v5542 = vadd.f32 0.0, %v5541
      %5543 = vmatmul.f32.gmra.mxu0 %v5498
      %v5544 = vpop.f32.mrf.mxu0
      %v5545 = vadd.f32 0.0, %v5544
      %5546 = vmatmul.f32.gmra.mxu0 %v5501
      %v5547 = vpop.f32.mrf.mxu0
      %v5548 = vadd.f32 0.0, %v5547
      %5549 = vmatmul.f32.gmra.mxu0 %v5504
      %v5550 = vpop.f32.mrf.mxu0
      %v5551 = vadd.f32 0.0, %v5550
      %5552 = vdwg.mxu0
      %v5553 = vadd.f32 %v5391, %v5524
      %v5554 = vadd.f32 %v5392, %v5527
      %v5555 = vadd.f32 %v5393, %v5530
      %v5556 = vadd.f32 %v5394, %v5533
      %v5557 = vadd.f32 %v5395, %v5536
      %v5558 = vadd.f32 %v5396, %v5539
      %v5559 = vadd.f32 %v5397, %v5542
      %v5560 = vadd.f32 %v5398, %v5545
      %v5561 = vadd.f32 %v5399, %v5548
      %v5562 = vadd.f32 %v5400, %v5551
      %5563 = vset.pattern.permute.xlu0 4
      %5564 = vperm.xlu0 %5563, %v4934
      %v5565 = vpop.permute.xlu0 %5564
      %5567 = vset.pattern.permute.xlu0 4
      %5568 = vperm.xlu0 %5567, %v4935
      %v5569 = vpop.permute.xlu0 %5568
      %5571 = vset.pattern.permute.xlu0 4
      %5572 = vperm.xlu0 %5571, %v4936
      %v5573 = vpop.permute.xlu0 %5572
      %5575 = vset.pattern.permute.xlu0 4
      %5576 = vperm.xlu0 %5575, %v4937
      %v5577 = vpop.permute.xlu0 %5576
      %5579 = vset.pattern.permute.xlu0 4
      %5580 = vperm.xlu0 %5579, %v4938
      %v5581 = vpop.permute.xlu0 %5580
      %5583 = vset.pattern.permute.xlu0 4
      %5584 = vperm.xlu0 %5583, %v4939
      %v5585 = vpop.permute.xlu0 %5584
      %5587 = vset.pattern.permute.xlu0 4
      %5588 = vperm.xlu0 %5587, %v4940
      %v5589 = vpop.permute.xlu0 %5588
      %5591 = vset.pattern.permute.xlu0 4
      %5592 = vperm.xlu0 %5591, %v4941
      %v5593 = vpop.permute.xlu0 %5592
      %5595 = vset.pattern.permute.xlu0 4
      %5596 = vperm.xlu0 %5595, %v4942
      %v5597 = vpop.permute.xlu0 %5596
      %5599 = vset.pattern.permute.xlu0 4
      %5600 = vperm.xlu0 %5599, %v4943
      %v5601 = vpop.permute.xlu0 %5600
      %v5603 = vmul.f32 %v4903, %v5565
      %v5604 = vmul.f32 %v4904, %v5569
      %v5605 = vmul.f32 %v4905, %v5573
      %v5606 = vmul.f32 %v4906, %v5577
      %v5607 = vmul.f32 %v4907, %v5581
      %v5608 = vmul.f32 %v4908, %v5585
      %v5609 = vmul.f32 %v4909, %v5589
      %v5610 = vmul.f32 %v4910, %v5593
      %v5611 = vmul.f32 %v4911, %v5597
      %v5612 = vmul.f32 %v4912, %v5601
      %s5613 = scalar_lea.vmem %s6, 128
      %v5614 = vld [vmem:[%s5613] sm:$0xff]
      %v5615 = vld [vmem:[%s5613 + $0x8] sm:$0xff]
      %v5616 = vld [vmem:[%s5613 + $0x10] sm:$0xff]
      %v5617 = vld [vmem:[%s5613 + $0x18] sm:$0xff]
      %v5619 = vsel %vm4826, %v5603, 0
      %v5622 = vsel %vm4826, %v5604, 0
      %v5625 = vsel %vm4826, %v5605, 0
      %v5628 = vsel %vm4826, %v5606, 0
      %v5631 = vsel %vm4826, %v5607, 0
      %v5634 = vsel %vm4826, %v5608, 0
      %v5637 = vsel %vm4826, %v5609, 0
      %v5640 = vsel %vm4826, %v5610, 0
      %v5643 = vsel %vm4826, %v5611, 0
      %v5646 = vsel %vm4826, %v5612, 0
      %5648 = vmatpush.msra.mxu0 0.0
      %5649 = vmatpush.msra.mxu0 0.0
      %5650 = vmatpush.msra.mxu0 0.0
      %5651 = vmatpush.msra.mxu0 0.0
      %5652 = vmatpush.msra.mxu0 0.0
      %5653 = vmatpush.msra.mxu0 0.0
      %5654 = vmatpush.msra.mxu0 0.0
      %5655 = vmatpush.msra.mxu0 0.0
      %5656 = vmatpush.msra.mxu0 0.0
      %5657 = vmatpush.msra.mxu0 0.0
      %5658 = vmatpush.msra.mxu0 0.0
      %5659 = vmatpush.msra.mxu0 0.0
      %5660 = vmatpush.msra.mxu0 %v5617
      %5661 = vmatpush.msra.mxu0 %v5616
      %5662 = vmatpush.msra.mxu0 %v5615
      %5663 = vmatpush.msra.mxu0 %v5614
      %5664 = vmatmul.f32.gmra.mxu0 %v5619
      %v5665 = vpop.f32.mrf.mxu0
      %v5666 = vadd.f32 0.0, %v5665
      %5667 = vmatmul.f32.gmra.mxu0 %v5622
      %v5668 = vpop.f32.mrf.mxu0
      %v5669 = vadd.f32 0.0, %v5668
      %5670 = vmatmul.f32.gmra.mxu0 %v5625
      %v5671 = vpop.f32.mrf.mxu0
      %v5672 = vadd.f32 0.0, %v5671
      %5673 = vmatmul.f32.gmra.mxu0 %v5628
      %v5674 = vpop.f32.mrf.mxu0
      %v5675 = vadd.f32 0.0, %v5674
      %5676 = vmatmul.f32.gmra.mxu0 %v5631
      %v5677 = vpop.f32.mrf.mxu0
      %v5678 = vadd.f32 0.0, %v5677
      %5679 = vmatmul.f32.gmra.mxu0 %v5634
      %v5680 = vpop.f32.mrf.mxu0
      %v5681 = vadd.f32 0.0, %v5680
      %5682 = vmatmul.f32.gmra.mxu0 %v5637
      %v5683 = vpop.f32.mrf.mxu0
      %v5684 = vadd.f32 0.0, %v5683
      %5685 = vmatmul.f32.gmra.mxu0 %v5640
      %v5686 = vpop.f32.mrf.mxu0
      %v5687 = vadd.f32 0.0, %v5686
      %5688 = vmatmul.f32.gmra.mxu0 %v5643
      %v5689 = vpop.f32.mrf.mxu0
      %v5690 = vadd.f32 0.0, %v5689
      %5691 = vmatmul.f32.gmra.mxu0 %v5646
      %v5692 = vpop.f32.mrf.mxu0
      %v5693 = vadd.f32 0.0, %v5692
      %5694 = vdwg.mxu0
      %v5695 = vadd.f32 %v5553, %v5666
      %v5696 = vadd.f32 %v5554, %v5669
      %v5697 = vadd.f32 %v5555, %v5672
      %v5698 = vadd.f32 %v5556, %v5675
      %v5699 = vadd.f32 %v5557, %v5678
      %v5700 = vadd.f32 %v5558, %v5681
      %v5701 = vadd.f32 %v5559, %v5684
      %v5702 = vadd.f32 %v5560, %v5687
      %v5703 = vadd.f32 %v5561, %v5690
      %v5704 = vadd.f32 %v5562, %v5693
      %v5705 = vrot.slane %v4903, 1
      %v5706 = vrot.slane %v4904, 1
      %v5707 = vrot.slane %v4905, 1
      %v5708 = vrot.slane %v4906, 1
      %v5709 = vrot.slane %v4907, 1
      %v5710 = vrot.slane %v4908, 1
      %v5711 = vrot.slane %v4909, 1
      %v5712 = vrot.slane %v4910, 1
      %v5713 = vrot.slane %v4911, 1
      %v5714 = vrot.slane %v4912, 1
      %v5715 = vsel %vm1426, %v5713, %v5714
      %v5716 = vsel %vm1426, %v5712, %v5713
      %v5717 = vsel %vm1426, %v5711, %v5712
      %v5718 = vsel %vm1426, %v5710, %v5711
      %v5719 = vsel %vm1426, %v5709, %v5710
      %v5720 = vsel %vm1426, %v5708, %v5709
      %v5721 = vsel %vm1426, %v5707, %v5708
      %v5722 = vsel %vm1426, %v5706, %v5707
      %v5723 = vsel %vm1426, %v5705, %v5706
      %v5724 = vsel %vm1426, %v5714, %v5705
      %5725 = vset.pattern.permute.xlu0 5
      %5726 = vperm.xlu0 %5725, %v4934
      %v5727 = vpop.permute.xlu0 %5726
      %5729 = vset.pattern.permute.xlu0 5
      %5730 = vperm.xlu0 %5729, %v4935
      %v5731 = vpop.permute.xlu0 %5730
      %5733 = vset.pattern.permute.xlu0 5
      %5734 = vperm.xlu0 %5733, %v4936
      %v5735 = vpop.permute.xlu0 %5734
      %5737 = vset.pattern.permute.xlu0 5
      %5738 = vperm.xlu0 %5737, %v4937
      %v5739 = vpop.permute.xlu0 %5738
      %5741 = vset.pattern.permute.xlu0 5
      %5742 = vperm.xlu0 %5741, %v4938
      %v5743 = vpop.permute.xlu0 %5742
      %5745 = vset.pattern.permute.xlu0 5
      %5746 = vperm.xlu0 %5745, %v4939
      %v5747 = vpop.permute.xlu0 %5746
      %5749 = vset.pattern.permute.xlu0 5
      %5750 = vperm.xlu0 %5749, %v4940
      %v5751 = vpop.permute.xlu0 %5750
      %5753 = vset.pattern.permute.xlu0 5
      %5754 = vperm.xlu0 %5753, %v4941
      %v5755 = vpop.permute.xlu0 %5754
      %5757 = vset.pattern.permute.xlu0 5
      %5758 = vperm.xlu0 %5757, %v4942
      %v5759 = vpop.permute.xlu0 %5758
      %5761 = vset.pattern.permute.xlu0 5
      %5762 = vperm.xlu0 %5761, %v4943
      %v5763 = vpop.permute.xlu0 %5762
      %v5765 = vmul.f32 %v5723, %v5727
      %v5766 = vmul.f32 %v5722, %v5731
      %v5767 = vmul.f32 %v5721, %v5735
      %v5768 = vmul.f32 %v5720, %v5739
      %v5769 = vmul.f32 %v5719, %v5743
      %v5770 = vmul.f32 %v5718, %v5747
      %v5771 = vmul.f32 %v5717, %v5751
      %v5772 = vmul.f32 %v5716, %v5755
      %v5773 = vmul.f32 %v5715, %v5759
      %v5774 = vmul.f32 %v5724, %v5763
      %s5775 = scalar_lea.vmem %s6, 160
      %v5776 = vld [vmem:[%s5775] sm:$0xff]
      %v5777 = vld [vmem:[%s5775 + $0x8] sm:$0xff]
      %v5778 = vld [vmem:[%s5775 + $0x10] sm:$0xff]
      %v5779 = vld [vmem:[%s5775 + $0x18] sm:$0xff]
      %v5781 = vsel %vm4826, %v5765, 0
      %v5784 = vsel %vm4826, %v5766, 0
      %v5787 = vsel %vm4826, %v5767, 0
      %v5790 = vsel %vm4826, %v5768, 0
      %v5793 = vsel %vm4826, %v5769, 0
      %v5796 = vsel %vm4826, %v5770, 0
      %v5799 = vsel %vm4826, %v5771, 0
      %v5802 = vsel %vm4826, %v5772, 0
      %v5805 = vsel %vm4826, %v5773, 0
      %v5808 = vsel %vm4826, %v5774, 0
      %5810 = vmatpush.msra.mxu0 0.0
      %5811 = vmatpush.msra.mxu0 0.0
      %5812 = vmatpush.msra.mxu0 0.0
      %5813 = vmatpush.msra.mxu0 0.0
      %5814 = vmatpush.msra.mxu0 0.0
      %5815 = vmatpush.msra.mxu0 0.0
      %5816 = vmatpush.msra.mxu0 0.0
      %5817 = vmatpush.msra.mxu0 0.0
      %5818 = vmatpush.msra.mxu0 0.0
      %5819 = vmatpush.msra.mxu0 0.0
      %5820 = vmatpush.msra.mxu0 0.0
      %5821 = vmatpush.msra.mxu0 0.0
      %5822 = vmatpush.msra.mxu0 %v5779
      %5823 = vmatpush.msra.mxu0 %v5778
      %5824 = vmatpush.msra.mxu0 %v5777
      %5825 = vmatpush.msra.mxu0 %v5776
      %5826 = vmatmul.f32.gmra.mxu0 %v5781
      %v5827 = vpop.f32.mrf.mxu0
      %v5828 = vadd.f32 0.0, %v5827
      %5829 = vmatmul.f32.gmra.mxu0 %v5784
      %v5830 = vpop.f32.mrf.mxu0
      %v5831 = vadd.f32 0.0, %v5830
      %5832 = vmatmul.f32.gmra.mxu0 %v5787
      %v5833 = vpop.f32.mrf.mxu0
      %v5834 = vadd.f32 0.0, %v5833
      %5835 = vmatmul.f32.gmra.mxu0 %v5790
      %v5836 = vpop.f32.mrf.mxu0
      %v5837 = vadd.f32 0.0, %v5836
      %5838 = vmatmul.f32.gmra.mxu0 %v5793
      %v5839 = vpop.f32.mrf.mxu0
      %v5840 = vadd.f32 0.0, %v5839
      %5841 = vmatmul.f32.gmra.mxu0 %v5796
      %v5842 = vpop.f32.mrf.mxu0
      %v5843 = vadd.f32 0.0, %v5842
      %5844 = vmatmul.f32.gmra.mxu0 %v5799
      %v5845 = vpop.f32.mrf.mxu0
      %v5846 = vadd.f32 0.0, %v5845
      %5847 = vmatmul.f32.gmra.mxu0 %v5802
      %v5848 = vpop.f32.mrf.mxu0
      %v5849 = vadd.f32 0.0, %v5848
      %5850 = vmatmul.f32.gmra.mxu0 %v5805
      %v5851 = vpop.f32.mrf.mxu0
      %v5852 = vadd.f32 0.0, %v5851
      %5853 = vmatmul.f32.gmra.mxu0 %v5808
      %v5854 = vpop.f32.mrf.mxu0
      %v5855 = vadd.f32 0.0, %v5854
      %5856 = vdwg.mxu0
      %v5857 = vadd.f32 %v5695, %v5828
      %v5858 = vadd.f32 %v5696, %v5831
      %v5859 = vadd.f32 %v5697, %v5834
      %v5860 = vadd.f32 %v5698, %v5837
      %v5861 = vadd.f32 %v5699, %v5840
      %v5862 = vadd.f32 %v5700, %v5843
      %v5863 = vadd.f32 %v5701, %v5846
      %v5864 = vadd.f32 %v5702, %v5849
      %v5865 = vadd.f32 %v5703, %v5852
      %v5866 = vadd.f32 %v5704, %v5855
      %5867 = vset.pattern.permute.xlu0 6
      %5868 = vperm.xlu0 %5867, %v4934
      %v5869 = vpop.permute.xlu0 %5868
      %5871 = vset.pattern.permute.xlu0 6
      %5872 = vperm.xlu0 %5871, %v4935
      %v5873 = vpop.permute.xlu0 %5872
      %5875 = vset.pattern.permute.xlu0 6
      %5876 = vperm.xlu0 %5875, %v4936
      %v5877 = vpop.permute.xlu0 %5876
      %5879 = vset.pattern.permute.xlu0 6
      %5880 = vperm.xlu0 %5879, %v4937
      %v5881 = vpop.permute.xlu0 %5880
      %5883 = vset.pattern.permute.xlu0 6
      %5884 = vperm.xlu0 %5883, %v4938
      %v5885 = vpop.permute.xlu0 %5884
      %5887 = vset.pattern.permute.xlu0 6
      %5888 = vperm.xlu0 %5887, %v4939
      %v5889 = vpop.permute.xlu0 %5888
      %5891 = vset.pattern.permute.xlu0 6
      %5892 = vperm.xlu0 %5891, %v4940
      %v5893 = vpop.permute.xlu0 %5892
      %5895 = vset.pattern.permute.xlu0 6
      %5896 = vperm.xlu0 %5895, %v4941
      %v5897 = vpop.permute.xlu0 %5896
      %5899 = vset.pattern.permute.xlu0 6
      %5900 = vperm.xlu0 %5899, %v4942
      %v5901 = vpop.permute.xlu0 %5900
      %5903 = vset.pattern.permute.xlu0 6
      %5904 = vperm.xlu0 %5903, %v4943
      %v5905 = vpop.permute.xlu0 %5904
      %v5907 = vmul.f32 %v4930, %v5869
      %v5908 = vmul.f32 %v4929, %v5873
      %v5909 = vmul.f32 %v4928, %v5877
      %v5910 = vmul.f32 %v4927, %v5881
      %v5911 = vmul.f32 %v4926, %v5885
      %v5912 = vmul.f32 %v4925, %v5889
      %v5913 = vmul.f32 %v4924, %v5893
      %v5914 = vmul.f32 %v4933, %v5897
      %v5915 = vmul.f32 %v4932, %v5901
      %v5916 = vmul.f32 %v4931, %v5905
      %s5917 = scalar_lea.vmem %s6, 192
      %v5918 = vld [vmem:[%s5917] sm:$0xff]
      %v5919 = vld [vmem:[%s5917 + $0x8] sm:$0xff]
      %v5920 = vld [vmem:[%s5917 + $0x10] sm:$0xff]
      %v5921 = vld [vmem:[%s5917 + $0x18] sm:$0xff]
      %v5923 = vsel %vm4826, %v5907, 0
      %v5926 = vsel %vm4826, %v5908, 0
      %v5929 = vsel %vm4826, %v5909, 0
      %v5932 = vsel %vm4826, %v5910, 0
      %v5935 = vsel %vm4826, %v5911, 0
      %v5938 = vsel %vm4826, %v5912, 0
      %v5941 = vsel %vm4826, %v5913, 0
      %v5944 = vsel %vm4826, %v5914, 0
      %v5947 = vsel %vm4826, %v5915, 0
      %v5950 = vsel %vm4826, %v5916, 0
      %5952 = vmatpush.msra.mxu0 0.0
      %5953 = vmatpush.msra.mxu0 0.0
      %5954 = vmatpush.msra.mxu0 0.0
      %5955 = vmatpush.msra.mxu0 0.0
      %5956 = vmatpush.msra.mxu0 0.0
      %5957 = vmatpush.msra.mxu0 0.0
      %5958 = vmatpush.msra.mxu0 0.0
      %5959 = vmatpush.msra.mxu0 0.0
      %5960 = vmatpush.msra.mxu0 0.0
      %5961 = vmatpush.msra.mxu0 0.0
      %5962 = vmatpush.msra.mxu0 0.0
      %5963 = vmatpush.msra.mxu0 0.0
      %5964 = vmatpush.msra.mxu0 %v5921
      %5965 = vmatpush.msra.mxu0 %v5920
      %5966 = vmatpush.msra.mxu0 %v5919
      %5967 = vmatpush.msra.mxu0 %v5918
      %5968 = vmatmul.f32.gmra.mxu0 %v5923
      %v5969 = vpop.f32.mrf.mxu0
      %v5970 = vadd.f32 0.0, %v5969
      %5971 = vmatmul.f32.gmra.mxu0 %v5926
      %v5972 = vpop.f32.mrf.mxu0
      %v5973 = vadd.f32 0.0, %v5972
      %5974 = vmatmul.f32.gmra.mxu0 %v5929
      %v5975 = vpop.f32.mrf.mxu0
      %v5976 = vadd.f32 0.0, %v5975
      %5977 = vmatmul.f32.gmra.mxu0 %v5932
      %v5978 = vpop.f32.mrf.mxu0
      %v5979 = vadd.f32 0.0, %v5978
      %5980 = vmatmul.f32.gmra.mxu0 %v5935
      %v5981 = vpop.f32.mrf.mxu0
      %v5982 = vadd.f32 0.0, %v5981
      %5983 = vmatmul.f32.gmra.mxu0 %v5938
      %v5984 = vpop.f32.mrf.mxu0
      %v5985 = vadd.f32 0.0, %v5984
      %5986 = vmatmul.f32.gmra.mxu0 %v5941
      %v5987 = vpop.f32.mrf.mxu0
      %v5988 = vadd.f32 0.0, %v5987
      %5989 = vmatmul.f32.gmra.mxu0 %v5944
      %v5990 = vpop.f32.mrf.mxu0
      %v5991 = vadd.f32 0.0, %v5990
      %5992 = vmatmul.f32.gmra.mxu0 %v5947
      %v5993 = vpop.f32.mrf.mxu0
      %v5994 = vadd.f32 0.0, %v5993
      %5995 = vmatmul.f32.gmra.mxu0 %v5950
      %v5996 = vpop.f32.mrf.mxu0
      %v5997 = vadd.f32 0.0, %v5996
      %5998 = vdwg.mxu0
      %v5999 = vadd.f32 %v5857, %v5970
      %v6000 = vadd.f32 %v5858, %v5973
      %v6001 = vadd.f32 %v5859, %v5976
      %v6002 = vadd.f32 %v5860, %v5979
      %v6003 = vadd.f32 %v5861, %v5982
      %v6004 = vadd.f32 %v5862, %v5985
      %v6005 = vadd.f32 %v5863, %v5988
      %v6006 = vadd.f32 %v5864, %v5991
      %v6007 = vadd.f32 %v5865, %v5994
      %v6008 = vadd.f32 %v5866, %v5997
      %6009 = vset.pattern.permute.xlu0 7
      %6010 = vperm.xlu0 %6009, %v4934
      %v6011 = vpop.permute.xlu0 %6010
      %6013 = vset.pattern.permute.xlu0 7
      %6014 = vperm.xlu0 %6013, %v4935
      %v6015 = vpop.permute.xlu0 %6014
      %6017 = vset.pattern.permute.xlu0 7
      %6018 = vperm.xlu0 %6017, %v4936
      %v6019 = vpop.permute.xlu0 %6018
      %6021 = vset.pattern.permute.xlu0 7
      %6022 = vperm.xlu0 %6021, %v4937
      %v6023 = vpop.permute.xlu0 %6022
      %6025 = vset.pattern.permute.xlu0 7
      %6026 = vperm.xlu0 %6025, %v4938
      %v6027 = vpop.permute.xlu0 %6026
      %6029 = vset.pattern.permute.xlu0 7
      %6030 = vperm.xlu0 %6029, %v4939
      %v6031 = vpop.permute.xlu0 %6030
      %6033 = vset.pattern.permute.xlu0 7
      %6034 = vperm.xlu0 %6033, %v4940
      %v6035 = vpop.permute.xlu0 %6034
      %6037 = vset.pattern.permute.xlu0 7
      %6038 = vperm.xlu0 %6037, %v4941
      %v6039 = vpop.permute.xlu0 %6038
      %6041 = vset.pattern.permute.xlu0 7
      %6042 = vperm.xlu0 %6041, %v4942
      %v6043 = vpop.permute.xlu0 %6042
      %6045 = vset.pattern.permute.xlu0 7
      %6046 = vperm.xlu0 %6045, %v4943
      %v6047 = vpop.permute.xlu0 %6046
      %v6049 = vmul.f32 %v5025, %v6011
      %v6050 = vmul.f32 %v5024, %v6015
      %v6051 = vmul.f32 %v5023, %v6019
      %v6052 = vmul.f32 %v5022, %v6023
      %v6053 = vmul.f32 %v5021, %v6027
      %v6054 = vmul.f32 %v5020, %v6031
      %v6055 = vmul.f32 %v5019, %v6035
      %v6056 = vmul.f32 %v5028, %v6039
      %v6057 = vmul.f32 %v5027, %v6043
      %v6058 = vmul.f32 %v5026, %v6047
      %s6059 = scalar_lea.vmem %s6, 224
      %v6060 = vld [vmem:[%s6059] sm:$0xff]
      %v6061 = vld [vmem:[%s6059 + $0x8] sm:$0xff]
      %v6062 = vld [vmem:[%s6059 + $0x10] sm:$0xff]
      %v6063 = vld [vmem:[%s6059 + $0x18] sm:$0xff]
      %v6065 = vsel %vm4826, %v6049, 0
      %v6068 = vsel %vm4826, %v6050, 0
      %v6071 = vsel %vm4826, %v6051, 0
      %v6074 = vsel %vm4826, %v6052, 0
      %v6077 = vsel %vm4826, %v6053, 0
      %v6080 = vsel %vm4826, %v6054, 0
      %v6083 = vsel %vm4826, %v6055, 0
      %v6086 = vsel %vm4826, %v6056, 0
      %v6089 = vsel %vm4826, %v6057, 0
      %v6092 = vsel %vm4826, %v6058, 0
      %6094 = vmatpush.msra.mxu0 0.0
      %6095 = vmatpush.msra.mxu0 0.0
      %6096 = vmatpush.msra.mxu0 0.0
      %6097 = vmatpush.msra.mxu0 0.0
      %6098 = vmatpush.msra.mxu0 0.0
      %6099 = vmatpush.msra.mxu0 0.0
      %6100 = vmatpush.msra.mxu0 0.0
      %6101 = vmatpush.msra.mxu0 0.0
      %6102 = vmatpush.msra.mxu0 0.0
      %6103 = vmatpush.msra.mxu0 0.0
      %6104 = vmatpush.msra.mxu0 0.0
      %6105 = vmatpush.msra.mxu0 0.0
      %6106 = vmatpush.msra.mxu0 %v6063
      %6107 = vmatpush.msra.mxu0 %v6062
      %6108 = vmatpush.msra.mxu0 %v6061
      %6109 = vmatpush.msra.mxu0 %v6060
      %6110 = vmatmul.f32.gmra.mxu0 %v6065
      %v6111 = vpop.f32.mrf.mxu0
      %v6112 = vadd.f32 0.0, %v6111
      %6113 = vmatmul.f32.gmra.mxu0 %v6068
      %v6114 = vpop.f32.mrf.mxu0
      %v6115 = vadd.f32 0.0, %v6114
      %6116 = vmatmul.f32.gmra.mxu0 %v6071
      %v6117 = vpop.f32.mrf.mxu0
      %v6118 = vadd.f32 0.0, %v6117
      %6119 = vmatmul.f32.gmra.mxu0 %v6074
      %v6120 = vpop.f32.mrf.mxu0
      %v6121 = vadd.f32 0.0, %v6120
      %6122 = vmatmul.f32.gmra.mxu0 %v6077
      %v6123 = vpop.f32.mrf.mxu0
      %v6124 = vadd.f32 0.0, %v6123
      %6125 = vmatmul.f32.gmra.mxu0 %v6080
      %v6126 = vpop.f32.mrf.mxu0
      %v6127 = vadd.f32 0.0, %v6126
      %6128 = vmatmul.f32.gmra.mxu0 %v6083
      %v6129 = vpop.f32.mrf.mxu0
      %v6130 = vadd.f32 0.0, %v6129
      %6131 = vmatmul.f32.gmra.mxu0 %v6086
      %v6132 = vpop.f32.mrf.mxu0
      %v6133 = vadd.f32 0.0, %v6132
      %6134 = vmatmul.f32.gmra.mxu0 %v6089
      %v6135 = vpop.f32.mrf.mxu0
      %v6136 = vadd.f32 0.0, %v6135
      %6137 = vmatmul.f32.gmra.mxu0 %v6092
      %v6138 = vpop.f32.mrf.mxu0
      %v6139 = vadd.f32 0.0, %v6138
      %6140 = vdwg.mxu0
      %v6141 = vadd.f32 %v5999, %v6112
      %v6142 = vadd.f32 %v6000, %v6115
      %v6143 = vadd.f32 %v6001, %v6118
      %v6144 = vadd.f32 %v6002, %v6121
      %v6145 = vadd.f32 %v6003, %v6124
      %v6146 = vadd.f32 %v6004, %v6127
      %v6147 = vadd.f32 %v6005, %v6130
      %v6148 = vadd.f32 %v6006, %v6133
      %v6149 = vadd.f32 %v6007, %v6136
      %v6150 = vadd.f32 %v6008, %v6139
      %6151 = vset.pattern.permute.xlu0 8
      %6152 = vperm.xlu0 %6151, %v4934
      %v6153 = vpop.permute.xlu0 %6152
      %6155 = vset.pattern.permute.xlu0 8
      %6156 = vperm.xlu0 %6155, %v4935
      %v6157 = vpop.permute.xlu0 %6156
      %6159 = vset.pattern.permute.xlu0 8
      %6160 = vperm.xlu0 %6159, %v4936
      %v6161 = vpop.permute.xlu0 %6160
      %6163 = vset.pattern.permute.xlu0 8
      %6164 = vperm.xlu0 %6163, %v4937
      %v6165 = vpop.permute.xlu0 %6164
      %6167 = vset.pattern.permute.xlu0 8
      %6168 = vperm.xlu0 %6167, %v4938
      %v6169 = vpop.permute.xlu0 %6168
      %6171 = vset.pattern.permute.xlu0 8
      %6172 = vperm.xlu0 %6171, %v4939
      %v6173 = vpop.permute.xlu0 %6172
      %6175 = vset.pattern.permute.xlu0 8
      %6176 = vperm.xlu0 %6175, %v4940
      %v6177 = vpop.permute.xlu0 %6176
      %6179 = vset.pattern.permute.xlu0 8
      %6180 = vperm.xlu0 %6179, %v4941
      %v6181 = vpop.permute.xlu0 %6180
      %6183 = vset.pattern.permute.xlu0 8
      %6184 = vperm.xlu0 %6183, %v4942
      %v6185 = vpop.permute.xlu0 %6184
      %6187 = vset.pattern.permute.xlu0 8
      %6188 = vperm.xlu0 %6187, %v4943
      %v6189 = vpop.permute.xlu0 %6188
      %v6191 = vmul.f32 %v5255, %v6153
      %v6192 = vmul.f32 %v5254, %v6157
      %v6193 = vmul.f32 %v5253, %v6161
      %v6194 = vmul.f32 %v5252, %v6165
      %v6195 = vmul.f32 %v5251, %v6169
      %v6196 = vmul.f32 %v5250, %v6173
      %v6197 = vmul.f32 %v5249, %v6177
      %v6198 = vmul.f32 %v5258, %v6181
      %v6199 = vmul.f32 %v5257, %v6185
      %v6200 = vmul.f32 %v5256, %v6189
      %s6201 = scalar_lea.vmem %s6, 256
      %v6202 = vld [vmem:[%s6201] sm:$0xff]
      %v6203 = vld [vmem:[%s6201 + $0x8] sm:$0xff]
      %v6204 = vld [vmem:[%s6201 + $0x10] sm:$0xff]
      %v6205 = vld [vmem:[%s6201 + $0x18] sm:$0xff]
      %v6207 = vsel %vm4826, %v6191, 0
      %v6210 = vsel %vm4826, %v6192, 0
      %v6213 = vsel %vm4826, %v6193, 0
      %v6216 = vsel %vm4826, %v6194, 0
      %v6219 = vsel %vm4826, %v6195, 0
      %v6222 = vsel %vm4826, %v6196, 0
      %v6225 = vsel %vm4826, %v6197, 0
      %v6228 = vsel %vm4826, %v6198, 0
      %v6231 = vsel %vm4826, %v6199, 0
      %v6234 = vsel %vm4826, %v6200, 0
      %6236 = vmatpush.msra.mxu0 0.0
      %6237 = vmatpush.msra.mxu0 0.0
      %6238 = vmatpush.msra.mxu0 0.0
      %6239 = vmatpush.msra.mxu0 0.0
      %6240 = vmatpush.msra.mxu0 0.0
      %6241 = vmatpush.msra.mxu0 0.0
      %6242 = vmatpush.msra.mxu0 0.0
      %6243 = vmatpush.msra.mxu0 0.0
      %6244 = vmatpush.msra.mxu0 0.0
      %6245 = vmatpush.msra.mxu0 0.0
      %6246 = vmatpush.msra.mxu0 0.0
      %6247 = vmatpush.msra.mxu0 0.0
      %6248 = vmatpush.msra.mxu0 %v6205
      %6249 = vmatpush.msra.mxu0 %v6204
      %6250 = vmatpush.msra.mxu0 %v6203
      %6251 = vmatpush.msra.mxu0 %v6202
      %6252 = vmatmul.f32.gmra.mxu0 %v6207
      %v6253 = vpop.f32.mrf.mxu0
      %v6254 = vadd.f32 0.0, %v6253
      %6255 = vmatmul.f32.gmra.mxu0 %v6210
      %v6256 = vpop.f32.mrf.mxu0
      %v6257 = vadd.f32 0.0, %v6256
      %6258 = vmatmul.f32.gmra.mxu0 %v6213
      %v6259 = vpop.f32.mrf.mxu0
      %v6260 = vadd.f32 0.0, %v6259
      %6261 = vmatmul.f32.gmra.mxu0 %v6216
      %v6262 = vpop.f32.mrf.mxu0
      %v6263 = vadd.f32 0.0, %v6262
      %6264 = vmatmul.f32.gmra.mxu0 %v6219
      %v6265 = vpop.f32.mrf.mxu0
      %v6266 = vadd.f32 0.0, %v6265
      %6267 = vmatmul.f32.gmra.mxu0 %v6222
      %v6268 = vpop.f32.mrf.mxu0
      %v6269 = vadd.f32 0.0, %v6268
      %6270 = vmatmul.f32.gmra.mxu0 %v6225
      %v6271 = vpop.f32.mrf.mxu0
      %v6272 = vadd.f32 0.0, %v6271
      %6273 = vmatmul.f32.gmra.mxu0 %v6228
      %v6274 = vpop.f32.mrf.mxu0
      %v6275 = vadd.f32 0.0, %v6274
      %6276 = vmatmul.f32.gmra.mxu0 %v6231
      %v6277 = vpop.f32.mrf.mxu0
      %v6278 = vadd.f32 0.0, %v6277
      %6279 = vmatmul.f32.gmra.mxu0 %v6234
      %v6280 = vpop.f32.mrf.mxu0
      %v6281 = vadd.f32 0.0, %v6280
      %6282 = vdwg.mxu0
      %v6283 = vadd.f32 %v6141, %v6254
      %v6284 = vadd.f32 %v6142, %v6257
      %v6285 = vadd.f32 %v6143, %v6260
      %v6286 = vadd.f32 %v6144, %v6263
      %v6287 = vadd.f32 %v6145, %v6266
      %v6288 = vadd.f32 %v6146, %v6269
      %v6289 = vadd.f32 %v6147, %v6272
      %v6290 = vadd.f32 %v6148, %v6275
      %v6291 = vadd.f32 %v6149, %v6278
      %v6292 = vadd.f32 %v6150, %v6281
      %v6293 = vld [vmem:[%s7] sm:$0x1]
      %v6295 = vperm.slane %v6293, 0
      %v6297 = vadd.f32 %v6283, %v6295
      %v6298 = vadd.f32 %v6284, %v6295
      %v6299 = vadd.f32 %v6285, %v6295
      %v6300 = vadd.f32 %v6286, %v6295
      %v6301 = vadd.f32 %v6287, %v6295
      %v6302 = vadd.f32 %v6288, %v6295
      %v6303 = vadd.f32 %v6289, %v6295
      %v6304 = vadd.f32 %v6290, %v6295
      %v6305 = vadd.f32 %v6291, %v6295
      %v6306 = vadd.f32 %v6292, %v6295
      %v6307 = vmax.f32 %v6297, 0.0
      %v6308 = vmax.f32 %v6298, 0.0
      %v6309 = vmax.f32 %v6299, 0.0
      %v6310 = vmax.f32 %v6300, 0.0
      %v6311 = vmax.f32 %v6301, 0.0
      %v6312 = vmax.f32 %v6302, 0.0
      %v6313 = vmax.f32 %v6303, 0.0
      %v6314 = vmax.f32 %v6304, 0.0
      %v6315 = vmax.f32 %v6305, 0.0
      %v6316 = vmax.f32 %v6306, 0.0
      %v6317 = vrot.slane %v6307, 1
      %v6318 = vrot.slane %v6308, 1
      %v6319 = vrot.slane %v6309, 1
      %v6320 = vrot.slane %v6310, 1
      %v6321 = vrot.slane %v6311, 1
      %v6322 = vrot.slane %v6312, 1
      %v6323 = vrot.slane %v6313, 1
      %v6324 = vrot.slane %v6314, 1
      %v6325 = vrot.slane %v6315, 1
      %v6326 = vrot.slane %v6316, 1
      %v6327 = vsel %vm1426, %v6325, %v6326
      %v6328 = vsel %vm1426, %v6324, %v6325
      %v6329 = vsel %vm1426, %v6323, %v6324
      %v6330 = vsel %vm1426, %v6322, %v6323
      %v6331 = vsel %vm1426, %v6321, %v6322
      %v6332 = vsel %vm1426, %v6320, %v6321
      %v6333 = vsel %vm1426, %v6319, %v6320
      %v6334 = vsel %vm1426, %v6318, %v6319
      %v6335 = vsel %vm1426, %v6317, %v6318
      %v6336 = vsel %vm1426, %v6326, %v6317
      %v6337 = vmax.f32 %v6307, %v6335
      %v6338 = vmax.f32 %v6308, %v6334
      %v6339 = vmax.f32 %v6309, %v6333
      %v6340 = vmax.f32 %v6310, %v6332
      %v6341 = vmax.f32 %v6311, %v6331
      %v6342 = vmax.f32 %v6312, %v6330
      %v6343 = vmax.f32 %v6313, %v6329
      %v6344 = vmax.f32 %v6314, %v6328
      %v6345 = vmax.f32 %v6315, %v6327
      %v6346 = vmax.f32 %v6316, %v6336
      %v6347 = vrot.slane %v6337, 4
      %v6348 = vrot.slane %v6338, 4
      %v6349 = vrot.slane %v6339, 4
      %v6350 = vrot.slane %v6340, 4
      %v6351 = vrot.slane %v6341, 4
      %v6352 = vrot.slane %v6342, 4
      %v6353 = vrot.slane %v6343, 4
      %v6354 = vrot.slane %v6344, 4
      %v6355 = vrot.slane %v6345, 4
      %v6356 = vrot.slane %v6346, 4
      %v6357 = vsel %vm5018, %v6355, %v6356
      %v6358 = vsel %vm5018, %v6354, %v6355
      %v6359 = vsel %vm5018, %v6353, %v6354
      %v6360 = vsel %vm5018, %v6352, %v6353
      %v6361 = vsel %vm5018, %v6351, %v6352
      %v6362 = vsel %vm5018, %v6350, %v6351
      %v6363 = vsel %vm5018, %v6349, %v6350
      %v6364 = vsel %vm5018, %v6348, %v6349
      %v6365 = vsel %vm5018, %v6347, %v6348
      %v6366 = vsel %vm5018, %v6356, %v6347
      %v6367 = vmax.f32 %v6337, %v6363
      %v6368 = vmax.f32 %v6338, %v6362
      %v6369 = vmax.f32 %v6339, %v6361
      %v6370 = vmax.f32 %v6340, %v6360
      %v6371 = vmax.f32 %v6341, %v6359
      %v6372 = vmax.f32 %v6342, %v6358
      %v6373 = vmax.f32 %v6343, %v6357
      %v6374 = vmax.f32 %v6344, %v6366
      %v6375 = vmax.f32 %v6345, %v6365
      %v6376 = vmax.f32 %v6346, %v6364
      %vm6377 = vcmask 523264
      %6378 = vst.msk [vmem:[#allocation4] sm:$0xff] %vm6377, %v6367
      %6379 = vst.msk [vmem:[#allocation4 + $0x8] sm:$0xff] %vm6377, %v6368
      %6380 = vst.msk [vmem:[#allocation4 + $0x10] sm:$0xff] %vm6377, %v6369
      %6381 = vst.msk [vmem:[#allocation4 + $0x18] sm:$0xff] %vm6377, %v6370
      %6382 = vst.msk [vmem:[#allocation4 + $0x20] sm:$0xff] %vm6377, %v6371
      %6383 = vst.msk [vmem:[#allocation4 + $0x28] sm:$0xff] %vm6377, %v6372
      %6384 = vst.msk [vmem:[#allocation4 + $0x30] sm:$0xff] %vm6377, %v6373
      %6385 = vst.msk [vmem:[#allocation4 + $0x38] sm:$0xff] %vm6377, %v6374
      %6386 = vst.msk [vmem:[#allocation4 + $0x40] sm:$0xff] %vm6377, %v6375
      %6387 = vst.msk [vmem:[#allocation4 + $0x48] sm:$0xff] %vm6377, %v6376
      %v6388 = vld [vmem:[#allocation4] ss:$2 sm:$0xff]
      %s6389 = scalar_lea.vmem [#allocation4], 16
      %v6390 = vld [vmem:[%s6389] ss:$2 sm:$0x3]
      %6391 = vst.msk [vmem:[#allocation5] sm:$0xff] %vm6377, %v6388
      %vm6392 = vcmask 517120
      %6393 = vst.msk [vmem:[#allocation5 + $0x8] sm:$0x3] %vm6392, %v6390
      %s6394 = scalar_lea.vmem [#allocation4], 40
      %v6395 = vld [vmem:[%s6394] ss:$2 sm:$0xff]
      %s6396 = scalar_lea.vmem [#allocation4], 56
      %v6397 = vld [vmem:[%s6396] ss:$2 sm:$0x3]
      %6398 = vst.msk [vmem:[#allocation5 + $0xa] sm:$0xff] %vm6377, %v6395
      %6399 = vst.msk [vmem:[#allocation5 + $0x12] sm:$0x3] %vm6392, %v6397
      %v6400 = vld [vmem:[#allocation5] sm:$0xff]
      %v6401 = vld [vmem:[#allocation5 + $0x8] sm:$0xff]
      %v6402 = vld [vmem:[#allocation5 + $0x10] sm:$0xf]
      %vm6405 = vcmask 1042432
      %v6406 = vrot.slane %v6400, 5
      %v6407 = vrot.slane %v6401, 5
      %v6408 = vsel %vm6405, %v6406, %v6407
      %v6411 = vsel %vm6405, 0.0, %v6406
      %v6412 = vld [vmem:[%s3] sm:$0xff]
      %v6413 = vld [vmem:[%s3 + $0x8] sm:$0xff]
      %v6414 = vld [vmem:[%s3 + $0x10] sm:$0xf]
      %6416 = vset.pattern.permute.xlu0 0
      %6417 = vperm.xlu0 %6416, %v6412
      %v6418 = vpop.permute.xlu0 %6417
      %6421 = vset.pattern.permute.xlu0 0
      %6422 = vperm.xlu0 %6421, %v6413
      %v6423 = vpop.permute.xlu0 %6422
      %6426 = vset.pattern.permute.xlu0 0
      %6427 = vperm.xlu0 %6426, %v6414
      %v6428 = vpop.permute.xlu0 %6427
      %v6430 = vmul.f32 %v6418, 0.0
      %v6431 = vmul.f32 %v6411, %v6423
      %v6432 = vmul.f32 %v6408, %v6428
      %v6433 = vld [vmem:[%s8] sm:$0xff]
      %v6434 = vld [vmem:[%s8 + $0x8] sm:$0xff]
      %v6435 = vld [vmem:[%s8 + $0x10] sm:$0xff]
      %v6436 = vld [vmem:[%s8 + $0x18] sm:$0xff]
      %v6437 = vld [vmem:[%s8 + $0x20] sm:$0xff]
      %v6438 = vld [vmem:[%s8 + $0x28] sm:$0xff]
      %v6439 = vld [vmem:[%s8 + $0x30] sm:$0xff]
      %v6440 = vld [vmem:[%s8 + $0x38] sm:$0xff]
      %vm6441 = vcmask 1041408
      %v6442 = vrot.slane %v6400, 6
      %v6443 = vrot.slane %v6401, 6
      %v6444 = vsel %vm6441, %v6442, %v6443
      %v6447 = vsel %vm6441, 0.0, %v6442
      %6448 = vset.pattern.permute.xlu0 1
      %6449 = vperm.xlu0 %6448, %v6412
      %v6450 = vpop.permute.xlu0 %6449
      %6452 = vset.pattern.permute.xlu0 1
      %6453 = vperm.xlu0 %6452, %v6413
      %v6454 = vpop.permute.xlu0 %6453
      %6456 = vset.pattern.permute.xlu0 1
      %6457 = vperm.xlu0 %6456, %v6414
      %v6458 = vpop.permute.xlu0 %6457
      %v6460 = vmul.f32 %v6450, 0.0
      %v6461 = vmul.f32 %v6447, %v6454
      %v6462 = vmul.f32 %v6444, %v6458
      %s6463 = scalar_lea.vmem %s8, 64
      %v6464 = vld [vmem:[%s6463] sm:$0xff]
      %v6465 = vld [vmem:[%s6463 + $0x8] sm:$0xff]
      %v6466 = vld [vmem:[%s6463 + $0x10] sm:$0xff]
      %v6467 = vld [vmem:[%s6463 + $0x18] sm:$0xff]
      %v6468 = vld [vmem:[%s6463 + $0x20] sm:$0xff]
      %v6469 = vld [vmem:[%s6463 + $0x28] sm:$0xff]
      %v6470 = vld [vmem:[%s6463 + $0x30] sm:$0xff]
      %v6471 = vld [vmem:[%s6463 + $0x38] sm:$0xff]
      %v6473 = vsel %vm6377, %v6460, 0
      %v6476 = vsel %vm6377, %v6461, 0
      %v6479 = vsel %vm6377, %v6462, 0
      %6481 = vmatpush.msra.mxu0 0.0
      %6482 = vmatpush.msra.mxu0 0.0
      %6483 = vmatpush.msra.mxu0 0.0
      %6484 = vmatpush.msra.mxu0 0.0
      %6485 = vmatpush.msra.mxu0 0.0
      %6486 = vmatpush.msra.mxu0 0.0
      %6487 = vmatpush.msra.mxu0 0.0
      %6488 = vmatpush.msra.mxu0 0.0
      %6489 = vmatpush.msra.mxu0 %v6471
      %6490 = vmatpush.msra.mxu0 %v6470
      %6491 = vmatpush.msra.mxu0 %v6469
      %6492 = vmatpush.msra.mxu0 %v6468
      %6493 = vmatpush.msra.mxu0 %v6467
      %6494 = vmatpush.msra.mxu0 %v6466
      %6495 = vmatpush.msra.mxu0 %v6465
      %6496 = vmatpush.msra.mxu0 %v6464
      %6497 = vmatmul.f32.gmra.mxu0 %v6473
      %v6498 = vpop.f32.mrf.mxu0
      %v6499 = vadd.f32 0.0, %v6498
      %6500 = vmatmul.f32.gmra.mxu0 %v6476
      %v6501 = vpop.f32.mrf.mxu0
      %v6502 = vadd.f32 0.0, %v6501
      %6503 = vmatmul.f32.gmra.mxu0 %v6479
      %v6504 = vpop.f32.mrf.mxu0
      %v6505 = vadd.f32 0.0, %v6504
      %6506 = vdwg.mxu0
      %v6508 = vsel %vm6377, %v6430, 0
      %v6511 = vsel %vm6377, %v6431, 0
      %v6514 = vsel %vm6377, %v6432, 0
      %6516 = vmatpush.msra.mxu0 0.0
      %6517 = vmatpush.msra.mxu0 0.0
      %6518 = vmatpush.msra.mxu0 0.0
      %6519 = vmatpush.msra.mxu0 0.0
      %6520 = vmatpush.msra.mxu0 0.0
      %6521 = vmatpush.msra.mxu0 0.0
      %6522 = vmatpush.msra.mxu0 0.0
      %6523 = vmatpush.msra.mxu0 0.0
      %6524 = vmatpush.msra.mxu0 %v6440
      %6525 = vmatpush.msra.mxu0 %v6439
      %6526 = vmatpush.msra.mxu0 %v6438
      %6527 = vmatpush.msra.mxu0 %v6437
      %6528 = vmatpush.msra.mxu0 %v6436
      %6529 = vmatpush.msra.mxu0 %v6435
      %6530 = vmatpush.msra.mxu0 %v6434
      %6531 = vmatpush.msra.mxu0 %v6433
      %6532 = vmatmul.f32.gmra.mxu0 %v6508
      %v6533 = vpop.f32.mrf.mxu0
      %v6534 = vadd.f32 %v6499, %v6533
      %6535 = vmatmul.f32.gmra.mxu0 %v6511
      %v6536 = vpop.f32.mrf.mxu0
      %v6537 = vadd.f32 %v6502, %v6536
      %6538 = vmatmul.f32.gmra.mxu0 %v6514
      %v6539 = vpop.f32.mrf.mxu0
      %v6540 = vadd.f32 %v6505, %v6539
      %6541 = vdwg.mxu0
      %vm6542 = vcmask 1040384
      %v6543 = vrot.slane %v6400, 7
      %v6544 = vrot.slane %v6401, 7
      %v6545 = vsel %vm6542, %v6543, %v6544
      %v6548 = vsel %vm6542, 0.0, %v6543
      %6549 = vset.pattern.permute.xlu0 2
      %6550 = vperm.xlu0 %6549, %v6412
      %v6551 = vpop.permute.xlu0 %6550
      %6553 = vset.pattern.permute.xlu0 2
      %6554 = vperm.xlu0 %6553, %v6413
      %v6555 = vpop.permute.xlu0 %6554
      %6557 = vset.pattern.permute.xlu0 2
      %6558 = vperm.xlu0 %6557, %v6414
      %v6559 = vpop.permute.xlu0 %6558
      %v6561 = vmul.f32 %v6551, 0.0
      %v6562 = vmul.f32 %v6548, %v6555
      %v6563 = vmul.f32 %v6545, %v6559
      %s6564 = scalar_lea.vmem %s8, 128
      %v6565 = vld [vmem:[%s6564] sm:$0xff]
      %v6566 = vld [vmem:[%s6564 + $0x8] sm:$0xff]
      %v6567 = vld [vmem:[%s6564 + $0x10] sm:$0xff]
      %v6568 = vld [vmem:[%s6564 + $0x18] sm:$0xff]
      %v6569 = vld [vmem:[%s6564 + $0x20] sm:$0xff]
      %v6570 = vld [vmem:[%s6564 + $0x28] sm:$0xff]
      %v6571 = vld [vmem:[%s6564 + $0x30] sm:$0xff]
      %v6572 = vld [vmem:[%s6564 + $0x38] sm:$0xff]
      %v6574 = vsel %vm6377, %v6561, 0
      %v6577 = vsel %vm6377, %v6562, 0
      %v6580 = vsel %vm6377, %v6563, 0
      %6582 = vmatpush.msra.mxu0 0.0
      %6583 = vmatpush.msra.mxu0 0.0
      %6584 = vmatpush.msra.mxu0 0.0
      %6585 = vmatpush.msra.mxu0 0.0
      %6586 = vmatpush.msra.mxu0 0.0
      %6587 = vmatpush.msra.mxu0 0.0
      %6588 = vmatpush.msra.mxu0 0.0
      %6589 = vmatpush.msra.mxu0 0.0
      %6590 = vmatpush.msra.mxu0 %v6572
      %6591 = vmatpush.msra.mxu0 %v6571
      %6592 = vmatpush.msra.mxu0 %v6570
      %6593 = vmatpush.msra.mxu0 %v6569
      %6594 = vmatpush.msra.mxu0 %v6568
      %6595 = vmatpush.msra.mxu0 %v6567
      %6596 = vmatpush.msra.mxu0 %v6566
      %6597 = vmatpush.msra.mxu0 %v6565
      %6598 = vmatmul.f32.gmra.mxu0 %v6574
      %v6599 = vpop.f32.mrf.mxu0
      %v6600 = vadd.f32 0.0, %v6599
      %6601 = vmatmul.f32.gmra.mxu0 %v6577
      %v6602 = vpop.f32.mrf.mxu0
      %v6603 = vadd.f32 0.0, %v6602
      %6604 = vmatmul.f32.gmra.mxu0 %v6580
      %v6605 = vpop.f32.mrf.mxu0
      %v6606 = vadd.f32 0.0, %v6605
      %6607 = vdwg.mxu0
      %v6608 = vadd.f32 %v6534, %v6600
      %v6609 = vadd.f32 %v6537, %v6603
      %v6610 = vadd.f32 %v6540, %v6606
      %v6612 = vrot.slane %v6402, 7
      %v6613 = vsel %vm6542, %v6544, %v6612
      %6615 = vset.pattern.permute.xlu0 3
      %6616 = vperm.xlu0 %6615, %v6412
      %v6617 = vpop.permute.xlu0 %6616
      %6619 = vset.pattern.permute.xlu0 3
      %6620 = vperm.xlu0 %6619, %v6413
      %v6621 = vpop.permute.xlu0 %6620
      %6623 = vset.pattern.permute.xlu0 3
      %6624 = vperm.xlu0 %6623, %v6414
      %v6625 = vpop.permute.xlu0 %6624
      %v6627 = vmul.f32 %v6548, %v6617
      %v6628 = vmul.f32 %v6545, %v6621
      %v6629 = vmul.f32 %v6613, %v6625
      %s6630 = scalar_lea.vmem %s8, 192
      %v6631 = vld [vmem:[%s6630] sm:$0xff]
      %v6632 = vld [vmem:[%s6630 + $0x8] sm:$0xff]
      %v6633 = vld [vmem:[%s6630 + $0x10] sm:$0xff]
      %v6634 = vld [vmem:[%s6630 + $0x18] sm:$0xff]
      %v6635 = vld [vmem:[%s6630 + $0x20] sm:$0xff]
      %v6636 = vld [vmem:[%s6630 + $0x28] sm:$0xff]
      %v6637 = vld [vmem:[%s6630 + $0x30] sm:$0xff]
      %v6638 = vld [vmem:[%s6630 + $0x38] sm:$0xff]
      %v6640 = vsel %vm6377, %v6627, 0
      %v6643 = vsel %vm6377, %v6628, 0
      %v6646 = vsel %vm6377, %v6629, 0
      %6648 = vmatpush.msra.mxu0 0.0
      %6649 = vmatpush.msra.mxu0 0.0
      %6650 = vmatpush.msra.mxu0 0.0
      %6651 = vmatpush.msra.mxu0 0.0
      %6652 = vmatpush.msra.mxu0 0.0
      %6653 = vmatpush.msra.mxu0 0.0
      %6654 = vmatpush.msra.mxu0 0.0
      %6655 = vmatpush.msra.mxu0 0.0
      %6656 = vmatpush.msra.mxu0 %v6638
      %6657 = vmatpush.msra.mxu0 %v6637
      %6658 = vmatpush.msra.mxu0 %v6636
      %6659 = vmatpush.msra.mxu0 %v6635
      %6660 = vmatpush.msra.mxu0 %v6634
      %6661 = vmatpush.msra.mxu0 %v6633
      %6662 = vmatpush.msra.mxu0 %v6632
      %6663 = vmatpush.msra.mxu0 %v6631
      %6664 = vmatmul.f32.gmra.mxu0 %v6640
      %v6665 = vpop.f32.mrf.mxu0
      %v6666 = vadd.f32 0.0, %v6665
      %6667 = vmatmul.f32.gmra.mxu0 %v6643
      %v6668 = vpop.f32.mrf.mxu0
      %v6669 = vadd.f32 0.0, %v6668
      %6670 = vmatmul.f32.gmra.mxu0 %v6646
      %v6671 = vpop.f32.mrf.mxu0
      %v6672 = vadd.f32 0.0, %v6671
      %6673 = vdwg.mxu0
      %v6674 = vadd.f32 %v6608, %v6666
      %v6675 = vadd.f32 %v6609, %v6669
      %v6676 = vadd.f32 %v6610, %v6672
      %6677 = vset.pattern.permute.xlu0 4
      %6678 = vperm.xlu0 %6677, %v6412
      %v6679 = vpop.permute.xlu0 %6678
      %6681 = vset.pattern.permute.xlu0 4
      %6682 = vperm.xlu0 %6681, %v6413
      %v6683 = vpop.permute.xlu0 %6682
      %6685 = vset.pattern.permute.xlu0 4
      %6686 = vperm.xlu0 %6685, %v6414
      %v6687 = vpop.permute.xlu0 %6686
      %v6689 = vmul.f32 %v6400, %v6679
      %v6690 = vmul.f32 %v6401, %v6683
      %v6691 = vmul.f32 %v6402, %v6687
      %s6692 = scalar_lea.vmem %s8, 256
      %v6693 = vld [vmem:[%s6692] sm:$0xff]
      %v6694 = vld [vmem:[%s6692 + $0x8] sm:$0xff]
      %v6695 = vld [vmem:[%s6692 + $0x10] sm:$0xff]
      %v6696 = vld [vmem:[%s6692 + $0x18] sm:$0xff]
      %v6697 = vld [vmem:[%s6692 + $0x20] sm:$0xff]
      %v6698 = vld [vmem:[%s6692 + $0x28] sm:$0xff]
      %v6699 = vld [vmem:[%s6692 + $0x30] sm:$0xff]
      %v6700 = vld [vmem:[%s6692 + $0x38] sm:$0xff]
      %v6702 = vsel %vm6377, %v6689, 0
      %v6705 = vsel %vm6377, %v6690, 0
      %v6708 = vsel %vm6377, %v6691, 0
      %6710 = vmatpush.msra.mxu0 0.0
      %6711 = vmatpush.msra.mxu0 0.0
      %6712 = vmatpush.msra.mxu0 0.0
      %6713 = vmatpush.msra.mxu0 0.0
      %6714 = vmatpush.msra.mxu0 0.0
      %6715 = vmatpush.msra.mxu0 0.0
      %6716 = vmatpush.msra.mxu0 0.0
      %6717 = vmatpush.msra.mxu0 0.0
      %6718 = vmatpush.msra.mxu0 %v6700
      %6719 = vmatpush.msra.mxu0 %v6699
      %6720 = vmatpush.msra.mxu0 %v6698
      %6721 = vmatpush.msra.mxu0 %v6697
      %6722 = vmatpush.msra.mxu0 %v6696
      %6723 = vmatpush.msra.mxu0 %v6695
      %6724 = vmatpush.msra.mxu0 %v6694
      %6725 = vmatpush.msra.mxu0 %v6693
      %6726 = vmatmul.f32.gmra.mxu0 %v6702
      %v6727 = vpop.f32.mrf.mxu0
      %v6728 = vadd.f32 0.0, %v6727
      %6729 = vmatmul.f32.gmra.mxu0 %v6705
      %v6730 = vpop.f32.mrf.mxu0
      %v6731 = vadd.f32 0.0, %v6730
      %6732 = vmatmul.f32.gmra.mxu0 %v6708
      %v6733 = vpop.f32.mrf.mxu0
      %v6734 = vadd.f32 0.0, %v6733
      %6735 = vdwg.mxu0
      %v6736 = vadd.f32 %v6674, %v6728
      %v6737 = vadd.f32 %v6675, %v6731
      %v6738 = vadd.f32 %v6676, %v6734
      %vm6739 = vcmask 1046528
      %v6740 = vrot.slane %v6400, 1
      %v6741 = vrot.slane %v6401, 1
      %v6742 = vsel %vm6739, %v6740, %v6741
      %v6743 = vrot.slane %v6402, 1
      %v6744 = vsel %vm6739, %v6741, %v6743
      %v6748 = vsel %vm6405, %v6743, 0.0
      %6749 = vset.pattern.permute.xlu0 5
      %6750 = vperm.xlu0 %6749, %v6412
      %v6751 = vpop.permute.xlu0 %6750
      %6753 = vset.pattern.permute.xlu0 5
      %6754 = vperm.xlu0 %6753, %v6413
      %v6755 = vpop.permute.xlu0 %6754
      %6757 = vset.pattern.permute.xlu0 5
      %6758 = vperm.xlu0 %6757, %v6414
      %v6759 = vpop.permute.xlu0 %6758
      %v6761 = vmul.f32 %v6742, %v6751
      %v6762 = vmul.f32 %v6744, %v6755
      %v6763 = vmul.f32 %v6748, %v6759
      %s6764 = scalar_lea.vmem %s8, 320
      %v6765 = vld [vmem:[%s6764] sm:$0xff]
      %v6766 = vld [vmem:[%s6764 + $0x8] sm:$0xff]
      %v6767 = vld [vmem:[%s6764 + $0x10] sm:$0xff]
      %v6768 = vld [vmem:[%s6764 + $0x18] sm:$0xff]
      %v6769 = vld [vmem:[%s6764 + $0x20] sm:$0xff]
      %v6770 = vld [vmem:[%s6764 + $0x28] sm:$0xff]
      %v6771 = vld [vmem:[%s6764 + $0x30] sm:$0xff]
      %v6772 = vld [vmem:[%s6764 + $0x38] sm:$0xff]
      %v6774 = vsel %vm6377, %v6761, 0
      %v6777 = vsel %vm6377, %v6762, 0
      %v6780 = vsel %vm6377, %v6763, 0
      %6782 = vmatpush.msra.mxu0 0.0
      %6783 = vmatpush.msra.mxu0 0.0
      %6784 = vmatpush.msra.mxu0 0.0
      %6785 = vmatpush.msra.mxu0 0.0
      %6786 = vmatpush.msra.mxu0 0.0
      %6787 = vmatpush.msra.mxu0 0.0
      %6788 = vmatpush.msra.mxu0 0.0
      %6789 = vmatpush.msra.mxu0 0.0
      %6790 = vmatpush.msra.mxu0 %v6772
      %6791 = vmatpush.msra.mxu0 %v6771
      %6792 = vmatpush.msra.mxu0 %v6770
      %6793 = vmatpush.msra.mxu0 %v6769
      %6794 = vmatpush.msra.mxu0 %v6768
      %6795 = vmatpush.msra.mxu0 %v6767
      %6796 = vmatpush.msra.mxu0 %v6766
      %6797 = vmatpush.msra.mxu0 %v6765
      %6798 = vmatmul.f32.gmra.mxu0 %v6774
      %v6799 = vpop.f32.mrf.mxu0
      %v6800 = vadd.f32 0.0, %v6799
      %6801 = vmatmul.f32.gmra.mxu0 %v6777
      %v6802 = vpop.f32.mrf.mxu0
      %v6803 = vadd.f32 0.0, %v6802
      %6804 = vmatmul.f32.gmra.mxu0 %v6780
      %v6805 = vpop.f32.mrf.mxu0
      %v6806 = vadd.f32 0.0, %v6805
      %6807 = vdwg.mxu0
      %v6808 = vadd.f32 %v6736, %v6800
      %v6809 = vadd.f32 %v6737, %v6803
      %v6810 = vadd.f32 %v6738, %v6806
      %6811 = vset.pattern.permute.xlu0 6
      %6812 = vperm.xlu0 %6811, %v6412
      %v6813 = vpop.permute.xlu0 %6812
      %6815 = vset.pattern.permute.xlu0 6
      %6816 = vperm.xlu0 %6815, %v6413
      %v6817 = vpop.permute.xlu0 %6816
      %6819 = vset.pattern.permute.xlu0 6
      %6820 = vperm.xlu0 %6819, %v6414
      %v6821 = vpop.permute.xlu0 %6820
      %v6823 = vmul.f32 %v6744, %v6813
      %v6824 = vmul.f32 %v6748, %v6817
      %v6825 = vmul.f32 %v6821, 0.0
      %s6826 = scalar_lea.vmem %s8, 384
      %v6827 = vld [vmem:[%s6826] sm:$0xff]
      %v6828 = vld [vmem:[%s6826 + $0x8] sm:$0xff]
      %v6829 = vld [vmem:[%s6826 + $0x10] sm:$0xff]
      %v6830 = vld [vmem:[%s6826 + $0x18] sm:$0xff]
      %v6831 = vld [vmem:[%s6826 + $0x20] sm:$0xff]
      %v6832 = vld [vmem:[%s6826 + $0x28] sm:$0xff]
      %v6833 = vld [vmem:[%s6826 + $0x30] sm:$0xff]
      %v6834 = vld [vmem:[%s6826 + $0x38] sm:$0xff]
      %v6836 = vsel %vm6377, %v6823, 0
      %v6839 = vsel %vm6377, %v6824, 0
      %v6842 = vsel %vm6377, %v6825, 0
      %6844 = vmatpush.msra.mxu0 0.0
      %6845 = vmatpush.msra.mxu0 0.0
      %6846 = vmatpush.msra.mxu0 0.0
      %6847 = vmatpush.msra.mxu0 0.0
      %6848 = vmatpush.msra.mxu0 0.0
      %6849 = vmatpush.msra.mxu0 0.0
      %6850 = vmatpush.msra.mxu0 0.0
      %6851 = vmatpush.msra.mxu0 0.0
      %6852 = vmatpush.msra.mxu0 %v6834
      %6853 = vmatpush.msra.mxu0 %v6833
      %6854 = vmatpush.msra.mxu0 %v6832
      %6855 = vmatpush.msra.mxu0 %v6831
      %6856 = vmatpush.msra.mxu0 %v6830
      %6857 = vmatpush.msra.mxu0 %v6829
      %6858 = vmatpush.msra.mxu0 %v6828
      %6859 = vmatpush.msra.mxu0 %v6827
      %6860 = vmatmul.f32.gmra.mxu0 %v6836
      %v6861 = vpop.f32.mrf.mxu0
      %v6862 = vadd.f32 0.0, %v6861
      %6863 = vmatmul.f32.gmra.mxu0 %v6839
      %v6864 = vpop.f32.mrf.mxu0
      %v6865 = vadd.f32 0.0, %v6864
      %6866 = vmatmul.f32.gmra.mxu0 %v6842
      %v6867 = vpop.f32.mrf.mxu0
      %v6868 = vadd.f32 0.0, %v6867
      %6869 = vdwg.mxu0
      %v6870 = vadd.f32 %v6808, %v6862
      %v6871 = vadd.f32 %v6809, %v6865
      %v6872 = vadd.f32 %v6810, %v6868
      %vm6873 = vcmask 1045504
      %v6874 = vrot.slane %v6401, 2
      %v6875 = vrot.slane %v6402, 2
      %v6876 = vsel %vm6873, %v6874, %v6875
      %v6879 = vsel %vm6441, %v6875, 0.0
      %6880 = vset.pattern.permute.xlu0 7
      %6881 = vperm.xlu0 %6880, %v6412
      %v6882 = vpop.permute.xlu0 %6881
      %6884 = vset.pattern.permute.xlu0 7
      %6885 = vperm.xlu0 %6884, %v6413
      %v6886 = vpop.permute.xlu0 %6885
      %6888 = vset.pattern.permute.xlu0 7
      %6889 = vperm.xlu0 %6888, %v6414
      %v6890 = vpop.permute.xlu0 %6889
      %v6892 = vmul.f32 %v6876, %v6882
      %v6893 = vmul.f32 %v6879, %v6886
      %v6894 = vmul.f32 %v6890, 0.0
      %s6895 = scalar_lea.vmem %s8, 448
      %v6896 = vld [vmem:[%s6895] sm:$0xff]
      %v6897 = vld [vmem:[%s6895 + $0x8] sm:$0xff]
      %v6898 = vld [vmem:[%s6895 + $0x10] sm:$0xff]
      %v6899 = vld [vmem:[%s6895 + $0x18] sm:$0xff]
      %v6900 = vld [vmem:[%s6895 + $0x20] sm:$0xff]
      %v6901 = vld [vmem:[%s6895 + $0x28] sm:$0xff]
      %v6902 = vld [vmem:[%s6895 + $0x30] sm:$0xff]
      %v6903 = vld [vmem:[%s6895 + $0x38] sm:$0xff]
      %v6905 = vsel %vm6377, %v6892, 0
      %v6908 = vsel %vm6377, %v6893, 0
      %v6911 = vsel %vm6377, %v6894, 0
      %6913 = vmatpush.msra.mxu0 0.0
      %6914 = vmatpush.msra.mxu0 0.0
      %6915 = vmatpush.msra.mxu0 0.0
      %6916 = vmatpush.msra.mxu0 0.0
      %6917 = vmatpush.msra.mxu0 0.0
      %6918 = vmatpush.msra.mxu0 0.0
      %6919 = vmatpush.msra.mxu0 0.0
      %6920 = vmatpush.msra.mxu0 0.0
      %6921 = vmatpush.msra.mxu0 %v6903
      %6922 = vmatpush.msra.mxu0 %v6902
      %6923 = vmatpush.msra.mxu0 %v6901
      %6924 = vmatpush.msra.mxu0 %v6900
      %6925 = vmatpush.msra.mxu0 %v6899
      %6926 = vmatpush.msra.mxu0 %v6898
      %6927 = vmatpush.msra.mxu0 %v6897
      %6928 = vmatpush.msra.mxu0 %v6896
      %6929 = vmatmul.f32.gmra.mxu0 %v6905
      %v6930 = vpop.f32.mrf.mxu0
      %v6931 = vadd.f32 0.0, %v6930
      %6932 = vmatmul.f32.gmra.mxu0 %v6908
      %v6933 = vpop.f32.mrf.mxu0
      %v6934 = vadd.f32 0.0, %v6933
      %6935 = vmatmul.f32.gmra.mxu0 %v6911
      %v6936 = vpop.f32.mrf.mxu0
      %v6937 = vadd.f32 0.0, %v6936
      %6938 = vdwg.mxu0
      %v6939 = vadd.f32 %v6870, %v6931
      %v6940 = vadd.f32 %v6871, %v6934
      %v6941 = vadd.f32 %v6872, %v6937
      %vm6942 = vcmask 1044480
      %v6943 = vrot.slane %v6401, 3
      %v6944 = vrot.slane %v6402, 3
      %v6945 = vsel %vm6942, %v6943, %v6944
      %v6948 = vsel %vm6542, %v6944, 0.0
      %6949 = vset.pattern.permute.xlu0 8
      %6950 = vperm.xlu0 %6949, %v6412
      %v6951 = vpop.permute.xlu0 %6950
      %6953 = vset.pattern.permute.xlu0 8
      %6954 = vperm.xlu0 %6953, %v6413
      %v6955 = vpop.permute.xlu0 %6954
      %6957 = vset.pattern.permute.xlu0 8
      %6958 = vperm.xlu0 %6957, %v6414
      %v6959 = vpop.permute.xlu0 %6958
      %v6961 = vmul.f32 %v6945, %v6951
      %v6962 = vmul.f32 %v6948, %v6955
      %v6963 = vmul.f32 %v6959, 0.0
      %s6964 = scalar_lea.vmem %s8, 512
      %v6965 = vld [vmem:[%s6964] sm:$0xff]
      %v6966 = vld [vmem:[%s6964 + $0x8] sm:$0xff]
      %v6967 = vld [vmem:[%s6964 + $0x10] sm:$0xff]
      %v6968 = vld [vmem:[%s6964 + $0x18] sm:$0xff]
      %v6969 = vld [vmem:[%s6964 + $0x20] sm:$0xff]
      %v6970 = vld [vmem:[%s6964 + $0x28] sm:$0xff]
      %v6971 = vld [vmem:[%s6964 + $0x30] sm:$0xff]
      %v6972 = vld [vmem:[%s6964 + $0x38] sm:$0xff]
      %v6974 = vsel %vm6377, %v6961, 0
      %v6977 = vsel %vm6377, %v6962, 0
      %v6980 = vsel %vm6377, %v6963, 0
      %6982 = vmatpush.msra.mxu0 0.0
      %6983 = vmatpush.msra.mxu0 0.0
      %6984 = vmatpush.msra.mxu0 0.0
      %6985 = vmatpush.msra.mxu0 0.0
      %6986 = vmatpush.msra.mxu0 0.0
      %6987 = vmatpush.msra.mxu0 0.0
      %6988 = vmatpush.msra.mxu0 0.0
      %6989 = vmatpush.msra.mxu0 0.0
      %6990 = vmatpush.msra.mxu0 %v6972
      %6991 = vmatpush.msra.mxu0 %v6971
      %6992 = vmatpush.msra.mxu0 %v6970
      %6993 = vmatpush.msra.mxu0 %v6969
      %6994 = vmatpush.msra.mxu0 %v6968
      %6995 = vmatpush.msra.mxu0 %v6967
      %6996 = vmatpush.msra.mxu0 %v6966
      %6997 = vmatpush.msra.mxu0 %v6965
      %6998 = vmatmul.f32.gmra.mxu0 %v6974
      %v6999 = vpop.f32.mrf.mxu0
      %v7000 = vadd.f32 0.0, %v6999
      %7001 = vmatmul.f32.gmra.mxu0 %v6977
      %v7002 = vpop.f32.mrf.mxu0
      %v7003 = vadd.f32 0.0, %v7002
      %7004 = vmatmul.f32.gmra.mxu0 %v6980
      %v7005 = vpop.f32.mrf.mxu0
      %v7006 = vadd.f32 0.0, %v7005
      %7007 = vdwg.mxu0
      %v7008 = vadd.f32 %v6939, %v7000
      %v7009 = vadd.f32 %v6940, %v7003
      %v7010 = vadd.f32 %v6941, %v7006
      %v7011 = vld [vmem:[%s9] sm:$0x1]
      %v7013 = vperm.slane %v7011, 0
      %v7015 = vadd.f32 %v7008, %v7013
      %v7016 = vadd.f32 %v7009, %v7013
      %v7017 = vadd.f32 %v7010, %v7013
      %v7018 = vmax.f32 %v7015, 0.0
      %v7019 = vmax.f32 %v7016, 0.0
      %v7020 = vmax.f32 %v7017, 0.0
      %7021 = vst [vmem:[#allocation6] sm:$0xff] 0.0
      %7022 = vst [vmem:[#allocation6 + $0x8] sm:$0x1f] 0.0
      %7023 = vst [vmem:[#allocation6 + $0x17] sm:$0x3] 0.0
      %7024 = vst [vmem:[#allocation6 + $0x23] sm:$0xff] 0.0
      %7025 = vst [vmem:[#allocation6 + $0x2b] sm:$0x1f] 0.0
      %7026 = vst [vmem:[#allocation6 + $0xd] sm:$0xff] %v7018
      %7027 = vst [vmem:[#allocation6 + $0x15] sm:$0x3] %v7019
      %7028 = vst [vmem:[#allocation6 + $0x17] sm:$0xfc] %v7019
      %7029 = vst [vmem:[#allocation6 + $0x1f] sm:$0xf] %v7020
      %v7030 = vld [vmem:[#allocation6] sm:$0xff]
      %v7031 = vld [vmem:[#allocation6 + $0x8] sm:$0xff]
      %v7032 = vld [vmem:[#allocation6 + $0x10] sm:$0xff]
      %v7033 = vld [vmem:[#allocation6 + $0x18] sm:$0xff]
      %v7034 = vld [vmem:[#allocation6 + $0x20] sm:$0xff]
      %v7035 = vld [vmem:[#allocation6 + $0x28] sm:$0xff]
      %v7036 = vrot.slane %v7030, 1
      %v7037 = vrot.slane %v7031, 1
      %v7038 = vrot.slane %v7032, 1
      %v7039 = vrot.slane %v7033, 1
      %v7040 = vrot.slane %v7034, 1
      %v7041 = vrot.slane %v7035, 1
      %v7042 = vsel %vm1426, %v7040, %v7041
      %v7043 = vsel %vm1426, %v7039, %v7040
      %v7044 = vsel %vm1426, %v7038, %v7039
      %v7045 = vsel %vm1426, %v7037, %v7038
      %v7046 = vsel %vm1426, %v7036, %v7037
      %v7047 = vsel %vm1426, %v7041, %v7036
      %v7048 = vmax.f32 %v7030, %v7046
      %v7049 = vmax.f32 %v7031, %v7045
      %v7050 = vmax.f32 %v7032, %v7044
      %v7051 = vmax.f32 %v7033, %v7043
      %v7052 = vmax.f32 %v7034, %v7042
      %v7053 = vmax.f32 %v7035, %v7047
      %v7054 = vrot.slane %v7048, 4
      %v7055 = vrot.slane %v7049, 4
      %v7056 = vrot.slane %v7050, 4
      %v7057 = vrot.slane %v7051, 4
      %v7058 = vrot.slane %v7052, 4
      %v7059 = vrot.slane %v7053, 4
      %v7060 = vsel %vm5018, %v7058, %v7059
      %v7061 = vsel %vm5018, %v7057, %v7058
      %v7062 = vsel %vm5018, %v7056, %v7057
      %v7063 = vsel %vm5018, %v7055, %v7056
      %v7064 = vsel %vm5018, %v7054, %v7055
      %v7065 = vsel %vm5018, %v7059, %v7054
      %v7066 = vmax.f32 %v7048, %v7063
      %v7067 = vmax.f32 %v7049, %v7062
      %v7068 = vmax.f32 %v7050, %v7061
      %v7069 = vmax.f32 %v7051, %v7060
      %v7070 = vmax.f32 %v7052, %v7065
      %v7071 = vmax.f32 %v7053, %v7064
      %7072 = vst [vmem:[#allocation6] sm:$0xff] %v7066
      %7073 = vst [vmem:[#allocation6 + $0x8] sm:$0xff] %v7067
      %7074 = vst [vmem:[#allocation6 + $0x10] sm:$0xff] %v7068
      %7075 = vst [vmem:[#allocation6 + $0x18] sm:$0xff] %v7069
      %7076 = vst [vmem:[#allocation6 + $0x20] sm:$0xff] %v7070
      %7077 = vst [vmem:[#allocation6 + $0x28] sm:$0xff] %v7071
      %v7078 = vld [vmem:[#allocation6] ss:$2 sm:$0x3f]
      %7079 = vst [vmem:[#allocation7] sm:$0x3f] %v7078
      %s7080 = scalar_lea.vmem [#allocation6], 24
      %v7081 = vld [vmem:[%s7080] ss:$2 sm:$0x3f]
      %7082 = vst [vmem:[#allocation7 + $0x6] sm:$0x3f] %v7081
      %v7083 = vld [vmem:[#allocation7] sm:$0xff]
      %v7084 = vld [vmem:[#allocation7 + $0x8] sm:$0xf]
      %v7085 = vld [vmem:[%s10] sm:$0xff]
      %v7086 = vld [vmem:[%s10 + $0x8] sm:$0xf]
      %v7087 = vmul.f32 %v7083, %v7085
      %v7088 = vmul.f32 %v7084, %v7086
      %7089 = vadd.xlane.f32.xlu0 %v7087
      %v7090 = vpop.xlane.xlu0 %7089
      %vm7091 = vcmask 1043456
      %v7092 = vsel %vm7091, %v7088, 0.0
      %7093 = vadd.xlane.f32.xlu0 %v7092
      %v7094 = vpop.xlane.xlu0 %7093
      %v7095 = vsel %vm7091, %v7094, 0.0
      %v7096 = vadd.f32 %v7090, %v7095
      %v7097 = vrot.slane %v7096, 4
      %v7098 = vadd.f32 %v7096, %v7097
      %v7099 = vrot.slane %v7098, 2
      %v7100 = vadd.f32 %v7098, %v7099
      %v7101 = vrot.slane %v7100, 1
      %v7102 = vadd.f32 %v7100, %v7101
      %v7103 = vld [vmem:[#allocation8] sm:$0x1]
      %v7104 = vadd.f32 %v7102, %v7103
      %7106 = vset.pattern.permute.xlu0 0
      %7107 = vperm.xlu0 %7106, %v7104
      %v7108 = vpop.permute.xlu0 %7107
      %v7110 = vperm.slane %v7108, 0
      %7111 = vst [vmem:[%s413] sm:$0x1] %v7110
      %p7112 = scmp.lt.s32.totalorder %s25, 1
      %s7113 = scalar_select %p7112, %s25, 1
      %s7114 = scalar_lea.vmem %s12, %s7113
      // Predicated region
      $region69: #{cnn_landmark_forward.1} parent=67 // pred_check
        %p7115 = pneg %p300
      $region70: #{cnn_landmark_forward.1} parent=67 // pred_check_branch
        %7117 = sbr.rel (%p7115) target = $region72
      $region71: #{cnn_landmark_forward.1} parent=67 // pred_region
        _
      $region72: #{cnn_landmark_forward.1} parent=67 // pred_fallthru
        _
    $region68: #{cnn_landmark_forward.1} parent=5 // pred_fallthru
      _
    %p7118 = scmp.le.s32.totalorder 2, %s20
    // Predicated region
    $region73: #{cnn_landmark_forward.1} parent=5 // pred_check
      %p7119 = pneg %p7118
    $region74: #{cnn_landmark_forward.1} parent=5 // pred_check_branch
      %7121 = sbr.rel (%p7119) target = $region76
    $region75: #{cnn_landmark_forward.1} parent=5 // pred_region
      %s7122 = ssub.s32 %s20, 2
      // Predicated region
      $region77: #{cnn_landmark_forward.1} parent=75 // pred_check
        %p7123 = pneg %p306
      $region78: #{cnn_landmark_forward.1} parent=75 // pred_check_branch
        %7125 = sbr.rel (%p7123) target = $region80
      $region79: #{cnn_landmark_forward.1} parent=75 // pred_region
        %p7126 = scmp.lt.s32.totalorder %s26, 1
        %s7127 = scalar_select %p7126, %s26, 1
        %s7128 = scalar_lea.vmem %s12, %s7127
      $region80: #{cnn_landmark_forward.1} parent=75 // pred_fallthru
        _
    $region76: #{cnn_landmark_forward.1} parent=5 // pred_fallthru
      _
  $region6: #{cnn_landmark_forward.1} parent=0 // loop_footer
    %s24 = sadd.s32 1, %s20
  $region7: #{cnn_landmark_forward.1} parent=0 // loop_footer_branch
    %19 = sbr.rel target = $region3
  $region8: #{cnn_landmark_forward.1} parent=0 // loop_exit
    _

</llo_original>
